<compile_context>
chip_gen: v7x
topology: tpu7x:2x2x1
jax: 0.10.0
libtpu: 0.0.40
codegen_flags: <defaults>
</compile_context>

<pallas_src>
import functools
import math

import jax
import jax.numpy as jnp
from jax.experimental import pallas as pl
from jax.experimental.pallas import tpu as pltpu

N_HEADS = 4
LN_EPS = 1e-5


def _round_up(x, m):
    return ((x + m - 1) // m) * m


def _pad2(a, rows, cols):
    """Zero-pad a 2-D array up to (rows, cols); no-op when already aligned."""
    r, c = a.shape
    if r == rows and c == cols:
        return a
    return jnp.zeros((rows, cols), a.dtype).at[:r, :c].set(a)


# ---------------------------------------------------------------------------
# Fused kernel: out = [LayerNorm](x) @ w + bias [+ residual]
#   bf16 operands on the MXU, f32 accumulation, epilogue fused on last k-step.
# ---------------------------------------------------------------------------
def _fused_linear_kernel(*refs, has_ln, has_residual, eps):
    it = iter(refs)
    x_ref = next(it)
    w_ref = next(it)
    b_ref = next(it)
    g_ref = next(it) if has_ln else None
    be_ref = next(it) if has_ln else None
    r_ref = next(it) if has_residual else None
    o_ref = next(it)
    acc_ref = next(it)

    @pl.when(pl.program_id(2) == 0)
    def _():
        acc_ref[...] = jnp.zeros_like(acc_ref)

    if has_ln:
        # LayerNorm over the (full-extent) K dim in f32, then cast to bf16.
        x = x_ref[...].astype(jnp.float32)
        mean = jnp.mean(x, axis=-1, keepdims=True)
        xc = x - mean
        var = jnp.mean(xc * xc, axis=-1, keepdims=True)
        x = (xc * jax.lax.rsqrt(var + eps)) * g_ref[...] + be_ref[...]
        x = x.astype(jnp.bfloat16)
    else:
        x = x_ref[...]

    acc_ref[...] += jnp.dot(x, w_ref[...], preferred_element_type=jnp.float32)

    @pl.when(pl.program_id(2) == pl.num_programs(2) - 1)
    def _():
        y = acc_ref[...] + b_ref[...]
        if has_residual:
            y = y + r_ref[...]
        o_ref[...] = y.astype(o_ref.dtype)


def pallas_linear(x, w_t, b, residual=None, ln=None, tm=256, tn=512, tk=512):
    """y = [LN(x)] @ w_t + b [+ residual].

    x: (M, K); w_t: (K, N) (already transposed from the torch layout); b: (N,).
    ln: optional (gamma, beta); fuses the LayerNorm over K into the kernel
        (requires K to fit in a single k-block, which holds for K <= tk).
    """
    M, K = x.shape
    K2, N = w_t.shape
    assert K == K2
    has_ln = ln is not None
    has_residual = residual is not None
    if has_ln:
        assert K <= tk, "fused LayerNorm needs the full K dim in one block"

    # Full-extent blocks for small dims (exempt from the (8,128) rule -> no
    # padding); 128-aligned tiles otherwise.
    tm = min(tm, _round_up(M, 8))
    tk = K if K <= tk else tk
    tn = N if N <= tn else tn
    Mp, Kp, Np = _round_up(M, tm), _round_up(K, tk), _round_up(N, tn)

    x_in = x.astype(jnp.float32) if has_ln else x.astype(jnp.bfloat16)
    x_p = _pad2(x_in, Mp, Kp)
    w_p = _pad2(w_t.astype(jnp.bfloat16), Kp, Np)
    b_p = _pad2(b.reshape(1, N).astype(jnp.float32), 1, Np)

    in_specs = [
        pl.BlockSpec((tm, tk), lambda i, j, k: (i, k)),
        pl.BlockSpec((tk, tn), lambda i, j, k: (k, j)),
        pl.BlockSpec((1, tn), lambda i, j, k: (0, j)),
    ]
    args = [x_p, w_p, b_p]
    if has_ln:
        g, be = ln
        in_specs += [pl.BlockSpec((1, tk), lambda i, j, k: (0, k)),
                     pl.BlockSpec((1, tk), lambda i, j, k: (0, k))]
        args += [g.reshape(1, K).astype(jnp.float32),
                 be.reshape(1, K).astype(jnp.float32)]
    if has_residual:
        in_specs.append(pl.BlockSpec((tm, tn), lambda i, j, k: (i, j)))
        args.append(_pad2(residual.astype(jnp.float32), Mp, Np))

    out = pl.pallas_call(
        functools.partial(_fused_linear_kernel, has_ln=has_ln,
                          has_residual=has_residual, eps=LN_EPS),
        out_shape=jax.ShapeDtypeStruct((Mp, Np), jnp.float32),
        grid=(Mp // tm, Np // tn, Kp // tk),
        in_specs=in_specs,
        out_specs=pl.BlockSpec((tm, tn), lambda i, j, k: (i, j)),
        scratch_shapes=[pltpu.VMEM((tm, tn), jnp.float32)],
        compiler_params=pltpu.CompilerParams(
            dimension_semantics=("parallel", "parallel", "arbitrary")),
    )(*args)
    if Mp != M or Np != N:
        out = out[:M, :N]
    return out


# ---------------------------------------------------------------------------
# Fused flash-attention kernel: softmax(q k^T / sqrt(d)) v, online softmax
# ---------------------------------------------------------------------------
def _flash_kernel(q_ref, k_ref, v_ref, o_ref, m_sc, l_sc, acc_sc, *, scale):
    ki = pl.program_id(2)

    @pl.when(ki == 0)
    def _():
        m_sc[...] = jnp.full(m_sc.shape, -jnp.inf, m_sc.dtype)
        l_sc[...] = jnp.zeros(l_sc.shape, l_sc.dtype)
        acc_sc[...] = jnp.zeros(acc_sc.shape, acc_sc.dtype)

    q = q_ref[0]                                      # (tq, hd) bf16
    k = k_ref[0]                                      # (tk, hd) bf16
    s = jax.lax.dot_general(
        q, k, (((1,), (1,)), ((), ())),
        preferred_element_type=jnp.float32) * scale   # (tq, tk) f32

    m_prev = m_sc[...]
    m_new = jnp.maximum(m_prev, jnp.max(s, axis=-1, keepdims=True))
    alpha = jnp.exp(m_prev - m_new)
    p = jnp.exp(s - m_new)
    l_sc[...] = alpha * l_sc[...] + jnp.sum(p, axis=-1, keepdims=True)
    acc_sc[...] = alpha * acc_sc[...] + jnp.dot(
        p.astype(v_ref.dtype), v_ref[0], preferred_element_type=jnp.float32)
    m_sc[...] = m_new

    @pl.when(ki == pl.num_programs(2) - 1)
    def _():
        o_ref[0] = (acc_sc[...] / l_sc[...]).astype(o_ref.dtype)


def pallas_flash_attention(q, k, v, block_q=128, block_k=128):
    """q, k, v: (B*heads, L, head_dim) bf16 -> (B*heads, L, head_dim) bf16."""
    BH, L, hd = q.shape
    block_q = min(block_q, L)
    block_k = min(block_k, L)
    assert L % block_q == 0 and L % block_k == 0
    assert block_q == L or block_q % 8 == 0
    scale = 1.0 / math.sqrt(hd)

    return pl.pallas_call(
        functools.partial(_flash_kernel, scale=scale),
        out_shape=jax.ShapeDtypeStruct((BH, L, hd), q.dtype),
        grid=(BH, L // block_q, L // block_k),
        in_specs=[
            pl.BlockSpec((1, block_q, hd), lambda g, qi, ki: (g, qi, 0)),
            pl.BlockSpec((1, block_k, hd), lambda g, qi, ki: (g, ki, 0)),
            pl.BlockSpec((1, block_k, hd), lambda g, qi, ki: (g, ki, 0)),
        ],
        out_specs=pl.BlockSpec((1, block_q, hd), lambda g, qi, ki: (g, qi, 0)),
        scratch_shapes=[
            pltpu.VMEM((block_q, 1), jnp.float32),   # running max
            pltpu.VMEM((block_q, 1), jnp.float32),   # running denom
            pltpu.VMEM((block_q, hd), jnp.float32),  # running numerator
        ],
        compiler_params=pltpu.CompilerParams(
            dimension_semantics=("parallel", "parallel", "arbitrary")),
    )(q, k, v)


# ---------------------------------------------------------------------------
# SelfAttention forward (matches the PyTorch module; NCHW in / NCHW out)
# ---------------------------------------------------------------------------
def self_attention_forward(params, x):
    B, C, Hs, Ws = x.shape
    assert Hs == Ws and C % N_HEADS == 0
    size = Hs
    L = size * size
    H = N_HEADS
    hd = C // H

    # x.view(-1, C, L).swapaxes(1, 2) -> (B, L, C)
    xs = x.reshape(B, C, L).transpose(0, 2, 1).astype(jnp.float32)
    x2 = xs.reshape(B * L, C)

    # LayerNorm fused into the QKV projection (bias fused in the epilogue).
    qkv = pallas_linear(x2, params["in_w"].T, params["in_b"],
                        ln=(params["ln_g"], params["ln_b"]))      # (BL, 3C)

    # head split (layout plumbing kept in XLA; negligible next to attention)
    qkv = qkv.reshape(B, L, 3, H, hd).transpose(2, 0, 3, 1, 4)    # (3,B,H,L,hd)
    q = qkv[0].reshape(B * H, L, hd).astype(jnp.bfloat16)
    k = qkv[1].reshape(B * H, L, hd).astype(jnp.bfloat16)
    v = qkv[2].reshape(B * H, L, hd).astype(jnp.bfloat16)

    # fused QK^T -> online softmax -> PV
    ctx = pallas_flash_attention(q, k, v)                         # (BH, L, hd)
    ctx = ctx.reshape(B, H, L, hd).transpose(0, 2, 1, 3).reshape(B * L, C)

    # output projection with fused bias + residual (attention_value + x)
    attn = pallas_linear(ctx, params["out_w"].T, params["out_b"], residual=x2)

    # ff_self: [LayerNorm fused into FF1] -> GELU -> FF2 (+residual fused)
    h = pallas_linear(attn, params["ff_w1"].T, params["ff_b1"],
                      ln=(params["ff_ln_g"], params["ff_ln_b"]))
    # TODO(synk): fuse the exact (erf) GELU into the FF1 matmul epilogue once
    # erf lowering in Mosaic is guaranteed; kept as one XLA pointwise op.
    h = jax.nn.gelu(h, approximate=False)
    out = pallas_linear(h, params["ff_w2"].T, params["ff_b2"], residual=attn)

    # (B, L, C) -> swapaxes -> (B, C, size, size)
    return out.reshape(B, L, C).transpose(0, 2, 1).reshape(B, C, size, size)


# ---------------------------------------------------------------------------
# Pure-JAX reference (same bf16 operand casts at matmul entry as the kernels)
# ---------------------------------------------------------------------------
def reference_forward(params, x):
    B, C, Hs, Ws = x.shape
    size = Hs
    L = size * size
    H = N_HEADS
    hd = C // H

    xs = x.reshape(B, C, L).transpose(0, 2, 1).astype(jnp.float32)
    x2 = xs.reshape(B * L, C)

    def ln(z, g, b):
        m = jnp.mean(z, axis=-1, keepdims=True)
        zc = z - m
        var = jnp.mean(zc * zc, axis=-1, keepdims=True)
        return zc * jax.lax.rsqrt(var + LN_EPS) * g[None, :] + b[None, :]

    def lin(z, w, b):
        return jnp.dot(z.astype(jnp.bfloat16), w.T.astype(jnp.bfloat16),
                       preferred_element_type=jnp.float32) + b[None, :]

    x_ln = ln(x2, params["ln_g"], params["ln_b"])
    qkv = lin(x_ln, params["in_w"], params["in_b"])
    qkv = qkv.reshape(B, L, 3, H, hd).transpose(2, 0, 3, 1, 4)    # (3,B,H,L,hd)
    q = qkv[0].astype(jnp.bfloat16)
    k = qkv[1].astype(jnp.bfloat16)
    v = qkv[2].astype(jnp.bfloat16)
    s = jnp.einsum("bhqd,bhkd->bhqk", q, k,
                   preferred_element_type=jnp.float32) * (1.0 / math.sqrt(hd))
    p = jax.nn.softmax(s, axis=-1)
    ctx = jnp.einsum("bhqk,bhkd->bhqd", p.astype(jnp.bfloat16), v,
                     preferred_element_type=jnp.float32)
    ctx = ctx.astype(jnp.bfloat16).transpose(0, 2, 1, 3).reshape(B * L, C)
    attn = lin(ctx, params["out_w"], params["out_b"]) + x2
    h = ln(attn, params["ff_ln_g"], params["ff_ln_b"])
    h = lin(h, params["ff_w1"], params["ff_b1"])
    h = jax.nn.gelu(h, approximate=False)
    out = lin(h, params["ff_w2"], params["ff_b2"]) + attn
    return out.reshape(B, L, C).transpose(0, 2, 1).reshape(B, C, size, size)


# ---------------------------------------------------------------------------
# Deterministic synthetic parameters (torch layouts / shapes)
# ---------------------------------------------------------------------------
def init_params(key, channels):
    C = channels
    ks = jax.random.split(key, 8)

    def lin_w(k, cout, cin):
        return jax.random.normal(k, (cout, cin), jnp.float32) / math.sqrt(cin)

    return dict(
        ln_g=jnp.ones((C,), jnp.float32), ln_b=jnp.zeros((C,), jnp.float32),
        in_w=lin_w(ks[0], 3 * C, C),
        in_b=0.1 * jax.random.normal(ks[1], (3 * C,), jnp.float32),
        out_w=lin_w(ks[2], C, C),
        out_b=0.1 * jax.random.normal(ks[3], (C,), jnp.float32),
        ff_ln_g=jnp.ones((C,), jnp.float32),
        ff_ln_b=jnp.zeros((C,), jnp.float32),
        ff_w1=lin_w(ks[4], C, C),
        ff_b1=0.1 * jax.random.normal(ks[5], (C,), jnp.float32),
        ff_w2=lin_w(ks[6], C, C),
        ff_b2=0.1 * jax.random.normal(ks[7], (C,), jnp.float32),
    )


# ---------------------------------------------------------------------------
if __name__ == "__main__":
    key = jax.random.PRNGKey(0)
    k_par, k_x = jax.random.split(key)

    B, C, size = 2, 64, 16                     # 4 heads, head_dim=16, L=256
    params = init_params(k_par, C)
    x = jax.random.normal(k_x, (B, C, size, size), jnp.float32)   # NCHW

    fwd = jax.jit(self_attention_forward)
    out = jax.block_until_ready(fwd(params, x))
    assert out.shape == (B, C, size, size) and out.dtype == jnp.float32
    assert bool(jnp.all(jnp.isfinite(out)))

    ref = jax.block_until_ready(jax.jit(reference_forward)(params, x))
    max_err = float(jnp.max(jnp.abs(out - ref)))
    assert max_err < 5e-2, f"mismatch vs reference: max abs err {max_err}"

    print("KERNEL_OK")
</pallas_src>

<mosaic_0001>
module attributes {stable_mosaic.version = 11 : i64} {
  func.func @_fused_linear_kernel(%arg0: i32, %arg1: i32, %arg2: i32, %arg3: memref<256x64xf32, #tpu.memory_space<vmem>>, %arg4: memref<64x192xbf16, #tpu.memory_space<vmem>>, %arg5: memref<1x192xf32, #tpu.memory_space<vmem>>, %arg6: memref<1x64xf32, #tpu.memory_space<vmem>>, %arg7: memref<1x64xf32, #tpu.memory_space<vmem>>, %arg8: memref<256x192xf32, #tpu.memory_space<vmem>>, %arg9: memref<256x192xf32, #tpu.memory_space<vmem>>) attributes {dimension_semantics = [#tpu.dimension_semantics<parallel>, #tpu.dimension_semantics<parallel>, #tpu.dimension_semantics<arbitrary>], iteration_bounds = array<i64: 2, 1, 1>, scalar_prefetch = 0 : i64, scratch_operands = 1 : i64, tpu.core_type = #tpu.core_type<tc>, window_params = [{transform_indices = @transform_0, window_bounds = array<i64: 256, 64>}, {transform_indices = @transform_1, window_bounds = array<i64: 64, 192>}, {transform_indices = @transform_2, window_bounds = array<i64: 1, 192>}, {transform_indices = @transform_3, window_bounds = array<i64: 1, 64>}, {transform_indices = @transform_4, window_bounds = array<i64: 1, 64>}, {transform_indices = @transform_5, window_bounds = array<i64: 256, 192>}]} {
    %c0_i32 = arith.constant 0 : i32
    %0 = arith.cmpi eq, %arg2, %c0_i32 : i32
    %1 = arith.extui %0 : i1 to i32
    %c0_i32_0 = arith.constant 0 : i32
    %2 = arith.cmpi ne, %1, %c0_i32_0 : i32
    scf.if %2 {
      %cst_19 = arith.constant 0.000000e+00 : f32
      %35 = vector.broadcast %cst_19 : f32 to vector<256x192xf32>
      %c0_20 = arith.constant 0 : index
      %c0_21 = arith.constant 0 : index
      %36 = vector.load %arg9[%c0_20, %c0_21] : memref<256x192xf32, #tpu.memory_space<vmem>>, vector<256x192xf32>
      tpu.vector_store %arg9[%c0_20, %c0_21], %35 {strides = array<i32>} : memref<256x192xf32, #tpu.memory_space<vmem>>, vector<256x192xf32>,
    } else {
    }
    %c0 = arith.constant 0 : index
    %c0_1 = arith.constant 0 : index
    %3 = vector.load %arg3[%c0, %c0_1] : memref<256x64xf32, #tpu.memory_space<vmem>>, vector<256x64xf32>
    %cst = arith.constant dense<0.000000e+00> : vector<256xf32>
    %4 = vector.multi_reduction <add>, %3, %cst [1] : vector<256x64xf32> to vector<256xf32>
    %5 = vector.shape_cast %4 : vector<256xf32> to vector<256x1xf32>
    %cst_2 = arith.constant 6.400000e+01 : f32
    %6 = vector.broadcast %cst_2 : f32 to vector<256x1xf32>
    %7 = arith.divf %5, %6 : vector<256x1xf32>
    %8 = vector.broadcast %7 : vector<256x1xf32> to vector<256x64xf32>
    %9 = arith.subf %3, %8 : vector<256x64xf32>
    %10 = arith.mulf %9, %9 : vector<256x64xf32>
    %cst_3 = arith.constant dense<0.000000e+00> : vector<256xf32>
    %11 = vector.multi_reduction <add>, %10, %cst_3 [1] : vector<256x64xf32> to vector<256xf32>
    %12 = vector.shape_cast %11 : vector<256xf32> to vector<256x1xf32>
    %cst_4 = arith.constant 6.400000e+01 : f32
    %13 = vector.broadcast %cst_4 : f32 to vector<256x1xf32>
    %14 = arith.divf %12, %13 : vector<256x1xf32>
    %cst_5 = arith.constant 9.99999974E-6 : f32
    %15 = vector.broadcast %cst_5 : f32 to vector<256x1xf32>
    %16 = arith.addf %14, %15 : vector<256x1xf32>
    %17 = math.rsqrt %16 : vector<256x1xf32>
    %18 = vector.broadcast %17 : vector<256x1xf32> to vector<256x64xf32>
    %19 = arith.mulf %9, %18 : vector<256x64xf32>
    %c0_6 = arith.constant 0 : index
    %c0_7 = arith.constant 0 : index
    %20 = vector.load %arg6[%c0_6, %c0_7] : memref<1x64xf32, #tpu.memory_space<vmem>>, vector<1x64xf32>
    %21 = vector.broadcast %20 : vector<1x64xf32> to vector<256x64xf32>
    %22 = arith.mulf %19, %21 : vector<256x64xf32>
    %c0_8 = arith.constant 0 : index
    %c0_9 = arith.constant 0 : index
    %23 = vector.load %arg7[%c0_8, %c0_9] : memref<1x64xf32, #tpu.memory_space<vmem>>, vector<1x64xf32>
    %24 = vector.broadcast %23 : vector<1x64xf32> to vector<256x64xf32>
    %25 = arith.addf %22, %24 : vector<256x64xf32>
    %26 = arith.truncf %25 : vector<256x64xf32> to vector<256x64xbf16>
    %c0_10 = arith.constant 0 : index
    %c0_11 = arith.constant 0 : index
    %27 = vector.load %arg9[%c0_10, %c0_11] : memref<256x192xf32, #tpu.memory_space<vmem>>, vector<256x192xf32>
    %c0_12 = arith.constant 0 : index
    %c0_13 = arith.constant 0 : index
    %28 = vector.load %arg4[%c0_12, %c0_13] : memref<64x192xbf16, #tpu.memory_space<vmem>>, vector<64x192xbf16>
    %cst_14 = arith.constant dense<0.000000e+00> : vector<256x192xf32>
    %29 = tpu.matmul %26, %28, %cst_14 {dimension_numbers = #tpu.dot_dimension_numbers<[1], [0], [0], [1], [0, 0, 1, 1], [], []>} : vector<256x64xbf16>, vector<64x192xbf16>, vector<256x192xf32> -> vector<256x192xf32>
    %30 = arith.addf %27, %29 : vector<256x192xf32>
    %c0_15 = arith.constant 0 : index
    %c0_16 = arith.constant 0 : index
    %31 = vector.load %arg9[%c0_15, %c0_16] : memref<256x192xf32, #tpu.memory_space<vmem>>, vector<256x192xf32>
    tpu.vector_store %arg9[%c0_15, %c0_16], %30 {strides = array<i32>} : memref<256x192xf32, #tpu.memory_space<vmem>>, vector<256x192xf32>,
    %c0_i32_17 = arith.constant 0 : i32
    %32 = arith.cmpi eq, %arg2, %c0_i32_17 : i32
    %33 = arith.extui %32 : i1 to i32
    %c0_i32_18 = arith.constant 0 : i32
    %34 = arith.cmpi ne, %33, %c0_i32_18 : i32
    scf.if %34 {
      %c0_19 = arith.constant 0 : index
      %c0_20 = arith.constant 0 : index
      %35 = vector.load %arg9[%c0_19, %c0_20] : memref<256x192xf32, #tpu.memory_space<vmem>>, vector<256x192xf32>
      %c0_21 = arith.constant 0 : index
      %c0_22 = arith.constant 0 : index
      %36 = vector.load %arg5[%c0_21, %c0_22] : memref<1x192xf32, #tpu.memory_space<vmem>>, vector<1x192xf32>
      %37 = vector.broadcast %36 : vector<1x192xf32> to vector<256x192xf32>
      %38 = arith.addf %35, %37 : vector<256x192xf32>
      %c0_23 = arith.constant 0 : index
      %c0_24 = arith.constant 0 : index
      %39 = vector.load %arg8[%c0_23, %c0_24] : memref<256x192xf32, #tpu.memory_space<vmem>>, vector<256x192xf32>
      tpu.vector_store %arg8[%c0_23, %c0_24], %38 {strides = array<i32>} : memref<256x192xf32, #tpu.memory_space<vmem>>, vector<256x192xf32>,
    } else {
    }
    return
  }
  func.func @transform_0(%arg0: i32, %arg1: i32, %arg2: i32) -> (i32, i32) {
    %c0_i32 = arith.constant 0 : i32
    return %arg0, %arg2 : i32, i32
  }
  func.func @transform_1(%arg0: i32, %arg1: i32, %arg2: i32) -> (i32, i32) {
    %c0_i32 = arith.constant 0 : i32
    return %arg2, %arg1 : i32, i32
  }
  func.func @transform_2(%arg0: i32, %arg1: i32, %arg2: i32) -> (i32, i32) {
    %c0_i32 = arith.constant 0 : i32
    %c0_i32_0 = arith.constant 0 : i32
    return %c0_i32, %arg1 : i32, i32
  }
  func.func @transform_3(%arg0: i32, %arg1: i32, %arg2: i32) -> (i32, i32) {
    %c0_i32 = arith.constant 0 : i32
    %c0_i32_0 = arith.constant 0 : i32
    return %c0_i32, %arg2 : i32, i32
  }
  func.func @transform_4(%arg0: i32, %arg1: i32, %arg2: i32) -> (i32, i32) {
    %c0_i32 = arith.constant 0 : i32
    %c0_i32_0 = arith.constant 0 : i32
    return %c0_i32, %arg2 : i32, i32
  }
  func.func @transform_5(%arg0: i32, %arg1: i32, %arg2: i32) -> (i32, i32) {
    %c0_i32 = arith.constant 0 : i32
    return %arg0, %arg1 : i32, i32
  }
}

module attributes {stable_mosaic.version = 11 : i64} {
  func.func @_flash_kernel(%arg0: i32, %arg1: i32, %arg2: i32, %arg3: memref<1x128x16xbf16, #tpu.memory_space<vmem>>, %arg4: memref<1x128x16xbf16, #tpu.memory_space<vmem>>, %arg5: memref<1x128x16xbf16, #tpu.memory_space<vmem>>, %arg6: memref<1x128x16xbf16, #tpu.memory_space<vmem>>, %arg7: memref<128x1xf32, #tpu.memory_space<vmem>>, %arg8: memref<128x1xf32, #tpu.memory_space<vmem>>, %arg9: memref<128x16xf32, #tpu.memory_space<vmem>>) attributes {dimension_semantics = [#tpu.dimension_semantics<parallel>, #tpu.dimension_semantics<parallel>, #tpu.dimension_semantics<arbitrary>], iteration_bounds = array<i64: 8, 2, 2>, scalar_prefetch = 0 : i64, scratch_operands = 3 : i64, tpu.core_type = #tpu.core_type<tc>, window_params = [{transform_indices = @transform_0, window_bounds = array<i64: 1, 128, 16>}, {transform_indices = @transform_1, window_bounds = array<i64: 1, 128, 16>}, {transform_indices = @transform_2, window_bounds = array<i64: 1, 128, 16>}, {transform_indices = @transform_3, window_bounds = array<i64: 1, 128, 16>}]} {
    %c0_i32 = arith.constant 0 : i32
    %0 = arith.cmpi eq, %arg2, %c0_i32 : i32
    %1 = arith.extui %0 : i1 to i32
    %c0_i32_0 = arith.constant 0 : i32
    %2 = arith.cmpi ne, %1, %c0_i32_0 : i32
    scf.if %2 {
      %cst_26 = arith.constant 0xFF800000 : f32
      %38 = vector.broadcast %cst_26 : f32 to vector<128x1xf32>
      %c0_27 = arith.constant 0 : index
      %c0_28 = arith.constant 0 : index
      %39 = vector.load %arg7[%c0_27, %c0_28] : memref<128x1xf32, #tpu.memory_space<vmem>>, vector<128x1xf32>
      tpu.vector_store %arg7[%c0_27, %c0_28], %38 {strides = array<i32>} : memref<128x1xf32, #tpu.memory_space<vmem>>, vector<128x1xf32>,
      %cst_29 = arith.constant 0.000000e+00 : f32
      %40 = vector.broadcast %cst_29 : f32 to vector<128x1xf32>
      %c0_30 = arith.constant 0 : index
      %c0_31 = arith.constant 0 : index
      %41 = vector.load %arg8[%c0_30, %c0_31] : memref<128x1xf32, #tpu.memory_space<vmem>>, vector<128x1xf32>
      tpu.vector_store %arg8[%c0_30, %c0_31], %40 {strides = array<i32>} : memref<128x1xf32, #tpu.memory_space<vmem>>, vector<128x1xf32>,
      %cst_32 = arith.constant 0.000000e+00 : f32
      %42 = vector.broadcast %cst_32 : f32 to vector<128x16xf32>
      %c0_33 = arith.constant 0 : index
      %c0_34 = arith.constant 0 : index
      %43 = vector.load %arg9[%c0_33, %c0_34] : memref<128x16xf32, #tpu.memory_space<vmem>>, vector<128x16xf32>
      tpu.vector_store %arg9[%c0_33, %c0_34], %42 {strides = array<i32>} : memref<128x16xf32, #tpu.memory_space<vmem>>, vector<128x16xf32>,
    } else {
    }
    %c0 = arith.constant 0 : index
    %c0_1 = arith.constant 0 : index
    %c0_2 = arith.constant 0 : index
    %3 = vector.load %arg3[%c0, %c0_1, %c0_2] : memref<1x128x16xbf16, #tpu.memory_space<vmem>>, vector<1x128x16xbf16>
    %4 = vector.shape_cast %3 : vector<1x128x16xbf16> to vector<128x16xbf16>
    %c0_3 = arith.constant 0 : index
    %c0_4 = arith.constant 0 : index
    %c0_5 = arith.constant 0 : index
    %5 = vector.load %arg4[%c0_3, %c0_4, %c0_5] : memref<1x128x16xbf16, #tpu.memory_space<vmem>>, vector<1x128x16xbf16>
    %6 = vector.shape_cast %5 : vector<1x128x16xbf16> to vector<128x16xbf16>
    %cst = arith.constant dense<0.000000e+00> : vector<128x128xf32>
    %7 = tpu.matmul %4, %6, %cst {dimension_numbers = #tpu.dot_dimension_numbers<[1], [1], [0], [0], [0, 0, 1, 0], [], []>} : vector<128x16xbf16>, vector<128x16xbf16>, vector<128x128xf32> -> vector<128x128xf32>
    %cst_6 = arith.constant 2.500000e-01 : f32
    %8 = vector.broadcast %cst_6 : f32 to vector<128x128xf32>
    %9 = arith.mulf %7, %8 : vector<128x128xf32>
    %c0_7 = arith.constant 0 : index
    %c0_8 = arith.constant 0 : index
    %10 = vector.load %arg7[%c0_7, %c0_8] : memref<128x1xf32, #tpu.memory_space<vmem>>, vector<128x1xf32>
    %cst_9 = arith.constant dense<0xFF800000> : vector<128xf32>
    %11 = vector.multi_reduction <maximumf>, %9, %cst_9 [1] : vector<128x128xf32> to vector<128xf32>
    %12 = vector.shape_cast %11 : vector<128xf32> to vector<128x1xf32>
    %13 = arith.maximumf %10, %12 : vector<128x1xf32>
    %14 = arith.subf %10, %13 : vector<128x1xf32>
    %15 = math.exp %14 : vector<128x1xf32>
    %16 = vector.broadcast %13 : vector<128x1xf32> to vector<128x128xf32>
    %17 = arith.subf %9, %16 : vector<128x128xf32>
    %18 = math.exp %17 : vector<128x128xf32>
    %c0_10 = arith.constant 0 : index
    %c0_11 = arith.constant 0 : index
    %19 = vector.load %arg8[%c0_10, %c0_11] : memref<128x1xf32, #tpu.memory_space<vmem>>, vector<128x1xf32>
    %20 = arith.mulf %15, %19 : vector<128x1xf32>
    %cst_12 = arith.constant dense<0.000000e+00> : vector<128xf32>
    %21 = vector.multi_reduction <add>, %18, %cst_12 [1] : vector<128x128xf32> to vector<128xf32>
    %22 = vector.shape_cast %21 : vector<128xf32> to vector<128x1xf32>
    %23 = arith.addf %20, %22 : vector<128x1xf32>
    %c0_13 = arith.constant 0 : index
    %c0_14 = arith.constant 0 : index
    %24 = vector.load %arg8[%c0_13, %c0_14] : memref<128x1xf32, #tpu.memory_space<vmem>>, vector<128x1xf32>
    tpu.vector_store %arg8[%c0_13, %c0_14], %23 {strides = array<i32>} : memref<128x1xf32, #tpu.memory_space<vmem>>, vector<128x1xf32>,
    %c0_15 = arith.constant 0 : index
    %c0_16 = arith.constant 0 : index
    %25 = vector.load %arg9[%c0_15, %c0_16] : memref<128x16xf32, #tpu.memory_space<vmem>>, vector<128x16xf32>
    %26 = vector.broadcast %15 : vector<128x1xf32> to vector<128x16xf32>
    %27 = arith.mulf %26, %25 : vector<128x16xf32>
    %28 = arith.truncf %18 : vector<128x128xf32> to vector<128x128xbf16>
    %c0_17 = arith.constant 0 : index
    %c0_18 = arith.constant 0 : index
    %c0_19 = arith.constant 0 : index
    %29 = vector.load %arg5[%c0_17, %c0_18, %c0_19] : memref<1x128x16xbf16, #tpu.memory_space<vmem>>, vector<1x128x16xbf16>
    %30 = vector.shape_cast %29 : vector<1x128x16xbf16> to vector<128x16xbf16>
    %cst_20 = arith.constant dense<0.000000e+00> : vector<128x16xf32>
    %31 = tpu.matmul %28, %30, %cst_20 {dimension_numbers = #tpu.dot_dimension_numbers<[1], [0], [0], [1], [0, 0, 1, 1], [], []>} : vector<128x128xbf16>, vector<128x16xbf16>, vector<128x16xf32> -> vector<128x16xf32>
    %32 = arith.addf %27, %31 : vector<128x16xf32>
    %c0_21 = arith.constant 0 : index
    %c0_22 = arith.constant 0 : index
    %33 = vector.load %arg9[%c0_21, %c0_22] : memref<128x16xf32, #tpu.memory_space<vmem>>, vector<128x16xf32>
    tpu.vector_store %arg9[%c0_21, %c0_22], %32 {strides = array<i32>} : memref<128x16xf32, #tpu.memory_space<vmem>>, vector<128x16xf32>,
    %c0_23 = arith.constant 0 : index
    %c0_24 = arith.constant 0 : index
    %34 = vector.load %arg7[%c0_23, %c0_24] : memref<128x1xf32, #tpu.memory_space<vmem>>, vector<128x1xf32>
    tpu.vector_store %arg7[%c0_23, %c0_24], %13 {strides = array<i32>} : memref<128x1xf32, #tpu.memory_space<vmem>>, vector<128x1xf32>,
    %c1_i32 = arith.constant 1 : i32
    %35 = arith.cmpi eq, %arg2, %c1_i32 : i32
    %36 = arith.extui %35 : i1 to i32
    %c0_i32_25 = arith.constant 0 : i32
    %37 = arith.cmpi ne, %36, %c0_i32_25 : i32
    scf.if %37 {
      %c0_26 = arith.constant 0 : index
      %c0_27 = arith.constant 0 : index
      %38 = vector.load %arg9[%c0_26, %c0_27] : memref<128x16xf32, #tpu.memory_space<vmem>>, vector<128x16xf32>
      %c0_28 = arith.constant 0 : index
      %c0_29 = arith.constant 0 : index
      %39 = vector.load %arg8[%c0_28, %c0_29] : memref<128x1xf32, #tpu.memory_space<vmem>>, vector<128x1xf32>
      %40 = vector.broadcast %39 : vector<128x1xf32> to vector<128x16xf32>
      %41 = arith.divf %38, %40 : vector<128x16xf32>
      %42 = arith.truncf %41 : vector<128x16xf32> to vector<128x16xbf16>
      %c0_30 = arith.constant 0 : index
      %c0_31 = arith.constant 0 : index
      %c0_32 = arith.constant 0 : index
      %43 = vector.load %arg6[%c0_30, %c0_31, %c0_32] : memref<1x128x16xbf16, #tpu.memory_space<vmem>>, vector<1x128x16xbf16>
      %44 = vector.shape_cast %43 : vector<1x128x16xbf16> to vector<128x16xbf16>
      %45 = vector.shape_cast %42 : vector<128x16xbf16> to vector<1x128x16xbf16>
      tpu.vector_store %arg6[%c0_30, %c0_31, %c0_32], %45 {strides = array<i32>} : memref<1x128x16xbf16, #tpu.memory_space<vmem>>, vector<1x128x16xbf16>,
    } else {
    }
    return
  }
  func.func @transform_0(%arg0: i32, %arg1: i32, %arg2: i32) -> (i32, i32, i32) {
    %c0_i32 = arith.constant 0 : i32
    %c0_i32_0 = arith.constant 0 : i32
    return %arg0, %arg1, %c0_i32 : i32, i32, i32
  }
  func.func @transform_1(%arg0: i32, %arg1: i32, %arg2: i32) -> (i32, i32, i32) {
    %c0_i32 = arith.constant 0 : i32
    %c0_i32_0 = arith.constant 0 : i32
    return %arg0, %arg2, %c0_i32 : i32, i32, i32
  }
  func.func @transform_2(%arg0: i32, %arg1: i32, %arg2: i32) -> (i32, i32, i32) {
    %c0_i32 = arith.constant 0 : i32
    %c0_i32_0 = arith.constant 0 : i32
    return %arg0, %arg2, %c0_i32 : i32, i32, i32
  }
  func.func @transform_3(%arg0: i32, %arg1: i32, %arg2: i32) -> (i32, i32, i32) {
    %c0_i32 = arith.constant 0 : i32
    %c0_i32_0 = arith.constant 0 : i32
    return %arg0, %arg1, %c0_i32 : i32, i32, i32
  }
}

module attributes {stable_mosaic.version = 11 : i64} {
  func.func @_fused_linear_kernel(%arg0: i32, %arg1: i32, %arg2: i32, %arg3: memref<256x64xbf16, #tpu.memory_space<vmem>>, %arg4: memref<64x64xbf16, #tpu.memory_space<vmem>>, %arg5: memref<1x64xf32, #tpu.memory_space<vmem>>, %arg6: memref<256x64xf32, #tpu.memory_space<vmem>>, %arg7: memref<256x64xf32, #tpu.memory_space<vmem>>, %arg8: memref<256x64xf32, #tpu.memory_space<vmem>>) attributes {dimension_semantics = [#tpu.dimension_semantics<parallel>, #tpu.dimension_semantics<parallel>, #tpu.dimension_semantics<arbitrary>], iteration_bounds = array<i64: 2, 1, 1>, scalar_prefetch = 0 : i64, scratch_operands = 1 : i64, tpu.core_type = #tpu.core_type<tc>, window_params = [{transform_indices = @transform_0, window_bounds = array<i64: 256, 64>}, {transform_indices = @transform_1, window_bounds = array<i64: 64, 64>}, {transform_indices = @transform_2, window_bounds = array<i64: 1, 64>}, {transform_indices = @transform_3, window_bounds = array<i64: 256, 64>}, {transform_indices = @transform_4, window_bounds = array<i64: 256, 64>}]} {
    %c0_i32 = arith.constant 0 : i32
    %0 = arith.cmpi eq, %arg2, %c0_i32 : i32
    %1 = arith.extui %0 : i1 to i32
    %c0_i32_0 = arith.constant 0 : i32
    %2 = arith.cmpi ne, %1, %c0_i32_0 : i32
    scf.if %2 {
      %cst_10 = arith.constant 0.000000e+00 : f32
      %12 = vector.broadcast %cst_10 : f32 to vector<256x64xf32>
      %c0_11 = arith.constant 0 : index
      %c0_12 = arith.constant 0 : index
      %13 = vector.load %arg8[%c0_11, %c0_12] : memref<256x64xf32, #tpu.memory_space<vmem>>, vector<256x64xf32>
      tpu.vector_store %arg8[%c0_11, %c0_12], %12 {strides = array<i32>} : memref<256x64xf32, #tpu.memory_space<vmem>>, vector<256x64xf32>,
    } else {
    }
    %c0 = arith.constant 0 : index
    %c0_1 = arith.constant 0 : index
    %3 = vector.load %arg3[%c0, %c0_1] : memref<256x64xbf16, #tpu.memory_space<vmem>>, vector<256x64xbf16>
    %c0_2 = arith.constant 0 : index
    %c0_3 = arith.constant 0 : index
    %4 = vector.load %arg8[%c0_2, %c0_3] : memref<256x64xf32, #tpu.memory_space<vmem>>, vector<256x64xf32>
    %c0_4 = arith.constant 0 : index
    %c0_5 = arith.constant 0 : index
    %5 = vector.load %arg4[%c0_4, %c0_5] : memref<64x64xbf16, #tpu.memory_space<vmem>>, vector<64x64xbf16>
    %cst = arith.constant dense<0.000000e+00> : vector<256x64xf32>
    %6 = tpu.matmul %3, %5, %cst {dimension_numbers = #tpu.dot_dimension_numbers<[1], [0], [0], [1], [0, 0, 1, 1], [], []>} : vector<256x64xbf16>, vector<64x64xbf16>, vector<256x64xf32> -> vector<256x64xf32>
    %7 = arith.addf %4, %6 : vector<256x64xf32>
    %c0_6 = arith.constant 0 : index
    %c0_7 = arith.constant 0 : index
    %8 = vector.load %arg8[%c0_6, %c0_7] : memref<256x64xf32, #tpu.memory_space<vmem>>, vector<256x64xf32>
    tpu.vector_store %arg8[%c0_6, %c0_7], %7 {strides = array<i32>} : memref<256x64xf32, #tpu.memory_space<vmem>>, vector<256x64xf32>,
    %c0_i32_8 = arith.constant 0 : i32
    %9 = arith.cmpi eq, %arg2, %c0_i32_8 : i32
    %10 = arith.extui %9 : i1 to i32
    %c0_i32_9 = arith.constant 0 : i32
    %11 = arith.cmpi ne, %10, %c0_i32_9 : i32
    scf.if %11 {
      %c0_10 = arith.constant 0 : index
      %c0_11 = arith.constant 0 : index
      %12 = vector.load %arg8[%c0_10, %c0_11] : memref<256x64xf32, #tpu.memory_space<vmem>>, vector<256x64xf32>
      %c0_12 = arith.constant 0 : index
      %c0_13 = arith.constant 0 : index
      %13 = vector.load %arg5[%c0_12, %c0_13] : memref<1x64xf32, #tpu.memory_space<vmem>>, vector<1x64xf32>
      %14 = vector.broadcast %13 : vector<1x64xf32> to vector<256x64xf32>
      %15 = arith.addf %12, %14 : vector<256x64xf32>
      %c0_14 = arith.constant 0 : index
      %c0_15 = arith.constant 0 : index
      %16 = vector.load %arg6[%c0_14, %c0_15] : memref<256x64xf32, #tpu.memory_space<vmem>>, vector<256x64xf32>
      %17 = arith.addf %15, %16 : vector<256x64xf32>
      %c0_16 = arith.constant 0 : index
      %c0_17 = arith.constant 0 : index
      %18 = vector.load %arg7[%c0_16, %c0_17] : memref<256x64xf32, #tpu.memory_space<vmem>>, vector<256x64xf32>
      tpu.vector_store %arg7[%c0_16, %c0_17], %17 {strides = array<i32>} : memref<256x64xf32, #tpu.memory_space<vmem>>, vector<256x64xf32>,
    } else {
    }
    return
  }
  func.func @transform_0(%arg0: i32, %arg1: i32, %arg2: i32) -> (i32, i32) {
    %c0_i32 = arith.constant 0 : i32
    return %arg0, %arg2 : i32, i32
  }
  func.func @transform_1(%arg0: i32, %arg1: i32, %arg2: i32) -> (i32, i32) {
    %c0_i32 = arith.constant 0 : i32
    return %arg2, %arg1 : i32, i32
  }
  func.func @transform_2(%arg0: i32, %arg1: i32, %arg2: i32) -> (i32, i32) {
    %c0_i32 = arith.constant 0 : i32
    %c0_i32_0 = arith.constant 0 : i32
    return %c0_i32, %arg1 : i32, i32
  }
  func.func @transform_3(%arg0: i32, %arg1: i32, %arg2: i32) -> (i32, i32) {
    %c0_i32 = arith.constant 0 : i32
    return %arg0, %arg1 : i32, i32
  }
  func.func @transform_4(%arg0: i32, %arg1: i32, %arg2: i32) -> (i32, i32) {
    %c0_i32 = arith.constant 0 : i32
    return %arg0, %arg1 : i32, i32
  }
}

module attributes {stable_mosaic.version = 11 : i64} {
  func.func @_fused_linear_kernel(%arg0: i32, %arg1: i32, %arg2: i32, %arg3: memref<256x64xf32, #tpu.memory_space<vmem>>, %arg4: memref<64x64xbf16, #tpu.memory_space<vmem>>, %arg5: memref<1x64xf32, #tpu.memory_space<vmem>>, %arg6: memref<1x64xf32, #tpu.memory_space<vmem>>, %arg7: memref<1x64xf32, #tpu.memory_space<vmem>>, %arg8: memref<256x64xf32, #tpu.memory_space<vmem>>, %arg9: memref<256x64xf32, #tpu.memory_space<vmem>>) attributes {dimension_semantics = [#tpu.dimension_semantics<parallel>, #tpu.dimension_semantics<parallel>, #tpu.dimension_semantics<arbitrary>], iteration_bounds = array<i64: 2, 1, 1>, scalar_prefetch = 0 : i64, scratch_operands = 1 : i64, tpu.core_type = #tpu.core_type<tc>, window_params = [{transform_indices = @transform_0, window_bounds = array<i64: 256, 64>}, {transform_indices = @transform_1, window_bounds = array<i64: 64, 64>}, {transform_indices = @transform_2, window_bounds = array<i64: 1, 64>}, {transform_indices = @transform_3, window_bounds = array<i64: 1, 64>}, {transform_indices = @transform_4, window_bounds = array<i64: 1, 64>}, {transform_indices = @transform_5, window_bounds = array<i64: 256, 64>}]} {
    %c0_i32 = arith.constant 0 : i32
    %0 = arith.cmpi eq, %arg2, %c0_i32 : i32
    %1 = arith.extui %0 : i1 to i32
    %c0_i32_0 = arith.constant 0 : i32
    %2 = arith.cmpi ne, %1, %c0_i32_0 : i32
    scf.if %2 {
      %cst_19 = arith.constant 0.000000e+00 : f32
      %35 = vector.broadcast %cst_19 : f32 to vector<256x64xf32>
      %c0_20 = arith.constant 0 : index
      %c0_21 = arith.constant 0 : index
      %36 = vector.load %arg9[%c0_20, %c0_21] : memref<256x64xf32, #tpu.memory_space<vmem>>, vector<256x64xf32>
      tpu.vector_store %arg9[%c0_20, %c0_21], %35 {strides = array<i32>} : memref<256x64xf32, #tpu.memory_space<vmem>>, vector<256x64xf32>,
    } else {
    }
    %c0 = arith.constant 0 : index
    %c0_1 = arith.constant 0 : index
    %3 = vector.load %arg3[%c0, %c0_1] : memref<256x64xf32, #tpu.memory_space<vmem>>, vector<256x64xf32>
    %cst = arith.constant dense<0.000000e+00> : vector<256xf32>
    %4 = vector.multi_reduction <add>, %3, %cst [1] : vector<256x64xf32> to vector<256xf32>
    %5 = vector.shape_cast %4 : vector<256xf32> to vector<256x1xf32>
    %cst_2 = arith.constant 6.400000e+01 : f32
    %6 = vector.broadcast %cst_2 : f32 to vector<256x1xf32>
    %7 = arith.divf %5, %6 : vector<256x1xf32>
    %8 = vector.broadcast %7 : vector<256x1xf32> to vector<256x64xf32>
    %9 = arith.subf %3, %8 : vector<256x64xf32>
    %10 = arith.mulf %9, %9 : vector<256x64xf32>
    %cst_3 = arith.constant dense<0.000000e+00> : vector<256xf32>
    %11 = vector.multi_reduction <add>, %10, %cst_3 [1] : vector<256x64xf32> to vector<256xf32>
    %12 = vector.shape_cast %11 : vector<256xf32> to vector<256x1xf32>
    %cst_4 = arith.constant 6.400000e+01 : f32
    %13 = vector.broadcast %cst_4 : f32 to vector<256x1xf32>
    %14 = arith.divf %12, %13 : vector<256x1xf32>
    %cst_5 = arith.constant 9.99999974E-6 : f32
    %15 = vector.broadcast %cst_5 : f32 to vector<256x1xf32>
    %16 = arith.addf %14, %15 : vector<256x1xf32>
    %17 = math.rsqrt %16 : vector<256x1xf32>
    %18 = vector.broadcast %17 : vector<256x1xf32> to vector<256x64xf32>
    %19 = arith.mulf %9, %18 : vector<256x64xf32>
    %c0_6 = arith.constant 0 : index
    %c0_7 = arith.constant 0 : index
    %20 = vector.load %arg6[%c0_6, %c0_7] : memref<1x64xf32, #tpu.memory_space<vmem>>, vector<1x64xf32>
    %21 = vector.broadcast %20 : vector<1x64xf32> to vector<256x64xf32>
    %22 = arith.mulf %19, %21 : vector<256x64xf32>
    %c0_8 = arith.constant 0 : index
    %c0_9 = arith.constant 0 : index
    %23 = vector.load %arg7[%c0_8, %c0_9] : memref<1x64xf32, #tpu.memory_space<vmem>>, vector<1x64xf32>
    %24 = vector.broadcast %23 : vector<1x64xf32> to vector<256x64xf32>
    %25 = arith.addf %22, %24 : vector<256x64xf32>
    %26 = arith.truncf %25 : vector<256x64xf32> to vector<256x64xbf16>
    %c0_10 = arith.constant 0 : index
    %c0_11 = arith.constant 0 : index
    %27 = vector.load %arg9[%c0_10, %c0_11] : memref<256x64xf32, #tpu.memory_space<vmem>>, vector<256x64xf32>
    %c0_12 = arith.constant 0 : index
    %c0_13 = arith.constant 0 : index
    %28 = vector.load %arg4[%c0_12, %c0_13] : memref<64x64xbf16, #tpu.memory_space<vmem>>, vector<64x64xbf16>
    %cst_14 = arith.constant dense<0.000000e+00> : vector<256x64xf32>
    %29 = tpu.matmul %26, %28, %cst_14 {dimension_numbers = #tpu.dot_dimension_numbers<[1], [0], [0], [1], [0, 0, 1, 1], [], []>} : vector<256x64xbf16>, vector<64x64xbf16>, vector<256x64xf32> -> vector<256x64xf32>
    %30 = arith.addf %27, %29 : vector<256x64xf32>
    %c0_15 = arith.constant 0 : index
    %c0_16 = arith.constant 0 : index
    %31 = vector.load %arg9[%c0_15, %c0_16] : memref<256x64xf32, #tpu.memory_space<vmem>>, vector<256x64xf32>
    tpu.vector_store %arg9[%c0_15, %c0_16], %30 {strides = array<i32>} : memref<256x64xf32, #tpu.memory_space<vmem>>, vector<256x64xf32>,
    %c0_i32_17 = arith.constant 0 : i32
    %32 = arith.cmpi eq, %arg2, %c0_i32_17 : i32
    %33 = arith.extui %32 : i1 to i32
    %c0_i32_18 = arith.constant 0 : i32
    %34 = arith.cmpi ne, %33, %c0_i32_18 : i32
    scf.if %34 {
      %c0_19 = arith.constant 0 : index
      %c0_20 = arith.constant 0 : index
      %35 = vector.load %arg9[%c0_19, %c0_20] : memref<256x64xf32, #tpu.memory_space<vmem>>, vector<256x64xf32>
      %c0_21 = arith.constant 0 : index
      %c0_22 = arith.constant 0 : index
      %36 = vector.load %arg5[%c0_21, %c0_22] : memref<1x64xf32, #tpu.memory_space<vmem>>, vector<1x64xf32>
      %37 = vector.broadcast %36 : vector<1x64xf32> to vector<256x64xf32>
      %38 = arith.addf %35, %37 : vector<256x64xf32>
      %c0_23 = arith.constant 0 : index
      %c0_24 = arith.constant 0 : index
      %39 = vector.load %arg8[%c0_23, %c0_24] : memref<256x64xf32, #tpu.memory_space<vmem>>, vector<256x64xf32>
      tpu.vector_store %arg8[%c0_23, %c0_24], %38 {strides = array<i32>} : memref<256x64xf32, #tpu.memory_space<vmem>>, vector<256x64xf32>,
    } else {
    }
    return
  }
  func.func @transform_0(%arg0: i32, %arg1: i32, %arg2: i32) -> (i32, i32) {
    %c0_i32 = arith.constant 0 : i32
    return %arg0, %arg2 : i32, i32
  }
  func.func @transform_1(%arg0: i32, %arg1: i32, %arg2: i32) -> (i32, i32) {
    %c0_i32 = arith.constant 0 : i32
    return %arg2, %arg1 : i32, i32
  }
  func.func @transform_2(%arg0: i32, %arg1: i32, %arg2: i32) -> (i32, i32) {
    %c0_i32 = arith.constant 0 : i32
    %c0_i32_0 = arith.constant 0 : i32
    return %c0_i32, %arg1 : i32, i32
  }
  func.func @transform_3(%arg0: i32, %arg1: i32, %arg2: i32) -> (i32, i32) {
    %c0_i32 = arith.constant 0 : i32
    %c0_i32_0 = arith.constant 0 : i32
    return %c0_i32, %arg2 : i32, i32
  }
  func.func @transform_4(%arg0: i32, %arg1: i32, %arg2: i32) -> (i32, i32) {
    %c0_i32 = arith.constant 0 : i32
    %c0_i32_0 = arith.constant 0 : i32
    return %c0_i32, %arg2 : i32, i32
  }
  func.func @transform_5(%arg0: i32, %arg1: i32, %arg2: i32) -> (i32, i32) {
    %c0_i32 = arith.constant 0 : i32
    return %arg0, %arg1 : i32, i32
  }
}

module attributes {stable_mosaic.version = 11 : i64} {
  func.func @_fused_linear_kernel(%arg0: i32, %arg1: i32, %arg2: i32, %arg3: memref<256x64xbf16, #tpu.memory_space<vmem>>, %arg4: memref<64x64xbf16, #tpu.memory_space<vmem>>, %arg5: memref<1x64xf32, #tpu.memory_space<vmem>>, %arg6: memref<256x64xf32, #tpu.memory_space<vmem>>, %arg7: memref<256x64xf32, #tpu.memory_space<vmem>>, %arg8: memref<256x64xf32, #tpu.memory_space<vmem>>) attributes {dimension_semantics = [#tpu.dimension_semantics<parallel>, #tpu.dimension_semantics<parallel>, #tpu.dimension_semantics<arbitrary>], iteration_bounds = array<i64: 2, 1, 1>, scalar_prefetch = 0 : i64, scratch_operands = 1 : i64, tpu.core_type = #tpu.core_type<tc>, window_params = [{transform_indices = @transform_0, window_bounds = array<i64: 256, 64>}, {transform_indices = @transform_1, window_bounds = array<i64: 64, 64>}, {transform_indices = @transform_2, window_bounds = array<i64: 1, 64>}, {transform_indices = @transform_3, window_bounds = array<i64: 256, 64>}, {transform_indices = @transform_4, window_bounds = array<i64: 256, 64>}]} {
    %c0_i32 = arith.constant 0 : i32
    %0 = arith.cmpi eq, %arg2, %c0_i32 : i32
    %1 = arith.extui %0 : i1 to i32
    %c0_i32_0 = arith.constant 0 : i32
    %2 = arith.cmpi ne, %1, %c0_i32_0 : i32
    scf.if %2 {
      %cst_10 = arith.constant 0.000000e+00 : f32
      %12 = vector.broadcast %cst_10 : f32 to vector<256x64xf32>
      %c0_11 = arith.constant 0 : index
      %c0_12 = arith.constant 0 : index
      %13 = vector.load %arg8[%c0_11, %c0_12] : memref<256x64xf32, #tpu.memory_space<vmem>>, vector<256x64xf32>
      tpu.vector_store %arg8[%c0_11, %c0_12], %12 {strides = array<i32>} : memref<256x64xf32, #tpu.memory_space<vmem>>, vector<256x64xf32>,
    } else {
    }
    %c0 = arith.constant 0 : index
    %c0_1 = arith.constant 0 : index
    %3 = vector.load %arg3[%c0, %c0_1] : memref<256x64xbf16, #tpu.memory_space<vmem>>, vector<256x64xbf16>
    %c0_2 = arith.constant 0 : index
    %c0_3 = arith.constant 0 : index
    %4 = vector.load %arg8[%c0_2, %c0_3] : memref<256x64xf32, #tpu.memory_space<vmem>>, vector<256x64xf32>
    %c0_4 = arith.constant 0 : index
    %c0_5 = arith.constant 0 : index
    %5 = vector.load %arg4[%c0_4, %c0_5] : memref<64x64xbf16, #tpu.memory_space<vmem>>, vector<64x64xbf16>
    %cst = arith.constant dense<0.000000e+00> : vector<256x64xf32>
    %6 = tpu.matmul %3, %5, %cst {dimension_numbers = #tpu.dot_dimension_numbers<[1], [0], [0], [1], [0, 0, 1, 1], [], []>} : vector<256x64xbf16>, vector<64x64xbf16>, vector<256x64xf32> -> vector<256x64xf32>
    %7 = arith.addf %4, %6 : vector<256x64xf32>
    %c0_6 = arith.constant 0 : index
    %c0_7 = arith.constant 0 : index
    %8 = vector.load %arg8[%c0_6, %c0_7] : memref<256x64xf32, #tpu.memory_space<vmem>>, vector<256x64xf32>
    tpu.vector_store %arg8[%c0_6, %c0_7], %7 {strides = array<i32>} : memref<256x64xf32, #tpu.memory_space<vmem>>, vector<256x64xf32>,
    %c0_i32_8 = arith.constant 0 : i32
    %9 = arith.cmpi eq, %arg2, %c0_i32_8 : i32
    %10 = arith.extui %9 : i1 to i32
    %c0_i32_9 = arith.constant 0 : i32
    %11 = arith.cmpi ne, %10, %c0_i32_9 : i32
    scf.if %11 {
      %c0_10 = arith.constant 0 : index
      %c0_11 = arith.constant 0 : index
      %12 = vector.load %arg8[%c0_10, %c0_11] : memref<256x64xf32, #tpu.memory_space<vmem>>, vector<256x64xf32>
      %c0_12 = arith.constant 0 : index
      %c0_13 = arith.constant 0 : index
      %13 = vector.load %arg5[%c0_12, %c0_13] : memref<1x64xf32, #tpu.memory_space<vmem>>, vector<1x64xf32>
      %14 = vector.broadcast %13 : vector<1x64xf32> to vector<256x64xf32>
      %15 = arith.addf %12, %14 : vector<256x64xf32>
      %c0_14 = arith.constant 0 : index
      %c0_15 = arith.constant 0 : index
      %16 = vector.load %arg6[%c0_14, %c0_15] : memref<256x64xf32, #tpu.memory_space<vmem>>, vector<256x64xf32>
      %17 = arith.addf %15, %16 : vector<256x64xf32>
      %c0_16 = arith.constant 0 : index
      %c0_17 = arith.constant 0 : index
      %18 = vector.load %arg7[%c0_16, %c0_17] : memref<256x64xf32, #tpu.memory_space<vmem>>, vector<256x64xf32>
      tpu.vector_store %arg7[%c0_16, %c0_17], %17 {strides = array<i32>} : memref<256x64xf32, #tpu.memory_space<vmem>>, vector<256x64xf32>,
    } else {
    }
    return
  }
  func.func @transform_0(%arg0: i32, %arg1: i32, %arg2: i32) -> (i32, i32) {
    %c0_i32 = arith.constant 0 : i32
    return %arg0, %arg2 : i32, i32
  }
  func.func @transform_1(%arg0: i32, %arg1: i32, %arg2: i32) -> (i32, i32) {
    %c0_i32 = arith.constant 0 : i32
    return %arg2, %arg1 : i32, i32
  }
  func.func @transform_2(%arg0: i32, %arg1: i32, %arg2: i32) -> (i32, i32) {
    %c0_i32 = arith.constant 0 : i32
    %c0_i32_0 = arith.constant 0 : i32
    return %c0_i32, %arg1 : i32, i32
  }
  func.func @transform_3(%arg0: i32, %arg1: i32, %arg2: i32) -> (i32, i32) {
    %c0_i32 = arith.constant 0 : i32
    return %arg0, %arg1 : i32, i32
  }
  func.func @transform_4(%arg0: i32, %arg1: i32, %arg2: i32) -> (i32, i32) {
    %c0_i32 = arith.constant 0 : i32
    return %arg0, %arg1 : i32, i32
  }
}

</mosaic_0001>

<llo_original>
// kernel: self_attention_forward.5
$region0: #{self_attention_forward.5}
  #allocation0 [shape = 'u32[]', space=smem, size = 0x4, offset = 0x4, fixed_abs, tag = 'smem constant byte address 0x4 - core index']
  #allocation1 [shape = 'u32[144,128]{1,0:T(1,128)}', space=vmem, size = 0x12000, scoped, tag = 'internal scratch']
  #allocation2 [shape = 'f32[256,192]{1,0:T(8,128)}', space=vmem, size = 0x40000, scoped, tag = 'scratch operand']
  %s0 = inlined_call_operand.hbm [shape: f32[512,64], index: 0, kind: input, shape index: {}]
  %s1 = inlined_call_operand.vmem [shape: bf16[64,192], index: 1, kind: input, shape index: {}]
  %s2 = inlined_call_operand.vmem [shape: f32[1,192], index: 2, kind: input, shape index: {}]
  %s3 = inlined_call_operand.vmem [shape: f32[1,64], index: 3, kind: input, shape index: {}]
  %s4 = inlined_call_operand.vmem [shape: f32[1,64], index: 4, kind: input, shape index: {}]
  %s5 = inlined_call_operand.vmem [shape: f32[512,192], index: 5, kind: output, shape index: {}]
  %s6 = sld [smem:[#allocation0]]
  $region65: #{self_attention_forward.5} parent=0
    _
  %s8 = ssub.s32 1, %s6
  %s9 = scalar_select 0, %s8, %s6
  $region1: #{self_attention_forward.5} parent=0
    #allocation3 [shape = 'u8[262144]{0}', space=vmem, size = 0x40000, scoped, tag = 'input window, operand 0']
    #allocation4 [shape = 's32[2]{0}', space=sflag, size = 0x8, scoped, tag = 'scoped memory for self_attention_forward.5']
    %10 = vsyncpa [#allocation4], 0
    %s11 = scalar_lea.sflag [#allocation4], 1
    %12 = vsyncpa %s11, 0
    loop: start=0, step=1, limit=4
    $region2: #{self_attention_forward.5} parent=1 // loop_pre_header
      _
    $region3: #{self_attention_forward.5} parent=1 // loop_header
      %s14 = sphi 0, %s18
      %p15 = scmp.ge.s32.totalorder %s14, 4
      %s21 = sphi 0, %s40
      %s22 = sphi 0, %s36
      %s23 = sphi 0, %s32
      %s24 = sphi 0, %s21
      %s25 = sphi 0, %s22
      %s26 = sphi 0, %s23
      %s27 = sphi 0, %s24
      %s28 = sphi 0, %s25
      %s29 = sphi 0, %s26
      %s45 = sphi 0, %s47
      %s48 = sphi 0, %s45
      %s49 = sphi 0, %s48
      %s65 = sphi 0, %s49
      %s73 = sphi 0, %s75
      %s76 = sphi 0, %s73
      %s77 = sphi 0, %s76
      %s93 = sphi 0, %s77
      %s99 = sphi 0, %s101
      %s102 = sphi 0, %s99
      %s103 = sphi 0, %s102
      %s119 = sphi 0, %s103
      %s125 = sphi 0, %s127
      %s128 = sphi 0, %s125
      %s129 = sphi 0, %s128
      %s145 = sphi 0, %s129
      %s151 = sphi 0, %s153
      %s154 = sphi 0, %s151
      %s155 = sphi 0, %s154
      %s171 = sphi 0, %s155
      %s179 = sphi 0, %s181
      %s182 = sphi 0, %s179
      %s183 = sphi 0, %s182
      %s199 = sphi 0, %s183
    $region4: #{self_attention_forward.5} parent=1 // loop_header_branch
      %17 = sbr.rel (%p15) target = $region8
    $region5: #{self_attention_forward.5} parent=1 // loop_body
      %s19 = ssub.s32 %s14, 1
      %s20 = ssub.s32 %s14, 2
      %s30 = sadd.s32 1, %s23
      %p31 = scmp.ge.s32.totalorder %s30, 1
      %s32 = scalar_select %p31, 0, %s30
      %s33 = sadd.s32 1, %s22
      %s34 = scalar_select %p31, %s33, %s22
      %p35 = scmp.ge.s32.totalorder %s34, 1
      %s36 = scalar_select %p35, 0, %s34
      %s37 = sadd.s32 1, %s21
      %s38 = scalar_select %p35, %s37, %s21
      %p39 = scmp.ge.s32.totalorder %s38, 2
      %s40 = scalar_select %p39, 0, %s38
      %s41 = ssub.s32 %s21, %s40
      %s42 = ssub.s32 %s23, %s32
      %s43 = sor.u32 %s41, %s42
      %p44 = scmp.eq.s32.totalorder %s43, 0
      %s46 = sadd.s32 %s45, 1
      %s47 = scalar_select %p44, %s45, %s46
      %p50 = pneg %p44
      %p51 = scmp.eq.s32.totalorder %s14, 1
      %p52 = por %p50, %p51
      %p53 = scmp.ne.s32.totalorder %s45, %s48
      %p54 = scmp.eq.s32.totalorder %s14, 0
      %p55 = por %p53, %p54
      %p56 = scmp.ne.s32.totalorder %s45, %s48
      %p57 = scmp.eq.s32.totalorder %s19, 1
      %p58 = por %p56, %p57
      %p59 = scmp.ne.s32.totalorder %s48, %s49
      %p60 = scmp.eq.s32.totalorder %s19, 0
      %p61 = por %p59, %p60
      %p62 = scmp.ne.s32.totalorder %s48, %s49
      %p63 = scmp.eq.s32.totalorder %s20, 1
      %p64 = por %p62, %p63
      %p66 = scmp.ne.s32.totalorder %s49, %s65
      %p67 = scmp.eq.s32.totalorder %s20, 0
      %p68 = por %p66, %p67
      %s69 = ssub.s32 %s23, %s32
      %s70 = ssub.s32 %s22, %s36
      %s71 = sor.u32 %s69, %s70
      %p72 = scmp.eq.s32.totalorder %s71, 0
      %s74 = sadd.s32 %s73, 1
      %s75 = scalar_select %p72, %s73, %s74
      %p78 = pneg %p72
      %p79 = scmp.eq.s32.totalorder %s14, 1
      %p80 = por %p78, %p79
      %p81 = scmp.ne.s32.totalorder %s73, %s76
      %p82 = scmp.eq.s32.totalorder %s14, 0
      %p83 = por %p81, %p82
      %p84 = scmp.ne.s32.totalorder %s73, %s76
      %p85 = scmp.eq.s32.totalorder %s19, 1
      %p86 = por %p84, %p85
      %p87 = scmp.ne.s32.totalorder %s76, %s77
      %p88 = scmp.eq.s32.totalorder %s19, 0
      %p89 = por %p87, %p88
      %p90 = scmp.ne.s32.totalorder %s76, %s77
      %p91 = scmp.eq.s32.totalorder %s20, 1
      %p92 = por %p90, %p91
      %p94 = scmp.ne.s32.totalorder %s77, %s93
      %p95 = scmp.eq.s32.totalorder %s20, 0
      %p96 = por %p94, %p95
      %s97 = ssub.s32 %s22, %s36
      %p98 = scmp.eq.s32.totalorder %s97, 0
      %s100 = sadd.s32 %s99, 1
      %s101 = scalar_select %p98, %s99, %s100
      %p104 = pneg %p98
      %p105 = scmp.eq.s32.totalorder %s14, 1
      %p106 = por %p104, %p105
      %p107 = scmp.ne.s32.totalorder %s99, %s102
      %p108 = scmp.eq.s32.totalorder %s14, 0
      %p109 = por %p107, %p108
      %p110 = scmp.ne.s32.totalorder %s99, %s102
      %p111 = scmp.eq.s32.totalorder %s19, 1
      %p112 = por %p110, %p111
      %p113 = scmp.ne.s32.totalorder %s102, %s103
      %p114 = scmp.eq.s32.totalorder %s19, 0
      %p115 = por %p113, %p114
      %p116 = scmp.ne.s32.totalorder %s102, %s103
      %p117 = scmp.eq.s32.totalorder %s20, 1
      %p118 = por %p116, %p117
      %p120 = scmp.ne.s32.totalorder %s103, %s119
      %p121 = scmp.eq.s32.totalorder %s20, 0
      %p122 = por %p120, %p121
      %s123 = ssub.s32 %s23, %s32
      %p124 = scmp.eq.s32.totalorder %s123, 0
      %s126 = sadd.s32 %s125, 1
      %s127 = scalar_select %p124, %s125, %s126
      %p130 = pneg %p124
      %p131 = scmp.eq.s32.totalorder %s14, 1
      %p132 = por %p130, %p131
      %p133 = scmp.ne.s32.totalorder %s125, %s128
      %p134 = scmp.eq.s32.totalorder %s14, 0
      %p135 = por %p133, %p134
      %p136 = scmp.ne.s32.totalorder %s125, %s128
      %p137 = scmp.eq.s32.totalorder %s19, 1
      %p138 = por %p136, %p137
      %p139 = scmp.ne.s32.totalorder %s128, %s129
      %p140 = scmp.eq.s32.totalorder %s19, 0
      %p141 = por %p139, %p140
      %p142 = scmp.ne.s32.totalorder %s128, %s129
      %p143 = scmp.eq.s32.totalorder %s20, 1
      %p144 = por %p142, %p143
      %p146 = scmp.ne.s32.totalorder %s129, %s145
      %p147 = scmp.eq.s32.totalorder %s20, 0
      %p148 = por %p146, %p147
      %s149 = ssub.s32 %s23, %s32
      %p150 = scmp.eq.s32.totalorder %s149, 0
      %s152 = sadd.s32 %s151, 1
      %s153 = scalar_select %p150, %s151, %s152
      %p156 = pneg %p150
      %p157 = scmp.eq.s32.totalorder %s14, 1
      %p158 = por %p156, %p157
      %p159 = scmp.ne.s32.totalorder %s151, %s154
      %p160 = scmp.eq.s32.totalorder %s14, 0
      %p161 = por %p159, %p160
      %p162 = scmp.ne.s32.totalorder %s151, %s154
      %p163 = scmp.eq.s32.totalorder %s19, 1
      %p164 = por %p162, %p163
      %p165 = scmp.ne.s32.totalorder %s154, %s155
      %p166 = scmp.eq.s32.totalorder %s19, 0
      %p167 = por %p165, %p166
      %p168 = scmp.ne.s32.totalorder %s154, %s155
      %p169 = scmp.eq.s32.totalorder %s20, 1
      %p170 = por %p168, %p169
      %p172 = scmp.ne.s32.totalorder %s155, %s171
      %p173 = scmp.eq.s32.totalorder %s20, 0
      %p174 = por %p172, %p173
      %s175 = ssub.s32 %s21, %s40
      %s176 = ssub.s32 %s22, %s36
      %s177 = sor.u32 %s175, %s176
      %p178 = scmp.eq.s32.totalorder %s177, 0
      %s180 = sadd.s32 %s179, 1
      %s181 = scalar_select %p178, %s179, %s180
      %p184 = pneg %p178
      %p185 = scmp.eq.s32.totalorder %s14, 1
      %p186 = por %p184, %p185
      %p187 = scmp.ne.s32.totalorder %s179, %s182
      %p188 = scmp.eq.s32.totalorder %s14, 0
      %p189 = por %p187, %p188
      %p190 = scmp.ne.s32.totalorder %s179, %s182
      %p191 = scmp.eq.s32.totalorder %s19, 1
      %p192 = por %p190, %p191
      %p193 = scmp.ne.s32.totalorder %s182, %s183
      %p194 = scmp.eq.s32.totalorder %s19, 0
      %p195 = por %p193, %p194
      %p196 = scmp.ne.s32.totalorder %s182, %s183
      %p197 = scmp.eq.s32.totalorder %s20, 1
      %p198 = por %p196, %p197
      %p200 = scmp.ne.s32.totalorder %s183, %s199
      %p201 = scmp.eq.s32.totalorder %s20, 0
      %p202 = por %p200, %p201
      %p203 = scmp.le.s32.totalorder 1, %s14
      %p204 = scmp.lt.s32.totalorder %s14, 3
      %p205 = pnand %p203, %p204
      %p206 = pneg %p205
      // Predicated region
      $region9: #{self_attention_forward.5} parent=5 // pred_check
        _
      $region10: #{self_attention_forward.5} parent=5 // pred_check_branch
        %208 = sbr.rel (%p205) target = $region12
      $region11: #{self_attention_forward.5} parent=5 // pred_region
        %s209 = ssub.s32 %s14, 1
        // Predicated region
        $region13: #{self_attention_forward.5} parent=11 // pred_check
          %p210 = pneg %p89
        $region14: #{self_attention_forward.5} parent=11 // pred_check_branch
          %212 = sbr.rel (%p210) target = $region16
        $region15: #{self_attention_forward.5} parent=11 // pred_region
          %s213 = smul.u32 8, %s26
          %s214 = smul.u32 2, %s25
          %p215 = scmp.lt.s32.totalorder %s213, 7
          %s216 = scalar_select %p215, %s213, 7
          %p217 = scmp.lt.s32.totalorder %s214, 1
          %s218 = scalar_select %p217, %s214, 1
          %s219 = smul.addr %s216, 2
          %s220 = sadd.s32 %s218, %s219
          %s221 = smul.addr %s220, 4
          %s222 = scalar_lea.vmem %s1, %s221
          %s223 = smul.u32 8, %s26
          %s224 = smul.u32 2, %s25
        $region16: #{self_attention_forward.5} parent=11 // pred_fallthru
          _
        // Predicated region
        $region17: #{self_attention_forward.5} parent=11 // pred_check
          %p225 = pneg %p115
        $region18: #{self_attention_forward.5} parent=11 // pred_check_branch
          %227 = sbr.rel (%p225) target = $region20
        $region19: #{self_attention_forward.5} parent=11 // pred_region
          %s228 = smul.u32 2, %s25
          %p229 = scmp.lt.s32.totalorder %s228, 1
          %s230 = scalar_select %p229, %s228, 1
          %s231 = scalar_lea.vmem %s2, %s230
          %s232 = smul.u32 2, %s25
        $region20: #{self_attention_forward.5} parent=11 // pred_fallthru
          _
        // Predicated region
        $region21: #{self_attention_forward.5} parent=11 // pred_check
          %p233 = pneg %p141
        $region22: #{self_attention_forward.5} parent=11 // pred_check_branch
          %235 = sbr.rel (%p233) target = $region24
        $region23: #{self_attention_forward.5} parent=11 // pred_region
          %p236 = scmp.lt.s32.totalorder %s26, 0
          %s237 = scalar_select %p236, %s26, 0
          %s238 = scalar_lea.vmem %s3, %s237
        $region24: #{self_attention_forward.5} parent=11 // pred_fallthru
          _
        // Predicated region
        $region25: #{self_attention_forward.5} parent=11 // pred_check
          %p239 = pneg %p167
        $region26: #{self_attention_forward.5} parent=11 // pred_check_branch
          %241 = sbr.rel (%p239) target = $region28
        $region27: #{self_attention_forward.5} parent=11 // pred_region
          %p242 = scmp.lt.s32.totalorder %s26, 0
          %s243 = scalar_select %p242, %s26, 0
          %s244 = scalar_lea.vmem %s4, %s243
        $region28: #{self_attention_forward.5} parent=11 // pred_fallthru
          _
      $region12: #{self_attention_forward.5} parent=5 // pred_fallthru
        _
      %p245 = scmp.lt.s32.totalorder %s14, 2
      // Predicated region
      $region29: #{self_attention_forward.5} parent=5 // pred_check
        %p246 = pneg %p245
      $region30: #{self_attention_forward.5} parent=5 // pred_check_branch
        %248 = sbr.rel (%p246) target = $region32
      $region31: #{self_attention_forward.5} parent=5 // pred_region
        // Predicated region
        $region33: #{self_attention_forward.5} parent=31 // pred_check
          %p249 = pneg %p55
        $region34: #{self_attention_forward.5} parent=31 // pred_check_branch
          %251 = sbr.rel (%p249) target = $region36
        $region35: #{self_attention_forward.5} parent=31 // pred_region
          %s252 = sand.u32 %s45, 1
          %s253 = scalar_lea.sflag [#allocation4], %s252
          %s254 = sand.u32 %s45, 1
          %s255 = smul.addr %s254, 256
          %s256 = scalar_lea.vmem [#allocation3], %s255
          %s257 = smul.u32 32, %s21
          %s259 = ssub.s32 4096, 4096
          %260 = vsyncadd %s253, %s259
          %s261 = sadd.s32 %s23, %s257
          %s262 = smul.addr %s261, 128
          %s263 = scalar_lea.hbm %s0, %s262
          %s264 = sshll.u32 %s256, 4
          %s265 = int_to_ptr.vmem [resolvable:$true] %s264
          %270 = dma.hbm_to_vmem [thread:$0]  %s263, 4096, %s265, %s253, 128, 128, 8
        $region36: #{self_attention_forward.5} parent=31 // pred_fallthru
          _
      $region32: #{self_attention_forward.5} parent=5 // pred_fallthru
        _
      %p271 = scmp.le.s32.totalorder 1, %s14
      %p272 = scmp.lt.s32.totalorder %s14, 3
      %p273 = pnand %p271, %p272
      %p274 = pneg %p273
      // Predicated region
      $region37: #{self_attention_forward.5} parent=5 // pred_check
        _
      $region38: #{self_attention_forward.5} parent=5 // pred_check_branch
        %276 = sbr.rel (%p273) target = $region40
      $region39: #{self_attention_forward.5} parent=5 // pred_region
        %s277 = ssub.s32 %s14, 1
        %s278 = sand.u32 %s48, 1
        %s279 = scalar_lea.sflag [#allocation4], %s278
        %s280 = sand.u32 %s48, 1
        %s281 = smul.addr %s280, 256
        %s282 = scalar_lea.vmem [#allocation3], %s281
        // Predicated region
        $region41: #{self_attention_forward.5} parent=39 // pred_check
          %p283 = pneg %p61
        $region42: #{self_attention_forward.5} parent=39 // pred_check_branch
          %285 = sbr.rel (%p283) target = $region44
        $region43: #{self_attention_forward.5} parent=39 // pred_region
          %286 = dma.done %s279, 4096
        $region44: #{self_attention_forward.5} parent=39 // pred_fallthru
          _
        %s287 = sand.u32 %s48, 1
        %s288 = scalar_lea.sflag [#allocation4], %s287
        %s289 = sand.u32 %s48, 1
        %s290 = smul.addr %s289, 256
        %s291 = scalar_lea.vmem [#allocation3], %s290
        %p292 = pneg %p61
        %p293 = pneg %p58
        %s294 = smul.u32 8, %s26
        %s295 = smul.u32 2, %s25
        %p296 = scmp.lt.s32.totalorder %s294, 7
        %s297 = scalar_select %p296, %s294, 7
        %p298 = scmp.lt.s32.totalorder %s295, 1
        %s299 = scalar_select %p298, %s295, 1
        %s300 = smul.addr %s297, 2
        %s301 = sadd.s32 %s299, %s300
        %s302 = smul.addr %s301, 4
        %s303 = scalar_lea.vmem %s1, %s302
        %p304 = pneg %p89
        %p305 = pneg %p86
        %s306 = smul.u32 2, %s25
        %p307 = scmp.lt.s32.totalorder %s306, 1
        %s308 = scalar_select %p307, %s306, 1
        %s309 = scalar_lea.vmem %s2, %s308
        %p310 = pneg %p115
        %p311 = pneg %p112
        %p312 = scmp.lt.s32.totalorder %s26, 0
        %s313 = scalar_select %p312, %s26, 0
        %s314 = scalar_lea.vmem %s3, %s313
        %p315 = pneg %p141
        %p316 = pneg %p138
        %p317 = scmp.lt.s32.totalorder %s26, 0
        %s318 = scalar_select %p317, %s26, 0
        %s319 = scalar_lea.vmem %s4, %s318
        %p320 = pneg %p167
        %p321 = pneg %p164
        %p322 = pneg %p195
        %p323 = pneg %p192
        %s324 = smul.u32 32, %s24
        %s325 = smul.u32 2, %s25
        %p326 = scmp.lt.s32.totalorder %s324, 63
        %s327 = scalar_select %p326, %s324, 63
        %p328 = scmp.lt.s32.totalorder %s325, 1
        %s329 = scalar_select %p328, %s325, 1
        %s330 = smul.addr %s327, 2
        %s331 = sadd.s32 %s329, %s330
        %s332 = smul.addr %s331, 8
        %s333 = scalar_lea.vmem %s5, %s332
        %s334 = smul.u32 32, %s24
        %s335 = smul.u32 8, %s26
        %s336 = smul.u32 2, %s25
        %p337 = scmp.lt.s32.totalorder %s335, 7
        %s338 = scalar_select %p337, %s335, 7
        %p339 = scmp.lt.s32.totalorder %s336, 1
        %s340 = scalar_select %p339, %s336, 1
        %s341 = smul.addr %s338, 2
        %s342 = sadd.s32 %s340, %s341
        %s343 = smul.addr %s342, 4
        %s344 = scalar_lea.vmem %s1, %s343
        %s345 = smul.u32 8, %s26
        %s346 = smul.u32 2, %s25
        %s347 = smul.u32 2, %s25
        %p348 = scmp.lt.s32.totalorder %s347, 1
        %s349 = scalar_select %p348, %s347, 1
        %s350 = scalar_lea.vmem %s2, %s349
        %s351 = smul.u32 2, %s25
        %p352 = scmp.lt.s32.totalorder %s26, 0
        %s353 = scalar_select %p352, %s26, 0
        %s354 = scalar_lea.vmem %s3, %s353
        %p355 = scmp.lt.s32.totalorder %s26, 0
        %s356 = scalar_select %p355, %s26, 0
        %s357 = scalar_lea.vmem %s4, %s356
        %s358 = smul.u32 32, %s24
        %s359 = smul.u32 2, %s25
        %p360 = scmp.lt.s32.totalorder %s358, 63
        %s361 = scalar_select %p360, %s358, 63
        %p362 = scmp.lt.s32.totalorder %s359, 1
        %s363 = scalar_select %p362, %s359, 1
        %s364 = smul.addr %s361, 2
        %s365 = sadd.s32 %s363, %s364
        %s366 = smul.addr %s365, 8
        %s367 = scalar_lea.vmem %s5, %s366
        %s368 = smul.u32 32, %s24
        %s369 = smul.u32 2, %s25
        %p371 = scmp.eq.s32.totalorder %s26, 0
        // Predicated region
        $region45: #{self_attention_forward.5} parent=39 // pred_check
          %p372 = pneg %p371
        $region46: #{self_attention_forward.5} parent=39 // pred_check_branch
          %374 = sbr.rel (%p372) target = $region48
        $region47: #{self_attention_forward.5} parent=39 // pred_region
          %375 = vst [vmem:[#allocation2] sm:$0xff] 0.0
          %vm376 = vcmask 523264
          %377 = vst.msk [vmem:[#allocation2 + $0x8] sm:$0xff] %vm376, 0.0
          %378 = vst [vmem:[#allocation2 + $0x10] sm:$0xff] 0.0
          %379 = vst.msk [vmem:[#allocation2 + $0x18] sm:$0xff] %vm376, 0.0
          %380 = vst [vmem:[#allocation2 + $0x20] sm:$0xff] 0.0
          %381 = vst.msk [vmem:[#allocation2 + $0x28] sm:$0xff] %vm376, 0.0
          %382 = vst [vmem:[#allocation2 + $0x30] sm:$0xff] 0.0
          %383 = vst.msk [vmem:[#allocation2 + $0x38] sm:$0xff] %vm376, 0.0
          %384 = vst [vmem:[#allocation2 + $0x40] sm:$0xff] 0.0
          %385 = vst.msk [vmem:[#allocation2 + $0x48] sm:$0xff] %vm376, 0.0
          %386 = vst [vmem:[#allocation2 + $0x50] sm:$0xff] 0.0
          %387 = vst.msk [vmem:[#allocation2 + $0x58] sm:$0xff] %vm376, 0.0
          %388 = vst [vmem:[#allocation2 + $0x60] sm:$0xff] 0.0
          %389 = vst.msk [vmem:[#allocation2 + $0x68] sm:$0xff] %vm376, 0.0
          %390 = vst [vmem:[#allocation2 + $0x70] sm:$0xff] 0.0
          %391 = vst.msk [vmem:[#allocation2 + $0x78] sm:$0xff] %vm376, 0.0
          %392 = vst [vmem:[#allocation2 + $0x80] sm:$0xff] 0.0
          %393 = vst.msk [vmem:[#allocation2 + $0x88] sm:$0xff] %vm376, 0.0
          %394 = vst [vmem:[#allocation2 + $0x90] sm:$0xff] 0.0
          %395 = vst.msk [vmem:[#allocation2 + $0x98] sm:$0xff] %vm376, 0.0
          %396 = vst [vmem:[#allocation2 + $0xa0] sm:$0xff] 0.0
          %397 = vst.msk [vmem:[#allocation2 + $0xa8] sm:$0xff] %vm376, 0.0
          %398 = vst [vmem:[#allocation2 + $0xb0] sm:$0xff] 0.0
          %399 = vst.msk [vmem:[#allocation2 + $0xb8] sm:$0xff] %vm376, 0.0
          %400 = vst [vmem:[#allocation2 + $0xc0] sm:$0xff] 0.0
          %401 = vst.msk [vmem:[#allocation2 + $0xc8] sm:$0xff] %vm376, 0.0
          %402 = vst [vmem:[#allocation2 + $0xd0] sm:$0xff] 0.0
          %403 = vst.msk [vmem:[#allocation2 + $0xd8] sm:$0xff] %vm376, 0.0
          %404 = vst [vmem:[#allocation2 + $0xe0] sm:$0xff] 0.0
          %405 = vst.msk [vmem:[#allocation2 + $0xe8] sm:$0xff] %vm376, 0.0
          %406 = vst [vmem:[#allocation2 + $0xf0] sm:$0xff] 0.0
          %407 = vst.msk [vmem:[#allocation2 + $0xf8] sm:$0xff] %vm376, 0.0
          %408 = vst [vmem:[#allocation2 + $0x100] sm:$0xff] 0.0
          %409 = vst.msk [vmem:[#allocation2 + $0x108] sm:$0xff] %vm376, 0.0
          %410 = vst [vmem:[#allocation2 + $0x110] sm:$0xff] 0.0
          %411 = vst.msk [vmem:[#allocation2 + $0x118] sm:$0xff] %vm376, 0.0
          %412 = vst [vmem:[#allocation2 + $0x120] sm:$0xff] 0.0
          %413 = vst.msk [vmem:[#allocation2 + $0x128] sm:$0xff] %vm376, 0.0
          %414 = vst [vmem:[#allocation2 + $0x130] sm:$0xff] 0.0
          %415 = vst.msk [vmem:[#allocation2 + $0x138] sm:$0xff] %vm376, 0.0
          %416 = vst [vmem:[#allocation2 + $0x140] sm:$0xff] 0.0
          %417 = vst.msk [vmem:[#allocation2 + $0x148] sm:$0xff] %vm376, 0.0
          %418 = vst [vmem:[#allocation2 + $0x150] sm:$0xff] 0.0
          %419 = vst.msk [vmem:[#allocation2 + $0x158] sm:$0xff] %vm376, 0.0
          %420 = vst [vmem:[#allocation2 + $0x160] sm:$0xff] 0.0
          %421 = vst.msk [vmem:[#allocation2 + $0x168] sm:$0xff] %vm376, 0.0
          %422 = vst [vmem:[#allocation2 + $0x170] sm:$0xff] 0.0
          %423 = vst.msk [vmem:[#allocation2 + $0x178] sm:$0xff] %vm376, 0.0
          %424 = vst [vmem:[#allocation2 + $0x180] sm:$0xff] 0.0
          %425 = vst.msk [vmem:[#allocation2 + $0x188] sm:$0xff] %vm376, 0.0
          %426 = vst [vmem:[#allocation2 + $0x190] sm:$0xff] 0.0
          %427 = vst.msk [vmem:[#allocation2 + $0x198] sm:$0xff] %vm376, 0.0
          %428 = vst [vmem:[#allocation2 + $0x1a0] sm:$0xff] 0.0
          %429 = vst.msk [vmem:[#allocation2 + $0x1a8] sm:$0xff] %vm376, 0.0
          %430 = vst [vmem:[#allocation2 + $0x1b0] sm:$0xff] 0.0
          %431 = vst.msk [vmem:[#allocation2 + $0x1b8] sm:$0xff] %vm376, 0.0
          %432 = vst [vmem:[#allocation2 + $0x1c0] sm:$0xff] 0.0
          %433 = vst.msk [vmem:[#allocation2 + $0x1c8] sm:$0xff] %vm376, 0.0
          %434 = vst [vmem:[#allocation2 + $0x1d0] sm:$0xff] 0.0
          %435 = vst.msk [vmem:[#allocation2 + $0x1d8] sm:$0xff] %vm376, 0.0
          %436 = vst [vmem:[#allocation2 + $0x1e0] sm:$0xff] 0.0
          %437 = vst.msk [vmem:[#allocation2 + $0x1e8] sm:$0xff] %vm376, 0.0
          %438 = vst [vmem:[#allocation2 + $0x1f0] sm:$0xff] 0.0
          %439 = vst.msk [vmem:[#allocation2 + $0x1f8] sm:$0xff] %vm376, 0.0
        $region48: #{self_attention_forward.5} parent=39 // pred_fallthru
          _
        %v440 = vld [vmem:[%s282] sm:$0xff]
        %v441 = vld [vmem:[%s282 + $0x8] sm:$0xff]
        %v442 = vld [vmem:[%s282 + $0x10] sm:$0xff]
        %v443 = vld [vmem:[%s282 + $0x18] sm:$0xff]
        %v444 = vld [vmem:[%s282 + $0x20] sm:$0xff]
        %v445 = vld [vmem:[%s282 + $0x28] sm:$0xff]
        %v446 = vld [vmem:[%s282 + $0x30] sm:$0xff]
        %v447 = vld [vmem:[%s282 + $0x38] sm:$0xff]
        %v448 = vld [vmem:[%s282 + $0x40] sm:$0xff]
        %v449 = vld [vmem:[%s282 + $0x48] sm:$0xff]
        %v450 = vld [vmem:[%s282 + $0x50] sm:$0xff]
        %v451 = vld [vmem:[%s282 + $0x58] sm:$0xff]
        %v452 = vld [vmem:[%s282 + $0x60] sm:$0xff]
        %v453 = vld [vmem:[%s282 + $0x68] sm:$0xff]
        %v454 = vld [vmem:[%s282 + $0x70] sm:$0xff]
        %v455 = vld [vmem:[%s282 + $0x78] sm:$0xff]
        %v456 = vld [vmem:[%s282 + $0x80] sm:$0xff]
        %v457 = vld [vmem:[%s282 + $0x88] sm:$0xff]
        %v458 = vld [vmem:[%s282 + $0x90] sm:$0xff]
        %v459 = vld [vmem:[%s282 + $0x98] sm:$0xff]
        %v460 = vld [vmem:[%s282 + $0xa0] sm:$0xff]
        %v461 = vld [vmem:[%s282 + $0xa8] sm:$0xff]
        %v462 = vld [vmem:[%s282 + $0xb0] sm:$0xff]
        %v463 = vld [vmem:[%s282 + $0xb8] sm:$0xff]
        %v464 = vld [vmem:[%s282 + $0xc0] sm:$0xff]
        %v465 = vld [vmem:[%s282 + $0xc8] sm:$0xff]
        %v466 = vld [vmem:[%s282 + $0xd0] sm:$0xff]
        %v467 = vld [vmem:[%s282 + $0xd8] sm:$0xff]
        %v468 = vld [vmem:[%s282 + $0xe0] sm:$0xff]
        %v469 = vld [vmem:[%s282 + $0xe8] sm:$0xff]
        %v470 = vld [vmem:[%s282 + $0xf0] sm:$0xff]
        %v471 = vld [vmem:[%s282 + $0xf8] sm:$0xff]
        %vm472 = vcmask 523264
        %v473 = vsel %vm472, %v440, 0.0
        %474 = vadd.xlane.f32.xlu0 %v473
        %v475 = vpop.xlane.xlu0 %474
        %v476 = vsel %vm472, %v441, 0.0
        %477 = vadd.xlane.f32.xlu0 %v476
        %v478 = vpop.xlane.xlu0 %477
        %v479 = vsel %vm472, %v442, 0.0
        %480 = vadd.xlane.f32.xlu0 %v479
        %v481 = vpop.xlane.xlu0 %480
        %v482 = vsel %vm472, %v443, 0.0
        %483 = vadd.xlane.f32.xlu0 %v482
        %v484 = vpop.xlane.xlu0 %483
        %v485 = vsel %vm472, %v444, 0.0
        %486 = vadd.xlane.f32.xlu0 %v485
        %v487 = vpop.xlane.xlu0 %486
        %v488 = vsel %vm472, %v445, 0.0
        %489 = vadd.xlane.f32.xlu0 %v488
        %v490 = vpop.xlane.xlu0 %489
        %v491 = vsel %vm472, %v446, 0.0
        %492 = vadd.xlane.f32.xlu0 %v491
        %v493 = vpop.xlane.xlu0 %492
        %v494 = vsel %vm472, %v447, 0.0
        %495 = vadd.xlane.f32.xlu0 %v494
        %v496 = vpop.xlane.xlu0 %495
        %v497 = vsel %vm472, %v448, 0.0
        %498 = vadd.xlane.f32.xlu0 %v497
        %v499 = vpop.xlane.xlu0 %498
        %v500 = vsel %vm472, %v449, 0.0
        %501 = vadd.xlane.f32.xlu0 %v500
        %v502 = vpop.xlane.xlu0 %501
        %v503 = vsel %vm472, %v450, 0.0
        %504 = vadd.xlane.f32.xlu0 %v503
        %v505 = vpop.xlane.xlu0 %504
        %v506 = vsel %vm472, %v451, 0.0
        %507 = vadd.xlane.f32.xlu0 %v506
        %v508 = vpop.xlane.xlu0 %507
        %v509 = vsel %vm472, %v452, 0.0
        %510 = vadd.xlane.f32.xlu0 %v509
        %v511 = vpop.xlane.xlu0 %510
        %v512 = vsel %vm472, %v453, 0.0
        %513 = vadd.xlane.f32.xlu0 %v512
        %v514 = vpop.xlane.xlu0 %513
        %v515 = vsel %vm472, %v454, 0.0
        %516 = vadd.xlane.f32.xlu0 %v515
        %v517 = vpop.xlane.xlu0 %516
        %v518 = vsel %vm472, %v455, 0.0
        %519 = vadd.xlane.f32.xlu0 %v518
        %v520 = vpop.xlane.xlu0 %519
        %v521 = vsel %vm472, %v456, 0.0
        %522 = vadd.xlane.f32.xlu0 %v521
        %v523 = vpop.xlane.xlu0 %522
        %v524 = vsel %vm472, %v457, 0.0
        %525 = vadd.xlane.f32.xlu0 %v524
        %v526 = vpop.xlane.xlu0 %525
        %v527 = vsel %vm472, %v458, 0.0
        %528 = vadd.xlane.f32.xlu0 %v527
        %v529 = vpop.xlane.xlu0 %528
        %v530 = vsel %vm472, %v459, 0.0
        %531 = vadd.xlane.f32.xlu0 %v530
        %v532 = vpop.xlane.xlu0 %531
        %v533 = vsel %vm472, %v460, 0.0
        %534 = vadd.xlane.f32.xlu0 %v533
        %v535 = vpop.xlane.xlu0 %534
        %v536 = vsel %vm472, %v461, 0.0
        %537 = vadd.xlane.f32.xlu0 %v536
        %v538 = vpop.xlane.xlu0 %537
        %v539 = vsel %vm472, %v462, 0.0
        %540 = vadd.xlane.f32.xlu0 %v539
        %v541 = vpop.xlane.xlu0 %540
        %v542 = vsel %vm472, %v463, 0.0
        %543 = vadd.xlane.f32.xlu0 %v542
        %v544 = vpop.xlane.xlu0 %543
        %v545 = vsel %vm472, %v464, 0.0
        %546 = vadd.xlane.f32.xlu0 %v545
        %v547 = vpop.xlane.xlu0 %546
        %v548 = vsel %vm472, %v465, 0.0
        %549 = vadd.xlane.f32.xlu0 %v548
        %v550 = vpop.xlane.xlu0 %549
        %v551 = vsel %vm472, %v466, 0.0
        %552 = vadd.xlane.f32.xlu0 %v551
        %v553 = vpop.xlane.xlu0 %552
        %v554 = vsel %vm472, %v467, 0.0
        %555 = vadd.xlane.f32.xlu0 %v554
        %v556 = vpop.xlane.xlu0 %555
        %v557 = vsel %vm472, %v468, 0.0
        %558 = vadd.xlane.f32.xlu0 %v557
        %v559 = vpop.xlane.xlu0 %558
        %v560 = vsel %vm472, %v469, 0.0
        %561 = vadd.xlane.f32.xlu0 %v560
        %v562 = vpop.xlane.xlu0 %561
        %v563 = vsel %vm472, %v470, 0.0
        %564 = vadd.xlane.f32.xlu0 %v563
        %v565 = vpop.xlane.xlu0 %564
        %v566 = vsel %vm472, %v471, 0.0
        %567 = vadd.xlane.f32.xlu0 %v566
        %v568 = vpop.xlane.xlu0 %567
        %v569 = vrcp.pop 64.0
        %v570 = vmul.f32 %v475, %v569
        %v571 = vmul.f32 %v478, %v569
        %v572 = vmul.f32 %v481, %v569
        %v573 = vmul.f32 %v484, %v569
        %v574 = vmul.f32 %v487, %v569
        %v575 = vmul.f32 %v490, %v569
        %v576 = vmul.f32 %v493, %v569
        %v577 = vmul.f32 %v496, %v569
        %v578 = vmul.f32 %v499, %v569
        %v579 = vmul.f32 %v502, %v569
        %v580 = vmul.f32 %v505, %v569
        %v581 = vmul.f32 %v508, %v569
        %v582 = vmul.f32 %v511, %v569
        %v583 = vmul.f32 %v514, %v569
        %v584 = vmul.f32 %v517, %v569
        %v585 = vmul.f32 %v520, %v569
        %v586 = vmul.f32 %v523, %v569
        %v587 = vmul.f32 %v526, %v569
        %v588 = vmul.f32 %v529, %v569
        %v589 = vmul.f32 %v532, %v569
        %v590 = vmul.f32 %v535, %v569
        %v591 = vmul.f32 %v538, %v569
        %v592 = vmul.f32 %v541, %v569
        %v593 = vmul.f32 %v544, %v569
        %v594 = vmul.f32 %v547, %v569
        %v595 = vmul.f32 %v550, %v569
        %v596 = vmul.f32 %v553, %v569
        %v597 = vmul.f32 %v556, %v569
        %v598 = vmul.f32 %v559, %v569
        %v599 = vmul.f32 %v562, %v569
        %v600 = vmul.f32 %v565, %v569
        %v601 = vmul.f32 %v568, %v569
        %v602 = vsub.f32 %v440, %v570
        %v603 = vsub.f32 %v441, %v571
        %v604 = vsub.f32 %v442, %v572
        %v605 = vsub.f32 %v443, %v573
        %v606 = vsub.f32 %v444, %v574
        %v607 = vsub.f32 %v445, %v575
        %v608 = vsub.f32 %v446, %v576
        %v609 = vsub.f32 %v447, %v577
        %v610 = vsub.f32 %v448, %v578
        %v611 = vsub.f32 %v449, %v579
        %v612 = vsub.f32 %v450, %v580
        %v613 = vsub.f32 %v451, %v581
        %v614 = vsub.f32 %v452, %v582
        %v615 = vsub.f32 %v453, %v583
        %v616 = vsub.f32 %v454, %v584
        %v617 = vsub.f32 %v455, %v585
        %v618 = vsub.f32 %v456, %v586
        %v619 = vsub.f32 %v457, %v587
        %v620 = vsub.f32 %v458, %v588
        %v621 = vsub.f32 %v459, %v589
        %v622 = vsub.f32 %v460, %v590
        %v623 = vsub.f32 %v461, %v591
        %v624 = vsub.f32 %v462, %v592
        %v625 = vsub.f32 %v463, %v593
        %v626 = vsub.f32 %v464, %v594
        %v627 = vsub.f32 %v465, %v595
        %v628 = vsub.f32 %v466, %v596
        %v629 = vsub.f32 %v467, %v597
        %v630 = vsub.f32 %v468, %v598
        %v631 = vsub.f32 %v469, %v599
        %v632 = vsub.f32 %v470, %v600
        %v633 = vsub.f32 %v471, %v601
        %v634 = vmul.f32 %v602, %v602
        %v635 = vmul.f32 %v603, %v603
        %v636 = vmul.f32 %v604, %v604
        %v637 = vmul.f32 %v605, %v605
        %v638 = vmul.f32 %v606, %v606
        %v639 = vmul.f32 %v607, %v607
        %v640 = vmul.f32 %v608, %v608
        %v641 = vmul.f32 %v609, %v609
        %v642 = vmul.f32 %v610, %v610
        %v643 = vmul.f32 %v611, %v611
        %v644 = vmul.f32 %v612, %v612
        %v645 = vmul.f32 %v613, %v613
        %v646 = vmul.f32 %v614, %v614
        %v647 = vmul.f32 %v615, %v615
        %v648 = vmul.f32 %v616, %v616
        %v649 = vmul.f32 %v617, %v617
        %v650 = vmul.f32 %v618, %v618
        %v651 = vmul.f32 %v619, %v619
        %v652 = vmul.f32 %v620, %v620
        %v653 = vmul.f32 %v621, %v621
        %v654 = vmul.f32 %v622, %v622
        %v655 = vmul.f32 %v623, %v623
        %v656 = vmul.f32 %v624, %v624
        %v657 = vmul.f32 %v625, %v625
        %v658 = vmul.f32 %v626, %v626
        %v659 = vmul.f32 %v627, %v627
        %v660 = vmul.f32 %v628, %v628
        %v661 = vmul.f32 %v629, %v629
        %v662 = vmul.f32 %v630, %v630
        %v663 = vmul.f32 %v631, %v631
        %v664 = vmul.f32 %v632, %v632
        %v665 = vmul.f32 %v633, %v633
        %v666 = vsel %vm472, %v634, 0.0
        %667 = vadd.xlane.f32.xlu0 %v666
        %v668 = vpop.xlane.xlu0 %667
        %v669 = vsel %vm472, %v635, 0.0
        %670 = vadd.xlane.f32.xlu0 %v669
        %v671 = vpop.xlane.xlu0 %670
        %v672 = vsel %vm472, %v636, 0.0
        %673 = vadd.xlane.f32.xlu0 %v672
        %v674 = vpop.xlane.xlu0 %673
        %v675 = vsel %vm472, %v637, 0.0
        %676 = vadd.xlane.f32.xlu0 %v675
        %v677 = vpop.xlane.xlu0 %676
        %v678 = vsel %vm472, %v638, 0.0
        %679 = vadd.xlane.f32.xlu0 %v678
        %v680 = vpop.xlane.xlu0 %679
        %v681 = vsel %vm472, %v639, 0.0
        %682 = vadd.xlane.f32.xlu0 %v681
        %v683 = vpop.xlane.xlu0 %682
        %v684 = vsel %vm472, %v640, 0.0
        %685 = vadd.xlane.f32.xlu0 %v684
        %v686 = vpop.xlane.xlu0 %685
        %v687 = vsel %vm472, %v641, 0.0
        %688 = vadd.xlane.f32.xlu0 %v687
        %v689 = vpop.xlane.xlu0 %688
        %v690 = vsel %vm472, %v642, 0.0
        %691 = vadd.xlane.f32.xlu0 %v690
        %v692 = vpop.xlane.xlu0 %691
        %v693 = vsel %vm472, %v643, 0.0
        %694 = vadd.xlane.f32.xlu0 %v693
        %v695 = vpop.xlane.xlu0 %694
        %v696 = vsel %vm472, %v644, 0.0
        %697 = vadd.xlane.f32.xlu0 %v696
        %v698 = vpop.xlane.xlu0 %697
        %v699 = vsel %vm472, %v645, 0.0
        %700 = vadd.xlane.f32.xlu0 %v699
        %v701 = vpop.xlane.xlu0 %700
        %v702 = vsel %vm472, %v646, 0.0
        %703 = vadd.xlane.f32.xlu0 %v702
        %v704 = vpop.xlane.xlu0 %703
        %v705 = vsel %vm472, %v647, 0.0
        %706 = vadd.xlane.f32.xlu0 %v705
        %v707 = vpop.xlane.xlu0 %706
        %v708 = vsel %vm472, %v648, 0.0
        %709 = vadd.xlane.f32.xlu0 %v708
        %v710 = vpop.xlane.xlu0 %709
        %v711 = vsel %vm472, %v649, 0.0
        %712 = vadd.xlane.f32.xlu0 %v711
        %v713 = vpop.xlane.xlu0 %712
        %v714 = vsel %vm472, %v650, 0.0
        %715 = vadd.xlane.f32.xlu0 %v714
        %v716 = vpop.xlane.xlu0 %715
        %v717 = vsel %vm472, %v651, 0.0
        %718 = vadd.xlane.f32.xlu0 %v717
        %v719 = vpop.xlane.xlu0 %718
        %v720 = vsel %vm472, %v652, 0.0
        %721 = vadd.xlane.f32.xlu0 %v720
        %v722 = vpop.xlane.xlu0 %721
        %v723 = vsel %vm472, %v653, 0.0
        %724 = vadd.xlane.f32.xlu0 %v723
        %v725 = vpop.xlane.xlu0 %724
        %v726 = vsel %vm472, %v654, 0.0
        %727 = vadd.xlane.f32.xlu0 %v726
        %v728 = vpop.xlane.xlu0 %727
        %v729 = vsel %vm472, %v655, 0.0
        %730 = vadd.xlane.f32.xlu0 %v729
        %v731 = vpop.xlane.xlu0 %730
        %v732 = vsel %vm472, %v656, 0.0
        %733 = vadd.xlane.f32.xlu0 %v732
        %v734 = vpop.xlane.xlu0 %733
        %v735 = vsel %vm472, %v657, 0.0
        %736 = vadd.xlane.f32.xlu0 %v735
        %v737 = vpop.xlane.xlu0 %736
        %v738 = vsel %vm472, %v658, 0.0
        %739 = vadd.xlane.f32.xlu0 %v738
        %v740 = vpop.xlane.xlu0 %739
        %v741 = vsel %vm472, %v659, 0.0
        %742 = vadd.xlane.f32.xlu0 %v741
        %v743 = vpop.xlane.xlu0 %742
        %v744 = vsel %vm472, %v660, 0.0
        %745 = vadd.xlane.f32.xlu0 %v744
        %v746 = vpop.xlane.xlu0 %745
        %v747 = vsel %vm472, %v661, 0.0
        %748 = vadd.xlane.f32.xlu0 %v747
        %v749 = vpop.xlane.xlu0 %748
        %v750 = vsel %vm472, %v662, 0.0
        %751 = vadd.xlane.f32.xlu0 %v750
        %v752 = vpop.xlane.xlu0 %751
        %v753 = vsel %vm472, %v663, 0.0
        %754 = vadd.xlane.f32.xlu0 %v753
        %v755 = vpop.xlane.xlu0 %754
        %v756 = vsel %vm472, %v664, 0.0
        %757 = vadd.xlane.f32.xlu0 %v756
        %v758 = vpop.xlane.xlu0 %757
        %v759 = vsel %vm472, %v665, 0.0
        %760 = vadd.xlane.f32.xlu0 %v759
        %v761 = vpop.xlane.xlu0 %760
        %v762 = vmul.f32 %v668, %v569
        %v763 = vmul.f32 %v671, %v569
        %v764 = vmul.f32 %v674, %v569
        %v765 = vmul.f32 %v677, %v569
        %v766 = vmul.f32 %v680, %v569
        %v767 = vmul.f32 %v683, %v569
        %v768 = vmul.f32 %v686, %v569
        %v769 = vmul.f32 %v689, %v569
        %v770 = vmul.f32 %v692, %v569
        %v771 = vmul.f32 %v695, %v569
        %v772 = vmul.f32 %v698, %v569
        %v773 = vmul.f32 %v701, %v569
        %v774 = vmul.f32 %v704, %v569
        %v775 = vmul.f32 %v707, %v569
        %v776 = vmul.f32 %v710, %v569
        %v777 = vmul.f32 %v713, %v569
        %v778 = vmul.f32 %v716, %v569
        %v779 = vmul.f32 %v719, %v569
        %v780 = vmul.f32 %v722, %v569
        %v781 = vmul.f32 %v725, %v569
        %v782 = vmul.f32 %v728, %v569
        %v783 = vmul.f32 %v731, %v569
        %v784 = vmul.f32 %v734, %v569
        %v785 = vmul.f32 %v737, %v569
        %v786 = vmul.f32 %v740, %v569
        %v787 = vmul.f32 %v743, %v569
        %v788 = vmul.f32 %v746, %v569
        %v789 = vmul.f32 %v749, %v569
        %v790 = vmul.f32 %v752, %v569
        %v791 = vmul.f32 %v755, %v569
        %v792 = vmul.f32 %v758, %v569
        %v793 = vmul.f32 %v761, %v569
        %v794 = vadd.f32 %v762, 1e-05
        %v795 = vadd.f32 %v763, 1e-05
        %v796 = vadd.f32 %v764, 1e-05
        %v797 = vadd.f32 %v765, 1e-05
        %v798 = vadd.f32 %v766, 1e-05
        %v799 = vadd.f32 %v767, 1e-05
        %v800 = vadd.f32 %v768, 1e-05
        %v801 = vadd.f32 %v769, 1e-05
        %v802 = vadd.f32 %v770, 1e-05
        %v803 = vadd.f32 %v771, 1e-05
        %v804 = vadd.f32 %v772, 1e-05
        %v805 = vadd.f32 %v773, 1e-05
        %v806 = vadd.f32 %v774, 1e-05
        %v807 = vadd.f32 %v775, 1e-05
        %v808 = vadd.f32 %v776, 1e-05
        %v809 = vadd.f32 %v777, 1e-05
        %v810 = vadd.f32 %v778, 1e-05
        %v811 = vadd.f32 %v779, 1e-05
        %v812 = vadd.f32 %v780, 1e-05
        %v813 = vadd.f32 %v781, 1e-05
        %v814 = vadd.f32 %v782, 1e-05
        %v815 = vadd.f32 %v783, 1e-05
        %v816 = vadd.f32 %v784, 1e-05
        %v817 = vadd.f32 %v785, 1e-05
        %v818 = vadd.f32 %v786, 1e-05
        %v819 = vadd.f32 %v787, 1e-05
        %v820 = vadd.f32 %v788, 1e-05
        %v821 = vadd.f32 %v789, 1e-05
        %v822 = vadd.f32 %v790, 1e-05
        %v823 = vadd.f32 %v791, 1e-05
        %v824 = vadd.f32 %v792, 1e-05
        %v825 = vadd.f32 %v793, 1e-05
        %v826 = vrsqrt.pop %v794
        %v827 = vrsqrt.pop %v795
        %v828 = vrsqrt.pop %v796
        %v829 = vrsqrt.pop %v797
        %v830 = vrsqrt.pop %v798
        %v831 = vrsqrt.pop %v799
        %v832 = vrsqrt.pop %v800
        %v833 = vrsqrt.pop %v801
        %v834 = vrsqrt.pop %v802
        %v835 = vrsqrt.pop %v803
        %v836 = vrsqrt.pop %v804
        %v837 = vrsqrt.pop %v805
        %v838 = vrsqrt.pop %v806
        %v839 = vrsqrt.pop %v807
        %v840 = vrsqrt.pop %v808
        %v841 = vrsqrt.pop %v809
        %v842 = vrsqrt.pop %v810
        %v843 = vrsqrt.pop %v811
        %v844 = vrsqrt.pop %v812
        %v845 = vrsqrt.pop %v813
        %v846 = vrsqrt.pop %v814
        %v847 = vrsqrt.pop %v815
        %v848 = vrsqrt.pop %v816
        %v849 = vrsqrt.pop %v817
        %v850 = vrsqrt.pop %v818
        %v851 = vrsqrt.pop %v819
        %v852 = vrsqrt.pop %v820
        %v853 = vrsqrt.pop %v821
        %v854 = vrsqrt.pop %v822
        %v855 = vrsqrt.pop %v823
        %v856 = vrsqrt.pop %v824
        %v857 = vrsqrt.pop %v825
        %v858 = vmul.f32 %v602, %v826
        %v859 = vmul.f32 %v603, %v827
        %v860 = vmul.f32 %v604, %v828
        %v861 = vmul.f32 %v605, %v829
        %v862 = vmul.f32 %v606, %v830
        %v863 = vmul.f32 %v607, %v831
        %v864 = vmul.f32 %v608, %v832
        %v865 = vmul.f32 %v609, %v833
        %v866 = vmul.f32 %v610, %v834
        %v867 = vmul.f32 %v611, %v835
        %v868 = vmul.f32 %v612, %v836
        %v869 = vmul.f32 %v613, %v837
        %v870 = vmul.f32 %v614, %v838
        %v871 = vmul.f32 %v615, %v839
        %v872 = vmul.f32 %v616, %v840
        %v873 = vmul.f32 %v617, %v841
        %v874 = vmul.f32 %v618, %v842
        %v875 = vmul.f32 %v619, %v843
        %v876 = vmul.f32 %v620, %v844
        %v877 = vmul.f32 %v621, %v845
        %v878 = vmul.f32 %v622, %v846
        %v879 = vmul.f32 %v623, %v847
        %v880 = vmul.f32 %v624, %v848
        %v881 = vmul.f32 %v625, %v849
        %v882 = vmul.f32 %v626, %v850
        %v883 = vmul.f32 %v627, %v851
        %v884 = vmul.f32 %v628, %v852
        %v885 = vmul.f32 %v629, %v853
        %v886 = vmul.f32 %v630, %v854
        %v887 = vmul.f32 %v631, %v855
        %v888 = vmul.f32 %v632, %v856
        %v889 = vmul.f32 %v633, %v857
        %v890 = vld [vmem:[%s354] sm:$0x1]
        %v892 = vlaneseq
        %v893 = vshrl.u32 %v892, 7
        %v894 = vsub.s32 0, %v893
        %v895 = vrot.slane %v890, %v894
        %v897 = vmul.f32 %v858, %v895
        %v898 = vmul.f32 %v859, %v895
        %v899 = vmul.f32 %v860, %v895
        %v900 = vmul.f32 %v861, %v895
        %v901 = vmul.f32 %v862, %v895
        %v902 = vmul.f32 %v863, %v895
        %v903 = vmul.f32 %v864, %v895
        %v904 = vmul.f32 %v865, %v895
        %v905 = vmul.f32 %v866, %v895
        %v906 = vmul.f32 %v867, %v895
        %v907 = vmul.f32 %v868, %v895
        %v908 = vmul.f32 %v869, %v895
        %v909 = vmul.f32 %v870, %v895
        %v910 = vmul.f32 %v871, %v895
        %v911 = vmul.f32 %v872, %v895
        %v912 = vmul.f32 %v873, %v895
        %v913 = vmul.f32 %v874, %v895
        %v914 = vmul.f32 %v875, %v895
        %v915 = vmul.f32 %v876, %v895
        %v916 = vmul.f32 %v877, %v895
        %v917 = vmul.f32 %v878, %v895
        %v918 = vmul.f32 %v879, %v895
        %v919 = vmul.f32 %v880, %v895
        %v920 = vmul.f32 %v881, %v895
        %v921 = vmul.f32 %v882, %v895
        %v922 = vmul.f32 %v883, %v895
        %v923 = vmul.f32 %v884, %v895
        %v924 = vmul.f32 %v885, %v895
        %v925 = vmul.f32 %v886, %v895
        %v926 = vmul.f32 %v887, %v895
        %v927 = vmul.f32 %v888, %v895
        %v928 = vmul.f32 %v889, %v895
        %v929 = vld [vmem:[%s357] sm:$0x1]
        %v931 = vlaneseq
        %v932 = vshrl.u32 %v931, 7
        %v933 = vsub.s32 0, %v932
        %v934 = vrot.slane %v929, %v933
        %v936 = vadd.f32 %v897, %v934
        %v937 = vadd.f32 %v898, %v934
        %v938 = vadd.f32 %v899, %v934
        %v939 = vadd.f32 %v900, %v934
        %v940 = vadd.f32 %v901, %v934
        %v941 = vadd.f32 %v902, %v934
        %v942 = vadd.f32 %v903, %v934
        %v943 = vadd.f32 %v904, %v934
        %v944 = vadd.f32 %v905, %v934
        %v945 = vadd.f32 %v906, %v934
        %v946 = vadd.f32 %v907, %v934
        %v947 = vadd.f32 %v908, %v934
        %v948 = vadd.f32 %v909, %v934
        %v949 = vadd.f32 %v910, %v934
        %v950 = vadd.f32 %v911, %v934
        %v951 = vadd.f32 %v912, %v934
        %v952 = vadd.f32 %v913, %v934
        %v953 = vadd.f32 %v914, %v934
        %v954 = vadd.f32 %v915, %v934
        %v955 = vadd.f32 %v916, %v934
        %v956 = vadd.f32 %v917, %v934
        %v957 = vadd.f32 %v918, %v934
        %v958 = vadd.f32 %v919, %v934
        %v959 = vadd.f32 %v920, %v934
        %v960 = vadd.f32 %v921, %v934
        %v961 = vadd.f32 %v922, %v934
        %v962 = vadd.f32 %v923, %v934
        %v963 = vadd.f32 %v924, %v934
        %v964 = vadd.f32 %v925, %v934
        %v965 = vadd.f32 %v926, %v934
        %v966 = vadd.f32 %v927, %v934
        %v967 = vadd.f32 %v928, %v934
        %v968 = vpack.c.bf16 %v937, %v936
        %v969 = vpack.c.bf16 %v939, %v938
        %v970 = vpack.c.bf16 %v941, %v940
        %v971 = vpack.c.bf16 %v943, %v942
        %v972 = vpack.c.bf16 %v945, %v944
        %v973 = vpack.c.bf16 %v947, %v946
        %v974 = vpack.c.bf16 %v949, %v948
        %v975 = vpack.c.bf16 %v951, %v950
        %v976 = vpack.c.bf16 %v953, %v952
        %v977 = vpack.c.bf16 %v955, %v954
        %v978 = vpack.c.bf16 %v957, %v956
        %v979 = vpack.c.bf16 %v959, %v958
        %v980 = vpack.c.bf16 %v961, %v960
        %v981 = vpack.c.bf16 %v963, %v962
        %v982 = vpack.c.bf16 %v965, %v964
        %v983 = vpack.c.bf16 %v967, %v966
        %v984 = vld [vmem:[#allocation2] sm:$0xff]
        %v985 = vld [vmem:[#allocation2 + $0x8] sm:$0xff]
        %v986 = vld [vmem:[#allocation2 + $0x10] sm:$0xff]
        %v987 = vld [vmem:[#allocation2 + $0x18] sm:$0xff]
        %v988 = vld [vmem:[#allocation2 + $0x20] sm:$0xff]
        %v989 = vld [vmem:[#allocation2 + $0x28] sm:$0xff]
        %v990 = vld [vmem:[#allocation2 + $0x30] sm:$0xff]
        %v991 = vld [vmem:[#allocation2 + $0x38] sm:$0xff]
        %v992 = vld [vmem:[#allocation2 + $0x40] sm:$0xff]
        %v993 = vld [vmem:[#allocation2 + $0x48] sm:$0xff]
        %v994 = vld [vmem:[#allocation2 + $0x50] sm:$0xff]
        %v995 = vld [vmem:[#allocation2 + $0x58] sm:$0xff]
        %v996 = vld [vmem:[#allocation2 + $0x60] sm:$0xff]
        %v997 = vld [vmem:[#allocation2 + $0x68] sm:$0xff]
        %v998 = vld [vmem:[#allocation2 + $0x70] sm:$0xff]
        %v999 = vld [vmem:[#allocation2 + $0x78] sm:$0xff]
        %v1000 = vld [vmem:[#allocation2 + $0x80] sm:$0xff]
        %v1001 = vld [vmem:[#allocation2 + $0x88] sm:$0xff]
        %v1002 = vld [vmem:[#allocation2 + $0x90] sm:$0xff]
        %v1003 = vld [vmem:[#allocation2 + $0x98] sm:$0xff]
        %v1004 = vld [vmem:[#allocation2 + $0xa0] sm:$0xff]
        %v1005 = vld [vmem:[#allocation2 + $0xa8] sm:$0xff]
        %v1006 = vld [vmem:[#allocation2 + $0xb0] sm:$0xff]
        %v1007 = vld [vmem:[#allocation2 + $0xb8] sm:$0xff]
        %v1008 = vld [vmem:[#allocation2 + $0xc0] sm:$0xff]
        %v1009 = vld [vmem:[#allocation2 + $0xc8] sm:$0xff]
        %v1010 = vld [vmem:[#allocation2 + $0xd0] sm:$0xff]
        %v1011 = vld [vmem:[#allocation2 + $0xd8] sm:$0xff]
        %v1012 = vld [vmem:[#allocation2 + $0xe0] sm:$0xff]
        %v1013 = vld [vmem:[#allocation2 + $0xe8] sm:$0xff]
        %v1014 = vld [vmem:[#allocation2 + $0xf0] sm:$0xff]
        %v1015 = vld [vmem:[#allocation2 + $0xf8] sm:$0xff]
        %v1016 = vld [vmem:[#allocation2 + $0x100] sm:$0xff]
        %v1017 = vld [vmem:[#allocation2 + $0x108] sm:$0xff]
        %v1018 = vld [vmem:[#allocation2 + $0x110] sm:$0xff]
        %v1019 = vld [vmem:[#allocation2 + $0x118] sm:$0xff]
        %v1020 = vld [vmem:[#allocation2 + $0x120] sm:$0xff]
        %v1021 = vld [vmem:[#allocation2 + $0x128] sm:$0xff]
        %v1022 = vld [vmem:[#allocation2 + $0x130] sm:$0xff]
        %v1023 = vld [vmem:[#allocation2 + $0x138] sm:$0xff]
        %v1024 = vld [vmem:[#allocation2 + $0x140] sm:$0xff]
        %v1025 = vld [vmem:[#allocation2 + $0x148] sm:$0xff]
        %v1026 = vld [vmem:[#allocation2 + $0x150] sm:$0xff]
        %v1027 = vld [vmem:[#allocation2 + $0x158] sm:$0xff]
        %v1028 = vld [vmem:[#allocation2 + $0x160] sm:$0xff]
        %v1029 = vld [vmem:[#allocation2 + $0x168] sm:$0xff]
        %v1030 = vld [vmem:[#allocation2 + $0x170] sm:$0xff]
        %v1031 = vld [vmem:[#allocation2 + $0x178] sm:$0xff]
        %v1032 = vld [vmem:[#allocation2 + $0x180] sm:$0xff]
        %v1033 = vld [vmem:[#allocation2 + $0x188] sm:$0xff]
        %v1034 = vld [vmem:[#allocation2 + $0x190] sm:$0xff]
        %v1035 = vld [vmem:[#allocation2 + $0x198] sm:$0xff]
        %v1036 = vld [vmem:[#allocation2 + $0x1a0] sm:$0xff]
        %v1037 = vld [vmem:[#allocation2 + $0x1a8] sm:$0xff]
        %v1038 = vld [vmem:[#allocation2 + $0x1b0] sm:$0xff]
        %v1039 = vld [vmem:[#allocation2 + $0x1b8] sm:$0xff]
        %v1040 = vld [vmem:[#allocation2 + $0x1c0] sm:$0xff]
        %v1041 = vld [vmem:[#allocation2 + $0x1c8] sm:$0xff]
        %v1042 = vld [vmem:[#allocation2 + $0x1d0] sm:$0xff]
        %v1043 = vld [vmem:[#allocation2 + $0x1d8] sm:$0xff]
        %v1044 = vld [vmem:[#allocation2 + $0x1e0] sm:$0xff]
        %v1045 = vld [vmem:[#allocation2 + $0x1e8] sm:$0xff]
        %v1046 = vld [vmem:[#allocation2 + $0x1f0] sm:$0xff]
        %v1047 = vld [vmem:[#allocation2 + $0x1f8] sm:$0xff]
        %v1048 = vld [vmem:[%s344] sm:$0xff]
        %v1049 = vld [vmem:[%s344 + $0x8] sm:$0xff]
        %v1050 = vld [vmem:[%s344 + $0x10] sm:$0xff]
        %v1051 = vld [vmem:[%s344 + $0x18] sm:$0xff]
        %v1052 = vld [vmem:[%s344 + $0x20] sm:$0xff]
        %v1053 = vld [vmem:[%s344 + $0x28] sm:$0xff]
        %v1054 = vld [vmem:[%s344 + $0x30] sm:$0xff]
        %v1055 = vld [vmem:[%s344 + $0x38] sm:$0xff]
        %v1064 = vunpack.c.l.b16 %v1048
        %v1065 = vunpack.c.h.b16 %v1048
        %v1066 = vunpack.c.l.b16 %v1049
        %v1067 = vunpack.c.h.b16 %v1049
        %v1068 = vunpack.c.l.b16 %v1050
        %v1069 = vunpack.c.h.b16 %v1050
        %v1070 = vunpack.c.l.b16 %v1051
        %v1071 = vunpack.c.h.b16 %v1051
        %v1072 = vunpack.c.l.b16 %v1052
        %v1073 = vunpack.c.h.b16 %v1052
        %v1074 = vunpack.c.l.b16 %v1053
        %v1075 = vunpack.c.h.b16 %v1053
        %v1076 = vunpack.c.l.b16 %v1054
        %v1077 = vunpack.c.h.b16 %v1054
        %v1078 = vunpack.c.l.b16 %v1055
        %v1079 = vunpack.c.h.b16 %v1055
        %v1080 = vpack.c.b16 %v1066, %v1064
        %v1081 = vpack.c.b16 %v1067, %v1065
        %v1082 = vpack.c.b16 %v1070, %v1068
        %v1083 = vpack.c.b16 %v1071, %v1069
        %v1084 = vpack.c.b16 %v1074, %v1072
        %v1085 = vpack.c.b16 %v1075, %v1073
        %v1086 = vpack.c.b16 %v1078, %v1076
        %v1087 = vpack.c.b16 %v1079, %v1077
        %v1097 = vsel %vm472, %v968, 0
        %v1100 = vsel %vm472, %v969, 0
        %v1103 = vsel %vm472, %v970, 0
        %v1106 = vsel %vm472, %v971, 0
        %v1109 = vsel %vm472, %v972, 0
        %v1112 = vsel %vm472, %v973, 0
        %v1115 = vsel %vm472, %v974, 0
        %v1118 = vsel %vm472, %v975, 0
        %v1121 = vsel %vm472, %v976, 0
        %v1124 = vsel %vm472, %v977, 0
        %v1127 = vsel %vm472, %v978, 0
        %v1130 = vsel %vm472, %v979, 0
        %v1133 = vsel %vm472, %v980, 0
        %v1136 = vsel %vm472, %v981, 0
        %v1139 = vsel %vm472, %v982, 0
        %v1142 = vsel %vm472, %v983, 0
        %1144 = vmatprep.subr.bf16.mxu0 %v1081
        %1145 = vmatpush1.bf16.msra.mxu0 %v1080
        %1146 = vmatprep.subr.bf16.mxu0 %v1083
        %1147 = vmatpush1.bf16.msra.mxu0 %v1082
        %1148 = vmatprep.subr.bf16.mxu0 %v1085
        %1149 = vmatpush1.bf16.msra.mxu0 %v1084
        %1150 = vmatprep.subr.bf16.mxu0 %v1087
        %1151 = vmatpush1.bf16.msra.mxu0 %v1086
        %1152 = vmatprep.subr.bf16.mxu0 0
        %1153 = vmatpush1.bf16.msra.mxu0 0
        %1154 = vmatprep.subr.bf16.mxu0 0
        %1155 = vmatpush1.bf16.msra.mxu0 0
        %1156 = vmatprep.subr.bf16.mxu0 0
        %1157 = vmatpush1.bf16.msra.mxu0 0
        %1158 = vmatprep.subr.bf16.mxu0 0
        %1159 = vmatpush1.bf16.msra.mxu0 0
        %1160 = vmatprep.subr.bf16.mxu0 0
        %1161 = vmatpush1.bf16.msra.mxu0 0
        %1162 = vmatprep.subr.bf16.mxu0 0
        %1163 = vmatpush1.bf16.msra.mxu0 0
        %1164 = vmatprep.subr.bf16.mxu0 0
        %1165 = vmatpush1.bf16.msra.mxu0 0
        %1166 = vmatprep.subr.bf16.mxu0 0
        %1167 = vmatpush1.bf16.msra.mxu0 0
        %1168 = vmatprep.subr.bf16.mxu0 0
        %1169 = vmatpush1.bf16.msra.mxu0 0
        %1170 = vmatprep.subr.bf16.mxu0 0
        %1171 = vmatpush1.bf16.msra.mxu0 0
        %1172 = vmatprep.subr.bf16.mxu0 0
        %1173 = vmatpush1.bf16.msra.mxu0 0
        %1174 = vmatprep.subr.bf16.mxu0 0
        %1175 = vmatpush1.bf16.msra.mxu0 0
        %1176 = vmatprep.mubr.bf16.mxu0 0
        %1177 = vmatmul.mubr.bf16.gmra.mrb[0].mxu0 %v1097
        %v1178 = vpop.f32.mrb[0].mxu0
        %v1179 = vadd.f32 0.0, %v1178
        %v1180 = vpop.f32.mrb[0].mxu0
        %v1181 = vadd.f32 0.0, %v1180
        %v1182 = vpop.f32.mrb[0].mxu0
        %v1183 = vadd.f32 0.0, %v1182
        %v1184 = vpop.f32.mrb[0].mxu0
        %v1185 = vadd.f32 0.0, %v1184
        %1186 = vmatprep.mubr.bf16.mxu0 0
        %1187 = vmatmul.mubr.bf16.gmra.mrb[0].mxu0 %v1100
        %v1188 = vpop.f32.mrb[0].mxu0
        %v1189 = vadd.f32 0.0, %v1188
        %v1190 = vpop.f32.mrb[0].mxu0
        %v1191 = vadd.f32 0.0, %v1190
        %v1192 = vpop.f32.mrb[0].mxu0
        %v1193 = vadd.f32 0.0, %v1192
        %v1194 = vpop.f32.mrb[0].mxu0
        %v1195 = vadd.f32 0.0, %v1194
        %1196 = vmatprep.mubr.bf16.mxu0 0
        %1197 = vmatmul.mubr.bf16.gmra.mrb[0].mxu0 %v1103
        %v1198 = vpop.f32.mrb[0].mxu0
        %v1199 = vadd.f32 0.0, %v1198
        %v1200 = vpop.f32.mrb[0].mxu0
        %v1201 = vadd.f32 0.0, %v1200
        %v1202 = vpop.f32.mrb[0].mxu0
        %v1203 = vadd.f32 0.0, %v1202
        %v1204 = vpop.f32.mrb[0].mxu0
        %v1205 = vadd.f32 0.0, %v1204
        %1206 = vmatprep.mubr.bf16.mxu0 0
        %1207 = vmatmul.mubr.bf16.gmra.mrb[0].mxu0 %v1106
        %v1208 = vpop.f32.mrb[0].mxu0
        %v1209 = vadd.f32 0.0, %v1208
        %v1210 = vpop.f32.mrb[0].mxu0
        %v1211 = vadd.f32 0.0, %v1210
        %v1212 = vpop.f32.mrb[0].mxu0
        %v1213 = vadd.f32 0.0, %v1212
        %v1214 = vpop.f32.mrb[0].mxu0
        %v1215 = vadd.f32 0.0, %v1214
        %1216 = vmatprep.mubr.bf16.mxu0 0
        %1217 = vmatmul.mubr.bf16.gmra.mrb[0].mxu0 %v1109
        %v1218 = vpop.f32.mrb[0].mxu0
        %v1219 = vadd.f32 0.0, %v1218
        %v1220 = vpop.f32.mrb[0].mxu0
        %v1221 = vadd.f32 0.0, %v1220
        %v1222 = vpop.f32.mrb[0].mxu0
        %v1223 = vadd.f32 0.0, %v1222
        %v1224 = vpop.f32.mrb[0].mxu0
        %v1225 = vadd.f32 0.0, %v1224
        %1226 = vmatprep.mubr.bf16.mxu0 0
        %1227 = vmatmul.mubr.bf16.gmra.mrb[0].mxu0 %v1112
        %v1228 = vpop.f32.mrb[0].mxu0
        %v1229 = vadd.f32 0.0, %v1228
        %v1230 = vpop.f32.mrb[0].mxu0
        %v1231 = vadd.f32 0.0, %v1230
        %v1232 = vpop.f32.mrb[0].mxu0
        %v1233 = vadd.f32 0.0, %v1232
        %v1234 = vpop.f32.mrb[0].mxu0
        %v1235 = vadd.f32 0.0, %v1234
        %1236 = vmatprep.mubr.bf16.mxu0 0
        %1237 = vmatmul.mubr.bf16.gmra.mrb[0].mxu0 %v1115
        %v1238 = vpop.f32.mrb[0].mxu0
        %v1239 = vadd.f32 0.0, %v1238
        %v1240 = vpop.f32.mrb[0].mxu0
        %v1241 = vadd.f32 0.0, %v1240
        %v1242 = vpop.f32.mrb[0].mxu0
        %v1243 = vadd.f32 0.0, %v1242
        %v1244 = vpop.f32.mrb[0].mxu0
        %v1245 = vadd.f32 0.0, %v1244
        %1246 = vmatprep.mubr.bf16.mxu0 0
        %1247 = vmatmul.mubr.bf16.gmra.mrb[0].mxu0 %v1118
        %v1248 = vpop.f32.mrb[0].mxu0
        %v1249 = vadd.f32 0.0, %v1248
        %v1250 = vpop.f32.mrb[0].mxu0
        %v1251 = vadd.f32 0.0, %v1250
        %v1252 = vpop.f32.mrb[0].mxu0
        %v1253 = vadd.f32 0.0, %v1252
        %v1254 = vpop.f32.mrb[0].mxu0
        %v1255 = vadd.f32 0.0, %v1254
        %1256 = vmatprep.mubr.bf16.mxu0 0
        %1257 = vmatmul.mubr.bf16.gmra.mrb[0].mxu0 %v1121
        %v1258 = vpop.f32.mrb[0].mxu0
        %v1259 = vadd.f32 0.0, %v1258
        %v1260 = vpop.f32.mrb[0].mxu0
        %v1261 = vadd.f32 0.0, %v1260
        %v1262 = vpop.f32.mrb[0].mxu0
        %v1263 = vadd.f32 0.0, %v1262
        %v1264 = vpop.f32.mrb[0].mxu0
        %v1265 = vadd.f32 0.0, %v1264
        %1266 = vmatprep.mubr.bf16.mxu0 0
        %1267 = vmatmul.mubr.bf16.gmra.mrb[0].mxu0 %v1124
        %v1268 = vpop.f32.mrb[0].mxu0
        %v1269 = vadd.f32 0.0, %v1268
        %v1270 = vpop.f32.mrb[0].mxu0
        %v1271 = vadd.f32 0.0, %v1270
        %v1272 = vpop.f32.mrb[0].mxu0
        %v1273 = vadd.f32 0.0, %v1272
        %v1274 = vpop.f32.mrb[0].mxu0
        %v1275 = vadd.f32 0.0, %v1274
        %1276 = vmatprep.mubr.bf16.mxu0 0
        %1277 = vmatmul.mubr.bf16.gmra.mrb[0].mxu0 %v1127
        %v1278 = vpop.f32.mrb[0].mxu0
        %v1279 = vadd.f32 0.0, %v1278
        %v1280 = vpop.f32.mrb[0].mxu0
        %v1281 = vadd.f32 0.0, %v1280
        %v1282 = vpop.f32.mrb[0].mxu0
        %v1283 = vadd.f32 0.0, %v1282
        %v1284 = vpop.f32.mrb[0].mxu0
        %v1285 = vadd.f32 0.0, %v1284
        %1286 = vmatprep.mubr.bf16.mxu0 0
        %1287 = vmatmul.mubr.bf16.gmra.mrb[0].mxu0 %v1130
        %v1288 = vpop.f32.mrb[0].mxu0
        %v1289 = vadd.f32 0.0, %v1288
        %v1290 = vpop.f32.mrb[0].mxu0
        %v1291 = vadd.f32 0.0, %v1290
        %v1292 = vpop.f32.mrb[0].mxu0
        %v1293 = vadd.f32 0.0, %v1292
        %v1294 = vpop.f32.mrb[0].mxu0
        %v1295 = vadd.f32 0.0, %v1294
        %1296 = vmatprep.mubr.bf16.mxu0 0
        %1297 = vmatmul.mubr.bf16.gmra.mrb[0].mxu0 %v1133
        %v1298 = vpop.f32.mrb[0].mxu0
        %v1299 = vadd.f32 0.0, %v1298
        %v1300 = vpop.f32.mrb[0].mxu0
        %v1301 = vadd.f32 0.0, %v1300
        %v1302 = vpop.f32.mrb[0].mxu0
        %v1303 = vadd.f32 0.0, %v1302
        %v1304 = vpop.f32.mrb[0].mxu0
        %v1305 = vadd.f32 0.0, %v1304
        %1306 = vmatprep.mubr.bf16.mxu0 0
        %1307 = vmatmul.mubr.bf16.gmra.mrb[0].mxu0 %v1136
        %v1308 = vpop.f32.mrb[0].mxu0
        %v1309 = vadd.f32 0.0, %v1308
        %v1310 = vpop.f32.mrb[0].mxu0
        %v1311 = vadd.f32 0.0, %v1310
        %v1312 = vpop.f32.mrb[0].mxu0
        %v1313 = vadd.f32 0.0, %v1312
        %v1314 = vpop.f32.mrb[0].mxu0
        %v1315 = vadd.f32 0.0, %v1314
        %1316 = vmatprep.mubr.bf16.mxu0 0
        %1317 = vmatmul.mubr.bf16.gmra.mrb[0].mxu0 %v1139
        %v1318 = vpop.f32.mrb[0].mxu0
        %v1319 = vadd.f32 0.0, %v1318
        %v1320 = vpop.f32.mrb[0].mxu0
        %v1321 = vadd.f32 0.0, %v1320
        %v1322 = vpop.f32.mrb[0].mxu0
        %v1323 = vadd.f32 0.0, %v1322
        %v1324 = vpop.f32.mrb[0].mxu0
        %v1325 = vadd.f32 0.0, %v1324
        %1326 = vmatprep.mubr.bf16.mxu0 0
        %1327 = vmatmul.mubr.bf16.gmra.mrb[0].mxu0 %v1142
        %v1328 = vpop.f32.mrb[0].mxu0
        %v1329 = vadd.f32 0.0, %v1328
        %v1330 = vpop.f32.mrb[0].mxu0
        %v1331 = vadd.f32 0.0, %v1330
        %v1332 = vpop.f32.mrb[0].mxu0
        %v1333 = vadd.f32 0.0, %v1332
        %v1334 = vpop.f32.mrb[0].mxu0
        %v1335 = vadd.f32 0.0, %v1334
        %1336 = vdwg.mxu0
        %v1337 = vadd.f32 %v984, %v1179
        %v1338 = vadd.f32 %v985, %v1181
        %v1339 = vadd.f32 %v986, %v1183
        %v1340 = vadd.f32 %v987, %v1185
        %v1341 = vadd.f32 %v988, %v1189
        %v1342 = vadd.f32 %v989, %v1191
        %v1343 = vadd.f32 %v990, %v1193
        %v1344 = vadd.f32 %v991, %v1195
        %v1345 = vadd.f32 %v992, %v1199
        %v1346 = vadd.f32 %v993, %v1201
        %v1347 = vadd.f32 %v994, %v1203
        %v1348 = vadd.f32 %v995, %v1205
        %v1349 = vadd.f32 %v996, %v1209
        %v1350 = vadd.f32 %v997, %v1211
        %v1351 = vadd.f32 %v998, %v1213
        %v1352 = vadd.f32 %v999, %v1215
        %v1353 = vadd.f32 %v1000, %v1219
        %v1354 = vadd.f32 %v1001, %v1221
        %v1355 = vadd.f32 %v1002, %v1223
        %v1356 = vadd.f32 %v1003, %v1225
        %v1357 = vadd.f32 %v1004, %v1229
        %v1358 = vadd.f32 %v1005, %v1231
        %v1359 = vadd.f32 %v1006, %v1233
        %v1360 = vadd.f32 %v1007, %v1235
        %v1361 = vadd.f32 %v1008, %v1239
        %v1362 = vadd.f32 %v1009, %v1241
        %v1363 = vadd.f32 %v1010, %v1243
        %v1364 = vadd.f32 %v1011, %v1245
        %v1365 = vadd.f32 %v1012, %v1249
        %v1366 = vadd.f32 %v1013, %v1251
        %v1367 = vadd.f32 %v1014, %v1253
        %v1368 = vadd.f32 %v1015, %v1255
        %v1369 = vadd.f32 %v1016, %v1259
        %v1370 = vadd.f32 %v1017, %v1261
        %v1371 = vadd.f32 %v1018, %v1263
        %v1372 = vadd.f32 %v1019, %v1265
        %v1373 = vadd.f32 %v1020, %v1269
        %v1374 = vadd.f32 %v1021, %v1271
        %v1375 = vadd.f32 %v1022, %v1273
        %v1376 = vadd.f32 %v1023, %v1275
        %v1377 = vadd.f32 %v1024, %v1279
        %v1378 = vadd.f32 %v1025, %v1281
        %v1379 = vadd.f32 %v1026, %v1283
        %v1380 = vadd.f32 %v1027, %v1285
        %v1381 = vadd.f32 %v1028, %v1289
        %v1382 = vadd.f32 %v1029, %v1291
        %v1383 = vadd.f32 %v1030, %v1293
        %v1384 = vadd.f32 %v1031, %v1295
        %v1385 = vadd.f32 %v1032, %v1299
        %v1386 = vadd.f32 %v1033, %v1301
        %v1387 = vadd.f32 %v1034, %v1303
        %v1388 = vadd.f32 %v1035, %v1305
        %v1389 = vadd.f32 %v1036, %v1309
        %v1390 = vadd.f32 %v1037, %v1311
        %v1391 = vadd.f32 %v1038, %v1313
        %v1392 = vadd.f32 %v1039, %v1315
        %v1393 = vadd.f32 %v1040, %v1319
        %v1394 = vadd.f32 %v1041, %v1321
        %v1395 = vadd.f32 %v1042, %v1323
        %v1396 = vadd.f32 %v1043, %v1325
        %v1397 = vadd.f32 %v1044, %v1329
        %v1398 = vadd.f32 %v1045, %v1331
        %v1399 = vadd.f32 %v1046, %v1333
        %v1400 = vadd.f32 %v1047, %v1335
        %1401 = vst [vmem:[#allocation2] sm:$0xff] %v1337
        %1402 = vst.msk [vmem:[#allocation2 + $0x8] sm:$0xff] %vm472, %v1338
        %1403 = vst [vmem:[#allocation2 + $0x10] sm:$0xff] %v1339
        %1404 = vst.msk [vmem:[#allocation2 + $0x18] sm:$0xff] %vm472, %v1340
        %1405 = vst [vmem:[#allocation2 + $0x20] sm:$0xff] %v1341
        %1406 = vst.msk [vmem:[#allocation2 + $0x28] sm:$0xff] %vm472, %v1342
        %1407 = vst [vmem:[#allocation2 + $0x30] sm:$0xff] %v1343
        %1408 = vst.msk [vmem:[#allocation2 + $0x38] sm:$0xff] %vm472, %v1344
        %1409 = vst [vmem:[#allocation2 + $0x40] sm:$0xff] %v1345
        %1410 = vst.msk [vmem:[#allocation2 + $0x48] sm:$0xff] %vm472, %v1346
        %1411 = vst [vmem:[#allocation2 + $0x50] sm:$0xff] %v1347
        %1412 = vst.msk [vmem:[#allocation2 + $0x58] sm:$0xff] %vm472, %v1348
        %1413 = vst [vmem:[#allocation2 + $0x60] sm:$0xff] %v1349
        %1414 = vst.msk [vmem:[#allocation2 + $0x68] sm:$0xff] %vm472, %v1350
        %1415 = vst [vmem:[#allocation2 + $0x70] sm:$0xff] %v1351
        %1416 = vst.msk [vmem:[#allocation2 + $0x78] sm:$0xff] %vm472, %v1352
        %1417 = vst [vmem:[#allocation2 + $0x80] sm:$0xff] %v1353
        %1418 = vst.msk [vmem:[#allocation2 + $0x88] sm:$0xff] %vm472, %v1354
        %1419 = vst [vmem:[#allocation2 + $0x90] sm:$0xff] %v1355
        %1420 = vst.msk [vmem:[#allocation2 + $0x98] sm:$0xff] %vm472, %v1356
        %1421 = vst [vmem:[#allocation2 + $0xa0] sm:$0xff] %v1357
        %1422 = vst.msk [vmem:[#allocation2 + $0xa8] sm:$0xff] %vm472, %v1358
        %1423 = vst [vmem:[#allocation2 + $0xb0] sm:$0xff] %v1359
        %1424 = vst.msk [vmem:[#allocation2 + $0xb8] sm:$0xff] %vm472, %v1360
        %1425 = vst [vmem:[#allocation2 + $0xc0] sm:$0xff] %v1361
        %1426 = vst.msk [vmem:[#allocation2 + $0xc8] sm:$0xff] %vm472, %v1362
        %1427 = vst [vmem:[#allocation2 + $0xd0] sm:$0xff] %v1363
        %1428 = vst.msk [vmem:[#allocation2 + $0xd8] sm:$0xff] %vm472, %v1364
        %1429 = vst [vmem:[#allocation2 + $0xe0] sm:$0xff] %v1365
        %1430 = vst.msk [vmem:[#allocation2 + $0xe8] sm:$0xff] %vm472, %v1366
        %1431 = vst [vmem:[#allocation2 + $0xf0] sm:$0xff] %v1367
        %1432 = vst.msk [vmem:[#allocation2 + $0xf8] sm:$0xff] %vm472, %v1368
        %1433 = vst [vmem:[#allocation2 + $0x100] sm:$0xff] %v1369
        %1434 = vst.msk [vmem:[#allocation2 + $0x108] sm:$0xff] %vm472, %v1370
        %1435 = vst [vmem:[#allocation2 + $0x110] sm:$0xff] %v1371
        %1436 = vst.msk [vmem:[#allocation2 + $0x118] sm:$0xff] %vm472, %v1372
        %1437 = vst [vmem:[#allocation2 + $0x120] sm:$0xff] %v1373
        %1438 = vst.msk [vmem:[#allocation2 + $0x128] sm:$0xff] %vm472, %v1374
        %1439 = vst [vmem:[#allocation2 + $0x130] sm:$0xff] %v1375
        %1440 = vst.msk [vmem:[#allocation2 + $0x138] sm:$0xff] %vm472, %v1376
        %1441 = vst [vmem:[#allocation2 + $0x140] sm:$0xff] %v1377
        %1442 = vst.msk [vmem:[#allocation2 + $0x148] sm:$0xff] %vm472, %v1378
        %1443 = vst [vmem:[#allocation2 + $0x150] sm:$0xff] %v1379
        %1444 = vst.msk [vmem:[#allocation2 + $0x158] sm:$0xff] %vm472, %v1380
        %1445 = vst [vmem:[#allocation2 + $0x160] sm:$0xff] %v1381
        %1446 = vst.msk [vmem:[#allocation2 + $0x168] sm:$0xff] %vm472, %v1382
        %1447 = vst [vmem:[#allocation2 + $0x170] sm:$0xff] %v1383
        %1448 = vst.msk [vmem:[#allocation2 + $0x178] sm:$0xff] %vm472, %v1384
        %1449 = vst [vmem:[#allocation2 + $0x180] sm:$0xff] %v1385
        %1450 = vst.msk [vmem:[#allocation2 + $0x188] sm:$0xff] %vm472, %v1386
        %1451 = vst [vmem:[#allocation2 + $0x190] sm:$0xff] %v1387
        %1452 = vst.msk [vmem:[#allocation2 + $0x198] sm:$0xff] %vm472, %v1388
        %1453 = vst [vmem:[#allocation2 + $0x1a0] sm:$0xff] %v1389
        %1454 = vst.msk [vmem:[#allocation2 + $0x1a8] sm:$0xff] %vm472, %v1390
        %1455 = vst [vmem:[#allocation2 + $0x1b0] sm:$0xff] %v1391
        %1456 = vst.msk [vmem:[#allocation2 + $0x1b8] sm:$0xff] %vm472, %v1392
        %1457 = vst [vmem:[#allocation2 + $0x1c0] sm:$0xff] %v1393
        %1458 = vst.msk [vmem:[#allocation2 + $0x1c8] sm:$0xff] %vm472, %v1394
        %1459 = vst [vmem:[#allocation2 + $0x1d0] sm:$0xff] %v1395
        %1460 = vst.msk [vmem:[#allocation2 + $0x1d8] sm:$0xff] %vm472, %v1396
        %1461 = vst [vmem:[#allocation2 + $0x1e0] sm:$0xff] %v1397
        %1462 = vst.msk [vmem:[#allocation2 + $0x1e8] sm:$0xff] %vm472, %v1398
        %1463 = vst [vmem:[#allocation2 + $0x1f0] sm:$0xff] %v1399
        %1464 = vst.msk [vmem:[#allocation2 + $0x1f8] sm:$0xff] %vm472, %v1400
        // Predicated region
        $region49: #{self_attention_forward.5} parent=39 // pred_check
          %p1465 = pneg %p371
        $region50: #{self_attention_forward.5} parent=39 // pred_check_branch
          %1467 = sbr.rel (%p1465) target = $region52
        $region51: #{self_attention_forward.5} parent=39 // pred_region
          %v1468 = vld [vmem:[#allocation2] sm:$0xff]
          %v1469 = vld [vmem:[#allocation2 + $0x8] sm:$0xff]
          %v1470 = vld [vmem:[#allocation2 + $0x10] sm:$0xff]
          %v1471 = vld [vmem:[#allocation2 + $0x18] sm:$0xff]
          %v1472 = vld [vmem:[#allocation2 + $0x20] sm:$0xff]
          %v1473 = vld [vmem:[#allocation2 + $0x28] sm:$0xff]
          %v1474 = vld [vmem:[#allocation2 + $0x30] sm:$0xff]
          %v1475 = vld [vmem:[#allocation2 + $0x38] sm:$0xff]
          %v1476 = vld [vmem:[#allocation2 + $0x40] sm:$0xff]
          %v1477 = vld [vmem:[#allocation2 + $0x48] sm:$0xff]
          %v1478 = vld [vmem:[#allocation2 + $0x50] sm:$0xff]
          %v1479 = vld [vmem:[#allocation2 + $0x58] sm:$0xff]
          %v1480 = vld [vmem:[#allocation2 + $0x60] sm:$0xff]
          %v1481 = vld [vmem:[#allocation2 + $0x68] sm:$0xff]
          %v1482 = vld [vmem:[#allocation2 + $0x70] sm:$0xff]
          %v1483 = vld [vmem:[#allocation2 + $0x78] sm:$0xff]
          %v1484 = vld [vmem:[#allocation2 + $0x80] sm:$0xff]
          %v1485 = vld [vmem:[#allocation2 + $0x88] sm:$0xff]
          %v1486 = vld [vmem:[#allocation2 + $0x90] sm:$0xff]
          %v1487 = vld [vmem:[#allocation2 + $0x98] sm:$0xff]
          %v1488 = vld [vmem:[#allocation2 + $0xa0] sm:$0xff]
          %v1489 = vld [vmem:[#allocation2 + $0xa8] sm:$0xff]
          %v1490 = vld [vmem:[#allocation2 + $0xb0] sm:$0xff]
          %v1491 = vld [vmem:[#allocation2 + $0xb8] sm:$0xff]
          %v1492 = vld [vmem:[#allocation2 + $0xc0] sm:$0xff]
          %v1493 = vld [vmem:[#allocation2 + $0xc8] sm:$0xff]
          %v1494 = vld [vmem:[#allocation2 + $0xd0] sm:$0xff]
          %v1495 = vld [vmem:[#allocation2 + $0xd8] sm:$0xff]
          %v1496 = vld [vmem:[#allocation2 + $0xe0] sm:$0xff]
          %v1497 = vld [vmem:[#allocation2 + $0xe8] sm:$0xff]
          %v1498 = vld [vmem:[#allocation2 + $0xf0] sm:$0xff]
          %v1499 = vld [vmem:[#allocation2 + $0xf8] sm:$0xff]
          %v1500 = vld [vmem:[#allocation2 + $0x100] sm:$0xff]
          %v1501 = vld [vmem:[#allocation2 + $0x108] sm:$0xff]
          %v1502 = vld [vmem:[#allocation2 + $0x110] sm:$0xff]
          %v1503 = vld [vmem:[#allocation2 + $0x118] sm:$0xff]
          %v1504 = vld [vmem:[#allocation2 + $0x120] sm:$0xff]
          %v1505 = vld [vmem:[#allocation2 + $0x128] sm:$0xff]
          %v1506 = vld [vmem:[#allocation2 + $0x130] sm:$0xff]
          %v1507 = vld [vmem:[#allocation2 + $0x138] sm:$0xff]
          %v1508 = vld [vmem:[#allocation2 + $0x140] sm:$0xff]
          %v1509 = vld [vmem:[#allocation2 + $0x148] sm:$0xff]
          %v1510 = vld [vmem:[#allocation2 + $0x150] sm:$0xff]
          %v1511 = vld [vmem:[#allocation2 + $0x158] sm:$0xff]
          %v1512 = vld [vmem:[#allocation2 + $0x160] sm:$0xff]
          %v1513 = vld [vmem:[#allocation2 + $0x168] sm:$0xff]
          %v1514 = vld [vmem:[#allocation2 + $0x170] sm:$0xff]
          %v1515 = vld [vmem:[#allocation2 + $0x178] sm:$0xff]
          %v1516 = vld [vmem:[#allocation2 + $0x180] sm:$0xff]
          %v1517 = vld [vmem:[#allocation2 + $0x188] sm:$0xff]
          %v1518 = vld [vmem:[#allocation2 + $0x190] sm:$0xff]
          %v1519 = vld [vmem:[#allocation2 + $0x198] sm:$0xff]
          %v1520 = vld [vmem:[#allocation2 + $0x1a0] sm:$0xff]
          %v1521 = vld [vmem:[#allocation2 + $0x1a8] sm:$0xff]
          %v1522 = vld [vmem:[#allocation2 + $0x1b0] sm:$0xff]
          %v1523 = vld [vmem:[#allocation2 + $0x1b8] sm:$0xff]
          %v1524 = vld [vmem:[#allocation2 + $0x1c0] sm:$0xff]
          %v1525 = vld [vmem:[#allocation2 + $0x1c8] sm:$0xff]
          %v1526 = vld [vmem:[#allocation2 + $0x1d0] sm:$0xff]
          %v1527 = vld [vmem:[#allocation2 + $0x1d8] sm:$0xff]
          %v1528 = vld [vmem:[#allocation2 + $0x1e0] sm:$0xff]
          %v1529 = vld [vmem:[#allocation2 + $0x1e8] sm:$0xff]
          %v1530 = vld [vmem:[#allocation2 + $0x1f0] sm:$0xff]
          %v1531 = vld [vmem:[#allocation2 + $0x1f8] sm:$0xff]
          %v1532 = vld [vmem:[%s350] sm:$0x3]
          %v1534 = vlaneseq
          %v1535 = vshrl.u32 %v1534, 7
          %v1536 = vsub.s32 0, %v1535
          %v1537 = vrot.slane %v1532, %v1536
          %v1538 = vlaneseq
          %v1539 = vshrl.u32 %v1538, 7
          %v1540 = vsub.s32 1, %v1539
          %v1541 = vrot.slane %v1532, %v1540
          %v1544 = vadd.f32 %v1468, %v1537
          %v1545 = vadd.f32 %v1469, %v1541
          %v1546 = vadd.f32 %v1470, %v1537
          %v1547 = vadd.f32 %v1471, %v1541
          %v1548 = vadd.f32 %v1472, %v1537
          %v1549 = vadd.f32 %v1473, %v1541
          %v1550 = vadd.f32 %v1474, %v1537
          %v1551 = vadd.f32 %v1475, %v1541
          %v1552 = vadd.f32 %v1476, %v1537
          %v1553 = vadd.f32 %v1477, %v1541
          %v1554 = vadd.f32 %v1478, %v1537
          %v1555 = vadd.f32 %v1479, %v1541
          %v1556 = vadd.f32 %v1480, %v1537
          %v1557 = vadd.f32 %v1481, %v1541
          %v1558 = vadd.f32 %v1482, %v1537
          %v1559 = vadd.f32 %v1483, %v1541
          %v1560 = vadd.f32 %v1484, %v1537
          %v1561 = vadd.f32 %v1485, %v1541
          %v1562 = vadd.f32 %v1486, %v1537
          %v1563 = vadd.f32 %v1487, %v1541
          %v1564 = vadd.f32 %v1488, %v1537
          %v1565 = vadd.f32 %v1489, %v1541
          %v1566 = vadd.f32 %v1490, %v1537
          %v1567 = vadd.f32 %v1491, %v1541
          %v1568 = vadd.f32 %v1492, %v1537
          %v1569 = vadd.f32 %v1493, %v1541
          %v1570 = vadd.f32 %v1494, %v1537
          %v1571 = vadd.f32 %v1495, %v1541
          %v1572 = vadd.f32 %v1496, %v1537
          %v1573 = vadd.f32 %v1497, %v1541
          %v1574 = vadd.f32 %v1498, %v1537
          %v1575 = vadd.f32 %v1499, %v1541
          %v1576 = vadd.f32 %v1500, %v1537
          %v1577 = vadd.f32 %v1501, %v1541
          %v1578 = vadd.f32 %v1502, %v1537
          %v1579 = vadd.f32 %v1503, %v1541
          %v1580 = vadd.f32 %v1504, %v1537
          %v1581 = vadd.f32 %v1505, %v1541
          %v1582 = vadd.f32 %v1506, %v1537
          %v1583 = vadd.f32 %v1507, %v1541
          %v1584 = vadd.f32 %v1508, %v1537
          %v1585 = vadd.f32 %v1509, %v1541
          %v1586 = vadd.f32 %v1510, %v1537
          %v1587 = vadd.f32 %v1511, %v1541
          %v1588 = vadd.f32 %v1512, %v1537
          %v1589 = vadd.f32 %v1513, %v1541
          %v1590 = vadd.f32 %v1514, %v1537
          %v1591 = vadd.f32 %v1515, %v1541
          %v1592 = vadd.f32 %v1516, %v1537
          %v1593 = vadd.f32 %v1517, %v1541
          %v1594 = vadd.f32 %v1518, %v1537
          %v1595 = vadd.f32 %v1519, %v1541
          %v1596 = vadd.f32 %v1520, %v1537
          %v1597 = vadd.f32 %v1521, %v1541
          %v1598 = vadd.f32 %v1522, %v1537
          %v1599 = vadd.f32 %v1523, %v1541
          %v1600 = vadd.f32 %v1524, %v1537
          %v1601 = vadd.f32 %v1525, %v1541
          %v1602 = vadd.f32 %v1526, %v1537
          %v1603 = vadd.f32 %v1527, %v1541
          %v1604 = vadd.f32 %v1528, %v1537
          %v1605 = vadd.f32 %v1529, %v1541
          %v1606 = vadd.f32 %v1530, %v1537
          %v1607 = vadd.f32 %v1531, %v1541
          %1608 = vst [vmem:[%s367] sm:$0xff] %v1544
          %1609 = vst.msk [vmem:[%s367 + $0x8] sm:$0xff] %vm472, %v1545
          %1610 = vst [vmem:[%s367 + $0x10] sm:$0xff] %v1546
          %1611 = vst.msk [vmem:[%s367 + $0x18] sm:$0xff] %vm472, %v1547
          %1612 = vst [vmem:[%s367 + $0x20] sm:$0xff] %v1548
          %1613 = vst.msk [vmem:[%s367 + $0x28] sm:$0xff] %vm472, %v1549
          %1614 = vst [vmem:[%s367 + $0x30] sm:$0xff] %v1550
          %1615 = vst.msk [vmem:[%s367 + $0x38] sm:$0xff] %vm472, %v1551
          %1616 = vst [vmem:[%s367 + $0x40] sm:$0xff] %v1552
          %1617 = vst.msk [vmem:[%s367 + $0x48] sm:$0xff] %vm472, %v1553
          %1618 = vst [vmem:[%s367 + $0x50] sm:$0xff] %v1554
          %1619 = vst.msk [vmem:[%s367 + $0x58] sm:$0xff] %vm472, %v1555
          %1620 = vst [vmem:[%s367 + $0x60] sm:$0xff] %v1556
          %1621 = vst.msk [vmem:[%s367 + $0x68] sm:$0xff] %vm472, %v1557
          %1622 = vst [vmem:[%s367 + $0x70] sm:$0xff] %v1558
          %1623 = vst.msk [vmem:[%s367 + $0x78] sm:$0xff] %vm472, %v1559
          %1624 = vst [vmem:[%s367 + $0x80] sm:$0xff] %v1560
          %1625 = vst.msk [vmem:[%s367 + $0x88] sm:$0xff] %vm472, %v1561
          %1626 = vst [vmem:[%s367 + $0x90] sm:$0xff] %v1562
          %1627 = vst.msk [vmem:[%s367 + $0x98] sm:$0xff] %vm472, %v1563
          %1628 = vst [vmem:[%s367 + $0xa0] sm:$0xff] %v1564
          %1629 = vst.msk [vmem:[%s367 + $0xa8] sm:$0xff] %vm472, %v1565
          %1630 = vst [vmem:[%s367 + $0xb0] sm:$0xff] %v1566
          %1631 = vst.msk [vmem:[%s367 + $0xb8] sm:$0xff] %vm472, %v1567
          %1632 = vst [vmem:[%s367 + $0xc0] sm:$0xff] %v1568
          %1633 = vst.msk [vmem:[%s367 + $0xc8] sm:$0xff] %vm472, %v1569
          %1634 = vst [vmem:[%s367 + $0xd0] sm:$0xff] %v1570
          %1635 = vst.msk [vmem:[%s367 + $0xd8] sm:$0xff] %vm472, %v1571
          %1636 = vst [vmem:[%s367 + $0xe0] sm:$0xff] %v1572
          %1637 = vst.msk [vmem:[%s367 + $0xe8] sm:$0xff] %vm472, %v1573
          %1638 = vst [vmem:[%s367 + $0xf0] sm:$0xff] %v1574
          %1639 = vst.msk [vmem:[%s367 + $0xf8] sm:$0xff] %vm472, %v1575
          %1640 = vst [vmem:[%s367 + $0x100] sm:$0xff] %v1576
          %1641 = vst.msk [vmem:[%s367 + $0x108] sm:$0xff] %vm472, %v1577
          %1642 = vst [vmem:[%s367 + $0x110] sm:$0xff] %v1578
          %1643 = vst.msk [vmem:[%s367 + $0x118] sm:$0xff] %vm472, %v1579
          %1644 = vst [vmem:[%s367 + $0x120] sm:$0xff] %v1580
          %1645 = vst.msk [vmem:[%s367 + $0x128] sm:$0xff] %vm472, %v1581
          %1646 = vst [vmem:[%s367 + $0x130] sm:$0xff] %v1582
          %1647 = vst.msk [vmem:[%s367 + $0x138] sm:$0xff] %vm472, %v1583
          %1648 = vst [vmem:[%s367 + $0x140] sm:$0xff] %v1584
          %1649 = vst.msk [vmem:[%s367 + $0x148] sm:$0xff] %vm472, %v1585
          %1650 = vst [vmem:[%s367 + $0x150] sm:$0xff] %v1586
          %1651 = vst.msk [vmem:[%s367 + $0x158] sm:$0xff] %vm472, %v1587
          %1652 = vst [vmem:[%s367 + $0x160] sm:$0xff] %v1588
          %1653 = vst.msk [vmem:[%s367 + $0x168] sm:$0xff] %vm472, %v1589
          %1654 = vst [vmem:[%s367 + $0x170] sm:$0xff] %v1590
          %1655 = vst.msk [vmem:[%s367 + $0x178] sm:$0xff] %vm472, %v1591
          %1656 = vst [vmem:[%s367 + $0x180] sm:$0xff] %v1592
          %1657 = vst.msk [vmem:[%s367 + $0x188] sm:$0xff] %vm472, %v1593
          %1658 = vst [vmem:[%s367 + $0x190] sm:$0xff] %v1594
          %1659 = vst.msk [vmem:[%s367 + $0x198] sm:$0xff] %vm472, %v1595
          %1660 = vst [vmem:[%s367 + $0x1a0] sm:$0xff] %v1596
          %1661 = vst.msk [vmem:[%s367 + $0x1a8] sm:$0xff] %vm472, %v1597
          %1662 = vst [vmem:[%s367 + $0x1b0] sm:$0xff] %v1598
          %1663 = vst.msk [vmem:[%s367 + $0x1b8] sm:$0xff] %vm472, %v1599
          %1664 = vst [vmem:[%s367 + $0x1c0] sm:$0xff] %v1600
          %1665 = vst.msk [vmem:[%s367 + $0x1c8] sm:$0xff] %vm472, %v1601
          %1666 = vst [vmem:[%s367 + $0x1d0] sm:$0xff] %v1602
          %1667 = vst.msk [vmem:[%s367 + $0x1d8] sm:$0xff] %vm472, %v1603
          %1668 = vst [vmem:[%s367 + $0x1e0] sm:$0xff] %v1604
          %1669 = vst.msk [vmem:[%s367 + $0x1e8] sm:$0xff] %vm472, %v1605
          %1670 = vst [vmem:[%s367 + $0x1f0] sm:$0xff] %v1606
          %1671 = vst.msk [vmem:[%s367 + $0x1f8] sm:$0xff] %vm472, %v1607
        $region52: #{self_attention_forward.5} parent=39 // pred_fallthru
          _
        %s1672 = smul.u32 32, %s24
        %s1673 = smul.u32 2, %s25
        %p1674 = scmp.lt.s32.totalorder %s1672, 63
        %s1675 = scalar_select %p1674, %s1672, 63
        %p1676 = scmp.lt.s32.totalorder %s1673, 1
        %s1677 = scalar_select %p1676, %s1673, 1
        %s1678 = smul.addr %s1675, 2
        %s1679 = sadd.s32 %s1677, %s1678
        %s1680 = smul.addr %s1679, 8
        %s1681 = scalar_lea.vmem %s5, %s1680
        // Predicated region
        $region53: #{self_attention_forward.5} parent=39 // pred_check
          %p1682 = pneg %p192
        $region54: #{self_attention_forward.5} parent=39 // pred_check_branch
          %1684 = sbr.rel (%p1682) target = $region56
        $region55: #{self_attention_forward.5} parent=39 // pred_region
          %s1685 = smul.u32 32, %s24
          %s1686 = smul.u32 2, %s25
        $region56: #{self_attention_forward.5} parent=39 // pred_fallthru
          _
      $region40: #{self_attention_forward.5} parent=5 // pred_fallthru
        _
      %p1687 = scmp.le.s32.totalorder 2, %s14
      // Predicated region
      $region57: #{self_attention_forward.5} parent=5 // pred_check
        %p1688 = pneg %p1687
      $region58: #{self_attention_forward.5} parent=5 // pred_check_branch
        %1690 = sbr.rel (%p1688) target = $region60
      $region59: #{self_attention_forward.5} parent=5 // pred_region
        %s1691 = ssub.s32 %s14, 2
        // Predicated region
        $region61: #{self_attention_forward.5} parent=59 // pred_check
          %p1692 = pneg %p198
        $region62: #{self_attention_forward.5} parent=59 // pred_check_branch
          %1694 = sbr.rel (%p1692) target = $region64
        $region63: #{self_attention_forward.5} parent=59 // pred_region
          %s1695 = smul.u32 32, %s27
          %s1696 = smul.u32 2, %s28
          %p1697 = scmp.lt.s32.totalorder %s1695, 63
          %s1698 = scalar_select %p1697, %s1695, 63
          %p1699 = scmp.lt.s32.totalorder %s1696, 1
          %s1700 = scalar_select %p1699, %s1696, 1
          %s1701 = smul.addr %s1698, 2
          %s1702 = sadd.s32 %s1700, %s1701
          %s1703 = smul.addr %s1702, 8
          %s1704 = scalar_lea.vmem %s5, %s1703
        $region64: #{self_attention_forward.5} parent=59 // pred_fallthru
          _
      $region60: #{self_attention_forward.5} parent=5 // pred_fallthru
        _
    $region6: #{self_attention_forward.5} parent=1 // loop_footer
      %s18 = sadd.s32 1, %s14
    $region7: #{self_attention_forward.5} parent=1 // loop_footer_branch
      %13 = sbr.rel target = $region3
    $region8: #{self_attention_forward.5} parent=1 // loop_exit
      _
    %1705 = vsyncpa [#allocation4], 1
    %s1706 = scalar_lea.sflag [#allocation4], 1
    %1707 = vsyncpa %s1706, 1

// kernel: self_attention_forward.6
$region0: #{self_attention_forward.6}
  #allocation0 [shape = 'u32[]', space=smem, size = 0x4, offset = 0x4, fixed_abs, tag = 'smem constant byte address 0x4 - core index']
  #allocation1 [shape = 'u32[144,128]{1,0:T(1,128)}', space=vmem, size = 0x12000, scoped, tag = 'internal scratch']
  #allocation2 [shape = 'f32[128,1]{1,0:T(8,128)}', space=vmem, size = 0x10000, scoped, tag = 'scratch operand']
  #allocation3 [shape = 'f32[128,1]{1,0:T(8,128)}', space=vmem, size = 0x10000, scoped, tag = 'scratch operand']
  #allocation4 [shape = 'f32[128,16]{1,0:T(8,128)}', space=vmem, size = 0x10000, scoped, tag = 'scratch operand']
  %s0 = inlined_call_operand.vmem [shape: bf16[8,256,16], index: 0, kind: input, shape index: {}]
  %s1 = inlined_call_operand.vmem [shape: bf16[8,256,16], index: 1, kind: input, shape index: {}]
  %s2 = inlined_call_operand.vmem [shape: bf16[8,256,16], index: 2, kind: input, shape index: {}]
  %s3 = inlined_call_operand.vmem [shape: bf16[8,256,16], index: 3, kind: output, shape index: {}]
  %s4 = sld [smem:[#allocation0]]
  $region53: #{self_attention_forward.6} parent=0
    _
  %s6 = ssub.s32 1, %s4
  %s7 = scalar_select 0, %s6, %s4
  loop: start=0, step=1, limit=34
  $region2: #{self_attention_forward.6} parent=0 // loop_pre_header
    _
  $region3: #{self_attention_forward.6} parent=0 // loop_header
    %s9 = sphi 0, %s13
    %p10 = scmp.ge.s32.totalorder %s9, 34
    %s16 = sphi 0, %s35
    %s17 = sphi 0, %s31
    %s18 = sphi 0, %s27
    %s19 = sphi 0, %s16
    %s20 = sphi 0, %s17
    %s21 = sphi 0, %s18
    %s22 = sphi 0, %s19
    %s23 = sphi 0, %s20
    %s24 = sphi 0, %s21
    %s40 = sphi 0, %s42
    %s43 = sphi 0, %s40
    %s44 = sphi 0, %s43
    %s60 = sphi 0, %s44
    %s68 = sphi 0, %s70
    %s71 = sphi 0, %s68
    %s72 = sphi 0, %s71
    %s88 = sphi 0, %s72
    %s96 = sphi 0, %s98
    %s99 = sphi 0, %s96
    %s100 = sphi 0, %s99
    %s116 = sphi 0, %s100
    %s124 = sphi 0, %s126
    %s127 = sphi 0, %s124
    %s128 = sphi 0, %s127
    %s144 = sphi 0, %s128
  $region4: #{self_attention_forward.6} parent=0 // loop_header_branch
    %12 = sbr.rel (%p10) target = $region8
  $region5: #{self_attention_forward.6} parent=0 // loop_body
    %s14 = ssub.s32 %s9, 1
    %s15 = ssub.s32 %s9, 2
    %s25 = sadd.s32 1, %s18
    %p26 = scmp.ge.s32.totalorder %s25, 2
    %s27 = scalar_select %p26, 0, %s25
    %s28 = sadd.s32 1, %s17
    %s29 = scalar_select %p26, %s28, %s17
    %p30 = scmp.ge.s32.totalorder %s29, 2
    %s31 = scalar_select %p30, 0, %s29
    %s32 = sadd.s32 1, %s16
    %s33 = scalar_select %p30, %s32, %s16
    %p34 = scmp.ge.s32.totalorder %s33, 8
    %s35 = scalar_select %p34, 0, %s33
    %s36 = ssub.s32 %s16, %s35
    %s37 = ssub.s32 %s17, %s31
    %s38 = sor.u32 %s36, %s37
    %p39 = scmp.eq.s32.totalorder %s38, 0
    %s41 = sadd.s32 %s40, 1
    %s42 = scalar_select %p39, %s40, %s41
    %p45 = pneg %p39
    %p46 = scmp.eq.s32.totalorder %s9, 31
    %p47 = por %p45, %p46
    %p48 = scmp.ne.s32.totalorder %s40, %s43
    %p49 = scmp.eq.s32.totalorder %s9, 0
    %p50 = por %p48, %p49
    %p51 = scmp.ne.s32.totalorder %s40, %s43
    %p52 = scmp.eq.s32.totalorder %s14, 31
    %p53 = por %p51, %p52
    %p54 = scmp.ne.s32.totalorder %s43, %s44
    %p55 = scmp.eq.s32.totalorder %s14, 0
    %p56 = por %p54, %p55
    %p57 = scmp.ne.s32.totalorder %s43, %s44
    %p58 = scmp.eq.s32.totalorder %s15, 31
    %p59 = por %p57, %p58
    %p61 = scmp.ne.s32.totalorder %s44, %s60
    %p62 = scmp.eq.s32.totalorder %s15, 0
    %p63 = por %p61, %p62
    %s64 = ssub.s32 %s16, %s35
    %s65 = ssub.s32 %s18, %s27
    %s66 = sor.u32 %s64, %s65
    %p67 = scmp.eq.s32.totalorder %s66, 0
    %s69 = sadd.s32 %s68, 1
    %s70 = scalar_select %p67, %s68, %s69
    %p73 = pneg %p67
    %p74 = scmp.eq.s32.totalorder %s9, 31
    %p75 = por %p73, %p74
    %p76 = scmp.ne.s32.totalorder %s68, %s71
    %p77 = scmp.eq.s32.totalorder %s9, 0
    %p78 = por %p76, %p77
    %p79 = scmp.ne.s32.totalorder %s68, %s71
    %p80 = scmp.eq.s32.totalorder %s14, 31
    %p81 = por %p79, %p80
    %p82 = scmp.ne.s32.totalorder %s71, %s72
    %p83 = scmp.eq.s32.totalorder %s14, 0
    %p84 = por %p82, %p83
    %p85 = scmp.ne.s32.totalorder %s71, %s72
    %p86 = scmp.eq.s32.totalorder %s15, 31
    %p87 = por %p85, %p86
    %p89 = scmp.ne.s32.totalorder %s72, %s88
    %p90 = scmp.eq.s32.totalorder %s15, 0
    %p91 = por %p89, %p90
    %s92 = ssub.s32 %s16, %s35
    %s93 = ssub.s32 %s18, %s27
    %s94 = sor.u32 %s92, %s93
    %p95 = scmp.eq.s32.totalorder %s94, 0
    %s97 = sadd.s32 %s96, 1
    %s98 = scalar_select %p95, %s96, %s97
    %p101 = pneg %p95
    %p102 = scmp.eq.s32.totalorder %s9, 31
    %p103 = por %p101, %p102
    %p104 = scmp.ne.s32.totalorder %s96, %s99
    %p105 = scmp.eq.s32.totalorder %s9, 0
    %p106 = por %p104, %p105
    %p107 = scmp.ne.s32.totalorder %s96, %s99
    %p108 = scmp.eq.s32.totalorder %s14, 31
    %p109 = por %p107, %p108
    %p110 = scmp.ne.s32.totalorder %s99, %s100
    %p111 = scmp.eq.s32.totalorder %s14, 0
    %p112 = por %p110, %p111
    %p113 = scmp.ne.s32.totalorder %s99, %s100
    %p114 = scmp.eq.s32.totalorder %s15, 31
    %p115 = por %p113, %p114
    %p117 = scmp.ne.s32.totalorder %s100, %s116
    %p118 = scmp.eq.s32.totalorder %s15, 0
    %p119 = por %p117, %p118
    %s120 = ssub.s32 %s16, %s35
    %s121 = ssub.s32 %s17, %s31
    %s122 = sor.u32 %s120, %s121
    %p123 = scmp.eq.s32.totalorder %s122, 0
    %s125 = sadd.s32 %s124, 1
    %s126 = scalar_select %p123, %s124, %s125
    %p129 = pneg %p123
    %p130 = scmp.eq.s32.totalorder %s9, 31
    %p131 = por %p129, %p130
    %p132 = scmp.ne.s32.totalorder %s124, %s127
    %p133 = scmp.eq.s32.totalorder %s9, 0
    %p134 = por %p132, %p133
    %p135 = scmp.ne.s32.totalorder %s124, %s127
    %p136 = scmp.eq.s32.totalorder %s14, 31
    %p137 = por %p135, %p136
    %p138 = scmp.ne.s32.totalorder %s127, %s128
    %p139 = scmp.eq.s32.totalorder %s14, 0
    %p140 = por %p138, %p139
    %p141 = scmp.ne.s32.totalorder %s127, %s128
    %p142 = scmp.eq.s32.totalorder %s15, 31
    %p143 = por %p141, %p142
    %p145 = scmp.ne.s32.totalorder %s128, %s144
    %p146 = scmp.eq.s32.totalorder %s15, 0
    %p147 = por %p145, %p146
    %p148 = scmp.le.s32.totalorder 1, %s9
    %p149 = scmp.lt.s32.totalorder %s9, 33
    %p150 = pnand %p148, %p149
    %p151 = pneg %p150
    // Predicated region
    $region9: #{self_attention_forward.6} parent=5 // pred_check
      _
    $region10: #{self_attention_forward.6} parent=5 // pred_check_branch
      %153 = sbr.rel (%p150) target = $region12
    $region11: #{self_attention_forward.6} parent=5 // pred_region
      %s154 = ssub.s32 %s9, 1
    $region12: #{self_attention_forward.6} parent=5 // pred_fallthru
      _
    %p155 = scmp.lt.s32.totalorder %s9, 32
    // Predicated region
    $region13: #{self_attention_forward.6} parent=5 // pred_check
      %p156 = pneg %p155
    $region14: #{self_attention_forward.6} parent=5 // pred_check_branch
      %158 = sbr.rel (%p156) target = $region16
    $region15: #{self_attention_forward.6} parent=5 // pred_region
      // Predicated region
      $region17: #{self_attention_forward.6} parent=15 // pred_check
        %p159 = pneg %p50
      $region18: #{self_attention_forward.6} parent=15 // pred_check_branch
        %161 = sbr.rel (%p159) target = $region20
      $region19: #{self_attention_forward.6} parent=15 // pred_region
        %s162 = smul.u32 16, %s17
        %p163 = scmp.lt.s32.totalorder %s16, 7
        %s164 = scalar_select %p163, %s16, 7
        %p165 = scmp.lt.s32.totalorder %s162, 31
        %s166 = scalar_select %p165, %s162, 31
        %s167 = smul.addr %s164, 32
        %s168 = sadd.s32 %s166, %s167
        %s169 = smul.addr %s168, 4
        %s170 = scalar_lea.vmem %s0, %s169
        %s171 = smul.u32 16, %s17
      $region20: #{self_attention_forward.6} parent=15 // pred_fallthru
        _
      // Predicated region
      $region21: #{self_attention_forward.6} parent=15 // pred_check
        %p172 = pneg %p78
      $region22: #{self_attention_forward.6} parent=15 // pred_check_branch
        %174 = sbr.rel (%p172) target = $region24
      $region23: #{self_attention_forward.6} parent=15 // pred_region
        %s175 = smul.u32 16, %s18
        %p176 = scmp.lt.s32.totalorder %s16, 7
        %s177 = scalar_select %p176, %s16, 7
        %p178 = scmp.lt.s32.totalorder %s175, 31
        %s179 = scalar_select %p178, %s175, 31
        %s180 = smul.addr %s177, 32
        %s181 = sadd.s32 %s179, %s180
        %s182 = smul.addr %s181, 4
        %s183 = scalar_lea.vmem %s1, %s182
        %s184 = smul.u32 16, %s18
      $region24: #{self_attention_forward.6} parent=15 // pred_fallthru
        _
      // Predicated region
      $region25: #{self_attention_forward.6} parent=15 // pred_check
        %p185 = pneg %p106
      $region26: #{self_attention_forward.6} parent=15 // pred_check_branch
        %187 = sbr.rel (%p185) target = $region28
      $region27: #{self_attention_forward.6} parent=15 // pred_region
        %s188 = smul.u32 16, %s18
        %p189 = scmp.lt.s32.totalorder %s16, 7
        %s190 = scalar_select %p189, %s16, 7
        %p191 = scmp.lt.s32.totalorder %s188, 31
        %s192 = scalar_select %p191, %s188, 31
        %s193 = smul.addr %s190, 32
        %s194 = sadd.s32 %s192, %s193
        %s195 = smul.addr %s194, 4
        %s196 = scalar_lea.vmem %s2, %s195
        %s197 = smul.u32 16, %s18
      $region28: #{self_attention_forward.6} parent=15 // pred_fallthru
        _
    $region16: #{self_attention_forward.6} parent=5 // pred_fallthru
      _
    %p198 = scmp.le.s32.totalorder 1, %s9
    %p199 = scmp.lt.s32.totalorder %s9, 33
    %p200 = pnand %p198, %p199
    %p201 = pneg %p200
    // Predicated region
    $region29: #{self_attention_forward.6} parent=5 // pred_check
      _
    $region30: #{self_attention_forward.6} parent=5 // pred_check_branch
      %203 = sbr.rel (%p200) target = $region32
    $region31: #{self_attention_forward.6} parent=5 // pred_region
      %s204 = ssub.s32 %s9, 1
      %s205 = smul.u32 16, %s20
      %p206 = scmp.lt.s32.totalorder %s19, 7
      %s207 = scalar_select %p206, %s19, 7
      %p208 = scmp.lt.s32.totalorder %s205, 31
      %s209 = scalar_select %p208, %s205, 31
      %s210 = smul.addr %s207, 32
      %s211 = sadd.s32 %s209, %s210
      %s212 = smul.addr %s211, 4
      %s213 = scalar_lea.vmem %s0, %s212
      %p214 = pneg %p56
      %p215 = pneg %p53
      %s216 = smul.u32 16, %s21
      %p217 = scmp.lt.s32.totalorder %s19, 7
      %s218 = scalar_select %p217, %s19, 7
      %p219 = scmp.lt.s32.totalorder %s216, 31
      %s220 = scalar_select %p219, %s216, 31
      %s221 = smul.addr %s218, 32
      %s222 = sadd.s32 %s220, %s221
      %s223 = smul.addr %s222, 4
      %s224 = scalar_lea.vmem %s1, %s223
      %p225 = pneg %p84
      %p226 = pneg %p81
      %s227 = smul.u32 16, %s21
      %p228 = scmp.lt.s32.totalorder %s19, 7
      %s229 = scalar_select %p228, %s19, 7
      %p230 = scmp.lt.s32.totalorder %s227, 31
      %s231 = scalar_select %p230, %s227, 31
      %s232 = smul.addr %s229, 32
      %s233 = sadd.s32 %s231, %s232
      %s234 = smul.addr %s233, 4
      %s235 = scalar_lea.vmem %s2, %s234
      %p236 = pneg %p112
      %p237 = pneg %p109
      %p238 = pneg %p140
      %p239 = pneg %p137
      %s240 = smul.u32 16, %s20
      %p241 = scmp.lt.s32.totalorder %s19, 7
      %s242 = scalar_select %p241, %s19, 7
      %p243 = scmp.lt.s32.totalorder %s240, 31
      %s244 = scalar_select %p243, %s240, 31
      %s245 = smul.addr %s242, 32
      %s246 = sadd.s32 %s244, %s245
      %s247 = smul.addr %s246, 4
      %s248 = scalar_lea.vmem %s3, %s247
      %s249 = smul.u32 16, %s20
      %p250 = scmp.lt.s32.totalorder %s19, 7
      %s251 = scalar_select %p250, %s19, 7
      %p252 = scmp.lt.s32.totalorder %s249, 31
      %s253 = scalar_select %p252, %s249, 31
      %s254 = smul.addr %s251, 32
      %s255 = sadd.s32 %s253, %s254
      %s256 = smul.addr %s255, 4
      %s257 = scalar_lea.vmem %s0, %s256
      %s258 = smul.u32 16, %s20
      %s259 = smul.u32 16, %s21
      %p260 = scmp.lt.s32.totalorder %s19, 7
      %s261 = scalar_select %p260, %s19, 7
      %p262 = scmp.lt.s32.totalorder %s259, 31
      %s263 = scalar_select %p262, %s259, 31
      %s264 = smul.addr %s261, 32
      %s265 = sadd.s32 %s263, %s264
      %s266 = smul.addr %s265, 4
      %s267 = scalar_lea.vmem %s1, %s266
      %s268 = smul.u32 16, %s21
      %s269 = smul.u32 16, %s21
      %p270 = scmp.lt.s32.totalorder %s19, 7
      %s271 = scalar_select %p270, %s19, 7
      %p272 = scmp.lt.s32.totalorder %s269, 31
      %s273 = scalar_select %p272, %s269, 31
      %s274 = smul.addr %s271, 32
      %s275 = sadd.s32 %s273, %s274
      %s276 = smul.addr %s275, 4
      %s277 = scalar_lea.vmem %s2, %s276
      %s278 = smul.u32 16, %s21
      %s279 = smul.u32 16, %s20
      %p280 = scmp.lt.s32.totalorder %s19, 7
      %s281 = scalar_select %p280, %s19, 7
      %p282 = scmp.lt.s32.totalorder %s279, 31
      %s283 = scalar_select %p282, %s279, 31
      %s284 = smul.addr %s281, 32
      %s285 = sadd.s32 %s283, %s284
      %s286 = smul.addr %s285, 4
      %s287 = scalar_lea.vmem %s3, %s286
      %s288 = smul.u32 16, %s20
      %p290 = scmp.eq.s32.totalorder %s21, 0
      // Predicated region
      $region33: #{self_attention_forward.6} parent=31 // pred_check
        %p291 = pneg %p290
      $region34: #{self_attention_forward.6} parent=31 // pred_check_branch
        %293 = sbr.rel (%p291) target = $region36
      $region35: #{self_attention_forward.6} parent=31 // pred_region
        %vm294 = vcmask 7168
        %295 = vst.msk [vmem:[#allocation2] sm:$0xff] %vm294, -inf
        %296 = vst.msk [vmem:[#allocation2 + $0x8] sm:$0xff] %vm294, -inf
        %297 = vst.msk [vmem:[#allocation2 + $0x10] sm:$0xff] %vm294, -inf
        %298 = vst.msk [vmem:[#allocation2 + $0x18] sm:$0xff] %vm294, -inf
        %299 = vst.msk [vmem:[#allocation2 + $0x20] sm:$0xff] %vm294, -inf
        %300 = vst.msk [vmem:[#allocation2 + $0x28] sm:$0xff] %vm294, -inf
        %301 = vst.msk [vmem:[#allocation2 + $0x30] sm:$0xff] %vm294, -inf
        %302 = vst.msk [vmem:[#allocation2 + $0x38] sm:$0xff] %vm294, -inf
        %303 = vst.msk [vmem:[#allocation2 + $0x40] sm:$0xff] %vm294, -inf
        %304 = vst.msk [vmem:[#allocation2 + $0x48] sm:$0xff] %vm294, -inf
        %305 = vst.msk [vmem:[#allocation2 + $0x50] sm:$0xff] %vm294, -inf
        %306 = vst.msk [vmem:[#allocation2 + $0x58] sm:$0xff] %vm294, -inf
        %307 = vst.msk [vmem:[#allocation2 + $0x60] sm:$0xff] %vm294, -inf
        %308 = vst.msk [vmem:[#allocation2 + $0x68] sm:$0xff] %vm294, -inf
        %309 = vst.msk [vmem:[#allocation2 + $0x70] sm:$0xff] %vm294, -inf
        %310 = vst.msk [vmem:[#allocation2 + $0x78] sm:$0xff] %vm294, -inf
        %311 = vst.msk [vmem:[#allocation3] sm:$0xff] %vm294, 0.0
        %312 = vst.msk [vmem:[#allocation3 + $0x8] sm:$0xff] %vm294, 0.0
        %313 = vst.msk [vmem:[#allocation3 + $0x10] sm:$0xff] %vm294, 0.0
        %314 = vst.msk [vmem:[#allocation3 + $0x18] sm:$0xff] %vm294, 0.0
        %315 = vst.msk [vmem:[#allocation3 + $0x20] sm:$0xff] %vm294, 0.0
        %316 = vst.msk [vmem:[#allocation3 + $0x28] sm:$0xff] %vm294, 0.0
        %317 = vst.msk [vmem:[#allocation3 + $0x30] sm:$0xff] %vm294, 0.0
        %318 = vst.msk [vmem:[#allocation3 + $0x38] sm:$0xff] %vm294, 0.0
        %319 = vst.msk [vmem:[#allocation3 + $0x40] sm:$0xff] %vm294, 0.0
        %320 = vst.msk [vmem:[#allocation3 + $0x48] sm:$0xff] %vm294, 0.0
        %321 = vst.msk [vmem:[#allocation3 + $0x50] sm:$0xff] %vm294, 0.0
        %322 = vst.msk [vmem:[#allocation3 + $0x58] sm:$0xff] %vm294, 0.0
        %323 = vst.msk [vmem:[#allocation3 + $0x60] sm:$0xff] %vm294, 0.0
        %324 = vst.msk [vmem:[#allocation3 + $0x68] sm:$0xff] %vm294, 0.0
        %325 = vst.msk [vmem:[#allocation3 + $0x70] sm:$0xff] %vm294, 0.0
        %326 = vst.msk [vmem:[#allocation3 + $0x78] sm:$0xff] %vm294, 0.0
        %vm327 = vcmask 130048
        %328 = vst.msk [vmem:[#allocation4] sm:$0xff] %vm327, 0.0
        %329 = vst.msk [vmem:[#allocation4 + $0x8] sm:$0xff] %vm327, 0.0
        %330 = vst.msk [vmem:[#allocation4 + $0x10] sm:$0xff] %vm327, 0.0
        %331 = vst.msk [vmem:[#allocation4 + $0x18] sm:$0xff] %vm327, 0.0
        %332 = vst.msk [vmem:[#allocation4 + $0x20] sm:$0xff] %vm327, 0.0
        %333 = vst.msk [vmem:[#allocation4 + $0x28] sm:$0xff] %vm327, 0.0
        %334 = vst.msk [vmem:[#allocation4 + $0x30] sm:$0xff] %vm327, 0.0
        %335 = vst.msk [vmem:[#allocation4 + $0x38] sm:$0xff] %vm327, 0.0
        %336 = vst.msk [vmem:[#allocation4 + $0x40] sm:$0xff] %vm327, 0.0
        %337 = vst.msk [vmem:[#allocation4 + $0x48] sm:$0xff] %vm327, 0.0
        %338 = vst.msk [vmem:[#allocation4 + $0x50] sm:$0xff] %vm327, 0.0
        %339 = vst.msk [vmem:[#allocation4 + $0x58] sm:$0xff] %vm327, 0.0
        %340 = vst.msk [vmem:[#allocation4 + $0x60] sm:$0xff] %vm327, 0.0
        %341 = vst.msk [vmem:[#allocation4 + $0x68] sm:$0xff] %vm327, 0.0
        %342 = vst.msk [vmem:[#allocation4 + $0x70] sm:$0xff] %vm327, 0.0
        %343 = vst.msk [vmem:[#allocation4 + $0x78] sm:$0xff] %vm327, 0.0
      $region36: #{self_attention_forward.6} parent=31 // pred_fallthru
        _
      %v344 = vld [vmem:[%s257] sm:$0xf]
      %v345 = vld [vmem:[%s257 + $0x4] sm:$0xf]
      %v346 = vld [vmem:[%s257 + $0x8] sm:$0xf]
      %v347 = vld [vmem:[%s257 + $0xc] sm:$0xf]
      %v348 = vld [vmem:[%s257 + $0x10] sm:$0xf]
      %v349 = vld [vmem:[%s257 + $0x14] sm:$0xf]
      %v350 = vld [vmem:[%s257 + $0x18] sm:$0xf]
      %v351 = vld [vmem:[%s257 + $0x1c] sm:$0xf]
      %v352 = vld [vmem:[%s257 + $0x20] sm:$0xf]
      %v353 = vld [vmem:[%s257 + $0x24] sm:$0xf]
      %v354 = vld [vmem:[%s257 + $0x28] sm:$0xf]
      %v355 = vld [vmem:[%s257 + $0x2c] sm:$0xf]
      %v356 = vld [vmem:[%s257 + $0x30] sm:$0xf]
      %v357 = vld [vmem:[%s257 + $0x34] sm:$0xf]
      %v358 = vld [vmem:[%s257 + $0x38] sm:$0xf]
      %v359 = vld [vmem:[%s257 + $0x3c] sm:$0xf]
      %v360 = vld [vmem:[%s267] sm:$0xf]
      %v361 = vld [vmem:[%s267 + $0x4] sm:$0xf]
      %v362 = vld [vmem:[%s267 + $0x8] sm:$0xf]
      %v363 = vld [vmem:[%s267 + $0xc] sm:$0xf]
      %v364 = vld [vmem:[%s267 + $0x10] sm:$0xf]
      %v365 = vld [vmem:[%s267 + $0x14] sm:$0xf]
      %v366 = vld [vmem:[%s267 + $0x18] sm:$0xf]
      %v367 = vld [vmem:[%s267 + $0x1c] sm:$0xf]
      %v368 = vld [vmem:[%s267 + $0x20] sm:$0xf]
      %v369 = vld [vmem:[%s267 + $0x24] sm:$0xf]
      %v370 = vld [vmem:[%s267 + $0x28] sm:$0xf]
      %v371 = vld [vmem:[%s267 + $0x2c] sm:$0xf]
      %v372 = vld [vmem:[%s267 + $0x30] sm:$0xf]
      %v373 = vld [vmem:[%s267 + $0x34] sm:$0xf]
      %v374 = vld [vmem:[%s267 + $0x38] sm:$0xf]
      %v375 = vld [vmem:[%s267 + $0x3c] sm:$0xf]
      %v392 = vunpack.c.l.b16 %v344
      %v393 = vunpack.c.l.b16 %v345
      %v394 = vunpack.c.l.b16 %v346
      %v395 = vunpack.c.l.b16 %v347
      %v396 = vunpack.c.l.b16 %v348
      %v397 = vunpack.c.l.b16 %v349
      %v398 = vunpack.c.l.b16 %v350
      %v399 = vunpack.c.l.b16 %v351
      %v400 = vunpack.c.l.b16 %v352
      %v401 = vunpack.c.l.b16 %v353
      %v402 = vunpack.c.l.b16 %v354
      %v403 = vunpack.c.l.b16 %v355
      %v404 = vunpack.c.l.b16 %v356
      %v405 = vunpack.c.l.b16 %v357
      %v406 = vunpack.c.l.b16 %v358
      %v407 = vunpack.c.l.b16 %v359
      %v408 = vpack.c.b16 %v393, %v392
      %v409 = vpack.c.b16 %v395, %v394
      %v410 = vpack.c.b16 %v397, %v396
      %v411 = vpack.c.b16 %v399, %v398
      %v412 = vpack.c.b16 %v401, %v400
      %v413 = vpack.c.b16 %v403, %v402
      %v414 = vpack.c.b16 %v405, %v404
      %v415 = vpack.c.b16 %v407, %v406
      %v432 = vunpack.c.l.b16 %v360
      %v433 = vunpack.c.l.b16 %v361
      %v434 = vunpack.c.l.b16 %v362
      %v435 = vunpack.c.l.b16 %v363
      %v436 = vunpack.c.l.b16 %v364
      %v437 = vunpack.c.l.b16 %v365
      %v438 = vunpack.c.l.b16 %v366
      %v439 = vunpack.c.l.b16 %v367
      %v440 = vunpack.c.l.b16 %v368
      %v441 = vunpack.c.l.b16 %v369
      %v442 = vunpack.c.l.b16 %v370
      %v443 = vunpack.c.l.b16 %v371
      %v444 = vunpack.c.l.b16 %v372
      %v445 = vunpack.c.l.b16 %v373
      %v446 = vunpack.c.l.b16 %v374
      %v447 = vunpack.c.l.b16 %v375
      %v448 = vpack.c.b16 %v433, %v432
      %v449 = vpack.c.b16 %v435, %v434
      %v450 = vpack.c.b16 %v437, %v436
      %v451 = vpack.c.b16 %v439, %v438
      %v452 = vpack.c.b16 %v441, %v440
      %v453 = vpack.c.b16 %v443, %v442
      %v454 = vpack.c.b16 %v445, %v444
      %v455 = vpack.c.b16 %v447, %v446
      %vm456 = vcmask 130048
      %v458 = vsel %vm456, %v408, 0
      %v461 = vsel %vm456, %v409, 0
      %v464 = vsel %vm456, %v410, 0
      %v467 = vsel %vm456, %v411, 0
      %v470 = vsel %vm456, %v412, 0
      %v473 = vsel %vm456, %v413, 0
      %v476 = vsel %vm456, %v414, 0
      %v479 = vsel %vm456, %v415, 0
      %v482 = vsel %vm456, %v448, 0
      %v485 = vsel %vm456, %v449, 0
      %v488 = vsel %vm456, %v450, 0
      %v491 = vsel %vm456, %v451, 0
      %v494 = vsel %vm456, %v452, 0
      %v497 = vsel %vm456, %v453, 0
      %v500 = vsel %vm456, %v454, 0
      %v503 = vsel %vm456, %v455, 0
      %505 = vmatprep.subr.bf16.mxu0 0
      %506 = vmatpush1.bf16.xpose.msra.mxu0 %v482
      %507 = vmatprep.subr.bf16.mxu0 0
      %508 = vmatpush1.bf16.xpose.msra.mxu0 %v485
      %509 = vmatprep.subr.bf16.mxu0 0
      %510 = vmatpush1.bf16.xpose.msra.mxu0 %v488
      %511 = vmatprep.subr.bf16.mxu0 0
      %512 = vmatpush1.bf16.xpose.msra.mxu0 %v491
      %513 = vmatprep.subr.bf16.mxu0 0
      %514 = vmatpush1.bf16.xpose.msra.mxu0 %v494
      %515 = vmatprep.subr.bf16.mxu0 0
      %516 = vmatpush1.bf16.xpose.msra.mxu0 %v497
      %517 = vmatprep.subr.bf16.mxu0 0
      %518 = vmatpush1.bf16.xpose.msra.mxu0 %v500
      %519 = vmatprep.subr.bf16.mxu0 0
      %520 = vmatpush1.bf16.xpose.msra.mxu0 %v503
      %521 = vmatprep.subr.bf16.mxu0 0
      %522 = vmatpush1.bf16.xpose.msra.mxu0 0
      %523 = vmatprep.subr.bf16.mxu0 0
      %524 = vmatpush1.bf16.xpose.msra.mxu0 0
      %525 = vmatprep.subr.bf16.mxu0 0
      %526 = vmatpush1.bf16.xpose.msra.mxu0 0
      %527 = vmatprep.subr.bf16.mxu0 0
      %528 = vmatpush1.bf16.xpose.msra.mxu0 0
      %529 = vmatprep.subr.bf16.mxu0 0
      %530 = vmatpush1.bf16.xpose.msra.mxu0 0
      %531 = vmatprep.subr.bf16.mxu0 0
      %532 = vmatpush1.bf16.xpose.msra.mxu0 0
      %533 = vmatprep.subr.bf16.mxu0 0
      %534 = vmatpush1.bf16.xpose.msra.mxu0 0
      %535 = vmatprep.subr.bf16.mxu0 0
      %536 = vmatpush1.bf16.xpose.msra.mxu0 0
      %537 = vmatprep.mubr.bf16.mxu0 0
      %538 = vmatmul.mubr.bf16.gmra.mrb[0].mxu0 %v458
      %v539 = vpop.f32.mrb[0].mxu0
      %v540 = vadd.f32 0.0, %v539
      %v541 = vpop.f32.mrb[0].mxu0
      %v542 = vpop.f32.mrb[0].mxu0
      %v543 = vadd.f32 0.0, %v542
      %v544 = vpop.f32.mrb[0].mxu0
      %545 = vmatprep.mubr.bf16.mxu0 0
      %546 = vmatmul.mubr.bf16.gmra.mrb[0].mxu0 %v461
      %v547 = vpop.f32.mrb[0].mxu0
      %v548 = vadd.f32 0.0, %v547
      %v549 = vpop.f32.mrb[0].mxu0
      %v550 = vpop.f32.mrb[0].mxu0
      %v551 = vadd.f32 0.0, %v550
      %v552 = vpop.f32.mrb[0].mxu0
      %553 = vmatprep.mubr.bf16.mxu0 0
      %554 = vmatmul.mubr.bf16.gmra.mrb[0].mxu0 %v464
      %v555 = vpop.f32.mrb[0].mxu0
      %v556 = vadd.f32 0.0, %v555
      %v557 = vpop.f32.mrb[0].mxu0
      %v558 = vpop.f32.mrb[0].mxu0
      %v559 = vadd.f32 0.0, %v558
      %v560 = vpop.f32.mrb[0].mxu0
      %561 = vmatprep.mubr.bf16.mxu0 0
      %562 = vmatmul.mubr.bf16.gmra.mrb[0].mxu0 %v467
      %v563 = vpop.f32.mrb[0].mxu0
      %v564 = vadd.f32 0.0, %v563
      %v565 = vpop.f32.mrb[0].mxu0
      %v566 = vpop.f32.mrb[0].mxu0
      %v567 = vadd.f32 0.0, %v566
      %v568 = vpop.f32.mrb[0].mxu0
      %569 = vmatprep.mubr.bf16.mxu0 0
      %570 = vmatmul.mubr.bf16.gmra.mrb[0].mxu0 %v470
      %v571 = vpop.f32.mrb[0].mxu0
      %v572 = vadd.f32 0.0, %v571
      %v573 = vpop.f32.mrb[0].mxu0
      %v574 = vpop.f32.mrb[0].mxu0
      %v575 = vadd.f32 0.0, %v574
      %v576 = vpop.f32.mrb[0].mxu0
      %577 = vmatprep.mubr.bf16.mxu0 0
      %578 = vmatmul.mubr.bf16.gmra.mrb[0].mxu0 %v473
      %v579 = vpop.f32.mrb[0].mxu0
      %v580 = vadd.f32 0.0, %v579
      %v581 = vpop.f32.mrb[0].mxu0
      %v582 = vpop.f32.mrb[0].mxu0
      %v583 = vadd.f32 0.0, %v582
      %v584 = vpop.f32.mrb[0].mxu0
      %585 = vmatprep.mubr.bf16.mxu0 0
      %586 = vmatmul.mubr.bf16.gmra.mrb[0].mxu0 %v476
      %v587 = vpop.f32.mrb[0].mxu0
      %v588 = vadd.f32 0.0, %v587
      %v589 = vpop.f32.mrb[0].mxu0
      %v590 = vpop.f32.mrb[0].mxu0
      %v591 = vadd.f32 0.0, %v590
      %v592 = vpop.f32.mrb[0].mxu0
      %593 = vmatprep.mubr.bf16.mxu0 0
      %594 = vmatmul.mubr.bf16.gmra.mrb[0].mxu0 %v479
      %v595 = vpop.f32.mrb[0].mxu0
      %v596 = vadd.f32 0.0, %v595
      %v597 = vpop.f32.mrb[0].mxu0
      %v598 = vpop.f32.mrb[0].mxu0
      %v599 = vadd.f32 0.0, %v598
      %v600 = vpop.f32.mrb[0].mxu0
      %601 = vdwg.mxu0
      %v602 = vmul.f32 %v540, 0.25
      %v603 = vmul.f32 %v543, 0.25
      %v604 = vmul.f32 %v548, 0.25
      %v605 = vmul.f32 %v551, 0.25
      %v606 = vmul.f32 %v556, 0.25
      %v607 = vmul.f32 %v559, 0.25
      %v608 = vmul.f32 %v564, 0.25
      %v609 = vmul.f32 %v567, 0.25
      %v610 = vmul.f32 %v572, 0.25
      %v611 = vmul.f32 %v575, 0.25
      %v612 = vmul.f32 %v580, 0.25
      %v613 = vmul.f32 %v583, 0.25
      %v614 = vmul.f32 %v588, 0.25
      %v615 = vmul.f32 %v591, 0.25
      %v616 = vmul.f32 %v596, 0.25
      %v617 = vmul.f32 %v599, 0.25
      %v618 = vld [vmem:[#allocation2] sm:$0xff]
      %v619 = vld [vmem:[#allocation2 + $0x8] sm:$0xff]
      %v620 = vld [vmem:[#allocation2 + $0x10] sm:$0xff]
      %v621 = vld [vmem:[#allocation2 + $0x18] sm:$0xff]
      %v622 = vld [vmem:[#allocation2 + $0x20] sm:$0xff]
      %v623 = vld [vmem:[#allocation2 + $0x28] sm:$0xff]
      %v624 = vld [vmem:[#allocation2 + $0x30] sm:$0xff]
      %v625 = vld [vmem:[#allocation2 + $0x38] sm:$0xff]
      %v626 = vld [vmem:[#allocation2 + $0x40] sm:$0xff]
      %v627 = vld [vmem:[#allocation2 + $0x48] sm:$0xff]
      %v628 = vld [vmem:[#allocation2 + $0x50] sm:$0xff]
      %v629 = vld [vmem:[#allocation2 + $0x58] sm:$0xff]
      %v630 = vld [vmem:[#allocation2 + $0x60] sm:$0xff]
      %v631 = vld [vmem:[#allocation2 + $0x68] sm:$0xff]
      %v632 = vld [vmem:[#allocation2 + $0x70] sm:$0xff]
      %v633 = vld [vmem:[#allocation2 + $0x78] sm:$0xff]
      %634 = vmax.xlane.f32.xlu0 %v602
      %v635 = vpop.xlane.xlu0 %634
      %636 = vmax.xlane.f32.xlu0 %v603
      %v637 = vpop.xlane.xlu0 %636
      %638 = vmax.xlane.f32.xlu0 %v604
      %v639 = vpop.xlane.xlu0 %638
      %640 = vmax.xlane.f32.xlu0 %v605
      %v641 = vpop.xlane.xlu0 %640
      %642 = vmax.xlane.f32.xlu0 %v606
      %v643 = vpop.xlane.xlu0 %642
      %644 = vmax.xlane.f32.xlu0 %v607
      %v645 = vpop.xlane.xlu0 %644
      %646 = vmax.xlane.f32.xlu0 %v608
      %v647 = vpop.xlane.xlu0 %646
      %648 = vmax.xlane.f32.xlu0 %v609
      %v649 = vpop.xlane.xlu0 %648
      %650 = vmax.xlane.f32.xlu0 %v610
      %v651 = vpop.xlane.xlu0 %650
      %652 = vmax.xlane.f32.xlu0 %v611
      %v653 = vpop.xlane.xlu0 %652
      %654 = vmax.xlane.f32.xlu0 %v612
      %v655 = vpop.xlane.xlu0 %654
      %656 = vmax.xlane.f32.xlu0 %v613
      %v657 = vpop.xlane.xlu0 %656
      %658 = vmax.xlane.f32.xlu0 %v614
      %v659 = vpop.xlane.xlu0 %658
      %660 = vmax.xlane.f32.xlu0 %v615
      %v661 = vpop.xlane.xlu0 %660
      %662 = vmax.xlane.f32.xlu0 %v616
      %v663 = vpop.xlane.xlu0 %662
      %664 = vmax.xlane.f32.xlu0 %v617
      %v665 = vpop.xlane.xlu0 %664
      %v666 = vmax.f32 %v618, %v635
      %v667 = vmax.f32 %v619, %v637
      %v668 = vmax.f32 %v620, %v639
      %v669 = vmax.f32 %v621, %v641
      %v670 = vmax.f32 %v622, %v643
      %v671 = vmax.f32 %v623, %v645
      %v672 = vmax.f32 %v624, %v647
      %v673 = vmax.f32 %v625, %v649
      %v674 = vmax.f32 %v626, %v651
      %v675 = vmax.f32 %v627, %v653
      %v676 = vmax.f32 %v628, %v655
      %v677 = vmax.f32 %v629, %v657
      %v678 = vmax.f32 %v630, %v659
      %v679 = vmax.f32 %v631, %v661
      %v680 = vmax.f32 %v632, %v663
      %v681 = vmax.f32 %v633, %v665
      %v682 = vsub.f32 %v618, %v666
      %v683 = vsub.f32 %v619, %v667
      %v684 = vsub.f32 %v620, %v668
      %v685 = vsub.f32 %v621, %v669
      %v686 = vsub.f32 %v622, %v670
      %v687 = vsub.f32 %v623, %v671
      %v688 = vsub.f32 %v624, %v672
      %v689 = vsub.f32 %v625, %v673
      %v690 = vsub.f32 %v626, %v674
      %v691 = vsub.f32 %v627, %v675
      %v692 = vsub.f32 %v628, %v676
      %v693 = vsub.f32 %v629, %v677
      %v694 = vsub.f32 %v630, %v678
      %v695 = vsub.f32 %v631, %v679
      %v696 = vsub.f32 %v632, %v680
      %v697 = vsub.f32 %v633, %v681
      %v698 = vmul.f32 %v682, 1.442695
      %v699 = vpow.pop %v698
      %v700 = vmul.f32 %v683, 1.442695
      %v701 = vpow.pop %v700
      %v702 = vmul.f32 %v684, 1.442695
      %v703 = vpow.pop %v702
      %v704 = vmul.f32 %v685, 1.442695
      %v705 = vpow.pop %v704
      %v706 = vmul.f32 %v686, 1.442695
      %v707 = vpow.pop %v706
      %v708 = vmul.f32 %v687, 1.442695
      %v709 = vpow.pop %v708
      %v710 = vmul.f32 %v688, 1.442695
      %v711 = vpow.pop %v710
      %v712 = vmul.f32 %v689, 1.442695
      %v713 = vpow.pop %v712
      %v714 = vmul.f32 %v690, 1.442695
      %v715 = vpow.pop %v714
      %v716 = vmul.f32 %v691, 1.442695
      %v717 = vpow.pop %v716
      %v718 = vmul.f32 %v692, 1.442695
      %v719 = vpow.pop %v718
      %v720 = vmul.f32 %v693, 1.442695
      %v721 = vpow.pop %v720
      %v722 = vmul.f32 %v694, 1.442695
      %v723 = vpow.pop %v722
      %v724 = vmul.f32 %v695, 1.442695
      %v725 = vpow.pop %v724
      %v726 = vmul.f32 %v696, 1.442695
      %v727 = vpow.pop %v726
      %v728 = vmul.f32 %v697, 1.442695
      %v729 = vpow.pop %v728
      %731 = vset.pattern.permute.xlu0 0
      %732 = vperm.xlu0 %731, %v666
      %v733 = vpop.permute.xlu0 %732
      %736 = vset.pattern.permute.xlu0 0
      %737 = vperm.xlu0 %736, %v667
      %v738 = vpop.permute.xlu0 %737
      %741 = vset.pattern.permute.xlu0 0
      %742 = vperm.xlu0 %741, %v668
      %v743 = vpop.permute.xlu0 %742
      %746 = vset.pattern.permute.xlu0 0
      %747 = vperm.xlu0 %746, %v669
      %v748 = vpop.permute.xlu0 %747
      %751 = vset.pattern.permute.xlu0 0
      %752 = vperm.xlu0 %751, %v670
      %v753 = vpop.permute.xlu0 %752
      %756 = vset.pattern.permute.xlu0 0
      %757 = vperm.xlu0 %756, %v671
      %v758 = vpop.permute.xlu0 %757
      %761 = vset.pattern.permute.xlu0 0
      %762 = vperm.xlu0 %761, %v672
      %v763 = vpop.permute.xlu0 %762
      %766 = vset.pattern.permute.xlu0 0
      %767 = vperm.xlu0 %766, %v673
      %v768 = vpop.permute.xlu0 %767
      %771 = vset.pattern.permute.xlu0 0
      %772 = vperm.xlu0 %771, %v674
      %v773 = vpop.permute.xlu0 %772
      %776 = vset.pattern.permute.xlu0 0
      %777 = vperm.xlu0 %776, %v675
      %v778 = vpop.permute.xlu0 %777
      %781 = vset.pattern.permute.xlu0 0
      %782 = vperm.xlu0 %781, %v676
      %v783 = vpop.permute.xlu0 %782
      %786 = vset.pattern.permute.xlu0 0
      %787 = vperm.xlu0 %786, %v677
      %v788 = vpop.permute.xlu0 %787
      %791 = vset.pattern.permute.xlu0 0
      %792 = vperm.xlu0 %791, %v678
      %v793 = vpop.permute.xlu0 %792
      %796 = vset.pattern.permute.xlu0 0
      %797 = vperm.xlu0 %796, %v679
      %v798 = vpop.permute.xlu0 %797
      %801 = vset.pattern.permute.xlu0 0
      %802 = vperm.xlu0 %801, %v680
      %v803 = vpop.permute.xlu0 %802
      %806 = vset.pattern.permute.xlu0 0
      %807 = vperm.xlu0 %806, %v681
      %v808 = vpop.permute.xlu0 %807
      %v810 = vsub.f32 %v602, %v733
      %v811 = vsub.f32 %v603, %v738
      %v812 = vsub.f32 %v604, %v743
      %v813 = vsub.f32 %v605, %v748
      %v814 = vsub.f32 %v606, %v753
      %v815 = vsub.f32 %v607, %v758
      %v816 = vsub.f32 %v608, %v763
      %v817 = vsub.f32 %v609, %v768
      %v818 = vsub.f32 %v610, %v773
      %v819 = vsub.f32 %v611, %v778
      %v820 = vsub.f32 %v612, %v783
      %v821 = vsub.f32 %v613, %v788
      %v822 = vsub.f32 %v614, %v793
      %v823 = vsub.f32 %v615, %v798
      %v824 = vsub.f32 %v616, %v803
      %v825 = vsub.f32 %v617, %v808
      %v826 = vmul.f32 %v810, 1.442695
      %v827 = vpow.pop %v826
      %v828 = vmul.f32 %v811, 1.442695
      %v829 = vpow.pop %v828
      %v830 = vmul.f32 %v812, 1.442695
      %v831 = vpow.pop %v830
      %v832 = vmul.f32 %v813, 1.442695
      %v833 = vpow.pop %v832
      %v834 = vmul.f32 %v814, 1.442695
      %v835 = vpow.pop %v834
      %v836 = vmul.f32 %v815, 1.442695
      %v837 = vpow.pop %v836
      %v838 = vmul.f32 %v816, 1.442695
      %v839 = vpow.pop %v838
      %v840 = vmul.f32 %v817, 1.442695
      %v841 = vpow.pop %v840
      %v842 = vmul.f32 %v818, 1.442695
      %v843 = vpow.pop %v842
      %v844 = vmul.f32 %v819, 1.442695
      %v845 = vpow.pop %v844
      %v846 = vmul.f32 %v820, 1.442695
      %v847 = vpow.pop %v846
      %v848 = vmul.f32 %v821, 1.442695
      %v849 = vpow.pop %v848
      %v850 = vmul.f32 %v822, 1.442695
      %v851 = vpow.pop %v850
      %v852 = vmul.f32 %v823, 1.442695
      %v853 = vpow.pop %v852
      %v854 = vmul.f32 %v824, 1.442695
      %v855 = vpow.pop %v854
      %v856 = vmul.f32 %v825, 1.442695
      %v857 = vpow.pop %v856
      %v858 = vld [vmem:[#allocation3] sm:$0xff]
      %v859 = vld [vmem:[#allocation3 + $0x8] sm:$0xff]
      %v860 = vld [vmem:[#allocation3 + $0x10] sm:$0xff]
      %v861 = vld [vmem:[#allocation3 + $0x18] sm:$0xff]
      %v862 = vld [vmem:[#allocation3 + $0x20] sm:$0xff]
      %v863 = vld [vmem:[#allocation3 + $0x28] sm:$0xff]
      %v864 = vld [vmem:[#allocation3 + $0x30] sm:$0xff]
      %v865 = vld [vmem:[#allocation3 + $0x38] sm:$0xff]
      %v866 = vld [vmem:[#allocation3 + $0x40] sm:$0xff]
      %v867 = vld [vmem:[#allocation3 + $0x48] sm:$0xff]
      %v868 = vld [vmem:[#allocation3 + $0x50] sm:$0xff]
      %v869 = vld [vmem:[#allocation3 + $0x58] sm:$0xff]
      %v870 = vld [vmem:[#allocation3 + $0x60] sm:$0xff]
      %v871 = vld [vmem:[#allocation3 + $0x68] sm:$0xff]
      %v872 = vld [vmem:[#allocation3 + $0x70] sm:$0xff]
      %v873 = vld [vmem:[#allocation3 + $0x78] sm:$0xff]
      %v874 = vmul.f32 %v699, %v858
      %v875 = vmul.f32 %v701, %v859
      %v876 = vmul.f32 %v703, %v860
      %v877 = vmul.f32 %v705, %v861
      %v878 = vmul.f32 %v707, %v862
      %v879 = vmul.f32 %v709, %v863
      %v880 = vmul.f32 %v711, %v864
      %v881 = vmul.f32 %v713, %v865
      %v882 = vmul.f32 %v715, %v866
      %v883 = vmul.f32 %v717, %v867
      %v884 = vmul.f32 %v719, %v868
      %v885 = vmul.f32 %v721, %v869
      %v886 = vmul.f32 %v723, %v870
      %v887 = vmul.f32 %v725, %v871
      %v888 = vmul.f32 %v727, %v872
      %v889 = vmul.f32 %v729, %v873
      %890 = vadd.xlane.f32.xlu0 %v827
      %v891 = vpop.xlane.xlu0 %890
      %892 = vadd.xlane.f32.xlu0 %v829
      %v893 = vpop.xlane.xlu0 %892
      %894 = vadd.xlane.f32.xlu0 %v831
      %v895 = vpop.xlane.xlu0 %894
      %896 = vadd.xlane.f32.xlu0 %v833
      %v897 = vpop.xlane.xlu0 %896
      %898 = vadd.xlane.f32.xlu0 %v835
      %v899 = vpop.xlane.xlu0 %898
      %900 = vadd.xlane.f32.xlu0 %v837
      %v901 = vpop.xlane.xlu0 %900
      %902 = vadd.xlane.f32.xlu0 %v839
      %v903 = vpop.xlane.xlu0 %902
      %904 = vadd.xlane.f32.xlu0 %v841
      %v905 = vpop.xlane.xlu0 %904
      %906 = vadd.xlane.f32.xlu0 %v843
      %v907 = vpop.xlane.xlu0 %906
      %908 = vadd.xlane.f32.xlu0 %v845
      %v909 = vpop.xlane.xlu0 %908
      %910 = vadd.xlane.f32.xlu0 %v847
      %v911 = vpop.xlane.xlu0 %910
      %912 = vadd.xlane.f32.xlu0 %v849
      %v913 = vpop.xlane.xlu0 %912
      %914 = vadd.xlane.f32.xlu0 %v851
      %v915 = vpop.xlane.xlu0 %914
      %916 = vadd.xlane.f32.xlu0 %v853
      %v917 = vpop.xlane.xlu0 %916
      %918 = vadd.xlane.f32.xlu0 %v855
      %v919 = vpop.xlane.xlu0 %918
      %920 = vadd.xlane.f32.xlu0 %v857
      %v921 = vpop.xlane.xlu0 %920
      %v922 = vadd.f32 %v874, %v891
      %v923 = vadd.f32 %v875, %v893
      %v924 = vadd.f32 %v876, %v895
      %v925 = vadd.f32 %v877, %v897
      %v926 = vadd.f32 %v878, %v899
      %v927 = vadd.f32 %v879, %v901
      %v928 = vadd.f32 %v880, %v903
      %v929 = vadd.f32 %v881, %v905
      %v930 = vadd.f32 %v882, %v907
      %v931 = vadd.f32 %v883, %v909
      %v932 = vadd.f32 %v884, %v911
      %v933 = vadd.f32 %v885, %v913
      %v934 = vadd.f32 %v886, %v915
      %v935 = vadd.f32 %v887, %v917
      %v936 = vadd.f32 %v888, %v919
      %v937 = vadd.f32 %v889, %v921
      %vm938 = vcmask 7168
      %939 = vst.msk [vmem:[#allocation3] sm:$0xff] %vm938, %v922
      %940 = vst.msk [vmem:[#allocation3 + $0x8] sm:$0xff] %vm938, %v923
      %941 = vst.msk [vmem:[#allocation3 + $0x10] sm:$0xff] %vm938, %v924
      %942 = vst.msk [vmem:[#allocation3 + $0x18] sm:$0xff] %vm938, %v925
      %943 = vst.msk [vmem:[#allocation3 + $0x20] sm:$0xff] %vm938, %v926
      %944 = vst.msk [vmem:[#allocation3 + $0x28] sm:$0xff] %vm938, %v927
      %945 = vst.msk [vmem:[#allocation3 + $0x30] sm:$0xff] %vm938, %v928
      %946 = vst.msk [vmem:[#allocation3 + $0x38] sm:$0xff] %vm938, %v929
      %947 = vst.msk [vmem:[#allocation3 + $0x40] sm:$0xff] %vm938, %v930
      %948 = vst.msk [vmem:[#allocation3 + $0x48] sm:$0xff] %vm938, %v931
      %949 = vst.msk [vmem:[#allocation3 + $0x50] sm:$0xff] %vm938, %v932
      %950 = vst.msk [vmem:[#allocation3 + $0x58] sm:$0xff] %vm938, %v933
      %951 = vst.msk [vmem:[#allocation3 + $0x60] sm:$0xff] %vm938, %v934
      %952 = vst.msk [vmem:[#allocation3 + $0x68] sm:$0xff] %vm938, %v935
      %953 = vst.msk [vmem:[#allocation3 + $0x70] sm:$0xff] %vm938, %v936
      %954 = vst.msk [vmem:[#allocation3 + $0x78] sm:$0xff] %vm938, %v937
      %v955 = vld [vmem:[#allocation4] sm:$0xff]
      %v956 = vld [vmem:[#allocation4 + $0x8] sm:$0xff]
      %v957 = vld [vmem:[#allocation4 + $0x10] sm:$0xff]
      %v958 = vld [vmem:[#allocation4 + $0x18] sm:$0xff]
      %v959 = vld [vmem:[#allocation4 + $0x20] sm:$0xff]
      %v960 = vld [vmem:[#allocation4 + $0x28] sm:$0xff]
      %v961 = vld [vmem:[#allocation4 + $0x30] sm:$0xff]
      %v962 = vld [vmem:[#allocation4 + $0x38] sm:$0xff]
      %v963 = vld [vmem:[#allocation4 + $0x40] sm:$0xff]
      %v964 = vld [vmem:[#allocation4 + $0x48] sm:$0xff]
      %v965 = vld [vmem:[#allocation4 + $0x50] sm:$0xff]
      %v966 = vld [vmem:[#allocation4 + $0x58] sm:$0xff]
      %v967 = vld [vmem:[#allocation4 + $0x60] sm:$0xff]
      %v968 = vld [vmem:[#allocation4 + $0x68] sm:$0xff]
      %v969 = vld [vmem:[#allocation4 + $0x70] sm:$0xff]
      %v970 = vld [vmem:[#allocation4 + $0x78] sm:$0xff]
      %972 = vset.pattern.permute.xlu0 0
      %973 = vperm.xlu0 %972, %v699
      %v974 = vpop.permute.xlu0 %973
      %977 = vset.pattern.permute.xlu0 0
      %978 = vperm.xlu0 %977, %v701
      %v979 = vpop.permute.xlu0 %978
      %982 = vset.pattern.permute.xlu0 0
      %983 = vperm.xlu0 %982, %v703
      %v984 = vpop.permute.xlu0 %983
      %987 = vset.pattern.permute.xlu0 0
      %988 = vperm.xlu0 %987, %v705
      %v989 = vpop.permute.xlu0 %988
      %992 = vset.pattern.permute.xlu0 0
      %993 = vperm.xlu0 %992, %v707
      %v994 = vpop.permute.xlu0 %993
      %997 = vset.pattern.permute.xlu0 0
      %998 = vperm.xlu0 %997, %v709
      %v999 = vpop.permute.xlu0 %998
      %1002 = vset.pattern.permute.xlu0 0
      %1003 = vperm.xlu0 %1002, %v711
      %v1004 = vpop.permute.xlu0 %1003
      %1007 = vset.pattern.permute.xlu0 0
      %1008 = vperm.xlu0 %1007, %v713
      %v1009 = vpop.permute.xlu0 %1008
      %1012 = vset.pattern.permute.xlu0 0
      %1013 = vperm.xlu0 %1012, %v715
      %v1014 = vpop.permute.xlu0 %1013
      %1017 = vset.pattern.permute.xlu0 0
      %1018 = vperm.xlu0 %1017, %v717
      %v1019 = vpop.permute.xlu0 %1018
      %1022 = vset.pattern.permute.xlu0 0
      %1023 = vperm.xlu0 %1022, %v719
      %v1024 = vpop.permute.xlu0 %1023
      %1027 = vset.pattern.permute.xlu0 0
      %1028 = vperm.xlu0 %1027, %v721
      %v1029 = vpop.permute.xlu0 %1028
      %1032 = vset.pattern.permute.xlu0 0
      %1033 = vperm.xlu0 %1032, %v723
      %v1034 = vpop.permute.xlu0 %1033
      %1037 = vset.pattern.permute.xlu0 0
      %1038 = vperm.xlu0 %1037, %v725
      %v1039 = vpop.permute.xlu0 %1038
      %1042 = vset.pattern.permute.xlu0 0
      %1043 = vperm.xlu0 %1042, %v727
      %v1044 = vpop.permute.xlu0 %1043
      %1047 = vset.pattern.permute.xlu0 0
      %1048 = vperm.xlu0 %1047, %v729
      %v1049 = vpop.permute.xlu0 %1048
      %v1051 = vmul.f32 %v974, %v955
      %v1052 = vmul.f32 %v979, %v956
      %v1053 = vmul.f32 %v984, %v957
      %v1054 = vmul.f32 %v989, %v958
      %v1055 = vmul.f32 %v994, %v959
      %v1056 = vmul.f32 %v999, %v960
      %v1057 = vmul.f32 %v1004, %v961
      %v1058 = vmul.f32 %v1009, %v962
      %v1059 = vmul.f32 %v1014, %v963
      %v1060 = vmul.f32 %v1019, %v964
      %v1061 = vmul.f32 %v1024, %v965
      %v1062 = vmul.f32 %v1029, %v966
      %v1063 = vmul.f32 %v1034, %v967
      %v1064 = vmul.f32 %v1039, %v968
      %v1065 = vmul.f32 %v1044, %v969
      %v1066 = vmul.f32 %v1049, %v970
      %v1067 = vpack.c.bf16 %v829, %v827
      %v1068 = vpack.c.bf16 %v833, %v831
      %v1069 = vpack.c.bf16 %v837, %v835
      %v1070 = vpack.c.bf16 %v841, %v839
      %v1071 = vpack.c.bf16 %v845, %v843
      %v1072 = vpack.c.bf16 %v849, %v847
      %v1073 = vpack.c.bf16 %v853, %v851
      %v1074 = vpack.c.bf16 %v857, %v855
      %v1075 = vld [vmem:[%s277] sm:$0xf]
      %v1076 = vld [vmem:[%s277 + $0x4] sm:$0xf]
      %v1077 = vld [vmem:[%s277 + $0x8] sm:$0xf]
      %v1078 = vld [vmem:[%s277 + $0xc] sm:$0xf]
      %v1079 = vld [vmem:[%s277 + $0x10] sm:$0xf]
      %v1080 = vld [vmem:[%s277 + $0x14] sm:$0xf]
      %v1081 = vld [vmem:[%s277 + $0x18] sm:$0xf]
      %v1082 = vld [vmem:[%s277 + $0x1c] sm:$0xf]
      %v1083 = vld [vmem:[%s277 + $0x20] sm:$0xf]
      %v1084 = vld [vmem:[%s277 + $0x24] sm:$0xf]
      %v1085 = vld [vmem:[%s277 + $0x28] sm:$0xf]
      %v1086 = vld [vmem:[%s277 + $0x2c] sm:$0xf]
      %v1087 = vld [vmem:[%s277 + $0x30] sm:$0xf]
      %v1088 = vld [vmem:[%s277 + $0x34] sm:$0xf]
      %v1089 = vld [vmem:[%s277 + $0x38] sm:$0xf]
      %v1090 = vld [vmem:[%s277 + $0x3c] sm:$0xf]
      %v1107 = vunpack.c.l.b16 %v1075
      %v1108 = vunpack.c.l.b16 %v1076
      %v1109 = vunpack.c.l.b16 %v1077
      %v1110 = vunpack.c.l.b16 %v1078
      %v1111 = vunpack.c.l.b16 %v1079
      %v1112 = vunpack.c.l.b16 %v1080
      %v1113 = vunpack.c.l.b16 %v1081
      %v1114 = vunpack.c.l.b16 %v1082
      %v1115 = vunpack.c.l.b16 %v1083
      %v1116 = vunpack.c.l.b16 %v1084
      %v1117 = vunpack.c.l.b16 %v1085
      %v1118 = vunpack.c.l.b16 %v1086
      %v1119 = vunpack.c.l.b16 %v1087
      %v1120 = vunpack.c.l.b16 %v1088
      %v1121 = vunpack.c.l.b16 %v1089
      %v1122 = vunpack.c.l.b16 %v1090
      %v1123 = vpack.c.b16 %v1108, %v1107
      %v1124 = vpack.c.b16 %v1110, %v1109
      %v1125 = vpack.c.b16 %v1112, %v1111
      %v1126 = vpack.c.b16 %v1114, %v1113
      %v1127 = vpack.c.b16 %v1116, %v1115
      %v1128 = vpack.c.b16 %v1118, %v1117
      %v1129 = vpack.c.b16 %v1120, %v1119
      %v1130 = vpack.c.b16 %v1122, %v1121
      %1139 = vmatprep.subr.bf16.mxu0 0
      %1140 = vmatpush1.bf16.msra.mxu0 %v1123
      %1141 = vmatprep.subr.bf16.mxu0 0
      %1142 = vmatpush1.bf16.msra.mxu0 %v1124
      %1143 = vmatprep.subr.bf16.mxu0 0
      %1144 = vmatpush1.bf16.msra.mxu0 %v1125
      %1145 = vmatprep.subr.bf16.mxu0 0
      %1146 = vmatpush1.bf16.msra.mxu0 %v1126
      %1147 = vmatprep.subr.bf16.mxu0 0
      %1148 = vmatpush1.bf16.msra.mxu0 %v1127
      %1149 = vmatprep.subr.bf16.mxu0 0
      %1150 = vmatpush1.bf16.msra.mxu0 %v1128
      %1151 = vmatprep.subr.bf16.mxu0 0
      %1152 = vmatpush1.bf16.msra.mxu0 %v1129
      %1153 = vmatprep.subr.bf16.mxu0 0
      %1154 = vmatpush1.bf16.msra.mxu0 %v1130
      %1155 = vmatprep.subr.bf16.mxu0 0
      %1156 = vmatpush1.bf16.msra.mxu0 0
      %1157 = vmatprep.subr.bf16.mxu0 0
      %1158 = vmatpush1.bf16.msra.mxu0 0
      %1159 = vmatprep.subr.bf16.mxu0 0
      %1160 = vmatpush1.bf16.msra.mxu0 0
      %1161 = vmatprep.subr.bf16.mxu0 0
      %1162 = vmatpush1.bf16.msra.mxu0 0
      %1163 = vmatprep.subr.bf16.mxu0 0
      %1164 = vmatpush1.bf16.msra.mxu0 0
      %1165 = vmatprep.subr.bf16.mxu0 0
      %1166 = vmatpush1.bf16.msra.mxu0 0
      %1167 = vmatprep.subr.bf16.mxu0 0
      %1168 = vmatpush1.bf16.msra.mxu0 0
      %1169 = vmatprep.subr.bf16.mxu0 0
      %1170 = vmatpush1.bf16.msra.mxu0 0
      %1171 = vmatprep.mubr.bf16.mxu0 0
      %1172 = vmatmul.mubr.bf16.gmra.mrb[0].mxu0 %v1067
      %v1173 = vpop.f32.mrb[0].mxu0
      %v1174 = vadd.f32 0.0, %v1173
      %v1175 = vpop.f32.mrb[0].mxu0
      %v1176 = vpop.f32.mrb[0].mxu0
      %v1177 = vadd.f32 0.0, %v1176
      %v1178 = vpop.f32.mrb[0].mxu0
      %1179 = vmatprep.mubr.bf16.mxu0 0
      %1180 = vmatmul.mubr.bf16.gmra.mrb[0].mxu0 %v1068
      %v1181 = vpop.f32.mrb[0].mxu0
      %v1182 = vadd.f32 0.0, %v1181
      %v1183 = vpop.f32.mrb[0].mxu0
      %v1184 = vpop.f32.mrb[0].mxu0
      %v1185 = vadd.f32 0.0, %v1184
      %v1186 = vpop.f32.mrb[0].mxu0
      %1187 = vmatprep.mubr.bf16.mxu0 0
      %1188 = vmatmul.mubr.bf16.gmra.mrb[0].mxu0 %v1069
      %v1189 = vpop.f32.mrb[0].mxu0
      %v1190 = vadd.f32 0.0, %v1189
      %v1191 = vpop.f32.mrb[0].mxu0
      %v1192 = vpop.f32.mrb[0].mxu0
      %v1193 = vadd.f32 0.0, %v1192
      %v1194 = vpop.f32.mrb[0].mxu0
      %1195 = vmatprep.mubr.bf16.mxu0 0
      %1196 = vmatmul.mubr.bf16.gmra.mrb[0].mxu0 %v1070
      %v1197 = vpop.f32.mrb[0].mxu0
      %v1198 = vadd.f32 0.0, %v1197
      %v1199 = vpop.f32.mrb[0].mxu0
      %v1200 = vpop.f32.mrb[0].mxu0
      %v1201 = vadd.f32 0.0, %v1200
      %v1202 = vpop.f32.mrb[0].mxu0
      %1203 = vmatprep.mubr.bf16.mxu0 0
      %1204 = vmatmul.mubr.bf16.gmra.mrb[0].mxu0 %v1071
      %v1205 = vpop.f32.mrb[0].mxu0
      %v1206 = vadd.f32 0.0, %v1205
      %v1207 = vpop.f32.mrb[0].mxu0
      %v1208 = vpop.f32.mrb[0].mxu0
      %v1209 = vadd.f32 0.0, %v1208
      %v1210 = vpop.f32.mrb[0].mxu0
      %1211 = vmatprep.mubr.bf16.mxu0 0
      %1212 = vmatmul.mubr.bf16.gmra.mrb[0].mxu0 %v1072
      %v1213 = vpop.f32.mrb[0].mxu0
      %v1214 = vadd.f32 0.0, %v1213
      %v1215 = vpop.f32.mrb[0].mxu0
      %v1216 = vpop.f32.mrb[0].mxu0
      %v1217 = vadd.f32 0.0, %v1216
      %v1218 = vpop.f32.mrb[0].mxu0
      %1219 = vmatprep.mubr.bf16.mxu0 0
      %1220 = vmatmul.mubr.bf16.gmra.mrb[0].mxu0 %v1073
      %v1221 = vpop.f32.mrb[0].mxu0
      %v1222 = vadd.f32 0.0, %v1221
      %v1223 = vpop.f32.mrb[0].mxu0
      %v1224 = vpop.f32.mrb[0].mxu0
      %v1225 = vadd.f32 0.0, %v1224
      %v1226 = vpop.f32.mrb[0].mxu0
      %1227 = vmatprep.mubr.bf16.mxu0 0
      %1228 = vmatmul.mubr.bf16.gmra.mrb[0].mxu0 %v1074
      %v1229 = vpop.f32.mrb[0].mxu0
      %v1230 = vadd.f32 0.0, %v1229
      %v1231 = vpop.f32.mrb[0].mxu0
      %v1232 = vpop.f32.mrb[0].mxu0
      %v1233 = vadd.f32 0.0, %v1232
      %v1234 = vpop.f32.mrb[0].mxu0
      %1235 = vdwg.mxu0
      %v1236 = vadd.f32 %v1051, %v1174
      %v1237 = vadd.f32 %v1052, %v1177
      %v1238 = vadd.f32 %v1053, %v1182
      %v1239 = vadd.f32 %v1054, %v1185
      %v1240 = vadd.f32 %v1055, %v1190
      %v1241 = vadd.f32 %v1056, %v1193
      %v1242 = vadd.f32 %v1057, %v1198
      %v1243 = vadd.f32 %v1058, %v1201
      %v1244 = vadd.f32 %v1059, %v1206
      %v1245 = vadd.f32 %v1060, %v1209
      %v1246 = vadd.f32 %v1061, %v1214
      %v1247 = vadd.f32 %v1062, %v1217
      %v1248 = vadd.f32 %v1063, %v1222
      %v1249 = vadd.f32 %v1064, %v1225
      %v1250 = vadd.f32 %v1065, %v1230
      %v1251 = vadd.f32 %v1066, %v1233
      %1252 = vst.msk [vmem:[#allocation4] sm:$0xff] %vm456, %v1236
      %1253 = vst.msk [vmem:[#allocation4 + $0x8] sm:$0xff] %vm456, %v1237
      %1254 = vst.msk [vmem:[#allocation4 + $0x10] sm:$0xff] %vm456, %v1238
      %1255 = vst.msk [vmem:[#allocation4 + $0x18] sm:$0xff] %vm456, %v1239
      %1256 = vst.msk [vmem:[#allocation4 + $0x20] sm:$0xff] %vm456, %v1240
      %1257 = vst.msk [vmem:[#allocation4 + $0x28] sm:$0xff] %vm456, %v1241
      %1258 = vst.msk [vmem:[#allocation4 + $0x30] sm:$0xff] %vm456, %v1242
      %1259 = vst.msk [vmem:[#allocation4 + $0x38] sm:$0xff] %vm456, %v1243
      %1260 = vst.msk [vmem:[#allocation4 + $0x40] sm:$0xff] %vm456, %v1244
      %1261 = vst.msk [vmem:[#allocation4 + $0x48] sm:$0xff] %vm456, %v1245
      %1262 = vst.msk [vmem:[#allocation4 + $0x50] sm:$0xff] %vm456, %v1246
      %1263 = vst.msk [vmem:[#allocation4 + $0x58] sm:$0xff] %vm456, %v1247
      %1264 = vst.msk [vmem:[#allocation4 + $0x60] sm:$0xff] %vm456, %v1248
      %1265 = vst.msk [vmem:[#allocation4 + $0x68] sm:$0xff] %vm456, %v1249
      %1266 = vst.msk [vmem:[#allocation4 + $0x70] sm:$0xff] %vm456, %v1250
      %1267 = vst.msk [vmem:[#allocation4 + $0x78] sm:$0xff] %vm456, %v1251
      %1268 = vst.msk [vmem:[#allocation2] sm:$0xff] %vm938, %v666
      %1269 = vst.msk [vmem:[#allocation2 + $0x8] sm:$0xff] %vm938, %v667
      %1270 = vst.msk [vmem:[#allocation2 + $0x10] sm:$0xff] %vm938, %v668
      %1271 = vst.msk [vmem:[#allocation2 + $0x18] sm:$0xff] %vm938, %v669
      %1272 = vst.msk [vmem:[#allocation2 + $0x20] sm:$0xff] %vm938, %v670
      %1273 = vst.msk [vmem:[#allocation2 + $0x28] sm:$0xff] %vm938, %v671
      %1274 = vst.msk [vmem:[#allocation2 + $0x30] sm:$0xff] %vm938, %v672
      %1275 = vst.msk [vmem:[#allocation2 + $0x38] sm:$0xff] %vm938, %v673
      %1276 = vst.msk [vmem:[#allocation2 + $0x40] sm:$0xff] %vm938, %v674
      %1277 = vst.msk [vmem:[#allocation2 + $0x48] sm:$0xff] %vm938, %v675
      %1278 = vst.msk [vmem:[#allocation2 + $0x50] sm:$0xff] %vm938, %v676
      %1279 = vst.msk [vmem:[#allocation2 + $0x58] sm:$0xff] %vm938, %v677
      %1280 = vst.msk [vmem:[#allocation2 + $0x60] sm:$0xff] %vm938, %v678
      %1281 = vst.msk [vmem:[#allocation2 + $0x68] sm:$0xff] %vm938, %v679
      %1282 = vst.msk [vmem:[#allocation2 + $0x70] sm:$0xff] %vm938, %v680
      %1283 = vst.msk [vmem:[#allocation2 + $0x78] sm:$0xff] %vm938, %v681
      %p1284 = scmp.eq.s32.totalorder %s21, 1
      // Predicated region
      $region37: #{self_attention_forward.6} parent=31 // pred_check
        %p1285 = pneg %p1284
      $region38: #{self_attention_forward.6} parent=31 // pred_check_branch
        %1287 = sbr.rel (%p1285) target = $region40
      $region39: #{self_attention_forward.6} parent=31 // pred_region
        %v1288 = vld [vmem:[#allocation4] sm:$0xff]
        %v1289 = vld [vmem:[#allocation4 + $0x8] sm:$0xff]
        %v1290 = vld [vmem:[#allocation4 + $0x10] sm:$0xff]
        %v1291 = vld [vmem:[#allocation4 + $0x18] sm:$0xff]
        %v1292 = vld [vmem:[#allocation4 + $0x20] sm:$0xff]
        %v1293 = vld [vmem:[#allocation4 + $0x28] sm:$0xff]
        %v1294 = vld [vmem:[#allocation4 + $0x30] sm:$0xff]
        %v1295 = vld [vmem:[#allocation4 + $0x38] sm:$0xff]
        %v1296 = vld [vmem:[#allocation4 + $0x40] sm:$0xff]
        %v1297 = vld [vmem:[#allocation4 + $0x48] sm:$0xff]
        %v1298 = vld [vmem:[#allocation4 + $0x50] sm:$0xff]
        %v1299 = vld [vmem:[#allocation4 + $0x58] sm:$0xff]
        %v1300 = vld [vmem:[#allocation4 + $0x60] sm:$0xff]
        %v1301 = vld [vmem:[#allocation4 + $0x68] sm:$0xff]
        %v1302 = vld [vmem:[#allocation4 + $0x70] sm:$0xff]
        %v1303 = vld [vmem:[#allocation4 + $0x78] sm:$0xff]
        %v1304 = vld [vmem:[#allocation3] sm:$0xff]
        %v1305 = vld [vmem:[#allocation3 + $0x8] sm:$0xff]
        %v1306 = vld [vmem:[#allocation3 + $0x10] sm:$0xff]
        %v1307 = vld [vmem:[#allocation3 + $0x18] sm:$0xff]
        %v1308 = vld [vmem:[#allocation3 + $0x20] sm:$0xff]
        %v1309 = vld [vmem:[#allocation3 + $0x28] sm:$0xff]
        %v1310 = vld [vmem:[#allocation3 + $0x30] sm:$0xff]
        %v1311 = vld [vmem:[#allocation3 + $0x38] sm:$0xff]
        %v1312 = vld [vmem:[#allocation3 + $0x40] sm:$0xff]
        %v1313 = vld [vmem:[#allocation3 + $0x48] sm:$0xff]
        %v1314 = vld [vmem:[#allocation3 + $0x50] sm:$0xff]
        %v1315 = vld [vmem:[#allocation3 + $0x58] sm:$0xff]
        %v1316 = vld [vmem:[#allocation3 + $0x60] sm:$0xff]
        %v1317 = vld [vmem:[#allocation3 + $0x68] sm:$0xff]
        %v1318 = vld [vmem:[#allocation3 + $0x70] sm:$0xff]
        %v1319 = vld [vmem:[#allocation3 + $0x78] sm:$0xff]
        %1321 = vset.pattern.permute.xlu0 0
        %1322 = vperm.xlu0 %1321, %v1304
        %v1323 = vpop.permute.xlu0 %1322
        %1326 = vset.pattern.permute.xlu0 0
        %1327 = vperm.xlu0 %1326, %v1305
        %v1328 = vpop.permute.xlu0 %1327
        %1331 = vset.pattern.permute.xlu0 0
        %1332 = vperm.xlu0 %1331, %v1306
        %v1333 = vpop.permute.xlu0 %1332
        %1336 = vset.pattern.permute.xlu0 0
        %1337 = vperm.xlu0 %1336, %v1307
        %v1338 = vpop.permute.xlu0 %1337
        %1341 = vset.pattern.permute.xlu0 0
        %1342 = vperm.xlu0 %1341, %v1308
        %v1343 = vpop.permute.xlu0 %1342
        %1346 = vset.pattern.permute.xlu0 0
        %1347 = vperm.xlu0 %1346, %v1309
        %v1348 = vpop.permute.xlu0 %1347
        %1351 = vset.pattern.permute.xlu0 0
        %1352 = vperm.xlu0 %1351, %v1310
        %v1353 = vpop.permute.xlu0 %1352
        %1356 = vset.pattern.permute.xlu0 0
        %1357 = vperm.xlu0 %1356, %v1311
        %v1358 = vpop.permute.xlu0 %1357
        %1361 = vset.pattern.permute.xlu0 0
        %1362 = vperm.xlu0 %1361, %v1312
        %v1363 = vpop.permute.xlu0 %1362
        %1366 = vset.pattern.permute.xlu0 0
        %1367 = vperm.xlu0 %1366, %v1313
        %v1368 = vpop.permute.xlu0 %1367
        %1371 = vset.pattern.permute.xlu0 0
        %1372 = vperm.xlu0 %1371, %v1314
        %v1373 = vpop.permute.xlu0 %1372
        %1376 = vset.pattern.permute.xlu0 0
        %1377 = vperm.xlu0 %1376, %v1315
        %v1378 = vpop.permute.xlu0 %1377
        %1381 = vset.pattern.permute.xlu0 0
        %1382 = vperm.xlu0 %1381, %v1316
        %v1383 = vpop.permute.xlu0 %1382
        %1386 = vset.pattern.permute.xlu0 0
        %1387 = vperm.xlu0 %1386, %v1317
        %v1388 = vpop.permute.xlu0 %1387
        %1391 = vset.pattern.permute.xlu0 0
        %1392 = vperm.xlu0 %1391, %v1318
        %v1393 = vpop.permute.xlu0 %1392
        %1396 = vset.pattern.permute.xlu0 0
        %1397 = vperm.xlu0 %1396, %v1319
        %v1398 = vpop.permute.xlu0 %1397
        %v1400 = vrcp.pop %v1323
        %v1401 = vmul.f32 %v1288, %v1400
        %v1402 = vrcp.pop %v1328
        %v1403 = vmul.f32 %v1289, %v1402
        %v1404 = vrcp.pop %v1333
        %v1405 = vmul.f32 %v1290, %v1404
        %v1406 = vrcp.pop %v1338
        %v1407 = vmul.f32 %v1291, %v1406
        %v1408 = vrcp.pop %v1343
        %v1409 = vmul.f32 %v1292, %v1408
        %v1410 = vrcp.pop %v1348
        %v1411 = vmul.f32 %v1293, %v1410
        %v1412 = vrcp.pop %v1353
        %v1413 = vmul.f32 %v1294, %v1412
        %v1414 = vrcp.pop %v1358
        %v1415 = vmul.f32 %v1295, %v1414
        %v1416 = vrcp.pop %v1363
        %v1417 = vmul.f32 %v1296, %v1416
        %v1418 = vrcp.pop %v1368
        %v1419 = vmul.f32 %v1297, %v1418
        %v1420 = vrcp.pop %v1373
        %v1421 = vmul.f32 %v1298, %v1420
        %v1422 = vrcp.pop %v1378
        %v1423 = vmul.f32 %v1299, %v1422
        %v1424 = vrcp.pop %v1383
        %v1425 = vmul.f32 %v1300, %v1424
        %v1426 = vrcp.pop %v1388
        %v1427 = vmul.f32 %v1301, %v1426
        %v1428 = vrcp.pop %v1393
        %v1429 = vmul.f32 %v1302, %v1428
        %v1430 = vrcp.pop %v1398
        %v1431 = vmul.f32 %v1303, %v1430
        %v1432 = vpack.c.bf16 %v1403, %v1401
        %v1433 = vpack.c.bf16 %v1407, %v1405
        %v1434 = vpack.c.bf16 %v1411, %v1409
        %v1435 = vpack.c.bf16 %v1415, %v1413
        %v1436 = vpack.c.bf16 %v1419, %v1417
        %v1437 = vpack.c.bf16 %v1423, %v1421
        %v1438 = vpack.c.bf16 %v1427, %v1425
        %v1439 = vpack.c.bf16 %v1431, %v1429
        %v1448 = vunpack.c.l.b16 %v1432
        %v1449 = vunpack.c.h.b16 %v1432
        %v1450 = vunpack.c.l.b16 %v1433
        %v1451 = vunpack.c.h.b16 %v1433
        %v1452 = vunpack.c.l.b16 %v1434
        %v1453 = vunpack.c.h.b16 %v1434
        %v1454 = vunpack.c.l.b16 %v1435
        %v1455 = vunpack.c.h.b16 %v1435
        %v1456 = vunpack.c.l.b16 %v1436
        %v1457 = vunpack.c.h.b16 %v1436
        %v1458 = vunpack.c.l.b16 %v1437
        %v1459 = vunpack.c.h.b16 %v1437
        %v1460 = vunpack.c.l.b16 %v1438
        %v1461 = vunpack.c.h.b16 %v1438
        %v1462 = vunpack.c.l.b16 %v1439
        %v1463 = vunpack.c.h.b16 %v1439
        %v1464 = vpack.c.b16 %v1448, %v1448
        %v1465 = vpack.c.b16 %v1449, %v1449
        %v1466 = vpack.c.b16 %v1450, %v1450
        %v1467 = vpack.c.b16 %v1451, %v1451
        %v1468 = vpack.c.b16 %v1452, %v1452
        %v1469 = vpack.c.b16 %v1453, %v1453
        %v1470 = vpack.c.b16 %v1454, %v1454
        %v1471 = vpack.c.b16 %v1455, %v1455
        %v1472 = vpack.c.b16 %v1456, %v1456
        %v1473 = vpack.c.b16 %v1457, %v1457
        %v1474 = vpack.c.b16 %v1458, %v1458
        %v1475 = vpack.c.b16 %v1459, %v1459
        %v1476 = vpack.c.b16 %v1460, %v1460
        %v1477 = vpack.c.b16 %v1461, %v1461
        %v1478 = vpack.c.b16 %v1462, %v1462
        %v1479 = vpack.c.b16 %v1463, %v1463
        %vm1496 = vcmask 125952
        %1497 = vst.msk [vmem:[%s287] sm:$0xf] %vm1496, %v1464
        %1498 = vst.msk [vmem:[%s287 + $0x4] sm:$0xf] %vm1496, %v1465
        %1499 = vst.msk [vmem:[%s287 + $0x8] sm:$0xf] %vm1496, %v1466
        %1500 = vst.msk [vmem:[%s287 + $0xc] sm:$0xf] %vm1496, %v1467
        %1501 = vst.msk [vmem:[%s287 + $0x10] sm:$0xf] %vm1496, %v1468
        %1502 = vst.msk [vmem:[%s287 + $0x14] sm:$0xf] %vm1496, %v1469
        %1503 = vst.msk [vmem:[%s287 + $0x18] sm:$0xf] %vm1496, %v1470
        %1504 = vst.msk [vmem:[%s287 + $0x1c] sm:$0xf] %vm1496, %v1471
        %1505 = vst.msk [vmem:[%s287 + $0x20] sm:$0xf] %vm1496, %v1472
        %1506 = vst.msk [vmem:[%s287 + $0x24] sm:$0xf] %vm1496, %v1473
        %1507 = vst.msk [vmem:[%s287 + $0x28] sm:$0xf] %vm1496, %v1474
        %1508 = vst.msk [vmem:[%s287 + $0x2c] sm:$0xf] %vm1496, %v1475
        %1509 = vst.msk [vmem:[%s287 + $0x30] sm:$0xf] %vm1496, %v1476
        %1510 = vst.msk [vmem:[%s287 + $0x34] sm:$0xf] %vm1496, %v1477
        %1511 = vst.msk [vmem:[%s287 + $0x38] sm:$0xf] %vm1496, %v1478
        %1512 = vst.msk [vmem:[%s287 + $0x3c] sm:$0xf] %vm1496, %v1479
      $region40: #{self_attention_forward.6} parent=31 // pred_fallthru
        _
      %s1513 = smul.u32 16, %s20
      %p1514 = scmp.lt.s32.totalorder %s19, 7
      %s1515 = scalar_select %p1514, %s19, 7
      %p1516 = scmp.lt.s32.totalorder %s1513, 31
      %s1517 = scalar_select %p1516, %s1513, 31
      %s1518 = smul.addr %s1515, 32
      %s1519 = sadd.s32 %s1517, %s1518
      %s1520 = smul.addr %s1519, 4
      %s1521 = scalar_lea.vmem %s3, %s1520
      // Predicated region
      $region41: #{self_attention_forward.6} parent=31 // pred_check
        %p1522 = pneg %p137
      $region42: #{self_attention_forward.6} parent=31 // pred_check_branch
        %1524 = sbr.rel (%p1522) target = $region44
      $region43: #{self_attention_forward.6} parent=31 // pred_region
        %s1525 = smul.u32 16, %s20
      $region44: #{self_attention_forward.6} parent=31 // pred_fallthru
        _
    $region32: #{self_attention_forward.6} parent=5 // pred_fallthru
      _
    %p1526 = scmp.le.s32.totalorder 2, %s9
    // Predicated region
    $region45: #{self_attention_forward.6} parent=5 // pred_check
      %p1527 = pneg %p1526
    $region46: #{self_attention_forward.6} parent=5 // pred_check_branch
      %1529 = sbr.rel (%p1527) target = $region48
    $region47: #{self_attention_forward.6} parent=5 // pred_region
      %s1530 = ssub.s32 %s9, 2
      // Predicated region
      $region49: #{self_attention_forward.6} parent=47 // pred_check
        %p1531 = pneg %p143
      $region50: #{self_attention_forward.6} parent=47 // pred_check_branch
        %1533 = sbr.rel (%p1531) target = $region52
      $region51: #{self_attention_forward.6} parent=47 // pred_region
        %s1534 = smul.u32 16, %s23
        %p1535 = scmp.lt.s32.totalorder %s22, 7
        %s1536 = scalar_select %p1535, %s22, 7
        %p1537 = scmp.lt.s32.totalorder %s1534, 31
        %s1538 = scalar_select %p1537, %s1534, 31
        %s1539 = smul.addr %s1536, 32
        %s1540 = sadd.s32 %s1538, %s1539
        %s1541 = smul.addr %s1540, 4
        %s1542 = scalar_lea.vmem %s3, %s1541
      $region52: #{self_attention_forward.6} parent=47 // pred_fallthru
        _
    $region48: #{self_attention_forward.6} parent=5 // pred_fallthru
      _
  $region6: #{self_attention_forward.6} parent=0 // loop_footer
    %s13 = sadd.s32 1, %s9
  $region7: #{self_attention_forward.6} parent=0 // loop_footer_branch
    %8 = sbr.rel target = $region3
  $region8: #{self_attention_forward.6} parent=0 // loop_exit
    _

// kernel: self_attention_forward.7
$region0: #{self_attention_forward.7}
  #allocation0 [shape = 'u32[]', space=smem, size = 0x4, offset = 0x4, fixed_abs, tag = 'smem constant byte address 0x4 - core index']
  #allocation1 [shape = 'u32[144,128]{1,0:T(1,128)}', space=vmem, size = 0x12000, scoped, tag = 'internal scratch']
  #allocation2 [shape = 'f32[256,64]{1,0:T(8,128)}', space=vmem, size = 0x20000, scoped, tag = 'scratch operand']
  %s0 = inlined_call_operand.vmem [shape: bf16[512,64], index: 0, kind: input, shape index: {}]
  %s1 = inlined_call_operand.vmem [shape: bf16[64,64], index: 1, kind: input, shape index: {}]
  %s2 = inlined_call_operand.vmem [shape: f32[1,64], index: 2, kind: input, shape index: {}]
  %s3 = inlined_call_operand.vmem [shape: f32[512,64], index: 3, kind: input, shape index: {}]
  %s4 = inlined_call_operand.vmem [shape: f32[512,64], index: 4, kind: output, shape index: {}]
  %s5 = sld [smem:[#allocation0]]
  $region57: #{self_attention_forward.7} parent=0
    _
  %s7 = ssub.s32 1, %s5
  %s8 = scalar_select 0, %s7, %s5
  loop: start=0, step=1, limit=4
  $region2: #{self_attention_forward.7} parent=0 // loop_pre_header
    _
  $region3: #{self_attention_forward.7} parent=0 // loop_header
    %s10 = sphi 0, %s14
    %p11 = scmp.ge.s32.totalorder %s10, 4
    %s17 = sphi 0, %s36
    %s18 = sphi 0, %s32
    %s19 = sphi 0, %s28
    %s20 = sphi 0, %s17
    %s21 = sphi 0, %s18
    %s22 = sphi 0, %s19
    %s23 = sphi 0, %s20
    %s24 = sphi 0, %s21
    %s25 = sphi 0, %s22
    %s41 = sphi 0, %s43
    %s44 = sphi 0, %s41
    %s45 = sphi 0, %s44
    %s61 = sphi 0, %s45
    %s69 = sphi 0, %s71
    %s72 = sphi 0, %s69
    %s73 = sphi 0, %s72
    %s89 = sphi 0, %s73
    %s95 = sphi 0, %s97
    %s98 = sphi 0, %s95
    %s99 = sphi 0, %s98
    %s115 = sphi 0, %s99
    %s123 = sphi 0, %s125
    %s126 = sphi 0, %s123
    %s127 = sphi 0, %s126
    %s143 = sphi 0, %s127
    %s151 = sphi 0, %s153
    %s154 = sphi 0, %s151
    %s155 = sphi 0, %s154
    %s171 = sphi 0, %s155
  $region4: #{self_attention_forward.7} parent=0 // loop_header_branch
    %13 = sbr.rel (%p11) target = $region8
  $region5: #{self_attention_forward.7} parent=0 // loop_body
    %s15 = ssub.s32 %s10, 1
    %s16 = ssub.s32 %s10, 2
    %s26 = sadd.s32 1, %s19
    %p27 = scmp.ge.s32.totalorder %s26, 1
    %s28 = scalar_select %p27, 0, %s26
    %s29 = sadd.s32 1, %s18
    %s30 = scalar_select %p27, %s29, %s18
    %p31 = scmp.ge.s32.totalorder %s30, 1
    %s32 = scalar_select %p31, 0, %s30
    %s33 = sadd.s32 1, %s17
    %s34 = scalar_select %p31, %s33, %s17
    %p35 = scmp.ge.s32.totalorder %s34, 2
    %s36 = scalar_select %p35, 0, %s34
    %s37 = ssub.s32 %s17, %s36
    %s38 = ssub.s32 %s19, %s28
    %s39 = sor.u32 %s37, %s38
    %p40 = scmp.eq.s32.totalorder %s39, 0
    %s42 = sadd.s32 %s41, 1
    %s43 = scalar_select %p40, %s41, %s42
    %p46 = pneg %p40
    %p47 = scmp.eq.s32.totalorder %s10, 1
    %p48 = por %p46, %p47
    %p49 = scmp.ne.s32.totalorder %s41, %s44
    %p50 = scmp.eq.s32.totalorder %s10, 0
    %p51 = por %p49, %p50
    %p52 = scmp.ne.s32.totalorder %s41, %s44
    %p53 = scmp.eq.s32.totalorder %s15, 1
    %p54 = por %p52, %p53
    %p55 = scmp.ne.s32.totalorder %s44, %s45
    %p56 = scmp.eq.s32.totalorder %s15, 0
    %p57 = por %p55, %p56
    %p58 = scmp.ne.s32.totalorder %s44, %s45
    %p59 = scmp.eq.s32.totalorder %s16, 1
    %p60 = por %p58, %p59
    %p62 = scmp.ne.s32.totalorder %s45, %s61
    %p63 = scmp.eq.s32.totalorder %s16, 0
    %p64 = por %p62, %p63
    %s65 = ssub.s32 %s19, %s28
    %s66 = ssub.s32 %s18, %s32
    %s67 = sor.u32 %s65, %s66
    %p68 = scmp.eq.s32.totalorder %s67, 0
    %s70 = sadd.s32 %s69, 1
    %s71 = scalar_select %p68, %s69, %s70
    %p74 = pneg %p68
    %p75 = scmp.eq.s32.totalorder %s10, 1
    %p76 = por %p74, %p75
    %p77 = scmp.ne.s32.totalorder %s69, %s72
    %p78 = scmp.eq.s32.totalorder %s10, 0
    %p79 = por %p77, %p78
    %p80 = scmp.ne.s32.totalorder %s69, %s72
    %p81 = scmp.eq.s32.totalorder %s15, 1
    %p82 = por %p80, %p81
    %p83 = scmp.ne.s32.totalorder %s72, %s73
    %p84 = scmp.eq.s32.totalorder %s15, 0
    %p85 = por %p83, %p84
    %p86 = scmp.ne.s32.totalorder %s72, %s73
    %p87 = scmp.eq.s32.totalorder %s16, 1
    %p88 = por %p86, %p87
    %p90 = scmp.ne.s32.totalorder %s73, %s89
    %p91 = scmp.eq.s32.totalorder %s16, 0
    %p92 = por %p90, %p91
    %s93 = ssub.s32 %s18, %s32
    %p94 = scmp.eq.s32.totalorder %s93, 0
    %s96 = sadd.s32 %s95, 1
    %s97 = scalar_select %p94, %s95, %s96
    %p100 = pneg %p94
    %p101 = scmp.eq.s32.totalorder %s10, 1
    %p102 = por %p100, %p101
    %p103 = scmp.ne.s32.totalorder %s95, %s98
    %p104 = scmp.eq.s32.totalorder %s10, 0
    %p105 = por %p103, %p104
    %p106 = scmp.ne.s32.totalorder %s95, %s98
    %p107 = scmp.eq.s32.totalorder %s15, 1
    %p108 = por %p106, %p107
    %p109 = scmp.ne.s32.totalorder %s98, %s99
    %p110 = scmp.eq.s32.totalorder %s15, 0
    %p111 = por %p109, %p110
    %p112 = scmp.ne.s32.totalorder %s98, %s99
    %p113 = scmp.eq.s32.totalorder %s16, 1
    %p114 = por %p112, %p113
    %p116 = scmp.ne.s32.totalorder %s99, %s115
    %p117 = scmp.eq.s32.totalorder %s16, 0
    %p118 = por %p116, %p117
    %s119 = ssub.s32 %s17, %s36
    %s120 = ssub.s32 %s18, %s32
    %s121 = sor.u32 %s119, %s120
    %p122 = scmp.eq.s32.totalorder %s121, 0
    %s124 = sadd.s32 %s123, 1
    %s125 = scalar_select %p122, %s123, %s124
    %p128 = pneg %p122
    %p129 = scmp.eq.s32.totalorder %s10, 1
    %p130 = por %p128, %p129
    %p131 = scmp.ne.s32.totalorder %s123, %s126
    %p132 = scmp.eq.s32.totalorder %s10, 0
    %p133 = por %p131, %p132
    %p134 = scmp.ne.s32.totalorder %s123, %s126
    %p135 = scmp.eq.s32.totalorder %s15, 1
    %p136 = por %p134, %p135
    %p137 = scmp.ne.s32.totalorder %s126, %s127
    %p138 = scmp.eq.s32.totalorder %s15, 0
    %p139 = por %p137, %p138
    %p140 = scmp.ne.s32.totalorder %s126, %s127
    %p141 = scmp.eq.s32.totalorder %s16, 1
    %p142 = por %p140, %p141
    %p144 = scmp.ne.s32.totalorder %s127, %s143
    %p145 = scmp.eq.s32.totalorder %s16, 0
    %p146 = por %p144, %p145
    %s147 = ssub.s32 %s17, %s36
    %s148 = ssub.s32 %s18, %s32
    %s149 = sor.u32 %s147, %s148
    %p150 = scmp.eq.s32.totalorder %s149, 0
    %s152 = sadd.s32 %s151, 1
    %s153 = scalar_select %p150, %s151, %s152
    %p156 = pneg %p150
    %p157 = scmp.eq.s32.totalorder %s10, 1
    %p158 = por %p156, %p157
    %p159 = scmp.ne.s32.totalorder %s151, %s154
    %p160 = scmp.eq.s32.totalorder %s10, 0
    %p161 = por %p159, %p160
    %p162 = scmp.ne.s32.totalorder %s151, %s154
    %p163 = scmp.eq.s32.totalorder %s15, 1
    %p164 = por %p162, %p163
    %p165 = scmp.ne.s32.totalorder %s154, %s155
    %p166 = scmp.eq.s32.totalorder %s15, 0
    %p167 = por %p165, %p166
    %p168 = scmp.ne.s32.totalorder %s154, %s155
    %p169 = scmp.eq.s32.totalorder %s16, 1
    %p170 = por %p168, %p169
    %p172 = scmp.ne.s32.totalorder %s155, %s171
    %p173 = scmp.eq.s32.totalorder %s16, 0
    %p174 = por %p172, %p173
    %p175 = scmp.le.s32.totalorder 1, %s10
    %p176 = scmp.lt.s32.totalorder %s10, 3
    %p177 = pnand %p175, %p176
    %p178 = pneg %p177
    // Predicated region
    $region9: #{self_attention_forward.7} parent=5 // pred_check
      _
    $region10: #{self_attention_forward.7} parent=5 // pred_check_branch
      %180 = sbr.rel (%p177) target = $region12
    $region11: #{self_attention_forward.7} parent=5 // pred_region
      %s181 = ssub.s32 %s10, 1
      // Predicated region
      $region13: #{self_attention_forward.7} parent=11 // pred_check
        %p182 = pneg %p85
      $region14: #{self_attention_forward.7} parent=11 // pred_check_branch
        %184 = sbr.rel (%p182) target = $region16
      $region15: #{self_attention_forward.7} parent=11 // pred_region
        %s185 = smul.u32 8, %s22
        %p186 = scmp.lt.s32.totalorder %s185, 7
        %s187 = scalar_select %p186, %s185, 7
        %p188 = scmp.lt.s32.totalorder %s21, 0
        %s189 = scalar_select %p188, %s21, 0
        %s190 = sadd.s32 %s189, %s187
        %s191 = smul.addr %s190, 4
        %s192 = scalar_lea.vmem %s1, %s191
        %s193 = smul.u32 8, %s22
      $region16: #{self_attention_forward.7} parent=11 // pred_fallthru
        _
      // Predicated region
      $region17: #{self_attention_forward.7} parent=11 // pred_check
        %p194 = pneg %p111
      $region18: #{self_attention_forward.7} parent=11 // pred_check_branch
        %196 = sbr.rel (%p194) target = $region20
      $region19: #{self_attention_forward.7} parent=11 // pred_region
        %p197 = scmp.lt.s32.totalorder %s21, 0
        %s198 = scalar_select %p197, %s21, 0
        %s199 = scalar_lea.vmem %s2, %s198
      $region20: #{self_attention_forward.7} parent=11 // pred_fallthru
        _
    $region12: #{self_attention_forward.7} parent=5 // pred_fallthru
      _
    %p200 = scmp.lt.s32.totalorder %s10, 2
    // Predicated region
    $region21: #{self_attention_forward.7} parent=5 // pred_check
      %p201 = pneg %p200
    $region22: #{self_attention_forward.7} parent=5 // pred_check_branch
      %203 = sbr.rel (%p201) target = $region24
    $region23: #{self_attention_forward.7} parent=5 // pred_region
      // Predicated region
      $region25: #{self_attention_forward.7} parent=23 // pred_check
        %p204 = pneg %p51
      $region26: #{self_attention_forward.7} parent=23 // pred_check_branch
        %206 = sbr.rel (%p204) target = $region28
      $region27: #{self_attention_forward.7} parent=23 // pred_region
        %s207 = smul.u32 32, %s17
        %p208 = scmp.lt.s32.totalorder %s207, 63
        %s209 = scalar_select %p208, %s207, 63
        %p210 = scmp.lt.s32.totalorder %s19, 0
        %s211 = scalar_select %p210, %s19, 0
        %s212 = sadd.s32 %s211, %s209
        %s213 = smul.addr %s212, 4
        %s214 = scalar_lea.vmem %s0, %s213
        %s215 = smul.u32 32, %s17
      $region28: #{self_attention_forward.7} parent=23 // pred_fallthru
        _
      // Predicated region
      $region29: #{self_attention_forward.7} parent=23 // pred_check
        %p216 = pneg %p133
      $region30: #{self_attention_forward.7} parent=23 // pred_check_branch
        %218 = sbr.rel (%p216) target = $region32
      $region31: #{self_attention_forward.7} parent=23 // pred_region
        %s219 = smul.u32 32, %s17
        %p220 = scmp.lt.s32.totalorder %s219, 63
        %s221 = scalar_select %p220, %s219, 63
        %p222 = scmp.lt.s32.totalorder %s18, 0
        %s223 = scalar_select %p222, %s18, 0
        %s224 = sadd.s32 %s223, %s221
        %s225 = smul.addr %s224, 8
        %s226 = scalar_lea.vmem %s3, %s225
        %s227 = smul.u32 32, %s17
      $region32: #{self_attention_forward.7} parent=23 // pred_fallthru
        _
    $region24: #{self_attention_forward.7} parent=5 // pred_fallthru
      _
    %p228 = scmp.le.s32.totalorder 1, %s10
    %p229 = scmp.lt.s32.totalorder %s10, 3
    %p230 = pnand %p228, %p229
    %p231 = pneg %p230
    // Predicated region
    $region33: #{self_attention_forward.7} parent=5 // pred_check
      _
    $region34: #{self_attention_forward.7} parent=5 // pred_check_branch
      %233 = sbr.rel (%p230) target = $region36
    $region35: #{self_attention_forward.7} parent=5 // pred_region
      %s234 = ssub.s32 %s10, 1
      %s235 = smul.u32 32, %s20
      %p236 = scmp.lt.s32.totalorder %s235, 63
      %s237 = scalar_select %p236, %s235, 63
      %p238 = scmp.lt.s32.totalorder %s22, 0
      %s239 = scalar_select %p238, %s22, 0
      %s240 = sadd.s32 %s239, %s237
      %s241 = smul.addr %s240, 4
      %s242 = scalar_lea.vmem %s0, %s241
      %p243 = pneg %p57
      %p244 = pneg %p54
      %s245 = smul.u32 8, %s22
      %p246 = scmp.lt.s32.totalorder %s245, 7
      %s247 = scalar_select %p246, %s245, 7
      %p248 = scmp.lt.s32.totalorder %s21, 0
      %s249 = scalar_select %p248, %s21, 0
      %s250 = sadd.s32 %s249, %s247
      %s251 = smul.addr %s250, 4
      %s252 = scalar_lea.vmem %s1, %s251
      %p253 = pneg %p85
      %p254 = pneg %p82
      %p255 = scmp.lt.s32.totalorder %s21, 0
      %s256 = scalar_select %p255, %s21, 0
      %s257 = scalar_lea.vmem %s2, %s256
      %p258 = pneg %p111
      %p259 = pneg %p108
      %s260 = smul.u32 32, %s20
      %p261 = scmp.lt.s32.totalorder %s260, 63
      %s262 = scalar_select %p261, %s260, 63
      %p263 = scmp.lt.s32.totalorder %s21, 0
      %s264 = scalar_select %p263, %s21, 0
      %s265 = sadd.s32 %s264, %s262
      %s266 = smul.addr %s265, 8
      %s267 = scalar_lea.vmem %s3, %s266
      %p268 = pneg %p139
      %p269 = pneg %p136
      %p270 = pneg %p167
      %p271 = pneg %p164
      %s272 = smul.u32 32, %s20
      %p273 = scmp.lt.s32.totalorder %s272, 63
      %s274 = scalar_select %p273, %s272, 63
      %p275 = scmp.lt.s32.totalorder %s21, 0
      %s276 = scalar_select %p275, %s21, 0
      %s277 = sadd.s32 %s276, %s274
      %s278 = smul.addr %s277, 8
      %s279 = scalar_lea.vmem %s4, %s278
      %s280 = smul.u32 32, %s20
      %p281 = scmp.lt.s32.totalorder %s280, 63
      %s282 = scalar_select %p281, %s280, 63
      %p283 = scmp.lt.s32.totalorder %s22, 0
      %s284 = scalar_select %p283, %s22, 0
      %s285 = sadd.s32 %s284, %s282
      %s286 = smul.addr %s285, 4
      %s287 = scalar_lea.vmem %s0, %s286
      %s288 = smul.u32 32, %s20
      %s289 = smul.u32 8, %s22
      %p290 = scmp.lt.s32.totalorder %s289, 7
      %s291 = scalar_select %p290, %s289, 7
      %p292 = scmp.lt.s32.totalorder %s21, 0
      %s293 = scalar_select %p292, %s21, 0
      %s294 = sadd.s32 %s293, %s291
      %s295 = smul.addr %s294, 4
      %s296 = scalar_lea.vmem %s1, %s295
      %s297 = smul.u32 8, %s22
      %p298 = scmp.lt.s32.totalorder %s21, 0
      %s299 = scalar_select %p298, %s21, 0
      %s300 = scalar_lea.vmem %s2, %s299
      %s301 = smul.u32 32, %s20
      %p302 = scmp.lt.s32.totalorder %s301, 63
      %s303 = scalar_select %p302, %s301, 63
      %p304 = scmp.lt.s32.totalorder %s21, 0
      %s305 = scalar_select %p304, %s21, 0
      %s306 = sadd.s32 %s305, %s303
      %s307 = smul.addr %s306, 8
      %s308 = scalar_lea.vmem %s3, %s307
      %s309 = smul.u32 32, %s20
      %s310 = smul.u32 32, %s20
      %p311 = scmp.lt.s32.totalorder %s310, 63
      %s312 = scalar_select %p311, %s310, 63
      %p313 = scmp.lt.s32.totalorder %s21, 0
      %s314 = scalar_select %p313, %s21, 0
      %s315 = sadd.s32 %s314, %s312
      %s316 = smul.addr %s315, 8
      %s317 = scalar_lea.vmem %s4, %s316
      %s318 = smul.u32 32, %s20
      %p320 = scmp.eq.s32.totalorder %s22, 0
      // Predicated region
      $region37: #{self_attention_forward.7} parent=35 // pred_check
        %p321 = pneg %p320
      $region38: #{self_attention_forward.7} parent=35 // pred_check_branch
        %323 = sbr.rel (%p321) target = $region40
      $region39: #{self_attention_forward.7} parent=35 // pred_region
        %vm324 = vcmask 523264
        %325 = vst.msk [vmem:[#allocation2] sm:$0xff] %vm324, 0.0
        %326 = vst.msk [vmem:[#allocation2 + $0x8] sm:$0xff] %vm324, 0.0
        %327 = vst.msk [vmem:[#allocation2 + $0x10] sm:$0xff] %vm324, 0.0
        %328 = vst.msk [vmem:[#allocation2 + $0x18] sm:$0xff] %vm324, 0.0
        %329 = vst.msk [vmem:[#allocation2 + $0x20] sm:$0xff] %vm324, 0.0
        %330 = vst.msk [vmem:[#allocation2 + $0x28] sm:$0xff] %vm324, 0.0
        %331 = vst.msk [vmem:[#allocation2 + $0x30] sm:$0xff] %vm324, 0.0
        %332 = vst.msk [vmem:[#allocation2 + $0x38] sm:$0xff] %vm324, 0.0
        %333 = vst.msk [vmem:[#allocation2 + $0x40] sm:$0xff] %vm324, 0.0
        %334 = vst.msk [vmem:[#allocation2 + $0x48] sm:$0xff] %vm324, 0.0
        %335 = vst.msk [vmem:[#allocation2 + $0x50] sm:$0xff] %vm324, 0.0
        %336 = vst.msk [vmem:[#allocation2 + $0x58] sm:$0xff] %vm324, 0.0
        %337 = vst.msk [vmem:[#allocation2 + $0x60] sm:$0xff] %vm324, 0.0
        %338 = vst.msk [vmem:[#allocation2 + $0x68] sm:$0xff] %vm324, 0.0
        %339 = vst.msk [vmem:[#allocation2 + $0x70] sm:$0xff] %vm324, 0.0
        %340 = vst.msk [vmem:[#allocation2 + $0x78] sm:$0xff] %vm324, 0.0
        %341 = vst.msk [vmem:[#allocation2 + $0x80] sm:$0xff] %vm324, 0.0
        %342 = vst.msk [vmem:[#allocation2 + $0x88] sm:$0xff] %vm324, 0.0
        %343 = vst.msk [vmem:[#allocation2 + $0x90] sm:$0xff] %vm324, 0.0
        %344 = vst.msk [vmem:[#allocation2 + $0x98] sm:$0xff] %vm324, 0.0
        %345 = vst.msk [vmem:[#allocation2 + $0xa0] sm:$0xff] %vm324, 0.0
        %346 = vst.msk [vmem:[#allocation2 + $0xa8] sm:$0xff] %vm324, 0.0
        %347 = vst.msk [vmem:[#allocation2 + $0xb0] sm:$0xff] %vm324, 0.0
        %348 = vst.msk [vmem:[#allocation2 + $0xb8] sm:$0xff] %vm324, 0.0
        %349 = vst.msk [vmem:[#allocation2 + $0xc0] sm:$0xff] %vm324, 0.0
        %350 = vst.msk [vmem:[#allocation2 + $0xc8] sm:$0xff] %vm324, 0.0
        %351 = vst.msk [vmem:[#allocation2 + $0xd0] sm:$0xff] %vm324, 0.0
        %352 = vst.msk [vmem:[#allocation2 + $0xd8] sm:$0xff] %vm324, 0.0
        %353 = vst.msk [vmem:[#allocation2 + $0xe0] sm:$0xff] %vm324, 0.0
        %354 = vst.msk [vmem:[#allocation2 + $0xe8] sm:$0xff] %vm324, 0.0
        %355 = vst.msk [vmem:[#allocation2 + $0xf0] sm:$0xff] %vm324, 0.0
        %356 = vst.msk [vmem:[#allocation2 + $0xf8] sm:$0xff] %vm324, 0.0
      $region40: #{self_attention_forward.7} parent=35 // pred_fallthru
        _
      %v357 = vld [vmem:[%s287] sm:$0xf]
      %v358 = vld [vmem:[%s287 + $0x4] sm:$0xf]
      %v359 = vld [vmem:[%s287 + $0x8] sm:$0xf]
      %v360 = vld [vmem:[%s287 + $0xc] sm:$0xf]
      %v361 = vld [vmem:[%s287 + $0x10] sm:$0xf]
      %v362 = vld [vmem:[%s287 + $0x14] sm:$0xf]
      %v363 = vld [vmem:[%s287 + $0x18] sm:$0xf]
      %v364 = vld [vmem:[%s287 + $0x1c] sm:$0xf]
      %v365 = vld [vmem:[%s287 + $0x20] sm:$0xf]
      %v366 = vld [vmem:[%s287 + $0x24] sm:$0xf]
      %v367 = vld [vmem:[%s287 + $0x28] sm:$0xf]
      %v368 = vld [vmem:[%s287 + $0x2c] sm:$0xf]
      %v369 = vld [vmem:[%s287 + $0x30] sm:$0xf]
      %v370 = vld [vmem:[%s287 + $0x34] sm:$0xf]
      %v371 = vld [vmem:[%s287 + $0x38] sm:$0xf]
      %v372 = vld [vmem:[%s287 + $0x3c] sm:$0xf]
      %v373 = vld [vmem:[%s287 + $0x40] sm:$0xf]
      %v374 = vld [vmem:[%s287 + $0x44] sm:$0xf]
      %v375 = vld [vmem:[%s287 + $0x48] sm:$0xf]
      %v376 = vld [vmem:[%s287 + $0x4c] sm:$0xf]
      %v377 = vld [vmem:[%s287 + $0x50] sm:$0xf]
      %v378 = vld [vmem:[%s287 + $0x54] sm:$0xf]
      %v379 = vld [vmem:[%s287 + $0x58] sm:$0xf]
      %v380 = vld [vmem:[%s287 + $0x5c] sm:$0xf]
      %v381 = vld [vmem:[%s287 + $0x60] sm:$0xf]
      %v382 = vld [vmem:[%s287 + $0x64] sm:$0xf]
      %v383 = vld [vmem:[%s287 + $0x68] sm:$0xf]
      %v384 = vld [vmem:[%s287 + $0x6c] sm:$0xf]
      %v385 = vld [vmem:[%s287 + $0x70] sm:$0xf]
      %v386 = vld [vmem:[%s287 + $0x74] sm:$0xf]
      %v387 = vld [vmem:[%s287 + $0x78] sm:$0xf]
      %v388 = vld [vmem:[%s287 + $0x7c] sm:$0xf]
      %v389 = vld [vmem:[#allocation2] sm:$0xff]
      %v390 = vld [vmem:[#allocation2 + $0x8] sm:$0xff]
      %v391 = vld [vmem:[#allocation2 + $0x10] sm:$0xff]
      %v392 = vld [vmem:[#allocation2 + $0x18] sm:$0xff]
      %v393 = vld [vmem:[#allocation2 + $0x20] sm:$0xff]
      %v394 = vld [vmem:[#allocation2 + $0x28] sm:$0xff]
      %v395 = vld [vmem:[#allocation2 + $0x30] sm:$0xff]
      %v396 = vld [vmem:[#allocation2 + $0x38] sm:$0xff]
      %v397 = vld [vmem:[#allocation2 + $0x40] sm:$0xff]
      %v398 = vld [vmem:[#allocation2 + $0x48] sm:$0xff]
      %v399 = vld [vmem:[#allocation2 + $0x50] sm:$0xff]
      %v400 = vld [vmem:[#allocation2 + $0x58] sm:$0xff]
      %v401 = vld [vmem:[#allocation2 + $0x60] sm:$0xff]
      %v402 = vld [vmem:[#allocation2 + $0x68] sm:$0xff]
      %v403 = vld [vmem:[#allocation2 + $0x70] sm:$0xff]
      %v404 = vld [vmem:[#allocation2 + $0x78] sm:$0xff]
      %v405 = vld [vmem:[#allocation2 + $0x80] sm:$0xff]
      %v406 = vld [vmem:[#allocation2 + $0x88] sm:$0xff]
      %v407 = vld [vmem:[#allocation2 + $0x90] sm:$0xff]
      %v408 = vld [vmem:[#allocation2 + $0x98] sm:$0xff]
      %v409 = vld [vmem:[#allocation2 + $0xa0] sm:$0xff]
      %v410 = vld [vmem:[#allocation2 + $0xa8] sm:$0xff]
      %v411 = vld [vmem:[#allocation2 + $0xb0] sm:$0xff]
      %v412 = vld [vmem:[#allocation2 + $0xb8] sm:$0xff]
      %v413 = vld [vmem:[#allocation2 + $0xc0] sm:$0xff]
      %v414 = vld [vmem:[#allocation2 + $0xc8] sm:$0xff]
      %v415 = vld [vmem:[#allocation2 + $0xd0] sm:$0xff]
      %v416 = vld [vmem:[#allocation2 + $0xd8] sm:$0xff]
      %v417 = vld [vmem:[#allocation2 + $0xe0] sm:$0xff]
      %v418 = vld [vmem:[#allocation2 + $0xe8] sm:$0xff]
      %v419 = vld [vmem:[#allocation2 + $0xf0] sm:$0xff]
      %v420 = vld [vmem:[#allocation2 + $0xf8] sm:$0xff]
      %v421 = vld [vmem:[%s296] sm:$0xf]
      %v422 = vld [vmem:[%s296 + $0x4] sm:$0xf]
      %v423 = vld [vmem:[%s296 + $0x8] sm:$0xf]
      %v424 = vld [vmem:[%s296 + $0xc] sm:$0xf]
      %v425 = vld [vmem:[%s296 + $0x10] sm:$0xf]
      %v426 = vld [vmem:[%s296 + $0x14] sm:$0xf]
      %v427 = vld [vmem:[%s296 + $0x18] sm:$0xf]
      %v428 = vld [vmem:[%s296 + $0x1c] sm:$0xf]
      %v461 = vunpack.c.l.b16 %v357
      %v462 = vunpack.c.l.b16 %v358
      %v463 = vunpack.c.l.b16 %v359
      %v464 = vunpack.c.l.b16 %v360
      %v465 = vunpack.c.l.b16 %v361
      %v466 = vunpack.c.l.b16 %v362
      %v467 = vunpack.c.l.b16 %v363
      %v468 = vunpack.c.l.b16 %v364
      %v469 = vunpack.c.l.b16 %v365
      %v470 = vunpack.c.l.b16 %v366
      %v471 = vunpack.c.l.b16 %v367
      %v472 = vunpack.c.l.b16 %v368
      %v473 = vunpack.c.l.b16 %v369
      %v474 = vunpack.c.l.b16 %v370
      %v475 = vunpack.c.l.b16 %v371
      %v476 = vunpack.c.l.b16 %v372
      %v477 = vunpack.c.l.b16 %v373
      %v478 = vunpack.c.l.b16 %v374
      %v479 = vunpack.c.l.b16 %v375
      %v480 = vunpack.c.l.b16 %v376
      %v481 = vunpack.c.l.b16 %v377
      %v482 = vunpack.c.l.b16 %v378
      %v483 = vunpack.c.l.b16 %v379
      %v484 = vunpack.c.l.b16 %v380
      %v485 = vunpack.c.l.b16 %v381
      %v486 = vunpack.c.l.b16 %v382
      %v487 = vunpack.c.l.b16 %v383
      %v488 = vunpack.c.l.b16 %v384
      %v489 = vunpack.c.l.b16 %v385
      %v490 = vunpack.c.l.b16 %v386
      %v491 = vunpack.c.l.b16 %v387
      %v492 = vunpack.c.l.b16 %v388
      %v493 = vpack.c.b16 %v462, %v461
      %v494 = vpack.c.b16 %v464, %v463
      %v495 = vpack.c.b16 %v466, %v465
      %v496 = vpack.c.b16 %v468, %v467
      %v497 = vpack.c.b16 %v470, %v469
      %v498 = vpack.c.b16 %v472, %v471
      %v499 = vpack.c.b16 %v474, %v473
      %v500 = vpack.c.b16 %v476, %v475
      %v501 = vpack.c.b16 %v478, %v477
      %v502 = vpack.c.b16 %v480, %v479
      %v503 = vpack.c.b16 %v482, %v481
      %v504 = vpack.c.b16 %v484, %v483
      %v505 = vpack.c.b16 %v486, %v485
      %v506 = vpack.c.b16 %v488, %v487
      %v507 = vpack.c.b16 %v490, %v489
      %v508 = vpack.c.b16 %v492, %v491
      %v517 = vunpack.c.l.b16 %v421
      %v518 = vunpack.c.l.b16 %v422
      %v519 = vunpack.c.l.b16 %v423
      %v520 = vunpack.c.l.b16 %v424
      %v521 = vunpack.c.l.b16 %v425
      %v522 = vunpack.c.l.b16 %v426
      %v523 = vunpack.c.l.b16 %v427
      %v524 = vunpack.c.l.b16 %v428
      %v525 = vpack.c.b16 %v518, %v517
      %v526 = vpack.c.b16 %v520, %v519
      %v527 = vpack.c.b16 %v522, %v521
      %v528 = vpack.c.b16 %v524, %v523
      %vm533 = vcmask 523264
      %v535 = vsel %vm533, %v493, 0
      %v538 = vsel %vm533, %v494, 0
      %v541 = vsel %vm533, %v495, 0
      %v544 = vsel %vm533, %v496, 0
      %v547 = vsel %vm533, %v497, 0
      %v550 = vsel %vm533, %v498, 0
      %v553 = vsel %vm533, %v499, 0
      %v556 = vsel %vm533, %v500, 0
      %v559 = vsel %vm533, %v501, 0
      %v562 = vsel %vm533, %v502, 0
      %v565 = vsel %vm533, %v503, 0
      %v568 = vsel %vm533, %v504, 0
      %v571 = vsel %vm533, %v505, 0
      %v574 = vsel %vm533, %v506, 0
      %v577 = vsel %vm533, %v507, 0
      %v580 = vsel %vm533, %v508, 0
      %582 = vmatprep.subr.bf16.mxu0 0
      %583 = vmatpush1.bf16.msra.mxu0 %v525
      %584 = vmatprep.subr.bf16.mxu0 0
      %585 = vmatpush1.bf16.msra.mxu0 %v526
      %586 = vmatprep.subr.bf16.mxu0 0
      %587 = vmatpush1.bf16.msra.mxu0 %v527
      %588 = vmatprep.subr.bf16.mxu0 0
      %589 = vmatpush1.bf16.msra.mxu0 %v528
      %590 = vmatprep.subr.bf16.mxu0 0
      %591 = vmatpush1.bf16.msra.mxu0 0
      %592 = vmatprep.subr.bf16.mxu0 0
      %593 = vmatpush1.bf16.msra.mxu0 0
      %594 = vmatprep.subr.bf16.mxu0 0
      %595 = vmatpush1.bf16.msra.mxu0 0
      %596 = vmatprep.subr.bf16.mxu0 0
      %597 = vmatpush1.bf16.msra.mxu0 0
      %598 = vmatprep.subr.bf16.mxu0 0
      %599 = vmatpush1.bf16.msra.mxu0 0
      %600 = vmatprep.subr.bf16.mxu0 0
      %601 = vmatpush1.bf16.msra.mxu0 0
      %602 = vmatprep.subr.bf16.mxu0 0
      %603 = vmatpush1.bf16.msra.mxu0 0
      %604 = vmatprep.subr.bf16.mxu0 0
      %605 = vmatpush1.bf16.msra.mxu0 0
      %606 = vmatprep.subr.bf16.mxu0 0
      %607 = vmatpush1.bf16.msra.mxu0 0
      %608 = vmatprep.subr.bf16.mxu0 0
      %609 = vmatpush1.bf16.msra.mxu0 0
      %610 = vmatprep.subr.bf16.mxu0 0
      %611 = vmatpush1.bf16.msra.mxu0 0
      %612 = vmatprep.subr.bf16.mxu0 0
      %613 = vmatpush1.bf16.msra.mxu0 0
      %614 = vmatprep.mubr.bf16.mxu0 0
      %615 = vmatmul.mubr.bf16.gmra.mrb[0].mxu0 %v535
      %v616 = vpop.f32.mrb[0].mxu0
      %v617 = vadd.f32 0.0, %v616
      %v618 = vpop.f32.mrb[0].mxu0
      %v619 = vpop.f32.mrb[0].mxu0
      %v620 = vadd.f32 0.0, %v619
      %v621 = vpop.f32.mrb[0].mxu0
      %622 = vmatprep.mubr.bf16.mxu0 0
      %623 = vmatmul.mubr.bf16.gmra.mrb[0].mxu0 %v538
      %v624 = vpop.f32.mrb[0].mxu0
      %v625 = vadd.f32 0.0, %v624
      %v626 = vpop.f32.mrb[0].mxu0
      %v627 = vpop.f32.mrb[0].mxu0
      %v628 = vadd.f32 0.0, %v627
      %v629 = vpop.f32.mrb[0].mxu0
      %630 = vmatprep.mubr.bf16.mxu0 0
      %631 = vmatmul.mubr.bf16.gmra.mrb[0].mxu0 %v541
      %v632 = vpop.f32.mrb[0].mxu0
      %v633 = vadd.f32 0.0, %v632
      %v634 = vpop.f32.mrb[0].mxu0
      %v635 = vpop.f32.mrb[0].mxu0
      %v636 = vadd.f32 0.0, %v635
      %v637 = vpop.f32.mrb[0].mxu0
      %638 = vmatprep.mubr.bf16.mxu0 0
      %639 = vmatmul.mubr.bf16.gmra.mrb[0].mxu0 %v544
      %v640 = vpop.f32.mrb[0].mxu0
      %v641 = vadd.f32 0.0, %v640
      %v642 = vpop.f32.mrb[0].mxu0
      %v643 = vpop.f32.mrb[0].mxu0
      %v644 = vadd.f32 0.0, %v643
      %v645 = vpop.f32.mrb[0].mxu0
      %646 = vmatprep.mubr.bf16.mxu0 0
      %647 = vmatmul.mubr.bf16.gmra.mrb[0].mxu0 %v547
      %v648 = vpop.f32.mrb[0].mxu0
      %v649 = vadd.f32 0.0, %v648
      %v650 = vpop.f32.mrb[0].mxu0
      %v651 = vpop.f32.mrb[0].mxu0
      %v652 = vadd.f32 0.0, %v651
      %v653 = vpop.f32.mrb[0].mxu0
      %654 = vmatprep.mubr.bf16.mxu0 0
      %655 = vmatmul.mubr.bf16.gmra.mrb[0].mxu0 %v550
      %v656 = vpop.f32.mrb[0].mxu0
      %v657 = vadd.f32 0.0, %v656
      %v658 = vpop.f32.mrb[0].mxu0
      %v659 = vpop.f32.mrb[0].mxu0
      %v660 = vadd.f32 0.0, %v659
      %v661 = vpop.f32.mrb[0].mxu0
      %662 = vmatprep.mubr.bf16.mxu0 0
      %663 = vmatmul.mubr.bf16.gmra.mrb[0].mxu0 %v553
      %v664 = vpop.f32.mrb[0].mxu0
      %v665 = vadd.f32 0.0, %v664
      %v666 = vpop.f32.mrb[0].mxu0
      %v667 = vpop.f32.mrb[0].mxu0
      %v668 = vadd.f32 0.0, %v667
      %v669 = vpop.f32.mrb[0].mxu0
      %670 = vmatprep.mubr.bf16.mxu0 0
      %671 = vmatmul.mubr.bf16.gmra.mrb[0].mxu0 %v556
      %v672 = vpop.f32.mrb[0].mxu0
      %v673 = vadd.f32 0.0, %v672
      %v674 = vpop.f32.mrb[0].mxu0
      %v675 = vpop.f32.mrb[0].mxu0
      %v676 = vadd.f32 0.0, %v675
      %v677 = vpop.f32.mrb[0].mxu0
      %678 = vmatprep.mubr.bf16.mxu0 0
      %679 = vmatmul.mubr.bf16.gmra.mrb[0].mxu0 %v559
      %v680 = vpop.f32.mrb[0].mxu0
      %v681 = vadd.f32 0.0, %v680
      %v682 = vpop.f32.mrb[0].mxu0
      %v683 = vpop.f32.mrb[0].mxu0
      %v684 = vadd.f32 0.0, %v683
      %v685 = vpop.f32.mrb[0].mxu0
      %686 = vmatprep.mubr.bf16.mxu0 0
      %687 = vmatmul.mubr.bf16.gmra.mrb[0].mxu0 %v562
      %v688 = vpop.f32.mrb[0].mxu0
      %v689 = vadd.f32 0.0, %v688
      %v690 = vpop.f32.mrb[0].mxu0
      %v691 = vpop.f32.mrb[0].mxu0
      %v692 = vadd.f32 0.0, %v691
      %v693 = vpop.f32.mrb[0].mxu0
      %694 = vmatprep.mubr.bf16.mxu0 0
      %695 = vmatmul.mubr.bf16.gmra.mrb[0].mxu0 %v565
      %v696 = vpop.f32.mrb[0].mxu0
      %v697 = vadd.f32 0.0, %v696
      %v698 = vpop.f32.mrb[0].mxu0
      %v699 = vpop.f32.mrb[0].mxu0
      %v700 = vadd.f32 0.0, %v699
      %v701 = vpop.f32.mrb[0].mxu0
      %702 = vmatprep.mubr.bf16.mxu0 0
      %703 = vmatmul.mubr.bf16.gmra.mrb[0].mxu0 %v568
      %v704 = vpop.f32.mrb[0].mxu0
      %v705 = vadd.f32 0.0, %v704
      %v706 = vpop.f32.mrb[0].mxu0
      %v707 = vpop.f32.mrb[0].mxu0
      %v708 = vadd.f32 0.0, %v707
      %v709 = vpop.f32.mrb[0].mxu0
      %710 = vmatprep.mubr.bf16.mxu0 0
      %711 = vmatmul.mubr.bf16.gmra.mrb[0].mxu0 %v571
      %v712 = vpop.f32.mrb[0].mxu0
      %v713 = vadd.f32 0.0, %v712
      %v714 = vpop.f32.mrb[0].mxu0
      %v715 = vpop.f32.mrb[0].mxu0
      %v716 = vadd.f32 0.0, %v715
      %v717 = vpop.f32.mrb[0].mxu0
      %718 = vmatprep.mubr.bf16.mxu0 0
      %719 = vmatmul.mubr.bf16.gmra.mrb[0].mxu0 %v574
      %v720 = vpop.f32.mrb[0].mxu0
      %v721 = vadd.f32 0.0, %v720
      %v722 = vpop.f32.mrb[0].mxu0
      %v723 = vpop.f32.mrb[0].mxu0
      %v724 = vadd.f32 0.0, %v723
      %v725 = vpop.f32.mrb[0].mxu0
      %726 = vmatprep.mubr.bf16.mxu0 0
      %727 = vmatmul.mubr.bf16.gmra.mrb[0].mxu0 %v577
      %v728 = vpop.f32.mrb[0].mxu0
      %v729 = vadd.f32 0.0, %v728
      %v730 = vpop.f32.mrb[0].mxu0
      %v731 = vpop.f32.mrb[0].mxu0
      %v732 = vadd.f32 0.0, %v731
      %v733 = vpop.f32.mrb[0].mxu0
      %734 = vmatprep.mubr.bf16.mxu0 0
      %735 = vmatmul.mubr.bf16.gmra.mrb[0].mxu0 %v580
      %v736 = vpop.f32.mrb[0].mxu0
      %v737 = vadd.f32 0.0, %v736
      %v738 = vpop.f32.mrb[0].mxu0
      %v739 = vpop.f32.mrb[0].mxu0
      %v740 = vadd.f32 0.0, %v739
      %v741 = vpop.f32.mrb[0].mxu0
      %742 = vdwg.mxu0
      %v743 = vadd.f32 %v389, %v617
      %v744 = vadd.f32 %v390, %v620
      %v745 = vadd.f32 %v391, %v625
      %v746 = vadd.f32 %v392, %v628
      %v747 = vadd.f32 %v393, %v633
      %v748 = vadd.f32 %v394, %v636
      %v749 = vadd.f32 %v395, %v641
      %v750 = vadd.f32 %v396, %v644
      %v751 = vadd.f32 %v397, %v649
      %v752 = vadd.f32 %v398, %v652
      %v753 = vadd.f32 %v399, %v657
      %v754 = vadd.f32 %v400, %v660
      %v755 = vadd.f32 %v401, %v665
      %v756 = vadd.f32 %v402, %v668
      %v757 = vadd.f32 %v403, %v673
      %v758 = vadd.f32 %v404, %v676
      %v759 = vadd.f32 %v405, %v681
      %v760 = vadd.f32 %v406, %v684
      %v761 = vadd.f32 %v407, %v689
      %v762 = vadd.f32 %v408, %v692
      %v763 = vadd.f32 %v409, %v697
      %v764 = vadd.f32 %v410, %v700
      %v765 = vadd.f32 %v411, %v705
      %v766 = vadd.f32 %v412, %v708
      %v767 = vadd.f32 %v413, %v713
      %v768 = vadd.f32 %v414, %v716
      %v769 = vadd.f32 %v415, %v721
      %v770 = vadd.f32 %v416, %v724
      %v771 = vadd.f32 %v417, %v729
      %v772 = vadd.f32 %v418, %v732
      %v773 = vadd.f32 %v419, %v737
      %v774 = vadd.f32 %v420, %v740
      %775 = vst.msk [vmem:[#allocation2] sm:$0xff] %vm533, %v743
      %776 = vst.msk [vmem:[#allocation2 + $0x8] sm:$0xff] %vm533, %v744
      %777 = vst.msk [vmem:[#allocation2 + $0x10] sm:$0xff] %vm533, %v745
      %778 = vst.msk [vmem:[#allocation2 + $0x18] sm:$0xff] %vm533, %v746
      %779 = vst.msk [vmem:[#allocation2 + $0x20] sm:$0xff] %vm533, %v747
      %780 = vst.msk [vmem:[#allocation2 + $0x28] sm:$0xff] %vm533, %v748
      %781 = vst.msk [vmem:[#allocation2 + $0x30] sm:$0xff] %vm533, %v749
      %782 = vst.msk [vmem:[#allocation2 + $0x38] sm:$0xff] %vm533, %v750
      %783 = vst.msk [vmem:[#allocation2 + $0x40] sm:$0xff] %vm533, %v751
      %784 = vst.msk [vmem:[#allocation2 + $0x48] sm:$0xff] %vm533, %v752
      %785 = vst.msk [vmem:[#allocation2 + $0x50] sm:$0xff] %vm533, %v753
      %786 = vst.msk [vmem:[#allocation2 + $0x58] sm:$0xff] %vm533, %v754
      %787 = vst.msk [vmem:[#allocation2 + $0x60] sm:$0xff] %vm533, %v755
      %788 = vst.msk [vmem:[#allocation2 + $0x68] sm:$0xff] %vm533, %v756
      %789 = vst.msk [vmem:[#allocation2 + $0x70] sm:$0xff] %vm533, %v757
      %790 = vst.msk [vmem:[#allocation2 + $0x78] sm:$0xff] %vm533, %v758
      %791 = vst.msk [vmem:[#allocation2 + $0x80] sm:$0xff] %vm533, %v759
      %792 = vst.msk [vmem:[#allocation2 + $0x88] sm:$0xff] %vm533, %v760
      %793 = vst.msk [vmem:[#allocation2 + $0x90] sm:$0xff] %vm533, %v761
      %794 = vst.msk [vmem:[#allocation2 + $0x98] sm:$0xff] %vm533, %v762
      %795 = vst.msk [vmem:[#allocation2 + $0xa0] sm:$0xff] %vm533, %v763
      %796 = vst.msk [vmem:[#allocation2 + $0xa8] sm:$0xff] %vm533, %v764
      %797 = vst.msk [vmem:[#allocation2 + $0xb0] sm:$0xff] %vm533, %v765
      %798 = vst.msk [vmem:[#allocation2 + $0xb8] sm:$0xff] %vm533, %v766
      %799 = vst.msk [vmem:[#allocation2 + $0xc0] sm:$0xff] %vm533, %v767
      %800 = vst.msk [vmem:[#allocation2 + $0xc8] sm:$0xff] %vm533, %v768
      %801 = vst.msk [vmem:[#allocation2 + $0xd0] sm:$0xff] %vm533, %v769
      %802 = vst.msk [vmem:[#allocation2 + $0xd8] sm:$0xff] %vm533, %v770
      %803 = vst.msk [vmem:[#allocation2 + $0xe0] sm:$0xff] %vm533, %v771
      %804 = vst.msk [vmem:[#allocation2 + $0xe8] sm:$0xff] %vm533, %v772
      %805 = vst.msk [vmem:[#allocation2 + $0xf0] sm:$0xff] %vm533, %v773
      %806 = vst.msk [vmem:[#allocation2 + $0xf8] sm:$0xff] %vm533, %v774
      // Predicated region
      $region41: #{self_attention_forward.7} parent=35 // pred_check
        %p807 = pneg %p320
      $region42: #{self_attention_forward.7} parent=35 // pred_check_branch
        %809 = sbr.rel (%p807) target = $region44
      $region43: #{self_attention_forward.7} parent=35 // pred_region
        %v810 = vld [vmem:[#allocation2] sm:$0xff]
        %v811 = vld [vmem:[#allocation2 + $0x8] sm:$0xff]
        %v812 = vld [vmem:[#allocation2 + $0x10] sm:$0xff]
        %v813 = vld [vmem:[#allocation2 + $0x18] sm:$0xff]
        %v814 = vld [vmem:[#allocation2 + $0x20] sm:$0xff]
        %v815 = vld [vmem:[#allocation2 + $0x28] sm:$0xff]
        %v816 = vld [vmem:[#allocation2 + $0x30] sm:$0xff]
        %v817 = vld [vmem:[#allocation2 + $0x38] sm:$0xff]
        %v818 = vld [vmem:[#allocation2 + $0x40] sm:$0xff]
        %v819 = vld [vmem:[#allocation2 + $0x48] sm:$0xff]
        %v820 = vld [vmem:[#allocation2 + $0x50] sm:$0xff]
        %v821 = vld [vmem:[#allocation2 + $0x58] sm:$0xff]
        %v822 = vld [vmem:[#allocation2 + $0x60] sm:$0xff]
        %v823 = vld [vmem:[#allocation2 + $0x68] sm:$0xff]
        %v824 = vld [vmem:[#allocation2 + $0x70] sm:$0xff]
        %v825 = vld [vmem:[#allocation2 + $0x78] sm:$0xff]
        %v826 = vld [vmem:[#allocation2 + $0x80] sm:$0xff]
        %v827 = vld [vmem:[#allocation2 + $0x88] sm:$0xff]
        %v828 = vld [vmem:[#allocation2 + $0x90] sm:$0xff]
        %v829 = vld [vmem:[#allocation2 + $0x98] sm:$0xff]
        %v830 = vld [vmem:[#allocation2 + $0xa0] sm:$0xff]
        %v831 = vld [vmem:[#allocation2 + $0xa8] sm:$0xff]
        %v832 = vld [vmem:[#allocation2 + $0xb0] sm:$0xff]
        %v833 = vld [vmem:[#allocation2 + $0xb8] sm:$0xff]
        %v834 = vld [vmem:[#allocation2 + $0xc0] sm:$0xff]
        %v835 = vld [vmem:[#allocation2 + $0xc8] sm:$0xff]
        %v836 = vld [vmem:[#allocation2 + $0xd0] sm:$0xff]
        %v837 = vld [vmem:[#allocation2 + $0xd8] sm:$0xff]
        %v838 = vld [vmem:[#allocation2 + $0xe0] sm:$0xff]
        %v839 = vld [vmem:[#allocation2 + $0xe8] sm:$0xff]
        %v840 = vld [vmem:[#allocation2 + $0xf0] sm:$0xff]
        %v841 = vld [vmem:[#allocation2 + $0xf8] sm:$0xff]
        %v842 = vld [vmem:[%s300] sm:$0x1]
        %v844 = vlaneseq
        %v845 = vshrl.u32 %v844, 7
        %v846 = vsub.s32 0, %v845
        %v847 = vrot.slane %v842, %v846
        %v849 = vadd.f32 %v810, %v847
        %v850 = vadd.f32 %v811, %v847
        %v851 = vadd.f32 %v812, %v847
        %v852 = vadd.f32 %v813, %v847
        %v853 = vadd.f32 %v814, %v847
        %v854 = vadd.f32 %v815, %v847
        %v855 = vadd.f32 %v816, %v847
        %v856 = vadd.f32 %v817, %v847
        %v857 = vadd.f32 %v818, %v847
        %v858 = vadd.f32 %v819, %v847
        %v859 = vadd.f32 %v820, %v847
        %v860 = vadd.f32 %v821, %v847
        %v861 = vadd.f32 %v822, %v847
        %v862 = vadd.f32 %v823, %v847
        %v863 = vadd.f32 %v824, %v847
        %v864 = vadd.f32 %v825, %v847
        %v865 = vadd.f32 %v826, %v847
        %v866 = vadd.f32 %v827, %v847
        %v867 = vadd.f32 %v828, %v847
        %v868 = vadd.f32 %v829, %v847
        %v869 = vadd.f32 %v830, %v847
        %v870 = vadd.f32 %v831, %v847
        %v871 = vadd.f32 %v832, %v847
        %v872 = vadd.f32 %v833, %v847
        %v873 = vadd.f32 %v834, %v847
        %v874 = vadd.f32 %v835, %v847
        %v875 = vadd.f32 %v836, %v847
        %v876 = vadd.f32 %v837, %v847
        %v877 = vadd.f32 %v838, %v847
        %v878 = vadd.f32 %v839, %v847
        %v879 = vadd.f32 %v840, %v847
        %v880 = vadd.f32 %v841, %v847
        %v881 = vld [vmem:[%s308] sm:$0xff]
        %v882 = vld [vmem:[%s308 + $0x8] sm:$0xff]
        %v883 = vld [vmem:[%s308 + $0x10] sm:$0xff]
        %v884 = vld [vmem:[%s308 + $0x18] sm:$0xff]
        %v885 = vld [vmem:[%s308 + $0x20] sm:$0xff]
        %v886 = vld [vmem:[%s308 + $0x28] sm:$0xff]
        %v887 = vld [vmem:[%s308 + $0x30] sm:$0xff]
        %v888 = vld [vmem:[%s308 + $0x38] sm:$0xff]
        %v889 = vld [vmem:[%s308 + $0x40] sm:$0xff]
        %v890 = vld [vmem:[%s308 + $0x48] sm:$0xff]
        %v891 = vld [vmem:[%s308 + $0x50] sm:$0xff]
        %v892 = vld [vmem:[%s308 + $0x58] sm:$0xff]
        %v893 = vld [vmem:[%s308 + $0x60] sm:$0xff]
        %v894 = vld [vmem:[%s308 + $0x68] sm:$0xff]
        %v895 = vld [vmem:[%s308 + $0x70] sm:$0xff]
        %v896 = vld [vmem:[%s308 + $0x78] sm:$0xff]
        %v897 = vld [vmem:[%s308 + $0x80] sm:$0xff]
        %v898 = vld [vmem:[%s308 + $0x88] sm:$0xff]
        %v899 = vld [vmem:[%s308 + $0x90] sm:$0xff]
        %v900 = vld [vmem:[%s308 + $0x98] sm:$0xff]
        %v901 = vld [vmem:[%s308 + $0xa0] sm:$0xff]
        %v902 = vld [vmem:[%s308 + $0xa8] sm:$0xff]
        %v903 = vld [vmem:[%s308 + $0xb0] sm:$0xff]
        %v904 = vld [vmem:[%s308 + $0xb8] sm:$0xff]
        %v905 = vld [vmem:[%s308 + $0xc0] sm:$0xff]
        %v906 = vld [vmem:[%s308 + $0xc8] sm:$0xff]
        %v907 = vld [vmem:[%s308 + $0xd0] sm:$0xff]
        %v908 = vld [vmem:[%s308 + $0xd8] sm:$0xff]
        %v909 = vld [vmem:[%s308 + $0xe0] sm:$0xff]
        %v910 = vld [vmem:[%s308 + $0xe8] sm:$0xff]
        %v911 = vld [vmem:[%s308 + $0xf0] sm:$0xff]
        %v912 = vld [vmem:[%s308 + $0xf8] sm:$0xff]
        %v913 = vadd.f32 %v849, %v881
        %v914 = vadd.f32 %v850, %v882
        %v915 = vadd.f32 %v851, %v883
        %v916 = vadd.f32 %v852, %v884
        %v917 = vadd.f32 %v853, %v885
        %v918 = vadd.f32 %v854, %v886
        %v919 = vadd.f32 %v855, %v887
        %v920 = vadd.f32 %v856, %v888
        %v921 = vadd.f32 %v857, %v889
        %v922 = vadd.f32 %v858, %v890
        %v923 = vadd.f32 %v859, %v891
        %v924 = vadd.f32 %v860, %v892
        %v925 = vadd.f32 %v861, %v893
        %v926 = vadd.f32 %v862, %v894
        %v927 = vadd.f32 %v863, %v895
        %v928 = vadd.f32 %v864, %v896
        %v929 = vadd.f32 %v865, %v897
        %v930 = vadd.f32 %v866, %v898
        %v931 = vadd.f32 %v867, %v899
        %v932 = vadd.f32 %v868, %v900
        %v933 = vadd.f32 %v869, %v901
        %v934 = vadd.f32 %v870, %v902
        %v935 = vadd.f32 %v871, %v903
        %v936 = vadd.f32 %v872, %v904
        %v937 = vadd.f32 %v873, %v905
        %v938 = vadd.f32 %v874, %v906
        %v939 = vadd.f32 %v875, %v907
        %v940 = vadd.f32 %v876, %v908
        %v941 = vadd.f32 %v877, %v909
        %v942 = vadd.f32 %v878, %v910
        %v943 = vadd.f32 %v879, %v911
        %v944 = vadd.f32 %v880, %v912
        %945 = vst.msk [vmem:[%s317] sm:$0xff] %vm533, %v913
        %946 = vst.msk [vmem:[%s317 + $0x8] sm:$0xff] %vm533, %v914
        %947 = vst.msk [vmem:[%s317 + $0x10] sm:$0xff] %vm533, %v915
        %948 = vst.msk [vmem:[%s317 + $0x18] sm:$0xff] %vm533, %v916
        %949 = vst.msk [vmem:[%s317 + $0x20] sm:$0xff] %vm533, %v917
        %950 = vst.msk [vmem:[%s317 + $0x28] sm:$0xff] %vm533, %v918
        %951 = vst.msk [vmem:[%s317 + $0x30] sm:$0xff] %vm533, %v919
        %952 = vst.msk [vmem:[%s317 + $0x38] sm:$0xff] %vm533, %v920
        %953 = vst.msk [vmem:[%s317 + $0x40] sm:$0xff] %vm533, %v921
        %954 = vst.msk [vmem:[%s317 + $0x48] sm:$0xff] %vm533, %v922
        %955 = vst.msk [vmem:[%s317 + $0x50] sm:$0xff] %vm533, %v923
        %956 = vst.msk [vmem:[%s317 + $0x58] sm:$0xff] %vm533, %v924
        %957 = vst.msk [vmem:[%s317 + $0x60] sm:$0xff] %vm533, %v925
        %958 = vst.msk [vmem:[%s317 + $0x68] sm:$0xff] %vm533, %v926
        %959 = vst.msk [vmem:[%s317 + $0x70] sm:$0xff] %vm533, %v927
        %960 = vst.msk [vmem:[%s317 + $0x78] sm:$0xff] %vm533, %v928
        %961 = vst.msk [vmem:[%s317 + $0x80] sm:$0xff] %vm533, %v929
        %962 = vst.msk [vmem:[%s317 + $0x88] sm:$0xff] %vm533, %v930
        %963 = vst.msk [vmem:[%s317 + $0x90] sm:$0xff] %vm533, %v931
        %964 = vst.msk [vmem:[%s317 + $0x98] sm:$0xff] %vm533, %v932
        %965 = vst.msk [vmem:[%s317 + $0xa0] sm:$0xff] %vm533, %v933
        %966 = vst.msk [vmem:[%s317 + $0xa8] sm:$0xff] %vm533, %v934
        %967 = vst.msk [vmem:[%s317 + $0xb0] sm:$0xff] %vm533, %v935
        %968 = vst.msk [vmem:[%s317 + $0xb8] sm:$0xff] %vm533, %v936
        %969 = vst.msk [vmem:[%s317 + $0xc0] sm:$0xff] %vm533, %v937
        %970 = vst.msk [vmem:[%s317 + $0xc8] sm:$0xff] %vm533, %v938
        %971 = vst.msk [vmem:[%s317 + $0xd0] sm:$0xff] %vm533, %v939
        %972 = vst.msk [vmem:[%s317 + $0xd8] sm:$0xff] %vm533, %v940
        %973 = vst.msk [vmem:[%s317 + $0xe0] sm:$0xff] %vm533, %v941
        %974 = vst.msk [vmem:[%s317 + $0xe8] sm:$0xff] %vm533, %v942
        %975 = vst.msk [vmem:[%s317 + $0xf0] sm:$0xff] %vm533, %v943
        %976 = vst.msk [vmem:[%s317 + $0xf8] sm:$0xff] %vm533, %v944
      $region44: #{self_attention_forward.7} parent=35 // pred_fallthru
        _
      %s977 = smul.u32 32, %s20
      %p978 = scmp.lt.s32.totalorder %s977, 63
      %s979 = scalar_select %p978, %s977, 63
      %p980 = scmp.lt.s32.totalorder %s21, 0
      %s981 = scalar_select %p980, %s21, 0
      %s982 = sadd.s32 %s981, %s979
      %s983 = smul.addr %s982, 8
      %s984 = scalar_lea.vmem %s4, %s983
      // Predicated region
      $region45: #{self_attention_forward.7} parent=35 // pred_check
        %p985 = pneg %p164
      $region46: #{self_attention_forward.7} parent=35 // pred_check_branch
        %987 = sbr.rel (%p985) target = $region48
      $region47: #{self_attention_forward.7} parent=35 // pred_region
        %s988 = smul.u32 32, %s20
      $region48: #{self_attention_forward.7} parent=35 // pred_fallthru
        _
    $region36: #{self_attention_forward.7} parent=5 // pred_fallthru
      _
    %p989 = scmp.le.s32.totalorder 2, %s10
    // Predicated region
    $region49: #{self_attention_forward.7} parent=5 // pred_check
      %p990 = pneg %p989
    $region50: #{self_attention_forward.7} parent=5 // pred_check_branch
      %992 = sbr.rel (%p990) target = $region52
    $region51: #{self_attention_forward.7} parent=5 // pred_region
      %s993 = ssub.s32 %s10, 2
      // Predicated region
      $region53: #{self_attention_forward.7} parent=51 // pred_check
        %p994 = pneg %p170
      $region54: #{self_attention_forward.7} parent=51 // pred_check_branch
        %996 = sbr.rel (%p994) target = $region56
      $region55: #{self_attention_forward.7} parent=51 // pred_region
        %s997 = smul.u32 32, %s23
        %p998 = scmp.lt.s32.totalorder %s997, 63
        %s999 = scalar_select %p998, %s997, 63
        %p1000 = scmp.lt.s32.totalorder %s24, 0
        %s1001 = scalar_select %p1000, %s24, 0
        %s1002 = sadd.s32 %s1001, %s999
        %s1003 = smul.addr %s1002, 8
        %s1004 = scalar_lea.vmem %s4, %s1003
      $region56: #{self_attention_forward.7} parent=51 // pred_fallthru
        _
    $region52: #{self_attention_forward.7} parent=5 // pred_fallthru
      _
  $region6: #{self_attention_forward.7} parent=0 // loop_footer
    %s14 = sadd.s32 1, %s10
  $region7: #{self_attention_forward.7} parent=0 // loop_footer_branch
    %9 = sbr.rel target = $region3
  $region8: #{self_attention_forward.7} parent=0 // loop_exit
    _

// kernel: self_attention_forward.8
$region0: #{self_attention_forward.8}
  #allocation0 [shape = 'u32[]', space=smem, size = 0x4, offset = 0x4, fixed_abs, tag = 'smem constant byte address 0x4 - core index']
  #allocation1 [shape = 'u32[144,128]{1,0:T(1,128)}', space=vmem, size = 0x12000, scoped, tag = 'internal scratch']
  #allocation2 [shape = 'f32[256,64]{1,0:T(8,128)}', space=vmem, size = 0x20000, scoped, tag = 'scratch operand']
  %s0 = inlined_call_operand.vmem [shape: f32[512,64], index: 0, kind: input, shape index: {}]
  %s1 = inlined_call_operand.vmem [shape: bf16[64,64], index: 1, kind: input, shape index: {}]
  %s2 = inlined_call_operand.vmem [shape: f32[1,64], index: 2, kind: input, shape index: {}]
  %s3 = inlined_call_operand.vmem [shape: f32[1,64], index: 3, kind: input, shape index: {}]
  %s4 = inlined_call_operand.vmem [shape: f32[1,64], index: 4, kind: input, shape index: {}]
  %s5 = inlined_call_operand.vmem [shape: f32[512,64], index: 5, kind: output, shape index: {}]
  %s6 = sld [smem:[#allocation0]]
  $region61: #{self_attention_forward.8} parent=0
    _
  %s8 = ssub.s32 1, %s6
  %s9 = scalar_select 0, %s8, %s6
  loop: start=0, step=1, limit=4
  $region2: #{self_attention_forward.8} parent=0 // loop_pre_header
    _
  $region3: #{self_attention_forward.8} parent=0 // loop_header
    %s11 = sphi 0, %s15
    %p12 = scmp.ge.s32.totalorder %s11, 4
    %s18 = sphi 0, %s37
    %s19 = sphi 0, %s33
    %s20 = sphi 0, %s29
    %s21 = sphi 0, %s18
    %s22 = sphi 0, %s19
    %s23 = sphi 0, %s20
    %s24 = sphi 0, %s21
    %s25 = sphi 0, %s22
    %s26 = sphi 0, %s23
    %s42 = sphi 0, %s44
    %s45 = sphi 0, %s42
    %s46 = sphi 0, %s45
    %s62 = sphi 0, %s46
    %s70 = sphi 0, %s72
    %s73 = sphi 0, %s70
    %s74 = sphi 0, %s73
    %s90 = sphi 0, %s74
    %s96 = sphi 0, %s98
    %s99 = sphi 0, %s96
    %s100 = sphi 0, %s99
    %s116 = sphi 0, %s100
    %s122 = sphi 0, %s124
    %s125 = sphi 0, %s122
    %s126 = sphi 0, %s125
    %s142 = sphi 0, %s126
    %s148 = sphi 0, %s150
    %s151 = sphi 0, %s148
    %s152 = sphi 0, %s151
    %s168 = sphi 0, %s152
    %s176 = sphi 0, %s178
    %s179 = sphi 0, %s176
    %s180 = sphi 0, %s179
    %s196 = sphi 0, %s180
  $region4: #{self_attention_forward.8} parent=0 // loop_header_branch
    %14 = sbr.rel (%p12) target = $region8
  $region5: #{self_attention_forward.8} parent=0 // loop_body
    %s16 = ssub.s32 %s11, 1
    %s17 = ssub.s32 %s11, 2
    %s27 = sadd.s32 1, %s20
    %p28 = scmp.ge.s32.totalorder %s27, 1
    %s29 = scalar_select %p28, 0, %s27
    %s30 = sadd.s32 1, %s19
    %s31 = scalar_select %p28, %s30, %s19
    %p32 = scmp.ge.s32.totalorder %s31, 1
    %s33 = scalar_select %p32, 0, %s31
    %s34 = sadd.s32 1, %s18
    %s35 = scalar_select %p32, %s34, %s18
    %p36 = scmp.ge.s32.totalorder %s35, 2
    %s37 = scalar_select %p36, 0, %s35
    %s38 = ssub.s32 %s18, %s37
    %s39 = ssub.s32 %s20, %s29
    %s40 = sor.u32 %s38, %s39
    %p41 = scmp.eq.s32.totalorder %s40, 0
    %s43 = sadd.s32 %s42, 1
    %s44 = scalar_select %p41, %s42, %s43
    %p47 = pneg %p41
    %p48 = scmp.eq.s32.totalorder %s11, 1
    %p49 = por %p47, %p48
    %p50 = scmp.ne.s32.totalorder %s42, %s45
    %p51 = scmp.eq.s32.totalorder %s11, 0
    %p52 = por %p50, %p51
    %p53 = scmp.ne.s32.totalorder %s42, %s45
    %p54 = scmp.eq.s32.totalorder %s16, 1
    %p55 = por %p53, %p54
    %p56 = scmp.ne.s32.totalorder %s45, %s46
    %p57 = scmp.eq.s32.totalorder %s16, 0
    %p58 = por %p56, %p57
    %p59 = scmp.ne.s32.totalorder %s45, %s46
    %p60 = scmp.eq.s32.totalorder %s17, 1
    %p61 = por %p59, %p60
    %p63 = scmp.ne.s32.totalorder %s46, %s62
    %p64 = scmp.eq.s32.totalorder %s17, 0
    %p65 = por %p63, %p64
    %s66 = ssub.s32 %s20, %s29
    %s67 = ssub.s32 %s19, %s33
    %s68 = sor.u32 %s66, %s67
    %p69 = scmp.eq.s32.totalorder %s68, 0
    %s71 = sadd.s32 %s70, 1
    %s72 = scalar_select %p69, %s70, %s71
    %p75 = pneg %p69
    %p76 = scmp.eq.s32.totalorder %s11, 1
    %p77 = por %p75, %p76
    %p78 = scmp.ne.s32.totalorder %s70, %s73
    %p79 = scmp.eq.s32.totalorder %s11, 0
    %p80 = por %p78, %p79
    %p81 = scmp.ne.s32.totalorder %s70, %s73
    %p82 = scmp.eq.s32.totalorder %s16, 1
    %p83 = por %p81, %p82
    %p84 = scmp.ne.s32.totalorder %s73, %s74
    %p85 = scmp.eq.s32.totalorder %s16, 0
    %p86 = por %p84, %p85
    %p87 = scmp.ne.s32.totalorder %s73, %s74
    %p88 = scmp.eq.s32.totalorder %s17, 1
    %p89 = por %p87, %p88
    %p91 = scmp.ne.s32.totalorder %s74, %s90
    %p92 = scmp.eq.s32.totalorder %s17, 0
    %p93 = por %p91, %p92
    %s94 = ssub.s32 %s19, %s33
    %p95 = scmp.eq.s32.totalorder %s94, 0
    %s97 = sadd.s32 %s96, 1
    %s98 = scalar_select %p95, %s96, %s97
    %p101 = pneg %p95
    %p102 = scmp.eq.s32.totalorder %s11, 1
    %p103 = por %p101, %p102
    %p104 = scmp.ne.s32.totalorder %s96, %s99
    %p105 = scmp.eq.s32.totalorder %s11, 0
    %p106 = por %p104, %p105
    %p107 = scmp.ne.s32.totalorder %s96, %s99
    %p108 = scmp.eq.s32.totalorder %s16, 1
    %p109 = por %p107, %p108
    %p110 = scmp.ne.s32.totalorder %s99, %s100
    %p111 = scmp.eq.s32.totalorder %s16, 0
    %p112 = por %p110, %p111
    %p113 = scmp.ne.s32.totalorder %s99, %s100
    %p114 = scmp.eq.s32.totalorder %s17, 1
    %p115 = por %p113, %p114
    %p117 = scmp.ne.s32.totalorder %s100, %s116
    %p118 = scmp.eq.s32.totalorder %s17, 0
    %p119 = por %p117, %p118
    %s120 = ssub.s32 %s20, %s29
    %p121 = scmp.eq.s32.totalorder %s120, 0
    %s123 = sadd.s32 %s122, 1
    %s124 = scalar_select %p121, %s122, %s123
    %p127 = pneg %p121
    %p128 = scmp.eq.s32.totalorder %s11, 1
    %p129 = por %p127, %p128
    %p130 = scmp.ne.s32.totalorder %s122, %s125
    %p131 = scmp.eq.s32.totalorder %s11, 0
    %p132 = por %p130, %p131
    %p133 = scmp.ne.s32.totalorder %s122, %s125
    %p134 = scmp.eq.s32.totalorder %s16, 1
    %p135 = por %p133, %p134
    %p136 = scmp.ne.s32.totalorder %s125, %s126
    %p137 = scmp.eq.s32.totalorder %s16, 0
    %p138 = por %p136, %p137
    %p139 = scmp.ne.s32.totalorder %s125, %s126
    %p140 = scmp.eq.s32.totalorder %s17, 1
    %p141 = por %p139, %p140
    %p143 = scmp.ne.s32.totalorder %s126, %s142
    %p144 = scmp.eq.s32.totalorder %s17, 0
    %p145 = por %p143, %p144
    %s146 = ssub.s32 %s20, %s29
    %p147 = scmp.eq.s32.totalorder %s146, 0
    %s149 = sadd.s32 %s148, 1
    %s150 = scalar_select %p147, %s148, %s149
    %p153 = pneg %p147
    %p154 = scmp.eq.s32.totalorder %s11, 1
    %p155 = por %p153, %p154
    %p156 = scmp.ne.s32.totalorder %s148, %s151
    %p157 = scmp.eq.s32.totalorder %s11, 0
    %p158 = por %p156, %p157
    %p159 = scmp.ne.s32.totalorder %s148, %s151
    %p160 = scmp.eq.s32.totalorder %s16, 1
    %p161 = por %p159, %p160
    %p162 = scmp.ne.s32.totalorder %s151, %s152
    %p163 = scmp.eq.s32.totalorder %s16, 0
    %p164 = por %p162, %p163
    %p165 = scmp.ne.s32.totalorder %s151, %s152
    %p166 = scmp.eq.s32.totalorder %s17, 1
    %p167 = por %p165, %p166
    %p169 = scmp.ne.s32.totalorder %s152, %s168
    %p170 = scmp.eq.s32.totalorder %s17, 0
    %p171 = por %p169, %p170
    %s172 = ssub.s32 %s18, %s37
    %s173 = ssub.s32 %s19, %s33
    %s174 = sor.u32 %s172, %s173
    %p175 = scmp.eq.s32.totalorder %s174, 0
    %s177 = sadd.s32 %s176, 1
    %s178 = scalar_select %p175, %s176, %s177
    %p181 = pneg %p175
    %p182 = scmp.eq.s32.totalorder %s11, 1
    %p183 = por %p181, %p182
    %p184 = scmp.ne.s32.totalorder %s176, %s179
    %p185 = scmp.eq.s32.totalorder %s11, 0
    %p186 = por %p184, %p185
    %p187 = scmp.ne.s32.totalorder %s176, %s179
    %p188 = scmp.eq.s32.totalorder %s16, 1
    %p189 = por %p187, %p188
    %p190 = scmp.ne.s32.totalorder %s179, %s180
    %p191 = scmp.eq.s32.totalorder %s16, 0
    %p192 = por %p190, %p191
    %p193 = scmp.ne.s32.totalorder %s179, %s180
    %p194 = scmp.eq.s32.totalorder %s17, 1
    %p195 = por %p193, %p194
    %p197 = scmp.ne.s32.totalorder %s180, %s196
    %p198 = scmp.eq.s32.totalorder %s17, 0
    %p199 = por %p197, %p198
    %p200 = scmp.le.s32.totalorder 1, %s11
    %p201 = scmp.lt.s32.totalorder %s11, 3
    %p202 = pnand %p200, %p201
    %p203 = pneg %p202
    // Predicated region
    $region9: #{self_attention_forward.8} parent=5 // pred_check
      _
    $region10: #{self_attention_forward.8} parent=5 // pred_check_branch
      %205 = sbr.rel (%p202) target = $region12
    $region11: #{self_attention_forward.8} parent=5 // pred_region
      %s206 = ssub.s32 %s11, 1
      // Predicated region
      $region13: #{self_attention_forward.8} parent=11 // pred_check
        %p207 = pneg %p86
      $region14: #{self_attention_forward.8} parent=11 // pred_check_branch
        %209 = sbr.rel (%p207) target = $region16
      $region15: #{self_attention_forward.8} parent=11 // pred_region
        %s210 = smul.u32 8, %s23
        %p211 = scmp.lt.s32.totalorder %s210, 7
        %s212 = scalar_select %p211, %s210, 7
        %p213 = scmp.lt.s32.totalorder %s22, 0
        %s214 = scalar_select %p213, %s22, 0
        %s215 = sadd.s32 %s214, %s212
        %s216 = smul.addr %s215, 4
        %s217 = scalar_lea.vmem %s1, %s216
        %s218 = smul.u32 8, %s23
      $region16: #{self_attention_forward.8} parent=11 // pred_fallthru
        _
      // Predicated region
      $region17: #{self_attention_forward.8} parent=11 // pred_check
        %p219 = pneg %p112
      $region18: #{self_attention_forward.8} parent=11 // pred_check_branch
        %221 = sbr.rel (%p219) target = $region20
      $region19: #{self_attention_forward.8} parent=11 // pred_region
        %p222 = scmp.lt.s32.totalorder %s22, 0
        %s223 = scalar_select %p222, %s22, 0
        %s224 = scalar_lea.vmem %s2, %s223
      $region20: #{self_attention_forward.8} parent=11 // pred_fallthru
        _
      // Predicated region
      $region21: #{self_attention_forward.8} parent=11 // pred_check
        %p225 = pneg %p138
      $region22: #{self_attention_forward.8} parent=11 // pred_check_branch
        %227 = sbr.rel (%p225) target = $region24
      $region23: #{self_attention_forward.8} parent=11 // pred_region
        %p228 = scmp.lt.s32.totalorder %s23, 0
        %s229 = scalar_select %p228, %s23, 0
        %s230 = scalar_lea.vmem %s3, %s229
      $region24: #{self_attention_forward.8} parent=11 // pred_fallthru
        _
      // Predicated region
      $region25: #{self_attention_forward.8} parent=11 // pred_check
        %p231 = pneg %p164
      $region26: #{self_attention_forward.8} parent=11 // pred_check_branch
        %233 = sbr.rel (%p231) target = $region28
      $region27: #{self_attention_forward.8} parent=11 // pred_region
        %p234 = scmp.lt.s32.totalorder %s23, 0
        %s235 = scalar_select %p234, %s23, 0
        %s236 = scalar_lea.vmem %s4, %s235
      $region28: #{self_attention_forward.8} parent=11 // pred_fallthru
        _
    $region12: #{self_attention_forward.8} parent=5 // pred_fallthru
      _
    %p237 = scmp.lt.s32.totalorder %s11, 2
    // Predicated region
    $region29: #{self_attention_forward.8} parent=5 // pred_check
      %p238 = pneg %p237
    $region30: #{self_attention_forward.8} parent=5 // pred_check_branch
      %240 = sbr.rel (%p238) target = $region32
    $region31: #{self_attention_forward.8} parent=5 // pred_region
      // Predicated region
      $region33: #{self_attention_forward.8} parent=31 // pred_check
        %p241 = pneg %p52
      $region34: #{self_attention_forward.8} parent=31 // pred_check_branch
        %243 = sbr.rel (%p241) target = $region36
      $region35: #{self_attention_forward.8} parent=31 // pred_region
        %s244 = smul.u32 32, %s18
        %p245 = scmp.lt.s32.totalorder %s244, 63
        %s246 = scalar_select %p245, %s244, 63
        %p247 = scmp.lt.s32.totalorder %s20, 0
        %s248 = scalar_select %p247, %s20, 0
        %s249 = sadd.s32 %s248, %s246
        %s250 = smul.addr %s249, 8
        %s251 = scalar_lea.vmem %s0, %s250
        %s252 = smul.u32 32, %s18
      $region36: #{self_attention_forward.8} parent=31 // pred_fallthru
        _
    $region32: #{self_attention_forward.8} parent=5 // pred_fallthru
      _
    %p253 = scmp.le.s32.totalorder 1, %s11
    %p254 = scmp.lt.s32.totalorder %s11, 3
    %p255 = pnand %p253, %p254
    %p256 = pneg %p255
    // Predicated region
    $region37: #{self_attention_forward.8} parent=5 // pred_check
      _
    $region38: #{self_attention_forward.8} parent=5 // pred_check_branch
      %258 = sbr.rel (%p255) target = $region40
    $region39: #{self_attention_forward.8} parent=5 // pred_region
      %s259 = ssub.s32 %s11, 1
      %s260 = smul.u32 32, %s21
      %p261 = scmp.lt.s32.totalorder %s260, 63
      %s262 = scalar_select %p261, %s260, 63
      %p263 = scmp.lt.s32.totalorder %s23, 0
      %s264 = scalar_select %p263, %s23, 0
      %s265 = sadd.s32 %s264, %s262
      %s266 = smul.addr %s265, 8
      %s267 = scalar_lea.vmem %s0, %s266
      %p268 = pneg %p58
      %p269 = pneg %p55
      %s270 = smul.u32 8, %s23
      %p271 = scmp.lt.s32.totalorder %s270, 7
      %s272 = scalar_select %p271, %s270, 7
      %p273 = scmp.lt.s32.totalorder %s22, 0
      %s274 = scalar_select %p273, %s22, 0
      %s275 = sadd.s32 %s274, %s272
      %s276 = smul.addr %s275, 4
      %s277 = scalar_lea.vmem %s1, %s276
      %p278 = pneg %p86
      %p279 = pneg %p83
      %p280 = scmp.lt.s32.totalorder %s22, 0
      %s281 = scalar_select %p280, %s22, 0
      %s282 = scalar_lea.vmem %s2, %s281
      %p283 = pneg %p112
      %p284 = pneg %p109
      %p285 = scmp.lt.s32.totalorder %s23, 0
      %s286 = scalar_select %p285, %s23, 0
      %s287 = scalar_lea.vmem %s3, %s286
      %p288 = pneg %p138
      %p289 = pneg %p135
      %p290 = scmp.lt.s32.totalorder %s23, 0
      %s291 = scalar_select %p290, %s23, 0
      %s292 = scalar_lea.vmem %s4, %s291
      %p293 = pneg %p164
      %p294 = pneg %p161
      %p295 = pneg %p192
      %p296 = pneg %p189
      %s297 = smul.u32 32, %s21
      %p298 = scmp.lt.s32.totalorder %s297, 63
      %s299 = scalar_select %p298, %s297, 63
      %p300 = scmp.lt.s32.totalorder %s22, 0
      %s301 = scalar_select %p300, %s22, 0
      %s302 = sadd.s32 %s301, %s299
      %s303 = smul.addr %s302, 8
      %s304 = scalar_lea.vmem %s5, %s303
      %s305 = smul.u32 32, %s21
      %p306 = scmp.lt.s32.totalorder %s305, 63
      %s307 = scalar_select %p306, %s305, 63
      %p308 = scmp.lt.s32.totalorder %s23, 0
      %s309 = scalar_select %p308, %s23, 0
      %s310 = sadd.s32 %s309, %s307
      %s311 = smul.addr %s310, 8
      %s312 = scalar_lea.vmem %s0, %s311
      %s313 = smul.u32 32, %s21
      %s314 = smul.u32 8, %s23
      %p315 = scmp.lt.s32.totalorder %s314, 7
      %s316 = scalar_select %p315, %s314, 7
      %p317 = scmp.lt.s32.totalorder %s22, 0
      %s318 = scalar_select %p317, %s22, 0
      %s319 = sadd.s32 %s318, %s316
      %s320 = smul.addr %s319, 4
      %s321 = scalar_lea.vmem %s1, %s320
      %s322 = smul.u32 8, %s23
      %p323 = scmp.lt.s32.totalorder %s22, 0
      %s324 = scalar_select %p323, %s22, 0
      %s325 = scalar_lea.vmem %s2, %s324
      %p326 = scmp.lt.s32.totalorder %s23, 0
      %s327 = scalar_select %p326, %s23, 0
      %s328 = scalar_lea.vmem %s3, %s327
      %p329 = scmp.lt.s32.totalorder %s23, 0
      %s330 = scalar_select %p329, %s23, 0
      %s331 = scalar_lea.vmem %s4, %s330
      %s332 = smul.u32 32, %s21
      %p333 = scmp.lt.s32.totalorder %s332, 63
      %s334 = scalar_select %p333, %s332, 63
      %p335 = scmp.lt.s32.totalorder %s22, 0
      %s336 = scalar_select %p335, %s22, 0
      %s337 = sadd.s32 %s336, %s334
      %s338 = smul.addr %s337, 8
      %s339 = scalar_lea.vmem %s5, %s338
      %s340 = smul.u32 32, %s21
      %p342 = scmp.eq.s32.totalorder %s23, 0
      // Predicated region
      $region41: #{self_attention_forward.8} parent=39 // pred_check
        %p343 = pneg %p342
      $region42: #{self_attention_forward.8} parent=39 // pred_check_branch
        %345 = sbr.rel (%p343) target = $region44
      $region43: #{self_attention_forward.8} parent=39 // pred_region
        %vm346 = vcmask 523264
        %347 = vst.msk [vmem:[#allocation2] sm:$0xff] %vm346, 0.0
        %348 = vst.msk [vmem:[#allocation2 + $0x8] sm:$0xff] %vm346, 0.0
        %349 = vst.msk [vmem:[#allocation2 + $0x10] sm:$0xff] %vm346, 0.0
        %350 = vst.msk [vmem:[#allocation2 + $0x18] sm:$0xff] %vm346, 0.0
        %351 = vst.msk [vmem:[#allocation2 + $0x20] sm:$0xff] %vm346, 0.0
        %352 = vst.msk [vmem:[#allocation2 + $0x28] sm:$0xff] %vm346, 0.0
        %353 = vst.msk [vmem:[#allocation2 + $0x30] sm:$0xff] %vm346, 0.0
        %354 = vst.msk [vmem:[#allocation2 + $0x38] sm:$0xff] %vm346, 0.0
        %355 = vst.msk [vmem:[#allocation2 + $0x40] sm:$0xff] %vm346, 0.0
        %356 = vst.msk [vmem:[#allocation2 + $0x48] sm:$0xff] %vm346, 0.0
        %357 = vst.msk [vmem:[#allocation2 + $0x50] sm:$0xff] %vm346, 0.0
        %358 = vst.msk [vmem:[#allocation2 + $0x58] sm:$0xff] %vm346, 0.0
        %359 = vst.msk [vmem:[#allocation2 + $0x60] sm:$0xff] %vm346, 0.0
        %360 = vst.msk [vmem:[#allocation2 + $0x68] sm:$0xff] %vm346, 0.0
        %361 = vst.msk [vmem:[#allocation2 + $0x70] sm:$0xff] %vm346, 0.0
        %362 = vst.msk [vmem:[#allocation2 + $0x78] sm:$0xff] %vm346, 0.0
        %363 = vst.msk [vmem:[#allocation2 + $0x80] sm:$0xff] %vm346, 0.0
        %364 = vst.msk [vmem:[#allocation2 + $0x88] sm:$0xff] %vm346, 0.0
        %365 = vst.msk [vmem:[#allocation2 + $0x90] sm:$0xff] %vm346, 0.0
        %366 = vst.msk [vmem:[#allocation2 + $0x98] sm:$0xff] %vm346, 0.0
        %367 = vst.msk [vmem:[#allocation2 + $0xa0] sm:$0xff] %vm346, 0.0
        %368 = vst.msk [vmem:[#allocation2 + $0xa8] sm:$0xff] %vm346, 0.0
        %369 = vst.msk [vmem:[#allocation2 + $0xb0] sm:$0xff] %vm346, 0.0
        %370 = vst.msk [vmem:[#allocation2 + $0xb8] sm:$0xff] %vm346, 0.0
        %371 = vst.msk [vmem:[#allocation2 + $0xc0] sm:$0xff] %vm346, 0.0
        %372 = vst.msk [vmem:[#allocation2 + $0xc8] sm:$0xff] %vm346, 0.0
        %373 = vst.msk [vmem:[#allocation2 + $0xd0] sm:$0xff] %vm346, 0.0
        %374 = vst.msk [vmem:[#allocation2 + $0xd8] sm:$0xff] %vm346, 0.0
        %375 = vst.msk [vmem:[#allocation2 + $0xe0] sm:$0xff] %vm346, 0.0
        %376 = vst.msk [vmem:[#allocation2 + $0xe8] sm:$0xff] %vm346, 0.0
        %377 = vst.msk [vmem:[#allocation2 + $0xf0] sm:$0xff] %vm346, 0.0
        %378 = vst.msk [vmem:[#allocation2 + $0xf8] sm:$0xff] %vm346, 0.0
      $region44: #{self_attention_forward.8} parent=39 // pred_fallthru
        _
      %v379 = vld [vmem:[%s312] sm:$0xff]
      %v380 = vld [vmem:[%s312 + $0x8] sm:$0xff]
      %v381 = vld [vmem:[%s312 + $0x10] sm:$0xff]
      %v382 = vld [vmem:[%s312 + $0x18] sm:$0xff]
      %v383 = vld [vmem:[%s312 + $0x20] sm:$0xff]
      %v384 = vld [vmem:[%s312 + $0x28] sm:$0xff]
      %v385 = vld [vmem:[%s312 + $0x30] sm:$0xff]
      %v386 = vld [vmem:[%s312 + $0x38] sm:$0xff]
      %v387 = vld [vmem:[%s312 + $0x40] sm:$0xff]
      %v388 = vld [vmem:[%s312 + $0x48] sm:$0xff]
      %v389 = vld [vmem:[%s312 + $0x50] sm:$0xff]
      %v390 = vld [vmem:[%s312 + $0x58] sm:$0xff]
      %v391 = vld [vmem:[%s312 + $0x60] sm:$0xff]
      %v392 = vld [vmem:[%s312 + $0x68] sm:$0xff]
      %v393 = vld [vmem:[%s312 + $0x70] sm:$0xff]
      %v394 = vld [vmem:[%s312 + $0x78] sm:$0xff]
      %v395 = vld [vmem:[%s312 + $0x80] sm:$0xff]
      %v396 = vld [vmem:[%s312 + $0x88] sm:$0xff]
      %v397 = vld [vmem:[%s312 + $0x90] sm:$0xff]
      %v398 = vld [vmem:[%s312 + $0x98] sm:$0xff]
      %v399 = vld [vmem:[%s312 + $0xa0] sm:$0xff]
      %v400 = vld [vmem:[%s312 + $0xa8] sm:$0xff]
      %v401 = vld [vmem:[%s312 + $0xb0] sm:$0xff]
      %v402 = vld [vmem:[%s312 + $0xb8] sm:$0xff]
      %v403 = vld [vmem:[%s312 + $0xc0] sm:$0xff]
      %v404 = vld [vmem:[%s312 + $0xc8] sm:$0xff]
      %v405 = vld [vmem:[%s312 + $0xd0] sm:$0xff]
      %v406 = vld [vmem:[%s312 + $0xd8] sm:$0xff]
      %v407 = vld [vmem:[%s312 + $0xe0] sm:$0xff]
      %v408 = vld [vmem:[%s312 + $0xe8] sm:$0xff]
      %v409 = vld [vmem:[%s312 + $0xf0] sm:$0xff]
      %v410 = vld [vmem:[%s312 + $0xf8] sm:$0xff]
      %vm411 = vcmask 523264
      %v412 = vsel %vm411, %v379, 0.0
      %413 = vadd.xlane.f32.xlu0 %v412
      %v414 = vpop.xlane.xlu0 %413
      %v415 = vsel %vm411, %v380, 0.0
      %416 = vadd.xlane.f32.xlu0 %v415
      %v417 = vpop.xlane.xlu0 %416
      %v418 = vsel %vm411, %v381, 0.0
      %419 = vadd.xlane.f32.xlu0 %v418
      %v420 = vpop.xlane.xlu0 %419
      %v421 = vsel %vm411, %v382, 0.0
      %422 = vadd.xlane.f32.xlu0 %v421
      %v423 = vpop.xlane.xlu0 %422
      %v424 = vsel %vm411, %v383, 0.0
      %425 = vadd.xlane.f32.xlu0 %v424
      %v426 = vpop.xlane.xlu0 %425
      %v427 = vsel %vm411, %v384, 0.0
      %428 = vadd.xlane.f32.xlu0 %v427
      %v429 = vpop.xlane.xlu0 %428
      %v430 = vsel %vm411, %v385, 0.0
      %431 = vadd.xlane.f32.xlu0 %v430
      %v432 = vpop.xlane.xlu0 %431
      %v433 = vsel %vm411, %v386, 0.0
      %434 = vadd.xlane.f32.xlu0 %v433
      %v435 = vpop.xlane.xlu0 %434
      %v436 = vsel %vm411, %v387, 0.0
      %437 = vadd.xlane.f32.xlu0 %v436
      %v438 = vpop.xlane.xlu0 %437
      %v439 = vsel %vm411, %v388, 0.0
      %440 = vadd.xlane.f32.xlu0 %v439
      %v441 = vpop.xlane.xlu0 %440
      %v442 = vsel %vm411, %v389, 0.0
      %443 = vadd.xlane.f32.xlu0 %v442
      %v444 = vpop.xlane.xlu0 %443
      %v445 = vsel %vm411, %v390, 0.0
      %446 = vadd.xlane.f32.xlu0 %v445
      %v447 = vpop.xlane.xlu0 %446
      %v448 = vsel %vm411, %v391, 0.0
      %449 = vadd.xlane.f32.xlu0 %v448
      %v450 = vpop.xlane.xlu0 %449
      %v451 = vsel %vm411, %v392, 0.0
      %452 = vadd.xlane.f32.xlu0 %v451
      %v453 = vpop.xlane.xlu0 %452
      %v454 = vsel %vm411, %v393, 0.0
      %455 = vadd.xlane.f32.xlu0 %v454
      %v456 = vpop.xlane.xlu0 %455
      %v457 = vsel %vm411, %v394, 0.0
      %458 = vadd.xlane.f32.xlu0 %v457
      %v459 = vpop.xlane.xlu0 %458
      %v460 = vsel %vm411, %v395, 0.0
      %461 = vadd.xlane.f32.xlu0 %v460
      %v462 = vpop.xlane.xlu0 %461
      %v463 = vsel %vm411, %v396, 0.0
      %464 = vadd.xlane.f32.xlu0 %v463
      %v465 = vpop.xlane.xlu0 %464
      %v466 = vsel %vm411, %v397, 0.0
      %467 = vadd.xlane.f32.xlu0 %v466
      %v468 = vpop.xlane.xlu0 %467
      %v469 = vsel %vm411, %v398, 0.0
      %470 = vadd.xlane.f32.xlu0 %v469
      %v471 = vpop.xlane.xlu0 %470
      %v472 = vsel %vm411, %v399, 0.0
      %473 = vadd.xlane.f32.xlu0 %v472
      %v474 = vpop.xlane.xlu0 %473
      %v475 = vsel %vm411, %v400, 0.0
      %476 = vadd.xlane.f32.xlu0 %v475
      %v477 = vpop.xlane.xlu0 %476
      %v478 = vsel %vm411, %v401, 0.0
      %479 = vadd.xlane.f32.xlu0 %v478
      %v480 = vpop.xlane.xlu0 %479
      %v481 = vsel %vm411, %v402, 0.0
      %482 = vadd.xlane.f32.xlu0 %v481
      %v483 = vpop.xlane.xlu0 %482
      %v484 = vsel %vm411, %v403, 0.0
      %485 = vadd.xlane.f32.xlu0 %v484
      %v486 = vpop.xlane.xlu0 %485
      %v487 = vsel %vm411, %v404, 0.0
      %488 = vadd.xlane.f32.xlu0 %v487
      %v489 = vpop.xlane.xlu0 %488
      %v490 = vsel %vm411, %v405, 0.0
      %491 = vadd.xlane.f32.xlu0 %v490
      %v492 = vpop.xlane.xlu0 %491
      %v493 = vsel %vm411, %v406, 0.0
      %494 = vadd.xlane.f32.xlu0 %v493
      %v495 = vpop.xlane.xlu0 %494
      %v496 = vsel %vm411, %v407, 0.0
      %497 = vadd.xlane.f32.xlu0 %v496
      %v498 = vpop.xlane.xlu0 %497
      %v499 = vsel %vm411, %v408, 0.0
      %500 = vadd.xlane.f32.xlu0 %v499
      %v501 = vpop.xlane.xlu0 %500
      %v502 = vsel %vm411, %v409, 0.0
      %503 = vadd.xlane.f32.xlu0 %v502
      %v504 = vpop.xlane.xlu0 %503
      %v505 = vsel %vm411, %v410, 0.0
      %506 = vadd.xlane.f32.xlu0 %v505
      %v507 = vpop.xlane.xlu0 %506
      %v508 = vrcp.pop 64.0
      %v509 = vmul.f32 %v414, %v508
      %v510 = vmul.f32 %v417, %v508
      %v511 = vmul.f32 %v420, %v508
      %v512 = vmul.f32 %v423, %v508
      %v513 = vmul.f32 %v426, %v508
      %v514 = vmul.f32 %v429, %v508
      %v515 = vmul.f32 %v432, %v508
      %v516 = vmul.f32 %v435, %v508
      %v517 = vmul.f32 %v438, %v508
      %v518 = vmul.f32 %v441, %v508
      %v519 = vmul.f32 %v444, %v508
      %v520 = vmul.f32 %v447, %v508
      %v521 = vmul.f32 %v450, %v508
      %v522 = vmul.f32 %v453, %v508
      %v523 = vmul.f32 %v456, %v508
      %v524 = vmul.f32 %v459, %v508
      %v525 = vmul.f32 %v462, %v508
      %v526 = vmul.f32 %v465, %v508
      %v527 = vmul.f32 %v468, %v508
      %v528 = vmul.f32 %v471, %v508
      %v529 = vmul.f32 %v474, %v508
      %v530 = vmul.f32 %v477, %v508
      %v531 = vmul.f32 %v480, %v508
      %v532 = vmul.f32 %v483, %v508
      %v533 = vmul.f32 %v486, %v508
      %v534 = vmul.f32 %v489, %v508
      %v535 = vmul.f32 %v492, %v508
      %v536 = vmul.f32 %v495, %v508
      %v537 = vmul.f32 %v498, %v508
      %v538 = vmul.f32 %v501, %v508
      %v539 = vmul.f32 %v504, %v508
      %v540 = vmul.f32 %v507, %v508
      %v541 = vsub.f32 %v379, %v509
      %v542 = vsub.f32 %v380, %v510
      %v543 = vsub.f32 %v381, %v511
      %v544 = vsub.f32 %v382, %v512
      %v545 = vsub.f32 %v383, %v513
      %v546 = vsub.f32 %v384, %v514
      %v547 = vsub.f32 %v385, %v515
      %v548 = vsub.f32 %v386, %v516
      %v549 = vsub.f32 %v387, %v517
      %v550 = vsub.f32 %v388, %v518
      %v551 = vsub.f32 %v389, %v519
      %v552 = vsub.f32 %v390, %v520
      %v553 = vsub.f32 %v391, %v521
      %v554 = vsub.f32 %v392, %v522
      %v555 = vsub.f32 %v393, %v523
      %v556 = vsub.f32 %v394, %v524
      %v557 = vsub.f32 %v395, %v525
      %v558 = vsub.f32 %v396, %v526
      %v559 = vsub.f32 %v397, %v527
      %v560 = vsub.f32 %v398, %v528
      %v561 = vsub.f32 %v399, %v529
      %v562 = vsub.f32 %v400, %v530
      %v563 = vsub.f32 %v401, %v531
      %v564 = vsub.f32 %v402, %v532
      %v565 = vsub.f32 %v403, %v533
      %v566 = vsub.f32 %v404, %v534
      %v567 = vsub.f32 %v405, %v535
      %v568 = vsub.f32 %v406, %v536
      %v569 = vsub.f32 %v407, %v537
      %v570 = vsub.f32 %v408, %v538
      %v571 = vsub.f32 %v409, %v539
      %v572 = vsub.f32 %v410, %v540
      %v573 = vmul.f32 %v541, %v541
      %v574 = vmul.f32 %v542, %v542
      %v575 = vmul.f32 %v543, %v543
      %v576 = vmul.f32 %v544, %v544
      %v577 = vmul.f32 %v545, %v545
      %v578 = vmul.f32 %v546, %v546
      %v579 = vmul.f32 %v547, %v547
      %v580 = vmul.f32 %v548, %v548
      %v581 = vmul.f32 %v549, %v549
      %v582 = vmul.f32 %v550, %v550
      %v583 = vmul.f32 %v551, %v551
      %v584 = vmul.f32 %v552, %v552
      %v585 = vmul.f32 %v553, %v553
      %v586 = vmul.f32 %v554, %v554
      %v587 = vmul.f32 %v555, %v555
      %v588 = vmul.f32 %v556, %v556
      %v589 = vmul.f32 %v557, %v557
      %v590 = vmul.f32 %v558, %v558
      %v591 = vmul.f32 %v559, %v559
      %v592 = vmul.f32 %v560, %v560
      %v593 = vmul.f32 %v561, %v561
      %v594 = vmul.f32 %v562, %v562
      %v595 = vmul.f32 %v563, %v563
      %v596 = vmul.f32 %v564, %v564
      %v597 = vmul.f32 %v565, %v565
      %v598 = vmul.f32 %v566, %v566
      %v599 = vmul.f32 %v567, %v567
      %v600 = vmul.f32 %v568, %v568
      %v601 = vmul.f32 %v569, %v569
      %v602 = vmul.f32 %v570, %v570
      %v603 = vmul.f32 %v571, %v571
      %v604 = vmul.f32 %v572, %v572
      %v605 = vsel %vm411, %v573, 0.0
      %606 = vadd.xlane.f32.xlu0 %v605
      %v607 = vpop.xlane.xlu0 %606
      %v608 = vsel %vm411, %v574, 0.0
      %609 = vadd.xlane.f32.xlu0 %v608
      %v610 = vpop.xlane.xlu0 %609
      %v611 = vsel %vm411, %v575, 0.0
      %612 = vadd.xlane.f32.xlu0 %v611
      %v613 = vpop.xlane.xlu0 %612
      %v614 = vsel %vm411, %v576, 0.0
      %615 = vadd.xlane.f32.xlu0 %v614
      %v616 = vpop.xlane.xlu0 %615
      %v617 = vsel %vm411, %v577, 0.0
      %618 = vadd.xlane.f32.xlu0 %v617
      %v619 = vpop.xlane.xlu0 %618
      %v620 = vsel %vm411, %v578, 0.0
      %621 = vadd.xlane.f32.xlu0 %v620
      %v622 = vpop.xlane.xlu0 %621
      %v623 = vsel %vm411, %v579, 0.0
      %624 = vadd.xlane.f32.xlu0 %v623
      %v625 = vpop.xlane.xlu0 %624
      %v626 = vsel %vm411, %v580, 0.0
      %627 = vadd.xlane.f32.xlu0 %v626
      %v628 = vpop.xlane.xlu0 %627
      %v629 = vsel %vm411, %v581, 0.0
      %630 = vadd.xlane.f32.xlu0 %v629
      %v631 = vpop.xlane.xlu0 %630
      %v632 = vsel %vm411, %v582, 0.0
      %633 = vadd.xlane.f32.xlu0 %v632
      %v634 = vpop.xlane.xlu0 %633
      %v635 = vsel %vm411, %v583, 0.0
      %636 = vadd.xlane.f32.xlu0 %v635
      %v637 = vpop.xlane.xlu0 %636
      %v638 = vsel %vm411, %v584, 0.0
      %639 = vadd.xlane.f32.xlu0 %v638
      %v640 = vpop.xlane.xlu0 %639
      %v641 = vsel %vm411, %v585, 0.0
      %642 = vadd.xlane.f32.xlu0 %v641
      %v643 = vpop.xlane.xlu0 %642
      %v644 = vsel %vm411, %v586, 0.0
      %645 = vadd.xlane.f32.xlu0 %v644
      %v646 = vpop.xlane.xlu0 %645
      %v647 = vsel %vm411, %v587, 0.0
      %648 = vadd.xlane.f32.xlu0 %v647
      %v649 = vpop.xlane.xlu0 %648
      %v650 = vsel %vm411, %v588, 0.0
      %651 = vadd.xlane.f32.xlu0 %v650
      %v652 = vpop.xlane.xlu0 %651
      %v653 = vsel %vm411, %v589, 0.0
      %654 = vadd.xlane.f32.xlu0 %v653
      %v655 = vpop.xlane.xlu0 %654
      %v656 = vsel %vm411, %v590, 0.0
      %657 = vadd.xlane.f32.xlu0 %v656
      %v658 = vpop.xlane.xlu0 %657
      %v659 = vsel %vm411, %v591, 0.0
      %660 = vadd.xlane.f32.xlu0 %v659
      %v661 = vpop.xlane.xlu0 %660
      %v662 = vsel %vm411, %v592, 0.0
      %663 = vadd.xlane.f32.xlu0 %v662
      %v664 = vpop.xlane.xlu0 %663
      %v665 = vsel %vm411, %v593, 0.0
      %666 = vadd.xlane.f32.xlu0 %v665
      %v667 = vpop.xlane.xlu0 %666
      %v668 = vsel %vm411, %v594, 0.0
      %669 = vadd.xlane.f32.xlu0 %v668
      %v670 = vpop.xlane.xlu0 %669
      %v671 = vsel %vm411, %v595, 0.0
      %672 = vadd.xlane.f32.xlu0 %v671
      %v673 = vpop.xlane.xlu0 %672
      %v674 = vsel %vm411, %v596, 0.0
      %675 = vadd.xlane.f32.xlu0 %v674
      %v676 = vpop.xlane.xlu0 %675
      %v677 = vsel %vm411, %v597, 0.0
      %678 = vadd.xlane.f32.xlu0 %v677
      %v679 = vpop.xlane.xlu0 %678
      %v680 = vsel %vm411, %v598, 0.0
      %681 = vadd.xlane.f32.xlu0 %v680
      %v682 = vpop.xlane.xlu0 %681
      %v683 = vsel %vm411, %v599, 0.0
      %684 = vadd.xlane.f32.xlu0 %v683
      %v685 = vpop.xlane.xlu0 %684
      %v686 = vsel %vm411, %v600, 0.0
      %687 = vadd.xlane.f32.xlu0 %v686
      %v688 = vpop.xlane.xlu0 %687
      %v689 = vsel %vm411, %v601, 0.0
      %690 = vadd.xlane.f32.xlu0 %v689
      %v691 = vpop.xlane.xlu0 %690
      %v692 = vsel %vm411, %v602, 0.0
      %693 = vadd.xlane.f32.xlu0 %v692
      %v694 = vpop.xlane.xlu0 %693
      %v695 = vsel %vm411, %v603, 0.0
      %696 = vadd.xlane.f32.xlu0 %v695
      %v697 = vpop.xlane.xlu0 %696
      %v698 = vsel %vm411, %v604, 0.0
      %699 = vadd.xlane.f32.xlu0 %v698
      %v700 = vpop.xlane.xlu0 %699
      %v701 = vmul.f32 %v607, %v508
      %v702 = vmul.f32 %v610, %v508
      %v703 = vmul.f32 %v613, %v508
      %v704 = vmul.f32 %v616, %v508
      %v705 = vmul.f32 %v619, %v508
      %v706 = vmul.f32 %v622, %v508
      %v707 = vmul.f32 %v625, %v508
      %v708 = vmul.f32 %v628, %v508
      %v709 = vmul.f32 %v631, %v508
      %v710 = vmul.f32 %v634, %v508
      %v711 = vmul.f32 %v637, %v508
      %v712 = vmul.f32 %v640, %v508
      %v713 = vmul.f32 %v643, %v508
      %v714 = vmul.f32 %v646, %v508
      %v715 = vmul.f32 %v649, %v508
      %v716 = vmul.f32 %v652, %v508
      %v717 = vmul.f32 %v655, %v508
      %v718 = vmul.f32 %v658, %v508
      %v719 = vmul.f32 %v661, %v508
      %v720 = vmul.f32 %v664, %v508
      %v721 = vmul.f32 %v667, %v508
      %v722 = vmul.f32 %v670, %v508
      %v723 = vmul.f32 %v673, %v508
      %v724 = vmul.f32 %v676, %v508
      %v725 = vmul.f32 %v679, %v508
      %v726 = vmul.f32 %v682, %v508
      %v727 = vmul.f32 %v685, %v508
      %v728 = vmul.f32 %v688, %v508
      %v729 = vmul.f32 %v691, %v508
      %v730 = vmul.f32 %v694, %v508
      %v731 = vmul.f32 %v697, %v508
      %v732 = vmul.f32 %v700, %v508
      %v733 = vadd.f32 %v701, 1e-05
      %v734 = vadd.f32 %v702, 1e-05
      %v735 = vadd.f32 %v703, 1e-05
      %v736 = vadd.f32 %v704, 1e-05
      %v737 = vadd.f32 %v705, 1e-05
      %v738 = vadd.f32 %v706, 1e-05
      %v739 = vadd.f32 %v707, 1e-05
      %v740 = vadd.f32 %v708, 1e-05
      %v741 = vadd.f32 %v709, 1e-05
      %v742 = vadd.f32 %v710, 1e-05
      %v743 = vadd.f32 %v711, 1e-05
      %v744 = vadd.f32 %v712, 1e-05
      %v745 = vadd.f32 %v713, 1e-05
      %v746 = vadd.f32 %v714, 1e-05
      %v747 = vadd.f32 %v715, 1e-05
      %v748 = vadd.f32 %v716, 1e-05
      %v749 = vadd.f32 %v717, 1e-05
      %v750 = vadd.f32 %v718, 1e-05
      %v751 = vadd.f32 %v719, 1e-05
      %v752 = vadd.f32 %v720, 1e-05
      %v753 = vadd.f32 %v721, 1e-05
      %v754 = vadd.f32 %v722, 1e-05
      %v755 = vadd.f32 %v723, 1e-05
      %v756 = vadd.f32 %v724, 1e-05
      %v757 = vadd.f32 %v725, 1e-05
      %v758 = vadd.f32 %v726, 1e-05
      %v759 = vadd.f32 %v727, 1e-05
      %v760 = vadd.f32 %v728, 1e-05
      %v761 = vadd.f32 %v729, 1e-05
      %v762 = vadd.f32 %v730, 1e-05
      %v763 = vadd.f32 %v731, 1e-05
      %v764 = vadd.f32 %v732, 1e-05
      %v765 = vrsqrt.pop %v733
      %v766 = vrsqrt.pop %v734
      %v767 = vrsqrt.pop %v735
      %v768 = vrsqrt.pop %v736
      %v769 = vrsqrt.pop %v737
      %v770 = vrsqrt.pop %v738
      %v771 = vrsqrt.pop %v739
      %v772 = vrsqrt.pop %v740
      %v773 = vrsqrt.pop %v741
      %v774 = vrsqrt.pop %v742
      %v775 = vrsqrt.pop %v743
      %v776 = vrsqrt.pop %v744
      %v777 = vrsqrt.pop %v745
      %v778 = vrsqrt.pop %v746
      %v779 = vrsqrt.pop %v747
      %v780 = vrsqrt.pop %v748
      %v781 = vrsqrt.pop %v749
      %v782 = vrsqrt.pop %v750
      %v783 = vrsqrt.pop %v751
      %v784 = vrsqrt.pop %v752
      %v785 = vrsqrt.pop %v753
      %v786 = vrsqrt.pop %v754
      %v787 = vrsqrt.pop %v755
      %v788 = vrsqrt.pop %v756
      %v789 = vrsqrt.pop %v757
      %v790 = vrsqrt.pop %v758
      %v791 = vrsqrt.pop %v759
      %v792 = vrsqrt.pop %v760
      %v793 = vrsqrt.pop %v761
      %v794 = vrsqrt.pop %v762
      %v795 = vrsqrt.pop %v763
      %v796 = vrsqrt.pop %v764
      %v797 = vmul.f32 %v541, %v765
      %v798 = vmul.f32 %v542, %v766
      %v799 = vmul.f32 %v543, %v767
      %v800 = vmul.f32 %v544, %v768
      %v801 = vmul.f32 %v545, %v769
      %v802 = vmul.f32 %v546, %v770
      %v803 = vmul.f32 %v547, %v771
      %v804 = vmul.f32 %v548, %v772
      %v805 = vmul.f32 %v549, %v773
      %v806 = vmul.f32 %v550, %v774
      %v807 = vmul.f32 %v551, %v775
      %v808 = vmul.f32 %v552, %v776
      %v809 = vmul.f32 %v553, %v777
      %v810 = vmul.f32 %v554, %v778
      %v811 = vmul.f32 %v555, %v779
      %v812 = vmul.f32 %v556, %v780
      %v813 = vmul.f32 %v557, %v781
      %v814 = vmul.f32 %v558, %v782
      %v815 = vmul.f32 %v559, %v783
      %v816 = vmul.f32 %v560, %v784
      %v817 = vmul.f32 %v561, %v785
      %v818 = vmul.f32 %v562, %v786
      %v819 = vmul.f32 %v563, %v787
      %v820 = vmul.f32 %v564, %v788
      %v821 = vmul.f32 %v565, %v789
      %v822 = vmul.f32 %v566, %v790
      %v823 = vmul.f32 %v567, %v791
      %v824 = vmul.f32 %v568, %v792
      %v825 = vmul.f32 %v569, %v793
      %v826 = vmul.f32 %v570, %v794
      %v827 = vmul.f32 %v571, %v795
      %v828 = vmul.f32 %v572, %v796
      %v829 = vld [vmem:[%s328] sm:$0x1]
      %v831 = vlaneseq
      %v832 = vshrl.u32 %v831, 7
      %v833 = vsub.s32 0, %v832
      %v834 = vrot.slane %v829, %v833
      %v836 = vmul.f32 %v797, %v834
      %v837 = vmul.f32 %v798, %v834
      %v838 = vmul.f32 %v799, %v834
      %v839 = vmul.f32 %v800, %v834
      %v840 = vmul.f32 %v801, %v834
      %v841 = vmul.f32 %v802, %v834
      %v842 = vmul.f32 %v803, %v834
      %v843 = vmul.f32 %v804, %v834
      %v844 = vmul.f32 %v805, %v834
      %v845 = vmul.f32 %v806, %v834
      %v846 = vmul.f32 %v807, %v834
      %v847 = vmul.f32 %v808, %v834
      %v848 = vmul.f32 %v809, %v834
      %v849 = vmul.f32 %v810, %v834
      %v850 = vmul.f32 %v811, %v834
      %v851 = vmul.f32 %v812, %v834
      %v852 = vmul.f32 %v813, %v834
      %v853 = vmul.f32 %v814, %v834
      %v854 = vmul.f32 %v815, %v834
      %v855 = vmul.f32 %v816, %v834
      %v856 = vmul.f32 %v817, %v834
      %v857 = vmul.f32 %v818, %v834
      %v858 = vmul.f32 %v819, %v834
      %v859 = vmul.f32 %v820, %v834
      %v860 = vmul.f32 %v821, %v834
      %v861 = vmul.f32 %v822, %v834
      %v862 = vmul.f32 %v823, %v834
      %v863 = vmul.f32 %v824, %v834
      %v864 = vmul.f32 %v825, %v834
      %v865 = vmul.f32 %v826, %v834
      %v866 = vmul.f32 %v827, %v834
      %v867 = vmul.f32 %v828, %v834
      %v868 = vld [vmem:[%s331] sm:$0x1]
      %v870 = vlaneseq
      %v871 = vshrl.u32 %v870, 7
      %v872 = vsub.s32 0, %v871
      %v873 = vrot.slane %v868, %v872
      %v875 = vadd.f32 %v836, %v873
      %v876 = vadd.f32 %v837, %v873
      %v877 = vadd.f32 %v838, %v873
      %v878 = vadd.f32 %v839, %v873
      %v879 = vadd.f32 %v840, %v873
      %v880 = vadd.f32 %v841, %v873
      %v881 = vadd.f32 %v842, %v873
      %v882 = vadd.f32 %v843, %v873
      %v883 = vadd.f32 %v844, %v873
      %v884 = vadd.f32 %v845, %v873
      %v885 = vadd.f32 %v846, %v873
      %v886 = vadd.f32 %v847, %v873
      %v887 = vadd.f32 %v848, %v873
      %v888 = vadd.f32 %v849, %v873
      %v889 = vadd.f32 %v850, %v873
      %v890 = vadd.f32 %v851, %v873
      %v891 = vadd.f32 %v852, %v873
      %v892 = vadd.f32 %v853, %v873
      %v893 = vadd.f32 %v854, %v873
      %v894 = vadd.f32 %v855, %v873
      %v895 = vadd.f32 %v856, %v873
      %v896 = vadd.f32 %v857, %v873
      %v897 = vadd.f32 %v858, %v873
      %v898 = vadd.f32 %v859, %v873
      %v899 = vadd.f32 %v860, %v873
      %v900 = vadd.f32 %v861, %v873
      %v901 = vadd.f32 %v862, %v873
      %v902 = vadd.f32 %v863, %v873
      %v903 = vadd.f32 %v864, %v873
      %v904 = vadd.f32 %v865, %v873
      %v905 = vadd.f32 %v866, %v873
      %v906 = vadd.f32 %v867, %v873
      %v907 = vpack.c.bf16 %v876, %v875
      %v908 = vpack.c.bf16 %v878, %v877
      %v909 = vpack.c.bf16 %v880, %v879
      %v910 = vpack.c.bf16 %v882, %v881
      %v911 = vpack.c.bf16 %v884, %v883
      %v912 = vpack.c.bf16 %v886, %v885
      %v913 = vpack.c.bf16 %v888, %v887
      %v914 = vpack.c.bf16 %v890, %v889
      %v915 = vpack.c.bf16 %v892, %v891
      %v916 = vpack.c.bf16 %v894, %v893
      %v917 = vpack.c.bf16 %v896, %v895
      %v918 = vpack.c.bf16 %v898, %v897
      %v919 = vpack.c.bf16 %v900, %v899
      %v920 = vpack.c.bf16 %v902, %v901
      %v921 = vpack.c.bf16 %v904, %v903
      %v922 = vpack.c.bf16 %v906, %v905
      %v923 = vld [vmem:[#allocation2] sm:$0xff]
      %v924 = vld [vmem:[#allocation2 + $0x8] sm:$0xff]
      %v925 = vld [vmem:[#allocation2 + $0x10] sm:$0xff]
      %v926 = vld [vmem:[#allocation2 + $0x18] sm:$0xff]
      %v927 = vld [vmem:[#allocation2 + $0x20] sm:$0xff]
      %v928 = vld [vmem:[#allocation2 + $0x28] sm:$0xff]
      %v929 = vld [vmem:[#allocation2 + $0x30] sm:$0xff]
      %v930 = vld [vmem:[#allocation2 + $0x38] sm:$0xff]
      %v931 = vld [vmem:[#allocation2 + $0x40] sm:$0xff]
      %v932 = vld [vmem:[#allocation2 + $0x48] sm:$0xff]
      %v933 = vld [vmem:[#allocation2 + $0x50] sm:$0xff]
      %v934 = vld [vmem:[#allocation2 + $0x58] sm:$0xff]
      %v935 = vld [vmem:[#allocation2 + $0x60] sm:$0xff]
      %v936 = vld [vmem:[#allocation2 + $0x68] sm:$0xff]
      %v937 = vld [vmem:[#allocation2 + $0x70] sm:$0xff]
      %v938 = vld [vmem:[#allocation2 + $0x78] sm:$0xff]
      %v939 = vld [vmem:[#allocation2 + $0x80] sm:$0xff]
      %v940 = vld [vmem:[#allocation2 + $0x88] sm:$0xff]
      %v941 = vld [vmem:[#allocation2 + $0x90] sm:$0xff]
      %v942 = vld [vmem:[#allocation2 + $0x98] sm:$0xff]
      %v943 = vld [vmem:[#allocation2 + $0xa0] sm:$0xff]
      %v944 = vld [vmem:[#allocation2 + $0xa8] sm:$0xff]
      %v945 = vld [vmem:[#allocation2 + $0xb0] sm:$0xff]
      %v946 = vld [vmem:[#allocation2 + $0xb8] sm:$0xff]
      %v947 = vld [vmem:[#allocation2 + $0xc0] sm:$0xff]
      %v948 = vld [vmem:[#allocation2 + $0xc8] sm:$0xff]
      %v949 = vld [vmem:[#allocation2 + $0xd0] sm:$0xff]
      %v950 = vld [vmem:[#allocation2 + $0xd8] sm:$0xff]
      %v951 = vld [vmem:[#allocation2 + $0xe0] sm:$0xff]
      %v952 = vld [vmem:[#allocation2 + $0xe8] sm:$0xff]
      %v953 = vld [vmem:[#allocation2 + $0xf0] sm:$0xff]
      %v954 = vld [vmem:[#allocation2 + $0xf8] sm:$0xff]
      %v955 = vld [vmem:[%s321] sm:$0xf]
      %v956 = vld [vmem:[%s321 + $0x4] sm:$0xf]
      %v957 = vld [vmem:[%s321 + $0x8] sm:$0xf]
      %v958 = vld [vmem:[%s321 + $0xc] sm:$0xf]
      %v959 = vld [vmem:[%s321 + $0x10] sm:$0xf]
      %v960 = vld [vmem:[%s321 + $0x14] sm:$0xf]
      %v961 = vld [vmem:[%s321 + $0x18] sm:$0xf]
      %v962 = vld [vmem:[%s321 + $0x1c] sm:$0xf]
      %v971 = vunpack.c.l.b16 %v955
      %v972 = vunpack.c.l.b16 %v956
      %v973 = vunpack.c.l.b16 %v957
      %v974 = vunpack.c.l.b16 %v958
      %v975 = vunpack.c.l.b16 %v959
      %v976 = vunpack.c.l.b16 %v960
      %v977 = vunpack.c.l.b16 %v961
      %v978 = vunpack.c.l.b16 %v962
      %v979 = vpack.c.b16 %v972, %v971
      %v980 = vpack.c.b16 %v974, %v973
      %v981 = vpack.c.b16 %v976, %v975
      %v982 = vpack.c.b16 %v978, %v977
      %v988 = vsel %vm411, %v907, 0
      %v991 = vsel %vm411, %v908, 0
      %v994 = vsel %vm411, %v909, 0
      %v997 = vsel %vm411, %v910, 0
      %v1000 = vsel %vm411, %v911, 0
      %v1003 = vsel %vm411, %v912, 0
      %v1006 = vsel %vm411, %v913, 0
      %v1009 = vsel %vm411, %v914, 0
      %v1012 = vsel %vm411, %v915, 0
      %v1015 = vsel %vm411, %v916, 0
      %v1018 = vsel %vm411, %v917, 0
      %v1021 = vsel %vm411, %v918, 0
      %v1024 = vsel %vm411, %v919, 0
      %v1027 = vsel %vm411, %v920, 0
      %v1030 = vsel %vm411, %v921, 0
      %v1033 = vsel %vm411, %v922, 0
      %1035 = vmatprep.subr.bf16.mxu0 0
      %1036 = vmatpush1.bf16.msra.mxu0 %v979
      %1037 = vmatprep.subr.bf16.mxu0 0
      %1038 = vmatpush1.bf16.msra.mxu0 %v980
      %1039 = vmatprep.subr.bf16.mxu0 0
      %1040 = vmatpush1.bf16.msra.mxu0 %v981
      %1041 = vmatprep.subr.bf16.mxu0 0
      %1042 = vmatpush1.bf16.msra.mxu0 %v982
      %1043 = vmatprep.subr.bf16.mxu0 0
      %1044 = vmatpush1.bf16.msra.mxu0 0
      %1045 = vmatprep.subr.bf16.mxu0 0
      %1046 = vmatpush1.bf16.msra.mxu0 0
      %1047 = vmatprep.subr.bf16.mxu0 0
      %1048 = vmatpush1.bf16.msra.mxu0 0
      %1049 = vmatprep.subr.bf16.mxu0 0
      %1050 = vmatpush1.bf16.msra.mxu0 0
      %1051 = vmatprep.subr.bf16.mxu0 0
      %1052 = vmatpush1.bf16.msra.mxu0 0
      %1053 = vmatprep.subr.bf16.mxu0 0
      %1054 = vmatpush1.bf16.msra.mxu0 0
      %1055 = vmatprep.subr.bf16.mxu0 0
      %1056 = vmatpush1.bf16.msra.mxu0 0
      %1057 = vmatprep.subr.bf16.mxu0 0
      %1058 = vmatpush1.bf16.msra.mxu0 0
      %1059 = vmatprep.subr.bf16.mxu0 0
      %1060 = vmatpush1.bf16.msra.mxu0 0
      %1061 = vmatprep.subr.bf16.mxu0 0
      %1062 = vmatpush1.bf16.msra.mxu0 0
      %1063 = vmatprep.subr.bf16.mxu0 0
      %1064 = vmatpush1.bf16.msra.mxu0 0
      %1065 = vmatprep.subr.bf16.mxu0 0
      %1066 = vmatpush1.bf16.msra.mxu0 0
      %1067 = vmatprep.mubr.bf16.mxu0 0
      %1068 = vmatmul.mubr.bf16.gmra.mrb[0].mxu0 %v988
      %v1069 = vpop.f32.mrb[0].mxu0
      %v1070 = vadd.f32 0.0, %v1069
      %v1071 = vpop.f32.mrb[0].mxu0
      %v1072 = vpop.f32.mrb[0].mxu0
      %v1073 = vadd.f32 0.0, %v1072
      %v1074 = vpop.f32.mrb[0].mxu0
      %1075 = vmatprep.mubr.bf16.mxu0 0
      %1076 = vmatmul.mubr.bf16.gmra.mrb[0].mxu0 %v991
      %v1077 = vpop.f32.mrb[0].mxu0
      %v1078 = vadd.f32 0.0, %v1077
      %v1079 = vpop.f32.mrb[0].mxu0
      %v1080 = vpop.f32.mrb[0].mxu0
      %v1081 = vadd.f32 0.0, %v1080
      %v1082 = vpop.f32.mrb[0].mxu0
      %1083 = vmatprep.mubr.bf16.mxu0 0
      %1084 = vmatmul.mubr.bf16.gmra.mrb[0].mxu0 %v994
      %v1085 = vpop.f32.mrb[0].mxu0
      %v1086 = vadd.f32 0.0, %v1085
      %v1087 = vpop.f32.mrb[0].mxu0
      %v1088 = vpop.f32.mrb[0].mxu0
      %v1089 = vadd.f32 0.0, %v1088
      %v1090 = vpop.f32.mrb[0].mxu0
      %1091 = vmatprep.mubr.bf16.mxu0 0
      %1092 = vmatmul.mubr.bf16.gmra.mrb[0].mxu0 %v997
      %v1093 = vpop.f32.mrb[0].mxu0
      %v1094 = vadd.f32 0.0, %v1093
      %v1095 = vpop.f32.mrb[0].mxu0
      %v1096 = vpop.f32.mrb[0].mxu0
      %v1097 = vadd.f32 0.0, %v1096
      %v1098 = vpop.f32.mrb[0].mxu0
      %1099 = vmatprep.mubr.bf16.mxu0 0
      %1100 = vmatmul.mubr.bf16.gmra.mrb[0].mxu0 %v1000
      %v1101 = vpop.f32.mrb[0].mxu0
      %v1102 = vadd.f32 0.0, %v1101
      %v1103 = vpop.f32.mrb[0].mxu0
      %v1104 = vpop.f32.mrb[0].mxu0
      %v1105 = vadd.f32 0.0, %v1104
      %v1106 = vpop.f32.mrb[0].mxu0
      %1107 = vmatprep.mubr.bf16.mxu0 0
      %1108 = vmatmul.mubr.bf16.gmra.mrb[0].mxu0 %v1003
      %v1109 = vpop.f32.mrb[0].mxu0
      %v1110 = vadd.f32 0.0, %v1109
      %v1111 = vpop.f32.mrb[0].mxu0
      %v1112 = vpop.f32.mrb[0].mxu0
      %v1113 = vadd.f32 0.0, %v1112
      %v1114 = vpop.f32.mrb[0].mxu0
      %1115 = vmatprep.mubr.bf16.mxu0 0
      %1116 = vmatmul.mubr.bf16.gmra.mrb[0].mxu0 %v1006
      %v1117 = vpop.f32.mrb[0].mxu0
      %v1118 = vadd.f32 0.0, %v1117
      %v1119 = vpop.f32.mrb[0].mxu0
      %v1120 = vpop.f32.mrb[0].mxu0
      %v1121 = vadd.f32 0.0, %v1120
      %v1122 = vpop.f32.mrb[0].mxu0
      %1123 = vmatprep.mubr.bf16.mxu0 0
      %1124 = vmatmul.mubr.bf16.gmra.mrb[0].mxu0 %v1009
      %v1125 = vpop.f32.mrb[0].mxu0
      %v1126 = vadd.f32 0.0, %v1125
      %v1127 = vpop.f32.mrb[0].mxu0
      %v1128 = vpop.f32.mrb[0].mxu0
      %v1129 = vadd.f32 0.0, %v1128
      %v1130 = vpop.f32.mrb[0].mxu0
      %1131 = vmatprep.mubr.bf16.mxu0 0
      %1132 = vmatmul.mubr.bf16.gmra.mrb[0].mxu0 %v1012
      %v1133 = vpop.f32.mrb[0].mxu0
      %v1134 = vadd.f32 0.0, %v1133
      %v1135 = vpop.f32.mrb[0].mxu0
      %v1136 = vpop.f32.mrb[0].mxu0
      %v1137 = vadd.f32 0.0, %v1136
      %v1138 = vpop.f32.mrb[0].mxu0
      %1139 = vmatprep.mubr.bf16.mxu0 0
      %1140 = vmatmul.mubr.bf16.gmra.mrb[0].mxu0 %v1015
      %v1141 = vpop.f32.mrb[0].mxu0
      %v1142 = vadd.f32 0.0, %v1141
      %v1143 = vpop.f32.mrb[0].mxu0
      %v1144 = vpop.f32.mrb[0].mxu0
      %v1145 = vadd.f32 0.0, %v1144
      %v1146 = vpop.f32.mrb[0].mxu0
      %1147 = vmatprep.mubr.bf16.mxu0 0
      %1148 = vmatmul.mubr.bf16.gmra.mrb[0].mxu0 %v1018
      %v1149 = vpop.f32.mrb[0].mxu0
      %v1150 = vadd.f32 0.0, %v1149
      %v1151 = vpop.f32.mrb[0].mxu0
      %v1152 = vpop.f32.mrb[0].mxu0
      %v1153 = vadd.f32 0.0, %v1152
      %v1154 = vpop.f32.mrb[0].mxu0
      %1155 = vmatprep.mubr.bf16.mxu0 0
      %1156 = vmatmul.mubr.bf16.gmra.mrb[0].mxu0 %v1021
      %v1157 = vpop.f32.mrb[0].mxu0
      %v1158 = vadd.f32 0.0, %v1157
      %v1159 = vpop.f32.mrb[0].mxu0
      %v1160 = vpop.f32.mrb[0].mxu0
      %v1161 = vadd.f32 0.0, %v1160
      %v1162 = vpop.f32.mrb[0].mxu0
      %1163 = vmatprep.mubr.bf16.mxu0 0
      %1164 = vmatmul.mubr.bf16.gmra.mrb[0].mxu0 %v1024
      %v1165 = vpop.f32.mrb[0].mxu0
      %v1166 = vadd.f32 0.0, %v1165
      %v1167 = vpop.f32.mrb[0].mxu0
      %v1168 = vpop.f32.mrb[0].mxu0
      %v1169 = vadd.f32 0.0, %v1168
      %v1170 = vpop.f32.mrb[0].mxu0
      %1171 = vmatprep.mubr.bf16.mxu0 0
      %1172 = vmatmul.mubr.bf16.gmra.mrb[0].mxu0 %v1027
      %v1173 = vpop.f32.mrb[0].mxu0
      %v1174 = vadd.f32 0.0, %v1173
      %v1175 = vpop.f32.mrb[0].mxu0
      %v1176 = vpop.f32.mrb[0].mxu0
      %v1177 = vadd.f32 0.0, %v1176
      %v1178 = vpop.f32.mrb[0].mxu0
      %1179 = vmatprep.mubr.bf16.mxu0 0
      %1180 = vmatmul.mubr.bf16.gmra.mrb[0].mxu0 %v1030
      %v1181 = vpop.f32.mrb[0].mxu0
      %v1182 = vadd.f32 0.0, %v1181
      %v1183 = vpop.f32.mrb[0].mxu0
      %v1184 = vpop.f32.mrb[0].mxu0
      %v1185 = vadd.f32 0.0, %v1184
      %v1186 = vpop.f32.mrb[0].mxu0
      %1187 = vmatprep.mubr.bf16.mxu0 0
      %1188 = vmatmul.mubr.bf16.gmra.mrb[0].mxu0 %v1033
      %v1189 = vpop.f32.mrb[0].mxu0
      %v1190 = vadd.f32 0.0, %v1189
      %v1191 = vpop.f32.mrb[0].mxu0
      %v1192 = vpop.f32.mrb[0].mxu0
      %v1193 = vadd.f32 0.0, %v1192
      %v1194 = vpop.f32.mrb[0].mxu0
      %1195 = vdwg.mxu0
      %v1196 = vadd.f32 %v923, %v1070
      %v1197 = vadd.f32 %v924, %v1073
      %v1198 = vadd.f32 %v925, %v1078
      %v1199 = vadd.f32 %v926, %v1081
      %v1200 = vadd.f32 %v927, %v1086
      %v1201 = vadd.f32 %v928, %v1089
      %v1202 = vadd.f32 %v929, %v1094
      %v1203 = vadd.f32 %v930, %v1097
      %v1204 = vadd.f32 %v931, %v1102
      %v1205 = vadd.f32 %v932, %v1105
      %v1206 = vadd.f32 %v933, %v1110
      %v1207 = vadd.f32 %v934, %v1113
      %v1208 = vadd.f32 %v935, %v1118
      %v1209 = vadd.f32 %v936, %v1121
      %v1210 = vadd.f32 %v937, %v1126
      %v1211 = vadd.f32 %v938, %v1129
      %v1212 = vadd.f32 %v939, %v1134
      %v1213 = vadd.f32 %v940, %v1137
      %v1214 = vadd.f32 %v941, %v1142
      %v1215 = vadd.f32 %v942, %v1145
      %v1216 = vadd.f32 %v943, %v1150
      %v1217 = vadd.f32 %v944, %v1153
      %v1218 = vadd.f32 %v945, %v1158
      %v1219 = vadd.f32 %v946, %v1161
      %v1220 = vadd.f32 %v947, %v1166
      %v1221 = vadd.f32 %v948, %v1169
      %v1222 = vadd.f32 %v949, %v1174
      %v1223 = vadd.f32 %v950, %v1177
      %v1224 = vadd.f32 %v951, %v1182
      %v1225 = vadd.f32 %v952, %v1185
      %v1226 = vadd.f32 %v953, %v1190
      %v1227 = vadd.f32 %v954, %v1193
      %1228 = vst.msk [vmem:[#allocation2] sm:$0xff] %vm411, %v1196
      %1229 = vst.msk [vmem:[#allocation2 + $0x8] sm:$0xff] %vm411, %v1197
      %1230 = vst.msk [vmem:[#allocation2 + $0x10] sm:$0xff] %vm411, %v1198
      %1231 = vst.msk [vmem:[#allocation2 + $0x18] sm:$0xff] %vm411, %v1199
      %1232 = vst.msk [vmem:[#allocation2 + $0x20] sm:$0xff] %vm411, %v1200
      %1233 = vst.msk [vmem:[#allocation2 + $0x28] sm:$0xff] %vm411, %v1201
      %1234 = vst.msk [vmem:[#allocation2 + $0x30] sm:$0xff] %vm411, %v1202
      %1235 = vst.msk [vmem:[#allocation2 + $0x38] sm:$0xff] %vm411, %v1203
      %1236 = vst.msk [vmem:[#allocation2 + $0x40] sm:$0xff] %vm411, %v1204
      %1237 = vst.msk [vmem:[#allocation2 + $0x48] sm:$0xff] %vm411, %v1205
      %1238 = vst.msk [vmem:[#allocation2 + $0x50] sm:$0xff] %vm411, %v1206
      %1239 = vst.msk [vmem:[#allocation2 + $0x58] sm:$0xff] %vm411, %v1207
      %1240 = vst.msk [vmem:[#allocation2 + $0x60] sm:$0xff] %vm411, %v1208
      %1241 = vst.msk [vmem:[#allocation2 + $0x68] sm:$0xff] %vm411, %v1209
      %1242 = vst.msk [vmem:[#allocation2 + $0x70] sm:$0xff] %vm411, %v1210
      %1243 = vst.msk [vmem:[#allocation2 + $0x78] sm:$0xff] %vm411, %v1211
      %1244 = vst.msk [vmem:[#allocation2 + $0x80] sm:$0xff] %vm411, %v1212
      %1245 = vst.msk [vmem:[#allocation2 + $0x88] sm:$0xff] %vm411, %v1213
      %1246 = vst.msk [vmem:[#allocation2 + $0x90] sm:$0xff] %vm411, %v1214
      %1247 = vst.msk [vmem:[#allocation2 + $0x98] sm:$0xff] %vm411, %v1215
      %1248 = vst.msk [vmem:[#allocation2 + $0xa0] sm:$0xff] %vm411, %v1216
      %1249 = vst.msk [vmem:[#allocation2 + $0xa8] sm:$0xff] %vm411, %v1217
      %1250 = vst.msk [vmem:[#allocation2 + $0xb0] sm:$0xff] %vm411, %v1218
      %1251 = vst.msk [vmem:[#allocation2 + $0xb8] sm:$0xff] %vm411, %v1219
      %1252 = vst.msk [vmem:[#allocation2 + $0xc0] sm:$0xff] %vm411, %v1220
      %1253 = vst.msk [vmem:[#allocation2 + $0xc8] sm:$0xff] %vm411, %v1221
      %1254 = vst.msk [vmem:[#allocation2 + $0xd0] sm:$0xff] %vm411, %v1222
      %1255 = vst.msk [vmem:[#allocation2 + $0xd8] sm:$0xff] %vm411, %v1223
      %1256 = vst.msk [vmem:[#allocation2 + $0xe0] sm:$0xff] %vm411, %v1224
      %1257 = vst.msk [vmem:[#allocation2 + $0xe8] sm:$0xff] %vm411, %v1225
      %1258 = vst.msk [vmem:[#allocation2 + $0xf0] sm:$0xff] %vm411, %v1226
      %1259 = vst.msk [vmem:[#allocation2 + $0xf8] sm:$0xff] %vm411, %v1227
      // Predicated region
      $region45: #{self_attention_forward.8} parent=39 // pred_check
        %p1260 = pneg %p342
      $region46: #{self_attention_forward.8} parent=39 // pred_check_branch
        %1262 = sbr.rel (%p1260) target = $region48
      $region47: #{self_attention_forward.8} parent=39 // pred_region
        %v1263 = vld [vmem:[#allocation2] sm:$0xff]
        %v1264 = vld [vmem:[#allocation2 + $0x8] sm:$0xff]
        %v1265 = vld [vmem:[#allocation2 + $0x10] sm:$0xff]
        %v1266 = vld [vmem:[#allocation2 + $0x18] sm:$0xff]
        %v1267 = vld [vmem:[#allocation2 + $0x20] sm:$0xff]
        %v1268 = vld [vmem:[#allocation2 + $0x28] sm:$0xff]
        %v1269 = vld [vmem:[#allocation2 + $0x30] sm:$0xff]
        %v1270 = vld [vmem:[#allocation2 + $0x38] sm:$0xff]
        %v1271 = vld [vmem:[#allocation2 + $0x40] sm:$0xff]
        %v1272 = vld [vmem:[#allocation2 + $0x48] sm:$0xff]
        %v1273 = vld [vmem:[#allocation2 + $0x50] sm:$0xff]
        %v1274 = vld [vmem:[#allocation2 + $0x58] sm:$0xff]
        %v1275 = vld [vmem:[#allocation2 + $0x60] sm:$0xff]
        %v1276 = vld [vmem:[#allocation2 + $0x68] sm:$0xff]
        %v1277 = vld [vmem:[#allocation2 + $0x70] sm:$0xff]
        %v1278 = vld [vmem:[#allocation2 + $0x78] sm:$0xff]
        %v1279 = vld [vmem:[#allocation2 + $0x80] sm:$0xff]
        %v1280 = vld [vmem:[#allocation2 + $0x88] sm:$0xff]
        %v1281 = vld [vmem:[#allocation2 + $0x90] sm:$0xff]
        %v1282 = vld [vmem:[#allocation2 + $0x98] sm:$0xff]
        %v1283 = vld [vmem:[#allocation2 + $0xa0] sm:$0xff]
        %v1284 = vld [vmem:[#allocation2 + $0xa8] sm:$0xff]
        %v1285 = vld [vmem:[#allocation2 + $0xb0] sm:$0xff]
        %v1286 = vld [vmem:[#allocation2 + $0xb8] sm:$0xff]
        %v1287 = vld [vmem:[#allocation2 + $0xc0] sm:$0xff]
        %v1288 = vld [vmem:[#allocation2 + $0xc8] sm:$0xff]
        %v1289 = vld [vmem:[#allocation2 + $0xd0] sm:$0xff]
        %v1290 = vld [vmem:[#allocation2 + $0xd8] sm:$0xff]
        %v1291 = vld [vmem:[#allocation2 + $0xe0] sm:$0xff]
        %v1292 = vld [vmem:[#allocation2 + $0xe8] sm:$0xff]
        %v1293 = vld [vmem:[#allocation2 + $0xf0] sm:$0xff]
        %v1294 = vld [vmem:[#allocation2 + $0xf8] sm:$0xff]
        %v1295 = vld [vmem:[%s325] sm:$0x1]
        %v1297 = vlaneseq
        %v1298 = vshrl.u32 %v1297, 7
        %v1299 = vsub.s32 0, %v1298
        %v1300 = vrot.slane %v1295, %v1299
        %v1302 = vadd.f32 %v1263, %v1300
        %v1303 = vadd.f32 %v1264, %v1300
        %v1304 = vadd.f32 %v1265, %v1300
        %v1305 = vadd.f32 %v1266, %v1300
        %v1306 = vadd.f32 %v1267, %v1300
        %v1307 = vadd.f32 %v1268, %v1300
        %v1308 = vadd.f32 %v1269, %v1300
        %v1309 = vadd.f32 %v1270, %v1300
        %v1310 = vadd.f32 %v1271, %v1300
        %v1311 = vadd.f32 %v1272, %v1300
        %v1312 = vadd.f32 %v1273, %v1300
        %v1313 = vadd.f32 %v1274, %v1300
        %v1314 = vadd.f32 %v1275, %v1300
        %v1315 = vadd.f32 %v1276, %v1300
        %v1316 = vadd.f32 %v1277, %v1300
        %v1317 = vadd.f32 %v1278, %v1300
        %v1318 = vadd.f32 %v1279, %v1300
        %v1319 = vadd.f32 %v1280, %v1300
        %v1320 = vadd.f32 %v1281, %v1300
        %v1321 = vadd.f32 %v1282, %v1300
        %v1322 = vadd.f32 %v1283, %v1300
        %v1323 = vadd.f32 %v1284, %v1300
        %v1324 = vadd.f32 %v1285, %v1300
        %v1325 = vadd.f32 %v1286, %v1300
        %v1326 = vadd.f32 %v1287, %v1300
        %v1327 = vadd.f32 %v1288, %v1300
        %v1328 = vadd.f32 %v1289, %v1300
        %v1329 = vadd.f32 %v1290, %v1300
        %v1330 = vadd.f32 %v1291, %v1300
        %v1331 = vadd.f32 %v1292, %v1300
        %v1332 = vadd.f32 %v1293, %v1300
        %v1333 = vadd.f32 %v1294, %v1300
        %1334 = vst.msk [vmem:[%s339] sm:$0xff] %vm411, %v1302
        %1335 = vst.msk [vmem:[%s339 + $0x8] sm:$0xff] %vm411, %v1303
        %1336 = vst.msk [vmem:[%s339 + $0x10] sm:$0xff] %vm411, %v1304
        %1337 = vst.msk [vmem:[%s339 + $0x18] sm:$0xff] %vm411, %v1305
        %1338 = vst.msk [vmem:[%s339 + $0x20] sm:$0xff] %vm411, %v1306
        %1339 = vst.msk [vmem:[%s339 + $0x28] sm:$0xff] %vm411, %v1307
        %1340 = vst.msk [vmem:[%s339 + $0x30] sm:$0xff] %vm411, %v1308
        %1341 = vst.msk [vmem:[%s339 + $0x38] sm:$0xff] %vm411, %v1309
        %1342 = vst.msk [vmem:[%s339 + $0x40] sm:$0xff] %vm411, %v1310
        %1343 = vst.msk [vmem:[%s339 + $0x48] sm:$0xff] %vm411, %v1311
        %1344 = vst.msk [vmem:[%s339 + $0x50] sm:$0xff] %vm411, %v1312
        %1345 = vst.msk [vmem:[%s339 + $0x58] sm:$0xff] %vm411, %v1313
        %1346 = vst.msk [vmem:[%s339 + $0x60] sm:$0xff] %vm411, %v1314
        %1347 = vst.msk [vmem:[%s339 + $0x68] sm:$0xff] %vm411, %v1315
        %1348 = vst.msk [vmem:[%s339 + $0x70] sm:$0xff] %vm411, %v1316
        %1349 = vst.msk [vmem:[%s339 + $0x78] sm:$0xff] %vm411, %v1317
        %1350 = vst.msk [vmem:[%s339 + $0x80] sm:$0xff] %vm411, %v1318
        %1351 = vst.msk [vmem:[%s339 + $0x88] sm:$0xff] %vm411, %v1319
        %1352 = vst.msk [vmem:[%s339 + $0x90] sm:$0xff] %vm411, %v1320
        %1353 = vst.msk [vmem:[%s339 + $0x98] sm:$0xff] %vm411, %v1321
        %1354 = vst.msk [vmem:[%s339 + $0xa0] sm:$0xff] %vm411, %v1322
        %1355 = vst.msk [vmem:[%s339 + $0xa8] sm:$0xff] %vm411, %v1323
        %1356 = vst.msk [vmem:[%s339 + $0xb0] sm:$0xff] %vm411, %v1324
        %1357 = vst.msk [vmem:[%s339 + $0xb8] sm:$0xff] %vm411, %v1325
        %1358 = vst.msk [vmem:[%s339 + $0xc0] sm:$0xff] %vm411, %v1326
        %1359 = vst.msk [vmem:[%s339 + $0xc8] sm:$0xff] %vm411, %v1327
        %1360 = vst.msk [vmem:[%s339 + $0xd0] sm:$0xff] %vm411, %v1328
        %1361 = vst.msk [vmem:[%s339 + $0xd8] sm:$0xff] %vm411, %v1329
        %1362 = vst.msk [vmem:[%s339 + $0xe0] sm:$0xff] %vm411, %v1330
        %1363 = vst.msk [vmem:[%s339 + $0xe8] sm:$0xff] %vm411, %v1331
        %1364 = vst.msk [vmem:[%s339 + $0xf0] sm:$0xff] %vm411, %v1332
        %1365 = vst.msk [vmem:[%s339 + $0xf8] sm:$0xff] %vm411, %v1333
      $region48: #{self_attention_forward.8} parent=39 // pred_fallthru
        _
      %s1366 = smul.u32 32, %s21
      %p1367 = scmp.lt.s32.totalorder %s1366, 63
      %s1368 = scalar_select %p1367, %s1366, 63
      %p1369 = scmp.lt.s32.totalorder %s22, 0
      %s1370 = scalar_select %p1369, %s22, 0
      %s1371 = sadd.s32 %s1370, %s1368
      %s1372 = smul.addr %s1371, 8
      %s1373 = scalar_lea.vmem %s5, %s1372
      // Predicated region
      $region49: #{self_attention_forward.8} parent=39 // pred_check
        %p1374 = pneg %p189
      $region50: #{self_attention_forward.8} parent=39 // pred_check_branch
        %1376 = sbr.rel (%p1374) target = $region52
      $region51: #{self_attention_forward.8} parent=39 // pred_region
        %s1377 = smul.u32 32, %s21
      $region52: #{self_attention_forward.8} parent=39 // pred_fallthru
        _
    $region40: #{self_attention_forward.8} parent=5 // pred_fallthru
      _
    %p1378 = scmp.le.s32.totalorder 2, %s11
    // Predicated region
    $region53: #{self_attention_forward.8} parent=5 // pred_check
      %p1379 = pneg %p1378
    $region54: #{self_attention_forward.8} parent=5 // pred_check_branch
      %1381 = sbr.rel (%p1379) target = $region56
    $region55: #{self_attention_forward.8} parent=5 // pred_region
      %s1382 = ssub.s32 %s11, 2
      // Predicated region
      $region57: #{self_attention_forward.8} parent=55 // pred_check
        %p1383 = pneg %p195
      $region58: #{self_attention_forward.8} parent=55 // pred_check_branch
        %1385 = sbr.rel (%p1383) target = $region60
      $region59: #{self_attention_forward.8} parent=55 // pred_region
        %s1386 = smul.u32 32, %s24
        %p1387 = scmp.lt.s32.totalorder %s1386, 63
        %s1388 = scalar_select %p1387, %s1386, 63
        %p1389 = scmp.lt.s32.totalorder %s25, 0
        %s1390 = scalar_select %p1389, %s25, 0
        %s1391 = sadd.s32 %s1390, %s1388
        %s1392 = smul.addr %s1391, 8
        %s1393 = scalar_lea.vmem %s5, %s1392
      $region60: #{self_attention_forward.8} parent=55 // pred_fallthru
        _
    $region56: #{self_attention_forward.8} parent=5 // pred_fallthru
      _
  $region6: #{self_attention_forward.8} parent=0 // loop_footer
    %s15 = sadd.s32 1, %s11
  $region7: #{self_attention_forward.8} parent=0 // loop_footer_branch
    %10 = sbr.rel target = $region3
  $region8: #{self_attention_forward.8} parent=0 // loop_exit
    _

// kernel: self_attention_forward.9
$region0: #{self_attention_forward.9}
  #allocation0 [shape = 'u32[]', space=smem, size = 0x4, offset = 0x4, fixed_abs, tag = 'smem constant byte address 0x4 - core index']
  #allocation1 [shape = 'u32[144,128]{1,0:T(1,128)}', space=vmem, size = 0x12000, scoped, tag = 'internal scratch']
  #allocation2 [shape = 'f32[256,64]{1,0:T(8,128)}', space=vmem, size = 0x20000, scoped, tag = 'scratch operand']
  %s0 = inlined_call_operand.vmem [shape: bf16[512,64], index: 0, kind: input, shape index: {}]
  %s1 = inlined_call_operand.vmem [shape: bf16[64,64], index: 1, kind: input, shape index: {}]
  %s2 = inlined_call_operand.vmem [shape: f32[1,64], index: 2, kind: input, shape index: {}]
  %s3 = inlined_call_operand.vmem [shape: f32[512,64], index: 3, kind: input, shape index: {}]
  %s4 = inlined_call_operand.hbm [shape: f32[512,64], index: 4, kind: output, shape index: {}]
  %s5 = sld [smem:[#allocation0]]
  $region57: #{self_attention_forward.9} parent=0
    _
  %s7 = ssub.s32 1, %s5
  %s8 = scalar_select 0, %s7, %s5
  $region1: #{self_attention_forward.9} parent=0
    #allocation3 [shape = 'u8[262144]{0}', space=vmem, size = 0x40000, scoped, tag = 'output window, operand 0']
    #allocation4 [shape = 's32[2]{0}', space=sflag, size = 0x8, scoped, tag = 'scoped memory for self_attention_forward.9']
    %9 = vsyncpa [#allocation4], 0
    %s10 = scalar_lea.sflag [#allocation4], 1
    %11 = vsyncpa %s10, 0
    loop: start=0, step=1, limit=4
    $region2: #{self_attention_forward.9} parent=1 // loop_pre_header
      _
    $region3: #{self_attention_forward.9} parent=1 // loop_header
      %s13 = sphi 0, %s17
      %p14 = scmp.ge.s32.totalorder %s13, 4
      %s20 = sphi 0, %s39
      %s21 = sphi 0, %s35
      %s22 = sphi 0, %s31
      %s23 = sphi 0, %s20
      %s24 = sphi 0, %s21
      %s25 = sphi 0, %s22
      %s26 = sphi 0, %s23
      %s27 = sphi 0, %s24
      %s28 = sphi 0, %s25
      %s44 = sphi 0, %s46
      %s47 = sphi 0, %s44
      %s48 = sphi 0, %s47
      %s64 = sphi 0, %s48
      %s72 = sphi 0, %s74
      %s75 = sphi 0, %s72
      %s76 = sphi 0, %s75
      %s92 = sphi 0, %s76
      %s98 = sphi 0, %s100
      %s101 = sphi 0, %s98
      %s102 = sphi 0, %s101
      %s118 = sphi 0, %s102
      %s126 = sphi 0, %s128
      %s129 = sphi 0, %s126
      %s130 = sphi 0, %s129
      %s146 = sphi 0, %s130
      %s154 = sphi 0, %s156
      %s157 = sphi 0, %s154
      %s158 = sphi 0, %s157
      %s174 = sphi 0, %s158
    $region4: #{self_attention_forward.9} parent=1 // loop_header_branch
      %16 = sbr.rel (%p14) target = $region8
    $region5: #{self_attention_forward.9} parent=1 // loop_body
      %s18 = ssub.s32 %s13, 1
      %s19 = ssub.s32 %s13, 2
      %s29 = sadd.s32 1, %s22
      %p30 = scmp.ge.s32.totalorder %s29, 1
      %s31 = scalar_select %p30, 0, %s29
      %s32 = sadd.s32 1, %s21
      %s33 = scalar_select %p30, %s32, %s21
      %p34 = scmp.ge.s32.totalorder %s33, 1
      %s35 = scalar_select %p34, 0, %s33
      %s36 = sadd.s32 1, %s20
      %s37 = scalar_select %p34, %s36, %s20
      %p38 = scmp.ge.s32.totalorder %s37, 2
      %s39 = scalar_select %p38, 0, %s37
      %s40 = ssub.s32 %s20, %s39
      %s41 = ssub.s32 %s22, %s31
      %s42 = sor.u32 %s40, %s41
      %p43 = scmp.eq.s32.totalorder %s42, 0
      %s45 = sadd.s32 %s44, 1
      %s46 = scalar_select %p43, %s44, %s45
      %p49 = pneg %p43
      %p50 = scmp.eq.s32.totalorder %s13, 1
      %p51 = por %p49, %p50
      %p52 = scmp.ne.s32.totalorder %s44, %s47
      %p53 = scmp.eq.s32.totalorder %s13, 0
      %p54 = por %p52, %p53
      %p55 = scmp.ne.s32.totalorder %s44, %s47
      %p56 = scmp.eq.s32.totalorder %s18, 1
      %p57 = por %p55, %p56
      %p58 = scmp.ne.s32.totalorder %s47, %s48
      %p59 = scmp.eq.s32.totalorder %s18, 0
      %p60 = por %p58, %p59
      %p61 = scmp.ne.s32.totalorder %s47, %s48
      %p62 = scmp.eq.s32.totalorder %s19, 1
      %p63 = por %p61, %p62
      %p65 = scmp.ne.s32.totalorder %s48, %s64
      %p66 = scmp.eq.s32.totalorder %s19, 0
      %p67 = por %p65, %p66
      %s68 = ssub.s32 %s22, %s31
      %s69 = ssub.s32 %s21, %s35
      %s70 = sor.u32 %s68, %s69
      %p71 = scmp.eq.s32.totalorder %s70, 0
      %s73 = sadd.s32 %s72, 1
      %s74 = scalar_select %p71, %s72, %s73
      %p77 = pneg %p71
      %p78 = scmp.eq.s32.totalorder %s13, 1
      %p79 = por %p77, %p78
      %p80 = scmp.ne.s32.totalorder %s72, %s75
      %p81 = scmp.eq.s32.totalorder %s13, 0
      %p82 = por %p80, %p81
      %p83 = scmp.ne.s32.totalorder %s72, %s75
      %p84 = scmp.eq.s32.totalorder %s18, 1
      %p85 = por %p83, %p84
      %p86 = scmp.ne.s32.totalorder %s75, %s76
      %p87 = scmp.eq.s32.totalorder %s18, 0
      %p88 = por %p86, %p87
      %p89 = scmp.ne.s32.totalorder %s75, %s76
      %p90 = scmp.eq.s32.totalorder %s19, 1
      %p91 = por %p89, %p90
      %p93 = scmp.ne.s32.totalorder %s76, %s92
      %p94 = scmp.eq.s32.totalorder %s19, 0
      %p95 = por %p93, %p94
      %s96 = ssub.s32 %s21, %s35
      %p97 = scmp.eq.s32.totalorder %s96, 0
      %s99 = sadd.s32 %s98, 1
      %s100 = scalar_select %p97, %s98, %s99
      %p103 = pneg %p97
      %p104 = scmp.eq.s32.totalorder %s13, 1
      %p105 = por %p103, %p104
      %p106 = scmp.ne.s32.totalorder %s98, %s101
      %p107 = scmp.eq.s32.totalorder %s13, 0
      %p108 = por %p106, %p107
      %p109 = scmp.ne.s32.totalorder %s98, %s101
      %p110 = scmp.eq.s32.totalorder %s18, 1
      %p111 = por %p109, %p110
      %p112 = scmp.ne.s32.totalorder %s101, %s102
      %p113 = scmp.eq.s32.totalorder %s18, 0
      %p114 = por %p112, %p113
      %p115 = scmp.ne.s32.totalorder %s101, %s102
      %p116 = scmp.eq.s32.totalorder %s19, 1
      %p117 = por %p115, %p116
      %p119 = scmp.ne.s32.totalorder %s102, %s118
      %p120 = scmp.eq.s32.totalorder %s19, 0
      %p121 = por %p119, %p120
      %s122 = ssub.s32 %s20, %s39
      %s123 = ssub.s32 %s21, %s35
      %s124 = sor.u32 %s122, %s123
      %p125 = scmp.eq.s32.totalorder %s124, 0
      %s127 = sadd.s32 %s126, 1
      %s128 = scalar_select %p125, %s126, %s127
      %p131 = pneg %p125
      %p132 = scmp.eq.s32.totalorder %s13, 1
      %p133 = por %p131, %p132
      %p134 = scmp.ne.s32.totalorder %s126, %s129
      %p135 = scmp.eq.s32.totalorder %s13, 0
      %p136 = por %p134, %p135
      %p137 = scmp.ne.s32.totalorder %s126, %s129
      %p138 = scmp.eq.s32.totalorder %s18, 1
      %p139 = por %p137, %p138
      %p140 = scmp.ne.s32.totalorder %s129, %s130
      %p141 = scmp.eq.s32.totalorder %s18, 0
      %p142 = por %p140, %p141
      %p143 = scmp.ne.s32.totalorder %s129, %s130
      %p144 = scmp.eq.s32.totalorder %s19, 1
      %p145 = por %p143, %p144
      %p147 = scmp.ne.s32.totalorder %s130, %s146
      %p148 = scmp.eq.s32.totalorder %s19, 0
      %p149 = por %p147, %p148
      %s150 = ssub.s32 %s20, %s39
      %s151 = ssub.s32 %s21, %s35
      %s152 = sor.u32 %s150, %s151
      %p153 = scmp.eq.s32.totalorder %s152, 0
      %s155 = sadd.s32 %s154, 1
      %s156 = scalar_select %p153, %s154, %s155
      %p159 = pneg %p153
      %p160 = scmp.eq.s32.totalorder %s13, 1
      %p161 = por %p159, %p160
      %p162 = scmp.ne.s32.totalorder %s154, %s157
      %p163 = scmp.eq.s32.totalorder %s13, 0
      %p164 = por %p162, %p163
      %p165 = scmp.ne.s32.totalorder %s154, %s157
      %p166 = scmp.eq.s32.totalorder %s18, 1
      %p167 = por %p165, %p166
      %p168 = scmp.ne.s32.totalorder %s157, %s158
      %p169 = scmp.eq.s32.totalorder %s18, 0
      %p170 = por %p168, %p169
      %p171 = scmp.ne.s32.totalorder %s157, %s158
      %p172 = scmp.eq.s32.totalorder %s19, 1
      %p173 = por %p171, %p172
      %p175 = scmp.ne.s32.totalorder %s158, %s174
      %p176 = scmp.eq.s32.totalorder %s19, 0
      %p177 = por %p175, %p176
      %p178 = scmp.le.s32.totalorder 1, %s13
      %p179 = scmp.lt.s32.totalorder %s13, 3
      %p180 = pnand %p178, %p179
      %p181 = pneg %p180
      // Predicated region
      $region9: #{self_attention_forward.9} parent=5 // pred_check
        _
      $region10: #{self_attention_forward.9} parent=5 // pred_check_branch
        %183 = sbr.rel (%p180) target = $region12
      $region11: #{self_attention_forward.9} parent=5 // pred_region
        %s184 = ssub.s32 %s13, 1
        // Predicated region
        $region13: #{self_attention_forward.9} parent=11 // pred_check
          %p185 = pneg %p88
        $region14: #{self_attention_forward.9} parent=11 // pred_check_branch
          %187 = sbr.rel (%p185) target = $region16
        $region15: #{self_attention_forward.9} parent=11 // pred_region
          %s188 = smul.u32 8, %s25
          %p189 = scmp.lt.s32.totalorder %s188, 7
          %s190 = scalar_select %p189, %s188, 7
          %p191 = scmp.lt.s32.totalorder %s24, 0
          %s192 = scalar_select %p191, %s24, 0
          %s193 = sadd.s32 %s192, %s190
          %s194 = smul.addr %s193, 4
          %s195 = scalar_lea.vmem %s1, %s194
          %s196 = smul.u32 8, %s25
        $region16: #{self_attention_forward.9} parent=11 // pred_fallthru
          _
        // Predicated region
        $region17: #{self_attention_forward.9} parent=11 // pred_check
          %p197 = pneg %p114
        $region18: #{self_attention_forward.9} parent=11 // pred_check_branch
          %199 = sbr.rel (%p197) target = $region20
        $region19: #{self_attention_forward.9} parent=11 // pred_region
          %p200 = scmp.lt.s32.totalorder %s24, 0
          %s201 = scalar_select %p200, %s24, 0
          %s202 = scalar_lea.vmem %s2, %s201
        $region20: #{self_attention_forward.9} parent=11 // pred_fallthru
          _
      $region12: #{self_attention_forward.9} parent=5 // pred_fallthru
        _
      %p203 = scmp.lt.s32.totalorder %s13, 2
      // Predicated region
      $region21: #{self_attention_forward.9} parent=5 // pred_check
        %p204 = pneg %p203
      $region22: #{self_attention_forward.9} parent=5 // pred_check_branch
        %206 = sbr.rel (%p204) target = $region24
      $region23: #{self_attention_forward.9} parent=5 // pred_region
        // Predicated region
        $region25: #{self_attention_forward.9} parent=23 // pred_check
          %p207 = pneg %p54
        $region26: #{self_attention_forward.9} parent=23 // pred_check_branch
          %209 = sbr.rel (%p207) target = $region28
        $region27: #{self_attention_forward.9} parent=23 // pred_region
          %s210 = smul.u32 32, %s20
          %p211 = scmp.lt.s32.totalorder %s210, 63
          %s212 = scalar_select %p211, %s210, 63
          %p213 = scmp.lt.s32.totalorder %s22, 0
          %s214 = scalar_select %p213, %s22, 0
          %s215 = sadd.s32 %s214, %s212
          %s216 = smul.addr %s215, 4
          %s217 = scalar_lea.vmem %s0, %s216
          %s218 = smul.u32 32, %s20
        $region28: #{self_attention_forward.9} parent=23 // pred_fallthru
          _
        // Predicated region
        $region29: #{self_attention_forward.9} parent=23 // pred_check
          %p219 = pneg %p136
        $region30: #{self_attention_forward.9} parent=23 // pred_check_branch
          %221 = sbr.rel (%p219) target = $region32
        $region31: #{self_attention_forward.9} parent=23 // pred_region
          %s222 = smul.u32 32, %s20
          %p223 = scmp.lt.s32.totalorder %s222, 63
          %s224 = scalar_select %p223, %s222, 63
          %p225 = scmp.lt.s32.totalorder %s21, 0
          %s226 = scalar_select %p225, %s21, 0
          %s227 = sadd.s32 %s226, %s224
          %s228 = smul.addr %s227, 8
          %s229 = scalar_lea.vmem %s3, %s228
          %s230 = smul.u32 32, %s20
        $region32: #{self_attention_forward.9} parent=23 // pred_fallthru
          _
      $region24: #{self_attention_forward.9} parent=5 // pred_fallthru
        _
      %p231 = scmp.le.s32.totalorder 1, %s13
      %p232 = scmp.lt.s32.totalorder %s13, 3
      %p233 = pnand %p231, %p232
      %p234 = pneg %p233
      // Predicated region
      $region33: #{self_attention_forward.9} parent=5 // pred_check
        _
      $region34: #{self_attention_forward.9} parent=5 // pred_check_branch
        %236 = sbr.rel (%p233) target = $region36
      $region35: #{self_attention_forward.9} parent=5 // pred_region
        %s237 = ssub.s32 %s13, 1
        %s238 = smul.u32 32, %s23
        %p239 = scmp.lt.s32.totalorder %s238, 63
        %s240 = scalar_select %p239, %s238, 63
        %p241 = scmp.lt.s32.totalorder %s25, 0
        %s242 = scalar_select %p241, %s25, 0
        %s243 = sadd.s32 %s242, %s240
        %s244 = smul.addr %s243, 4
        %s245 = scalar_lea.vmem %s0, %s244
        %p246 = pneg %p60
        %p247 = pneg %p57
        %s248 = smul.u32 8, %s25
        %p249 = scmp.lt.s32.totalorder %s248, 7
        %s250 = scalar_select %p249, %s248, 7
        %p251 = scmp.lt.s32.totalorder %s24, 0
        %s252 = scalar_select %p251, %s24, 0
        %s253 = sadd.s32 %s252, %s250
        %s254 = smul.addr %s253, 4
        %s255 = scalar_lea.vmem %s1, %s254
        %p256 = pneg %p88
        %p257 = pneg %p85
        %p258 = scmp.lt.s32.totalorder %s24, 0
        %s259 = scalar_select %p258, %s24, 0
        %s260 = scalar_lea.vmem %s2, %s259
        %p261 = pneg %p114
        %p262 = pneg %p111
        %s263 = smul.u32 32, %s23
        %p264 = scmp.lt.s32.totalorder %s263, 63
        %s265 = scalar_select %p264, %s263, 63
        %p266 = scmp.lt.s32.totalorder %s24, 0
        %s267 = scalar_select %p266, %s24, 0
        %s268 = sadd.s32 %s267, %s265
        %s269 = smul.addr %s268, 8
        %s270 = scalar_lea.vmem %s3, %s269
        %p271 = pneg %p142
        %p272 = pneg %p139
        %p273 = pneg %p170
        %p274 = pneg %p167
        %s275 = sand.u32 %s157, 1
        %s276 = scalar_lea.sflag [#allocation4], %s275
        %s277 = sand.u32 %s157, 1
        %s278 = smul.addr %s277, 256
        %s279 = scalar_lea.vmem [#allocation3], %s278
        %s280 = smul.u32 32, %s23
        %p281 = scmp.lt.s32.totalorder %s280, 63
        %s282 = scalar_select %p281, %s280, 63
        %p283 = scmp.lt.s32.totalorder %s25, 0
        %s284 = scalar_select %p283, %s25, 0
        %s285 = sadd.s32 %s284, %s282
        %s286 = smul.addr %s285, 4
        %s287 = scalar_lea.vmem %s0, %s286
        %s288 = smul.u32 32, %s23
        %s289 = smul.u32 8, %s25
        %p290 = scmp.lt.s32.totalorder %s289, 7
        %s291 = scalar_select %p290, %s289, 7
        %p292 = scmp.lt.s32.totalorder %s24, 0
        %s293 = scalar_select %p292, %s24, 0
        %s294 = sadd.s32 %s293, %s291
        %s295 = smul.addr %s294, 4
        %s296 = scalar_lea.vmem %s1, %s295
        %s297 = smul.u32 8, %s25
        %p298 = scmp.lt.s32.totalorder %s24, 0
        %s299 = scalar_select %p298, %s24, 0
        %s300 = scalar_lea.vmem %s2, %s299
        %s301 = smul.u32 32, %s23
        %p302 = scmp.lt.s32.totalorder %s301, 63
        %s303 = scalar_select %p302, %s301, 63
        %p304 = scmp.lt.s32.totalorder %s24, 0
        %s305 = scalar_select %p304, %s24, 0
        %s306 = sadd.s32 %s305, %s303
        %s307 = smul.addr %s306, 8
        %s308 = scalar_lea.vmem %s3, %s307
        %s309 = smul.u32 32, %s23
        %s310 = smul.u32 32, %s23
        %p312 = scmp.eq.s32.totalorder %s25, 0
        // Predicated region
        $region37: #{self_attention_forward.9} parent=35 // pred_check
          %p313 = pneg %p312
        $region38: #{self_attention_forward.9} parent=35 // pred_check_branch
          %315 = sbr.rel (%p313) target = $region40
        $region39: #{self_attention_forward.9} parent=35 // pred_region
          %vm316 = vcmask 523264
          %317 = vst.msk [vmem:[#allocation2] sm:$0xff] %vm316, 0.0
          %318 = vst.msk [vmem:[#allocation2 + $0x8] sm:$0xff] %vm316, 0.0
          %319 = vst.msk [vmem:[#allocation2 + $0x10] sm:$0xff] %vm316, 0.0
          %320 = vst.msk [vmem:[#allocation2 + $0x18] sm:$0xff] %vm316, 0.0
          %321 = vst.msk [vmem:[#allocation2 + $0x20] sm:$0xff] %vm316, 0.0
          %322 = vst.msk [vmem:[#allocation2 + $0x28] sm:$0xff] %vm316, 0.0
          %323 = vst.msk [vmem:[#allocation2 + $0x30] sm:$0xff] %vm316, 0.0
          %324 = vst.msk [vmem:[#allocation2 + $0x38] sm:$0xff] %vm316, 0.0
          %325 = vst.msk [vmem:[#allocation2 + $0x40] sm:$0xff] %vm316, 0.0
          %326 = vst.msk [vmem:[#allocation2 + $0x48] sm:$0xff] %vm316, 0.0
          %327 = vst.msk [vmem:[#allocation2 + $0x50] sm:$0xff] %vm316, 0.0
          %328 = vst.msk [vmem:[#allocation2 + $0x58] sm:$0xff] %vm316, 0.0
          %329 = vst.msk [vmem:[#allocation2 + $0x60] sm:$0xff] %vm316, 0.0
          %330 = vst.msk [vmem:[#allocation2 + $0x68] sm:$0xff] %vm316, 0.0
          %331 = vst.msk [vmem:[#allocation2 + $0x70] sm:$0xff] %vm316, 0.0
          %332 = vst.msk [vmem:[#allocation2 + $0x78] sm:$0xff] %vm316, 0.0
          %333 = vst.msk [vmem:[#allocation2 + $0x80] sm:$0xff] %vm316, 0.0
          %334 = vst.msk [vmem:[#allocation2 + $0x88] sm:$0xff] %vm316, 0.0
          %335 = vst.msk [vmem:[#allocation2 + $0x90] sm:$0xff] %vm316, 0.0
          %336 = vst.msk [vmem:[#allocation2 + $0x98] sm:$0xff] %vm316, 0.0
          %337 = vst.msk [vmem:[#allocation2 + $0xa0] sm:$0xff] %vm316, 0.0
          %338 = vst.msk [vmem:[#allocation2 + $0xa8] sm:$0xff] %vm316, 0.0
          %339 = vst.msk [vmem:[#allocation2 + $0xb0] sm:$0xff] %vm316, 0.0
          %340 = vst.msk [vmem:[#allocation2 + $0xb8] sm:$0xff] %vm316, 0.0
          %341 = vst.msk [vmem:[#allocation2 + $0xc0] sm:$0xff] %vm316, 0.0
          %342 = vst.msk [vmem:[#allocation2 + $0xc8] sm:$0xff] %vm316, 0.0
          %343 = vst.msk [vmem:[#allocation2 + $0xd0] sm:$0xff] %vm316, 0.0
          %344 = vst.msk [vmem:[#allocation2 + $0xd8] sm:$0xff] %vm316, 0.0
          %345 = vst.msk [vmem:[#allocation2 + $0xe0] sm:$0xff] %vm316, 0.0
          %346 = vst.msk [vmem:[#allocation2 + $0xe8] sm:$0xff] %vm316, 0.0
          %347 = vst.msk [vmem:[#allocation2 + $0xf0] sm:$0xff] %vm316, 0.0
          %348 = vst.msk [vmem:[#allocation2 + $0xf8] sm:$0xff] %vm316, 0.0
        $region40: #{self_attention_forward.9} parent=35 // pred_fallthru
          _
        %v349 = vld [vmem:[%s287] sm:$0xf]
        %v350 = vld [vmem:[%s287 + $0x4] sm:$0xf]
        %v351 = vld [vmem:[%s287 + $0x8] sm:$0xf]
        %v352 = vld [vmem:[%s287 + $0xc] sm:$0xf]
        %v353 = vld [vmem:[%s287 + $0x10] sm:$0xf]
        %v354 = vld [vmem:[%s287 + $0x14] sm:$0xf]
        %v355 = vld [vmem:[%s287 + $0x18] sm:$0xf]
        %v356 = vld [vmem:[%s287 + $0x1c] sm:$0xf]
        %v357 = vld [vmem:[%s287 + $0x20] sm:$0xf]
        %v358 = vld [vmem:[%s287 + $0x24] sm:$0xf]
        %v359 = vld [vmem:[%s287 + $0x28] sm:$0xf]
        %v360 = vld [vmem:[%s287 + $0x2c] sm:$0xf]
        %v361 = vld [vmem:[%s287 + $0x30] sm:$0xf]
        %v362 = vld [vmem:[%s287 + $0x34] sm:$0xf]
        %v363 = vld [vmem:[%s287 + $0x38] sm:$0xf]
        %v364 = vld [vmem:[%s287 + $0x3c] sm:$0xf]
        %v365 = vld [vmem:[%s287 + $0x40] sm:$0xf]
        %v366 = vld [vmem:[%s287 + $0x44] sm:$0xf]
        %v367 = vld [vmem:[%s287 + $0x48] sm:$0xf]
        %v368 = vld [vmem:[%s287 + $0x4c] sm:$0xf]
        %v369 = vld [vmem:[%s287 + $0x50] sm:$0xf]
        %v370 = vld [vmem:[%s287 + $0x54] sm:$0xf]
        %v371 = vld [vmem:[%s287 + $0x58] sm:$0xf]
        %v372 = vld [vmem:[%s287 + $0x5c] sm:$0xf]
        %v373 = vld [vmem:[%s287 + $0x60] sm:$0xf]
        %v374 = vld [vmem:[%s287 + $0x64] sm:$0xf]
        %v375 = vld [vmem:[%s287 + $0x68] sm:$0xf]
        %v376 = vld [vmem:[%s287 + $0x6c] sm:$0xf]
        %v377 = vld [vmem:[%s287 + $0x70] sm:$0xf]
        %v378 = vld [vmem:[%s287 + $0x74] sm:$0xf]
        %v379 = vld [vmem:[%s287 + $0x78] sm:$0xf]
        %v380 = vld [vmem:[%s287 + $0x7c] sm:$0xf]
        %v381 = vld [vmem:[#allocation2] sm:$0xff]
        %v382 = vld [vmem:[#allocation2 + $0x8] sm:$0xff]
        %v383 = vld [vmem:[#allocation2 + $0x10] sm:$0xff]
        %v384 = vld [vmem:[#allocation2 + $0x18] sm:$0xff]
        %v385 = vld [vmem:[#allocation2 + $0x20] sm:$0xff]
        %v386 = vld [vmem:[#allocation2 + $0x28] sm:$0xff]
        %v387 = vld [vmem:[#allocation2 + $0x30] sm:$0xff]
        %v388 = vld [vmem:[#allocation2 + $0x38] sm:$0xff]
        %v389 = vld [vmem:[#allocation2 + $0x40] sm:$0xff]
        %v390 = vld [vmem:[#allocation2 + $0x48] sm:$0xff]
        %v391 = vld [vmem:[#allocation2 + $0x50] sm:$0xff]
        %v392 = vld [vmem:[#allocation2 + $0x58] sm:$0xff]
        %v393 = vld [vmem:[#allocation2 + $0x60] sm:$0xff]
        %v394 = vld [vmem:[#allocation2 + $0x68] sm:$0xff]
        %v395 = vld [vmem:[#allocation2 + $0x70] sm:$0xff]
        %v396 = vld [vmem:[#allocation2 + $0x78] sm:$0xff]
        %v397 = vld [vmem:[#allocation2 + $0x80] sm:$0xff]
        %v398 = vld [vmem:[#allocation2 + $0x88] sm:$0xff]
        %v399 = vld [vmem:[#allocation2 + $0x90] sm:$0xff]
        %v400 = vld [vmem:[#allocation2 + $0x98] sm:$0xff]
        %v401 = vld [vmem:[#allocation2 + $0xa0] sm:$0xff]
        %v402 = vld [vmem:[#allocation2 + $0xa8] sm:$0xff]
        %v403 = vld [vmem:[#allocation2 + $0xb0] sm:$0xff]
        %v404 = vld [vmem:[#allocation2 + $0xb8] sm:$0xff]
        %v405 = vld [vmem:[#allocation2 + $0xc0] sm:$0xff]
        %v406 = vld [vmem:[#allocation2 + $0xc8] sm:$0xff]
        %v407 = vld [vmem:[#allocation2 + $0xd0] sm:$0xff]
        %v408 = vld [vmem:[#allocation2 + $0xd8] sm:$0xff]
        %v409 = vld [vmem:[#allocation2 + $0xe0] sm:$0xff]
        %v410 = vld [vmem:[#allocation2 + $0xe8] sm:$0xff]
        %v411 = vld [vmem:[#allocation2 + $0xf0] sm:$0xff]
        %v412 = vld [vmem:[#allocation2 + $0xf8] sm:$0xff]
        %v413 = vld [vmem:[%s296] sm:$0xf]
        %v414 = vld [vmem:[%s296 + $0x4] sm:$0xf]
        %v415 = vld [vmem:[%s296 + $0x8] sm:$0xf]
        %v416 = vld [vmem:[%s296 + $0xc] sm:$0xf]
        %v417 = vld [vmem:[%s296 + $0x10] sm:$0xf]
        %v418 = vld [vmem:[%s296 + $0x14] sm:$0xf]
        %v419 = vld [vmem:[%s296 + $0x18] sm:$0xf]
        %v420 = vld [vmem:[%s296 + $0x1c] sm:$0xf]
        %v453 = vunpack.c.l.b16 %v349
        %v454 = vunpack.c.l.b16 %v350
        %v455 = vunpack.c.l.b16 %v351
        %v456 = vunpack.c.l.b16 %v352
        %v457 = vunpack.c.l.b16 %v353
        %v458 = vunpack.c.l.b16 %v354
        %v459 = vunpack.c.l.b16 %v355
        %v460 = vunpack.c.l.b16 %v356
        %v461 = vunpack.c.l.b16 %v357
        %v462 = vunpack.c.l.b16 %v358
        %v463 = vunpack.c.l.b16 %v359
        %v464 = vunpack.c.l.b16 %v360
        %v465 = vunpack.c.l.b16 %v361
        %v466 = vunpack.c.l.b16 %v362
        %v467 = vunpack.c.l.b16 %v363
        %v468 = vunpack.c.l.b16 %v364
        %v469 = vunpack.c.l.b16 %v365
        %v470 = vunpack.c.l.b16 %v366
        %v471 = vunpack.c.l.b16 %v367
        %v472 = vunpack.c.l.b16 %v368
        %v473 = vunpack.c.l.b16 %v369
        %v474 = vunpack.c.l.b16 %v370
        %v475 = vunpack.c.l.b16 %v371
        %v476 = vunpack.c.l.b16 %v372
        %v477 = vunpack.c.l.b16 %v373
        %v478 = vunpack.c.l.b16 %v374
        %v479 = vunpack.c.l.b16 %v375
        %v480 = vunpack.c.l.b16 %v376
        %v481 = vunpack.c.l.b16 %v377
        %v482 = vunpack.c.l.b16 %v378
        %v483 = vunpack.c.l.b16 %v379
        %v484 = vunpack.c.l.b16 %v380
        %v485 = vpack.c.b16 %v454, %v453
        %v486 = vpack.c.b16 %v456, %v455
        %v487 = vpack.c.b16 %v458, %v457
        %v488 = vpack.c.b16 %v460, %v459
        %v489 = vpack.c.b16 %v462, %v461
        %v490 = vpack.c.b16 %v464, %v463
        %v491 = vpack.c.b16 %v466, %v465
        %v492 = vpack.c.b16 %v468, %v467
        %v493 = vpack.c.b16 %v470, %v469
        %v494 = vpack.c.b16 %v472, %v471
        %v495 = vpack.c.b16 %v474, %v473
        %v496 = vpack.c.b16 %v476, %v475
        %v497 = vpack.c.b16 %v478, %v477
        %v498 = vpack.c.b16 %v480, %v479
        %v499 = vpack.c.b16 %v482, %v481
        %v500 = vpack.c.b16 %v484, %v483
        %v509 = vunpack.c.l.b16 %v413
        %v510 = vunpack.c.l.b16 %v414
        %v511 = vunpack.c.l.b16 %v415
        %v512 = vunpack.c.l.b16 %v416
        %v513 = vunpack.c.l.b16 %v417
        %v514 = vunpack.c.l.b16 %v418
        %v515 = vunpack.c.l.b16 %v419
        %v516 = vunpack.c.l.b16 %v420
        %v517 = vpack.c.b16 %v510, %v509
        %v518 = vpack.c.b16 %v512, %v511
        %v519 = vpack.c.b16 %v514, %v513
        %v520 = vpack.c.b16 %v516, %v515
        %vm525 = vcmask 523264
        %v527 = vsel %vm525, %v485, 0
        %v530 = vsel %vm525, %v486, 0
        %v533 = vsel %vm525, %v487, 0
        %v536 = vsel %vm525, %v488, 0
        %v539 = vsel %vm525, %v489, 0
        %v542 = vsel %vm525, %v490, 0
        %v545 = vsel %vm525, %v491, 0
        %v548 = vsel %vm525, %v492, 0
        %v551 = vsel %vm525, %v493, 0
        %v554 = vsel %vm525, %v494, 0
        %v557 = vsel %vm525, %v495, 0
        %v560 = vsel %vm525, %v496, 0
        %v563 = vsel %vm525, %v497, 0
        %v566 = vsel %vm525, %v498, 0
        %v569 = vsel %vm525, %v499, 0
        %v572 = vsel %vm525, %v500, 0
        %574 = vmatprep.subr.bf16.mxu0 0
        %575 = vmatpush1.bf16.msra.mxu0 %v517
        %576 = vmatprep.subr.bf16.mxu0 0
        %577 = vmatpush1.bf16.msra.mxu0 %v518
        %578 = vmatprep.subr.bf16.mxu0 0
        %579 = vmatpush1.bf16.msra.mxu0 %v519
        %580 = vmatprep.subr.bf16.mxu0 0
        %581 = vmatpush1.bf16.msra.mxu0 %v520
        %582 = vmatprep.subr.bf16.mxu0 0
        %583 = vmatpush1.bf16.msra.mxu0 0
        %584 = vmatprep.subr.bf16.mxu0 0
        %585 = vmatpush1.bf16.msra.mxu0 0
        %586 = vmatprep.subr.bf16.mxu0 0
        %587 = vmatpush1.bf16.msra.mxu0 0
        %588 = vmatprep.subr.bf16.mxu0 0
        %589 = vmatpush1.bf16.msra.mxu0 0
        %590 = vmatprep.subr.bf16.mxu0 0
        %591 = vmatpush1.bf16.msra.mxu0 0
        %592 = vmatprep.subr.bf16.mxu0 0
        %593 = vmatpush1.bf16.msra.mxu0 0
        %594 = vmatprep.subr.bf16.mxu0 0
        %595 = vmatpush1.bf16.msra.mxu0 0
        %596 = vmatprep.subr.bf16.mxu0 0
        %597 = vmatpush1.bf16.msra.mxu0 0
        %598 = vmatprep.subr.bf16.mxu0 0
        %599 = vmatpush1.bf16.msra.mxu0 0
        %600 = vmatprep.subr.bf16.mxu0 0
        %601 = vmatpush1.bf16.msra.mxu0 0
        %602 = vmatprep.subr.bf16.mxu0 0
        %603 = vmatpush1.bf16.msra.mxu0 0
        %604 = vmatprep.subr.bf16.mxu0 0
        %605 = vmatpush1.bf16.msra.mxu0 0
        %606 = vmatprep.mubr.bf16.mxu0 0
        %607 = vmatmul.mubr.bf16.gmra.mrb[0].mxu0 %v527
        %v608 = vpop.f32.mrb[0].mxu0
        %v609 = vadd.f32 0.0, %v608
        %v610 = vpop.f32.mrb[0].mxu0
        %v611 = vpop.f32.mrb[0].mxu0
        %v612 = vadd.f32 0.0, %v611
        %v613 = vpop.f32.mrb[0].mxu0
        %614 = vmatprep.mubr.bf16.mxu0 0
        %615 = vmatmul.mubr.bf16.gmra.mrb[0].mxu0 %v530
        %v616 = vpop.f32.mrb[0].mxu0
        %v617 = vadd.f32 0.0, %v616
        %v618 = vpop.f32.mrb[0].mxu0
        %v619 = vpop.f32.mrb[0].mxu0
        %v620 = vadd.f32 0.0, %v619
        %v621 = vpop.f32.mrb[0].mxu0
        %622 = vmatprep.mubr.bf16.mxu0 0
        %623 = vmatmul.mubr.bf16.gmra.mrb[0].mxu0 %v533
        %v624 = vpop.f32.mrb[0].mxu0
        %v625 = vadd.f32 0.0, %v624
        %v626 = vpop.f32.mrb[0].mxu0
        %v627 = vpop.f32.mrb[0].mxu0
        %v628 = vadd.f32 0.0, %v627
        %v629 = vpop.f32.mrb[0].mxu0
        %630 = vmatprep.mubr.bf16.mxu0 0
        %631 = vmatmul.mubr.bf16.gmra.mrb[0].mxu0 %v536
        %v632 = vpop.f32.mrb[0].mxu0
        %v633 = vadd.f32 0.0, %v632
        %v634 = vpop.f32.mrb[0].mxu0
        %v635 = vpop.f32.mrb[0].mxu0
        %v636 = vadd.f32 0.0, %v635
        %v637 = vpop.f32.mrb[0].mxu0
        %638 = vmatprep.mubr.bf16.mxu0 0
        %639 = vmatmul.mubr.bf16.gmra.mrb[0].mxu0 %v539
        %v640 = vpop.f32.mrb[0].mxu0
        %v641 = vadd.f32 0.0, %v640
        %v642 = vpop.f32.mrb[0].mxu0
        %v643 = vpop.f32.mrb[0].mxu0
        %v644 = vadd.f32 0.0, %v643
        %v645 = vpop.f32.mrb[0].mxu0
        %646 = vmatprep.mubr.bf16.mxu0 0
        %647 = vmatmul.mubr.bf16.gmra.mrb[0].mxu0 %v542
        %v648 = vpop.f32.mrb[0].mxu0
        %v649 = vadd.f32 0.0, %v648
        %v650 = vpop.f32.mrb[0].mxu0
        %v651 = vpop.f32.mrb[0].mxu0
        %v652 = vadd.f32 0.0, %v651
        %v653 = vpop.f32.mrb[0].mxu0
        %654 = vmatprep.mubr.bf16.mxu0 0
        %655 = vmatmul.mubr.bf16.gmra.mrb[0].mxu0 %v545
        %v656 = vpop.f32.mrb[0].mxu0
        %v657 = vadd.f32 0.0, %v656
        %v658 = vpop.f32.mrb[0].mxu0
        %v659 = vpop.f32.mrb[0].mxu0
        %v660 = vadd.f32 0.0, %v659
        %v661 = vpop.f32.mrb[0].mxu0
        %662 = vmatprep.mubr.bf16.mxu0 0
        %663 = vmatmul.mubr.bf16.gmra.mrb[0].mxu0 %v548
        %v664 = vpop.f32.mrb[0].mxu0
        %v665 = vadd.f32 0.0, %v664
        %v666 = vpop.f32.mrb[0].mxu0
        %v667 = vpop.f32.mrb[0].mxu0
        %v668 = vadd.f32 0.0, %v667
        %v669 = vpop.f32.mrb[0].mxu0
        %670 = vmatprep.mubr.bf16.mxu0 0
        %671 = vmatmul.mubr.bf16.gmra.mrb[0].mxu0 %v551
        %v672 = vpop.f32.mrb[0].mxu0
        %v673 = vadd.f32 0.0, %v672
        %v674 = vpop.f32.mrb[0].mxu0
        %v675 = vpop.f32.mrb[0].mxu0
        %v676 = vadd.f32 0.0, %v675
        %v677 = vpop.f32.mrb[0].mxu0
        %678 = vmatprep.mubr.bf16.mxu0 0
        %679 = vmatmul.mubr.bf16.gmra.mrb[0].mxu0 %v554
        %v680 = vpop.f32.mrb[0].mxu0
        %v681 = vadd.f32 0.0, %v680
        %v682 = vpop.f32.mrb[0].mxu0
        %v683 = vpop.f32.mrb[0].mxu0
        %v684 = vadd.f32 0.0, %v683
        %v685 = vpop.f32.mrb[0].mxu0
        %686 = vmatprep.mubr.bf16.mxu0 0
        %687 = vmatmul.mubr.bf16.gmra.mrb[0].mxu0 %v557
        %v688 = vpop.f32.mrb[0].mxu0
        %v689 = vadd.f32 0.0, %v688
        %v690 = vpop.f32.mrb[0].mxu0
        %v691 = vpop.f32.mrb[0].mxu0
        %v692 = vadd.f32 0.0, %v691
        %v693 = vpop.f32.mrb[0].mxu0
        %694 = vmatprep.mubr.bf16.mxu0 0
        %695 = vmatmul.mubr.bf16.gmra.mrb[0].mxu0 %v560
        %v696 = vpop.f32.mrb[0].mxu0
        %v697 = vadd.f32 0.0, %v696
        %v698 = vpop.f32.mrb[0].mxu0
        %v699 = vpop.f32.mrb[0].mxu0
        %v700 = vadd.f32 0.0, %v699
        %v701 = vpop.f32.mrb[0].mxu0
        %702 = vmatprep.mubr.bf16.mxu0 0
        %703 = vmatmul.mubr.bf16.gmra.mrb[0].mxu0 %v563
        %v704 = vpop.f32.mrb[0].mxu0
        %v705 = vadd.f32 0.0, %v704
        %v706 = vpop.f32.mrb[0].mxu0
        %v707 = vpop.f32.mrb[0].mxu0
        %v708 = vadd.f32 0.0, %v707
        %v709 = vpop.f32.mrb[0].mxu0
        %710 = vmatprep.mubr.bf16.mxu0 0
        %711 = vmatmul.mubr.bf16.gmra.mrb[0].mxu0 %v566
        %v712 = vpop.f32.mrb[0].mxu0
        %v713 = vadd.f32 0.0, %v712
        %v714 = vpop.f32.mrb[0].mxu0
        %v715 = vpop.f32.mrb[0].mxu0
        %v716 = vadd.f32 0.0, %v715
        %v717 = vpop.f32.mrb[0].mxu0
        %718 = vmatprep.mubr.bf16.mxu0 0
        %719 = vmatmul.mubr.bf16.gmra.mrb[0].mxu0 %v569
        %v720 = vpop.f32.mrb[0].mxu0
        %v721 = vadd.f32 0.0, %v720
        %v722 = vpop.f32.mrb[0].mxu0
        %v723 = vpop.f32.mrb[0].mxu0
        %v724 = vadd.f32 0.0, %v723
        %v725 = vpop.f32.mrb[0].mxu0
        %726 = vmatprep.mubr.bf16.mxu0 0
        %727 = vmatmul.mubr.bf16.gmra.mrb[0].mxu0 %v572
        %v728 = vpop.f32.mrb[0].mxu0
        %v729 = vadd.f32 0.0, %v728
        %v730 = vpop.f32.mrb[0].mxu0
        %v731 = vpop.f32.mrb[0].mxu0
        %v732 = vadd.f32 0.0, %v731
        %v733 = vpop.f32.mrb[0].mxu0
        %734 = vdwg.mxu0
        %v735 = vadd.f32 %v381, %v609
        %v736 = vadd.f32 %v382, %v612
        %v737 = vadd.f32 %v383, %v617
        %v738 = vadd.f32 %v384, %v620
        %v739 = vadd.f32 %v385, %v625
        %v740 = vadd.f32 %v386, %v628
        %v741 = vadd.f32 %v387, %v633
        %v742 = vadd.f32 %v388, %v636
        %v743 = vadd.f32 %v389, %v641
        %v744 = vadd.f32 %v390, %v644
        %v745 = vadd.f32 %v391, %v649
        %v746 = vadd.f32 %v392, %v652
        %v747 = vadd.f32 %v393, %v657
        %v748 = vadd.f32 %v394, %v660
        %v749 = vadd.f32 %v395, %v665
        %v750 = vadd.f32 %v396, %v668
        %v751 = vadd.f32 %v397, %v673
        %v752 = vadd.f32 %v398, %v676
        %v753 = vadd.f32 %v399, %v681
        %v754 = vadd.f32 %v400, %v684
        %v755 = vadd.f32 %v401, %v689
        %v756 = vadd.f32 %v402, %v692
        %v757 = vadd.f32 %v403, %v697
        %v758 = vadd.f32 %v404, %v700
        %v759 = vadd.f32 %v405, %v705
        %v760 = vadd.f32 %v406, %v708
        %v761 = vadd.f32 %v407, %v713
        %v762 = vadd.f32 %v408, %v716
        %v763 = vadd.f32 %v409, %v721
        %v764 = vadd.f32 %v410, %v724
        %v765 = vadd.f32 %v411, %v729
        %v766 = vadd.f32 %v412, %v732
        %767 = vst.msk [vmem:[#allocation2] sm:$0xff] %vm525, %v735
        %768 = vst.msk [vmem:[#allocation2 + $0x8] sm:$0xff] %vm525, %v736
        %769 = vst.msk [vmem:[#allocation2 + $0x10] sm:$0xff] %vm525, %v737
        %770 = vst.msk [vmem:[#allocation2 + $0x18] sm:$0xff] %vm525, %v738
        %771 = vst.msk [vmem:[#allocation2 + $0x20] sm:$0xff] %vm525, %v739
        %772 = vst.msk [vmem:[#allocation2 + $0x28] sm:$0xff] %vm525, %v740
        %773 = vst.msk [vmem:[#allocation2 + $0x30] sm:$0xff] %vm525, %v741
        %774 = vst.msk [vmem:[#allocation2 + $0x38] sm:$0xff] %vm525, %v742
        %775 = vst.msk [vmem:[#allocation2 + $0x40] sm:$0xff] %vm525, %v743
        %776 = vst.msk [vmem:[#allocation2 + $0x48] sm:$0xff] %vm525, %v744
        %777 = vst.msk [vmem:[#allocation2 + $0x50] sm:$0xff] %vm525, %v745
        %778 = vst.msk [vmem:[#allocation2 + $0x58] sm:$0xff] %vm525, %v746
        %779 = vst.msk [vmem:[#allocation2 + $0x60] sm:$0xff] %vm525, %v747
        %780 = vst.msk [vmem:[#allocation2 + $0x68] sm:$0xff] %vm525, %v748
        %781 = vst.msk [vmem:[#allocation2 + $0x70] sm:$0xff] %vm525, %v749
        %782 = vst.msk [vmem:[#allocation2 + $0x78] sm:$0xff] %vm525, %v750
        %783 = vst.msk [vmem:[#allocation2 + $0x80] sm:$0xff] %vm525, %v751
        %784 = vst.msk [vmem:[#allocation2 + $0x88] sm:$0xff] %vm525, %v752
        %785 = vst.msk [vmem:[#allocation2 + $0x90] sm:$0xff] %vm525, %v753
        %786 = vst.msk [vmem:[#allocation2 + $0x98] sm:$0xff] %vm525, %v754
        %787 = vst.msk [vmem:[#allocation2 + $0xa0] sm:$0xff] %vm525, %v755
        %788 = vst.msk [vmem:[#allocation2 + $0xa8] sm:$0xff] %vm525, %v756
        %789 = vst.msk [vmem:[#allocation2 + $0xb0] sm:$0xff] %vm525, %v757
        %790 = vst.msk [vmem:[#allocation2 + $0xb8] sm:$0xff] %vm525, %v758
        %791 = vst.msk [vmem:[#allocation2 + $0xc0] sm:$0xff] %vm525, %v759
        %792 = vst.msk [vmem:[#allocation2 + $0xc8] sm:$0xff] %vm525, %v760
        %793 = vst.msk [vmem:[#allocation2 + $0xd0] sm:$0xff] %vm525, %v761
        %794 = vst.msk [vmem:[#allocation2 + $0xd8] sm:$0xff] %vm525, %v762
        %795 = vst.msk [vmem:[#allocation2 + $0xe0] sm:$0xff] %vm525, %v763
        %796 = vst.msk [vmem:[#allocation2 + $0xe8] sm:$0xff] %vm525, %v764
        %797 = vst.msk [vmem:[#allocation2 + $0xf0] sm:$0xff] %vm525, %v765
        %798 = vst.msk [vmem:[#allocation2 + $0xf8] sm:$0xff] %vm525, %v766
        // Predicated region
        $region41: #{self_attention_forward.9} parent=35 // pred_check
          %p799 = pneg %p312
        $region42: #{self_attention_forward.9} parent=35 // pred_check_branch
          %801 = sbr.rel (%p799) target = $region44
        $region43: #{self_attention_forward.9} parent=35 // pred_region
          %v802 = vld [vmem:[#allocation2] sm:$0xff]
          %v803 = vld [vmem:[#allocation2 + $0x8] sm:$0xff]
          %v804 = vld [vmem:[#allocation2 + $0x10] sm:$0xff]
          %v805 = vld [vmem:[#allocation2 + $0x18] sm:$0xff]
          %v806 = vld [vmem:[#allocation2 + $0x20] sm:$0xff]
          %v807 = vld [vmem:[#allocation2 + $0x28] sm:$0xff]
          %v808 = vld [vmem:[#allocation2 + $0x30] sm:$0xff]
          %v809 = vld [vmem:[#allocation2 + $0x38] sm:$0xff]
          %v810 = vld [vmem:[#allocation2 + $0x40] sm:$0xff]
          %v811 = vld [vmem:[#allocation2 + $0x48] sm:$0xff]
          %v812 = vld [vmem:[#allocation2 + $0x50] sm:$0xff]
          %v813 = vld [vmem:[#allocation2 + $0x58] sm:$0xff]
          %v814 = vld [vmem:[#allocation2 + $0x60] sm:$0xff]
          %v815 = vld [vmem:[#allocation2 + $0x68] sm:$0xff]
          %v816 = vld [vmem:[#allocation2 + $0x70] sm:$0xff]
          %v817 = vld [vmem:[#allocation2 + $0x78] sm:$0xff]
          %v818 = vld [vmem:[#allocation2 + $0x80] sm:$0xff]
          %v819 = vld [vmem:[#allocation2 + $0x88] sm:$0xff]
          %v820 = vld [vmem:[#allocation2 + $0x90] sm:$0xff]
          %v821 = vld [vmem:[#allocation2 + $0x98] sm:$0xff]
          %v822 = vld [vmem:[#allocation2 + $0xa0] sm:$0xff]
          %v823 = vld [vmem:[#allocation2 + $0xa8] sm:$0xff]
          %v824 = vld [vmem:[#allocation2 + $0xb0] sm:$0xff]
          %v825 = vld [vmem:[#allocation2 + $0xb8] sm:$0xff]
          %v826 = vld [vmem:[#allocation2 + $0xc0] sm:$0xff]
          %v827 = vld [vmem:[#allocation2 + $0xc8] sm:$0xff]
          %v828 = vld [vmem:[#allocation2 + $0xd0] sm:$0xff]
          %v829 = vld [vmem:[#allocation2 + $0xd8] sm:$0xff]
          %v830 = vld [vmem:[#allocation2 + $0xe0] sm:$0xff]
          %v831 = vld [vmem:[#allocation2 + $0xe8] sm:$0xff]
          %v832 = vld [vmem:[#allocation2 + $0xf0] sm:$0xff]
          %v833 = vld [vmem:[#allocation2 + $0xf8] sm:$0xff]
          %v834 = vld [vmem:[%s300] sm:$0x1]
          %v836 = vlaneseq
          %v837 = vshrl.u32 %v836, 7
          %v838 = vsub.s32 0, %v837
          %v839 = vrot.slane %v834, %v838
          %v841 = vadd.f32 %v802, %v839
          %v842 = vadd.f32 %v803, %v839
          %v843 = vadd.f32 %v804, %v839
          %v844 = vadd.f32 %v805, %v839
          %v845 = vadd.f32 %v806, %v839
          %v846 = vadd.f32 %v807, %v839
          %v847 = vadd.f32 %v808, %v839
          %v848 = vadd.f32 %v809, %v839
          %v849 = vadd.f32 %v810, %v839
          %v850 = vadd.f32 %v811, %v839
          %v851 = vadd.f32 %v812, %v839
          %v852 = vadd.f32 %v813, %v839
          %v853 = vadd.f32 %v814, %v839
          %v854 = vadd.f32 %v815, %v839
          %v855 = vadd.f32 %v816, %v839
          %v856 = vadd.f32 %v817, %v839
          %v857 = vadd.f32 %v818, %v839
          %v858 = vadd.f32 %v819, %v839
          %v859 = vadd.f32 %v820, %v839
          %v860 = vadd.f32 %v821, %v839
          %v861 = vadd.f32 %v822, %v839
          %v862 = vadd.f32 %v823, %v839
          %v863 = vadd.f32 %v824, %v839
          %v864 = vadd.f32 %v825, %v839
          %v865 = vadd.f32 %v826, %v839
          %v866 = vadd.f32 %v827, %v839
          %v867 = vadd.f32 %v828, %v839
          %v868 = vadd.f32 %v829, %v839
          %v869 = vadd.f32 %v830, %v839
          %v870 = vadd.f32 %v831, %v839
          %v871 = vadd.f32 %v832, %v839
          %v872 = vadd.f32 %v833, %v839
          %v873 = vld [vmem:[%s308] sm:$0xff]
          %v874 = vld [vmem:[%s308 + $0x8] sm:$0xff]
          %v875 = vld [vmem:[%s308 + $0x10] sm:$0xff]
          %v876 = vld [vmem:[%s308 + $0x18] sm:$0xff]
          %v877 = vld [vmem:[%s308 + $0x20] sm:$0xff]
          %v878 = vld [vmem:[%s308 + $0x28] sm:$0xff]
          %v879 = vld [vmem:[%s308 + $0x30] sm:$0xff]
          %v880 = vld [vmem:[%s308 + $0x38] sm:$0xff]
          %v881 = vld [vmem:[%s308 + $0x40] sm:$0xff]
          %v882 = vld [vmem:[%s308 + $0x48] sm:$0xff]
          %v883 = vld [vmem:[%s308 + $0x50] sm:$0xff]
          %v884 = vld [vmem:[%s308 + $0x58] sm:$0xff]
          %v885 = vld [vmem:[%s308 + $0x60] sm:$0xff]
          %v886 = vld [vmem:[%s308 + $0x68] sm:$0xff]
          %v887 = vld [vmem:[%s308 + $0x70] sm:$0xff]
          %v888 = vld [vmem:[%s308 + $0x78] sm:$0xff]
          %v889 = vld [vmem:[%s308 + $0x80] sm:$0xff]
          %v890 = vld [vmem:[%s308 + $0x88] sm:$0xff]
          %v891 = vld [vmem:[%s308 + $0x90] sm:$0xff]
          %v892 = vld [vmem:[%s308 + $0x98] sm:$0xff]
          %v893 = vld [vmem:[%s308 + $0xa0] sm:$0xff]
          %v894 = vld [vmem:[%s308 + $0xa8] sm:$0xff]
          %v895 = vld [vmem:[%s308 + $0xb0] sm:$0xff]
          %v896 = vld [vmem:[%s308 + $0xb8] sm:$0xff]
          %v897 = vld [vmem:[%s308 + $0xc0] sm:$0xff]
          %v898 = vld [vmem:[%s308 + $0xc8] sm:$0xff]
          %v899 = vld [vmem:[%s308 + $0xd0] sm:$0xff]
          %v900 = vld [vmem:[%s308 + $0xd8] sm:$0xff]
          %v901 = vld [vmem:[%s308 + $0xe0] sm:$0xff]
          %v902 = vld [vmem:[%s308 + $0xe8] sm:$0xff]
          %v903 = vld [vmem:[%s308 + $0xf0] sm:$0xff]
          %v904 = vld [vmem:[%s308 + $0xf8] sm:$0xff]
          %v905 = vadd.f32 %v841, %v873
          %v906 = vadd.f32 %v842, %v874
          %v907 = vadd.f32 %v843, %v875
          %v908 = vadd.f32 %v844, %v876
          %v909 = vadd.f32 %v845, %v877
          %v910 = vadd.f32 %v846, %v878
          %v911 = vadd.f32 %v847, %v879
          %v912 = vadd.f32 %v848, %v880
          %v913 = vadd.f32 %v849, %v881
          %v914 = vadd.f32 %v850, %v882
          %v915 = vadd.f32 %v851, %v883
          %v916 = vadd.f32 %v852, %v884
          %v917 = vadd.f32 %v853, %v885
          %v918 = vadd.f32 %v854, %v886
          %v919 = vadd.f32 %v855, %v887
          %v920 = vadd.f32 %v856, %v888
          %v921 = vadd.f32 %v857, %v889
          %v922 = vadd.f32 %v858, %v890
          %v923 = vadd.f32 %v859, %v891
          %v924 = vadd.f32 %v860, %v892
          %v925 = vadd.f32 %v861, %v893
          %v926 = vadd.f32 %v862, %v894
          %v927 = vadd.f32 %v863, %v895
          %v928 = vadd.f32 %v864, %v896
          %v929 = vadd.f32 %v865, %v897
          %v930 = vadd.f32 %v866, %v898
          %v931 = vadd.f32 %v867, %v899
          %v932 = vadd.f32 %v868, %v900
          %v933 = vadd.f32 %v869, %v901
          %v934 = vadd.f32 %v870, %v902
          %v935 = vadd.f32 %v871, %v903
          %v936 = vadd.f32 %v872, %v904
          %937 = vst.msk [vmem:[%s279] sm:$0xff] %vm525, %v905
          %938 = vst.msk [vmem:[%s279 + $0x8] sm:$0xff] %vm525, %v906
          %939 = vst.msk [vmem:[%s279 + $0x10] sm:$0xff] %vm525, %v907
          %940 = vst.msk [vmem:[%s279 + $0x18] sm:$0xff] %vm525, %v908
          %941 = vst.msk [vmem:[%s279 + $0x20] sm:$0xff] %vm525, %v909
          %942 = vst.msk [vmem:[%s279 + $0x28] sm:$0xff] %vm525, %v910
          %943 = vst.msk [vmem:[%s279 + $0x30] sm:$0xff] %vm525, %v911
          %944 = vst.msk [vmem:[%s279 + $0x38] sm:$0xff] %vm525, %v912
          %945 = vst.msk [vmem:[%s279 + $0x40] sm:$0xff] %vm525, %v913
          %946 = vst.msk [vmem:[%s279 + $0x48] sm:$0xff] %vm525, %v914
          %947 = vst.msk [vmem:[%s279 + $0x50] sm:$0xff] %vm525, %v915
          %948 = vst.msk [vmem:[%s279 + $0x58] sm:$0xff] %vm525, %v916
          %949 = vst.msk [vmem:[%s279 + $0x60] sm:$0xff] %vm525, %v917
          %950 = vst.msk [vmem:[%s279 + $0x68] sm:$0xff] %vm525, %v918
          %951 = vst.msk [vmem:[%s279 + $0x70] sm:$0xff] %vm525, %v919
          %952 = vst.msk [vmem:[%s279 + $0x78] sm:$0xff] %vm525, %v920
          %953 = vst.msk [vmem:[%s279 + $0x80] sm:$0xff] %vm525, %v921
          %954 = vst.msk [vmem:[%s279 + $0x88] sm:$0xff] %vm525, %v922
          %955 = vst.msk [vmem:[%s279 + $0x90] sm:$0xff] %vm525, %v923
          %956 = vst.msk [vmem:[%s279 + $0x98] sm:$0xff] %vm525, %v924
          %957 = vst.msk [vmem:[%s279 + $0xa0] sm:$0xff] %vm525, %v925
          %958 = vst.msk [vmem:[%s279 + $0xa8] sm:$0xff] %vm525, %v926
          %959 = vst.msk [vmem:[%s279 + $0xb0] sm:$0xff] %vm525, %v927
          %960 = vst.msk [vmem:[%s279 + $0xb8] sm:$0xff] %vm525, %v928
          %961 = vst.msk [vmem:[%s279 + $0xc0] sm:$0xff] %vm525, %v929
          %962 = vst.msk [vmem:[%s279 + $0xc8] sm:$0xff] %vm525, %v930
          %963 = vst.msk [vmem:[%s279 + $0xd0] sm:$0xff] %vm525, %v931
          %964 = vst.msk [vmem:[%s279 + $0xd8] sm:$0xff] %vm525, %v932
          %965 = vst.msk [vmem:[%s279 + $0xe0] sm:$0xff] %vm525, %v933
          %966 = vst.msk [vmem:[%s279 + $0xe8] sm:$0xff] %vm525, %v934
          %967 = vst.msk [vmem:[%s279 + $0xf0] sm:$0xff] %vm525, %v935
          %968 = vst.msk [vmem:[%s279 + $0xf8] sm:$0xff] %vm525, %v936
        $region44: #{self_attention_forward.9} parent=35 // pred_fallthru
          _
        %s969 = sand.u32 %s157, 1
        %s970 = scalar_lea.sflag [#allocation4], %s969
        %s971 = sand.u32 %s157, 1
        %s972 = smul.addr %s971, 256
        %s973 = scalar_lea.vmem [#allocation3], %s972
        // Predicated region
        $region45: #{self_attention_forward.9} parent=35 // pred_check
          %p974 = pneg %p167
        $region46: #{self_attention_forward.9} parent=35 // pred_check_branch
          %976 = sbr.rel (%p974) target = $region48
        $region47: #{self_attention_forward.9} parent=35 // pred_region
          %s977 = smul.u32 32, %s23
          %s979 = ssub.s32 4096, 4096
          %980 = vsyncadd %s970, %s979
          %s981 = sadd.s32 %s24, %s977
          %s982 = smul.addr %s981, 128
          %s983 = scalar_lea.hbm %s4, %s982
          %s984 = sshll.u32 %s973, 4
          %s985 = int_to_ptr.vmem [resolvable:$true] %s984
          %990 = dma.vmem_to_hbm [thread:$0]  %s985, 4096, %s983, %s970, 128, 128, 8
        $region48: #{self_attention_forward.9} parent=35 // pred_fallthru
          _
      $region36: #{self_attention_forward.9} parent=5 // pred_fallthru
        _
      %p991 = scmp.le.s32.totalorder 2, %s13
      // Predicated region
      $region49: #{self_attention_forward.9} parent=5 // pred_check
        %p992 = pneg %p991
      $region50: #{self_attention_forward.9} parent=5 // pred_check_branch
        %994 = sbr.rel (%p992) target = $region52
      $region51: #{self_attention_forward.9} parent=5 // pred_region
        %s995 = ssub.s32 %s13, 2
        // Predicated region
        $region53: #{self_attention_forward.9} parent=51 // pred_check
          %p996 = pneg %p173
        $region54: #{self_attention_forward.9} parent=51 // pred_check_branch
          %998 = sbr.rel (%p996) target = $region56
        $region55: #{self_attention_forward.9} parent=51 // pred_region
          %s999 = sand.u32 %s158, 1
          %s1000 = scalar_lea.sflag [#allocation4], %s999
          %s1001 = sand.u32 %s158, 1
          %s1002 = smul.addr %s1001, 256
          %s1003 = scalar_lea.vmem [#allocation3], %s1002
          %1004 = dma.done %s1000, 4096
        $region56: #{self_attention_forward.9} parent=51 // pred_fallthru
          _
      $region52: #{self_attention_forward.9} parent=5 // pred_fallthru
        _
    $region6: #{self_attention_forward.9} parent=1 // loop_footer
      %s17 = sadd.s32 1, %s13
    $region7: #{self_attention_forward.9} parent=1 // loop_footer_branch
      %12 = sbr.rel target = $region3
    $region8: #{self_attention_forward.9} parent=1 // loop_exit
      _
    %1005 = vsyncpa [#allocation4], 1
    %s1006 = scalar_lea.sflag [#allocation4], 1
    %1007 = vsyncpa %s1006, 1

</llo_original>
